<compile_context>
chip_gen: v5e
topology: v5e:2x2
jax: 0.10.0
libtpu: 0.0.40
codegen_flags: <defaults>
</compile_context>

<pallas_src>
import functools
import math

import jax
import jax.numpy as jnp
from jax.experimental import pallas as pl
from jax.experimental.pallas import tpu as pltpu

CFG = [64, 64, 'M', 128, 128, 'M', 256, 256, 256, 256, 'M',
       512, 512, 512, 512, 'M', 512, 512, 512, 512, 'M']

# Scoped-VMEM budget.  Worst case here is ~13 MB (resident 9x512x512 bf16 conv weight,
# double buffered, + fp32 accumulator + strips/out blocks) — safe on v5e (128 MiB phys,
# 16 MiB default scope), v6e (128 MiB) and v7x (64 MiB phys, 32 MiB default scope).
VMEM_LIMIT = 32 * 1024 * 1024


def _round_up(x, m):
    return (x + m - 1) // m * m


def _largest_divisor(n, cap):
    cap = max(1, min(n, cap))
    for d in range(cap, 0, -1):
        if n % d == 0:
            return d
    return 1


# ---------------------------------------------------------------------------
# Pallas kernel 1: fused tiled matmul + bias + (optional) ReLU   (FC layers)
# ---------------------------------------------------------------------------
def _matmul_kernel(x_ref, w_ref, b_ref, o_ref, acc_ref, *, apply_relu):
    @pl.when(pl.program_id(2) == 0)
    def _init():
        acc_ref[...] = jnp.zeros_like(acc_ref)

    acc_ref[...] += jnp.dot(x_ref[...], w_ref[...],
                            preferred_element_type=jnp.float32)

    @pl.when(pl.program_id(2) == pl.num_programs(2) - 1)
    def _finalize():
        r = acc_ref[...] + b_ref[...]
        if apply_relu:
            r = jnp.maximum(r, 0.0)
        o_ref[...] = r.astype(o_ref.dtype)


def _fc_tiles(M, K, N):
    tm = min(256, _round_up(M, 8))
    tk = min(2048, _round_up(K, 128))
    tn = min(1024, _round_up(N, 128))
    return tm, tk, tn


def prep_linear(w, b):
    """One-time pre-pad + bf16 cast of a Linear layer (no per-forward weight padding)."""
    K, N = w.shape
    _, tk, tn = _fc_tiles(8, K, N)
    Kp, Np = _round_up(K, tk), _round_up(N, tn)
    wp = jnp.pad(w, ((0, Kp - K), (0, Np - N))).astype(jnp.bfloat16)
    bp = jnp.pad(b, (0, Np - N)).reshape(1, Np).astype(jnp.float32)
    return wp, bp, K, N


def pallas_linear(x, wp, bp, K, N, *, relu):
    """y = relu?(x @ W + b) with pre-padded bf16 weights wp (Kp,Np), f32 bias bp (1,Np)."""
    M = x.shape[0]
    assert x.shape[1] == K, (x.shape, K)
    Kp, Np = wp.shape
    tm, tk, tn = _fc_tiles(M, K, N)
    Mp = _round_up(M, tm)
    xp = jnp.pad(x, ((0, Mp - M), (0, Kp - K))).astype(jnp.bfloat16)
    grid = (Mp // tm, Np // tn, Kp // tk)

    out = pl.pallas_call(
        functools.partial(_matmul_kernel, apply_relu=relu),
        out_shape=jax.ShapeDtypeStruct((Mp, Np), jnp.float32),
        grid_spec=pltpu.PrefetchScalarGridSpec(
            num_scalar_prefetch=0,
            grid=grid,
            in_specs=[
                pl.BlockSpec((tm, tk), lambda i, j, k: (i, k)),
                pl.BlockSpec((tk, tn), lambda i, j, k: (k, j)),
                pl.BlockSpec((1, tn), lambda i, j, k: (0, j)),
            ],
            out_specs=pl.BlockSpec((tm, tn), lambda i, j, k: (i, j)),
            scratch_shapes=[pltpu.VMEM((tm, tn), jnp.float32)],
        ),
        compiler_params=pltpu.CompilerParams(
            dimension_semantics=("parallel", "parallel", "arbitrary"),
            vmem_limit_bytes=VMEM_LIMIT),
        cost_estimate=pl.CostEstimate(
            flops=2 * Mp * Np * Kp,
            transcendentals=0,
            bytes_accessed=Mp * Kp * 2 + Kp * Np * 2 + Np * 4 + Mp * Np * 4),
    )(xp, wp, bp)

    return out[:M, :N]


# ---------------------------------------------------------------------------
# Pallas kernel 2: 3x3 conv (pad=1, stride=1) with in-kernel tap accumulation
# ---------------------------------------------------------------------------
def _conv_kernel(x_ref, w_ref, b_ref, o_ref, *, th, W8, apply_relu):
    # x_ref: (th+2, W8+2, Cin) f32 row strip of the zero-padded input (halo = 1 row/col)
    # w_ref: (9, Cin, Cout) bf16, fully VMEM resident     b_ref: (1, Cout) f32
    # o_ref: (th*W8, Cout)
    cin = x_ref.shape[-1]
    cout = o_ref.shape[-1]
    acc = jnp.zeros((th * W8, cout), jnp.float32)
    for t in range(9):                       # in-kernel tap accumulation (no HBM im2col)
        dh, dw = t // 3, t % 3
        patch = x_ref[pl.ds(dh, th), pl.ds(dw, W8), :]            # (th, W8, Cin)
        patch = patch.reshape(th * W8, cin).astype(jnp.bfloat16)  # W8 % 8 == 0 -> tile aligned
        acc = acc + jnp.dot(patch, w_ref[t], preferred_element_type=jnp.float32)
    r = acc + b_ref[...]
    if apply_relu:
        r = jnp.maximum(r, 0.0)
    o_ref[...] = r.astype(o_ref.dtype)


def prep_conv(w, b):
    """(3,3,Cin,Cout) f32 -> (9,Cin,Cout) bf16 resident weight + (1,Cout) f32 bias."""
    cin, cout = w.shape[2], w.shape[3]
    return (w.reshape(9, cin, cout).astype(jnp.bfloat16),
            b.reshape(1, cout).astype(jnp.float32))


def conv3x3(x, w9, b2, *, relu):
    """3x3 conv, stride 1, padding 1 (cross-correlation, matches nn.Conv2d). x: NHWC f32."""
    B, H, W, Cin = x.shape
    Cout = w9.shape[-1]
    # Pad the width to a multiple of 8 with extra zero columns (cropped afterwards) so
    # the in-kernel (th, W8, Cin) -> (th*W8, Cin) reshape is tile aligned.
    W8 = _round_up(W, 8)
    th = _largest_divisor(H, max(1, 512 // W8))        # th*W8 <= 512 rows per matmul
    nH = H // th
    xp = jnp.pad(x, ((0, 0), (1, 1), (1, 1 + (W8 - W)), (0, 0)))
    # Overlapping row strips (1-row halo each side): ~(th+2)/th input amplification vs
    # the 9x of a materialized im2col.
    strips = jnp.stack([xp[:, i * th:i * th + th + 2] for i in range(nH)], axis=1)

    out = pl.pallas_call(
        functools.partial(_conv_kernel, th=th, W8=W8, apply_relu=relu),
        out_shape=jax.ShapeDtypeStruct((B * H * W8, Cout), x.dtype),
        grid_spec=pltpu.PrefetchScalarGridSpec(
            num_scalar_prefetch=0,
            grid=(B, nH),
            in_specs=[
                pl.BlockSpec((None, None, th + 2, W8 + 2, Cin),
                             lambda b, i: (b, i, 0, 0, 0)),
                pl.BlockSpec((9, Cin, Cout), lambda b, i: (0, 0, 0)),   # VMEM resident
                pl.BlockSpec((1, Cout), lambda b, i: (0, 0)),           # VMEM resident
            ],
            out_specs=pl.BlockSpec((th * W8, Cout), lambda b, i: (b * nH + i, 0)),
        ),
        compiler_params=pltpu.CompilerParams(
            dimension_semantics=("parallel", "parallel"),
            vmem_limit_bytes=VMEM_LIMIT),
        cost_estimate=pl.CostEstimate(
            flops=2 * B * H * W8 * 9 * Cin * Cout,
            transcendentals=0,
            bytes_accessed=(B * nH * (th + 2) * (W8 + 2) * Cin * 4
                            + 9 * Cin * Cout * 2 + Cout * 4
                            + B * H * W8 * Cout * 4)),
    )(strips, w9, b2)

    out = out.reshape(B, H, W8, Cout)
    return out[:, :, :W, :] if W8 != W else out


# ---------------------------------------------------------------------------
# Pallas kernel 3: fused 2x2 max pool (both axes reduced in one kernel)
# ---------------------------------------------------------------------------
def _pool_kernel(x_ref, o_ref, *, C):
    # x_ref: (th2, 2, Wh, 2*C)  ->  o_ref: (th2, Wh, C)
    x = x_ref[...]
    y = jnp.maximum(x[:, 0], x[:, 1])                    # reduce the H pair (major axis)
    o_ref[...] = jnp.maximum(y[:, :, :C], y[:, :, C:])   # reduce the W pair (lane halves)


def maxpool2x2(x):
    """2x2 max pool, stride 2, NHWC. Single fused Pallas kernel, no transposes."""
    B, H, W, C = x.shape
    R, Wh = B * (H // 2), W // 2
    xr = x.reshape(R, 2, Wh, 2 * C)       # free, row-major-compatible reshape
    row_bytes = 2 * Wh * 2 * C * x.dtype.itemsize
    th2 = _largest_divisor(R, max(1, (2 * 1024 * 1024) // row_bytes))
    out = pl.pallas_call(
        functools.partial(_pool_kernel, C=C),
        out_shape=jax.ShapeDtypeStruct((R, Wh, C), x.dtype),
        grid_spec=pltpu.PrefetchScalarGridSpec(
            num_scalar_prefetch=0,
            grid=(R // th2,),
            in_specs=[pl.BlockSpec((th2, 2, Wh, 2 * C), lambda i: (i, 0, 0, 0))],
            out_specs=pl.BlockSpec((th2, Wh, C), lambda i: (i, 0, 0)),
        ),
        compiler_params=pltpu.CompilerParams(
            dimension_semantics=("parallel",),
            vmem_limit_bytes=VMEM_LIMIT),
    )(xr)
    return out.reshape(B, H // 2, Wh, C)


# ---------------------------------------------------------------------------
# Parameter init (deterministic, synthetic) + one-time prep
# ---------------------------------------------------------------------------
def init_params(key, num_classes=1000):
    params = {"convs": [], "fcs": []}
    keys = iter(jax.random.split(key, 64))
    in_c = 3
    for v in CFG:
        if v == 'M':
            continue
        kw, kb = next(keys), next(keys)
        w = jax.random.normal(kw, (3, 3, in_c, v), jnp.float32) * (1.0 / math.sqrt(9 * in_c))
        bb = jax.random.normal(kb, (v,), jnp.float32) * 0.01
        params["convs"].append((w, bb))
        in_c = v
    for fi, fo in [(512 * 7 * 7, 4096), (4096, 4096), (4096, num_classes)]:
        kw, kb = next(keys), next(keys)
        w = jax.random.normal(kw, (fi, fo), jnp.float32) * (1.0 / math.sqrt(fi))
        bb = jax.random.normal(kb, (fo,), jnp.float32) * 0.01
        params["fcs"].append((w, bb))
    return params


def prepare_params(params):
    """One-time prep: reshape / pad / cast weights so the forward pads no weights."""
    return {
        "convs": [prep_conv(w, b) for (w, b) in params["convs"]],
        "fcs": [prep_linear(w, b) for (w, b) in params["fcs"]],
    }


# ---------------------------------------------------------------------------
# VGG19 forward
# ---------------------------------------------------------------------------
def _forward_features(params, x_nchw):
    # features modules [1:27]: conv1_1 .. conv4_4; ReLU after every conv except the
    # final conv4_4; 2x2 max pools after blocks 1, 2, 3 only.
    x = jnp.transpose(x_nchw, (0, 2, 3, 1)).astype(jnp.float32)   # NCHW -> NHWC
    blocks = [(2, True), (2, True), (4, True), (4, False)]        # (num_convs, pool_after)
    conv_i = 0
    for bi, (nconv, pool_after) in enumerate(blocks):
        for ci in range(nconv):
            w9, b2 = params["convs"][conv_i]
            conv_i += 1
            is_last = (bi == len(blocks) - 1 and ci == nconv - 1)
            x = conv3x3(x, w9, b2, relu=not is_last)
        if pool_after:
            x = maxpool2x2(x)
    return jnp.transpose(x, (0, 3, 1, 2))                          # NHWC -> NCHW


def _forward_classifier(params, x):
    B = x.shape[0]
    h = x.reshape(B, -1)            # matches torch x.view(B, -1) on an NCHW tensor
    (w1, b1, k1, n1), (w2, b2, k2, n2), (w3, b3, k3, n3) = params["fcs"]
    h = pallas_linear(h, w1, b1, k1, n1, relu=True)
    # TODO(synk): Dropout -> identity (eval semantics)
    h = pallas_linear(h, w2, b2, k2, n2, relu=True)
    # TODO(synk): Dropout -> identity (eval semantics)
    h = pallas_linear(h, w3, b3, k3, n3, relu=False)
    return h


def vgg19_forward(params, x, feature_mode=False):
    if feature_mode:
        return _forward_features(params, x)
    return _forward_classifier(params, x)


# ---------------------------------------------------------------------------
if __name__ == "__main__":
    key = jax.random.PRNGKey(0)
    pkey, xk1, xk2 = jax.random.split(key, 3)

    num_classes = 1000
    raw_params = init_params(pkey, num_classes=num_classes)
    params = prepare_params(raw_params)

    # Default path (feature_mode=False): classifier on flattened (B, 512, 7, 7)
    x_cls = jax.random.normal(xk1, (2, 512, 7, 7), jnp.float32)
    logits = vgg19_forward(params, x_cls, feature_mode=False)
    logits = jax.block_until_ready(logits)
    assert logits.shape == (2, num_classes), logits.shape

    # Feature path (feature_mode=True): NCHW image-like input with 3 channels
    x_img = jax.random.normal(xk2, (2, 3, 16, 16), jnp.float32)
    feats = vgg19_forward(params, x_img, feature_mode=True)
    feats = jax.block_until_ready(feats)
    assert feats.shape == (2, 512, 2, 2), feats.shape

    print("KERNEL_OK")
</pallas_src>

<mosaic_0001>
module attributes {stable_mosaic.version = 11 : i64} {
  func.func @_matmul_kernel(%arg0: i32, %arg1: i32, %arg2: i32, %arg3: memref<8x2048xbf16, #tpu.memory_space<vmem>>, %arg4: memref<2048x1024xbf16, #tpu.memory_space<vmem>>, %arg5: memref<1x1024xf32, #tpu.memory_space<vmem>>, %arg6: memref<8x1024xf32, #tpu.memory_space<vmem>>, %arg7: memref<8x1024xf32, #tpu.memory_space<vmem>>) attributes {dimension_semantics = [#tpu.dimension_semantics<parallel>, #tpu.dimension_semantics<parallel>, #tpu.dimension_semantics<arbitrary>], iteration_bounds = array<i64: 1, 4, 13>, scalar_prefetch = 0 : i64, scratch_operands = 1 : i64, tpu.core_type = #tpu.core_type<tc>, window_params = [{transform_indices = @transform_0, window_bounds = array<i64: 8, 2048>}, {transform_indices = @transform_1, window_bounds = array<i64: 2048, 1024>}, {transform_indices = @transform_2, window_bounds = array<i64: 1, 1024>}, {transform_indices = @transform_3, window_bounds = array<i64: 8, 1024>}]} {
    %c0_i32 = arith.constant 0 : i32
    %0 = arith.cmpi eq, %arg2, %c0_i32 : i32
    %1 = arith.extui %0 : i1 to i32
    %c0_i32_0 = arith.constant 0 : i32
    %2 = arith.cmpi ne, %1, %c0_i32_0 : i32
    scf.if %2 {
      %cst_9 = arith.constant 0.000000e+00 : f32
      %12 = vector.broadcast %cst_9 : f32 to vector<8x1024xf32>
      %c0_10 = arith.constant 0 : index
      %c0_11 = arith.constant 0 : index
      %13 = vector.load %arg7[%c0_10, %c0_11] : memref<8x1024xf32, #tpu.memory_space<vmem>>, vector<8x1024xf32>
      tpu.vector_store %arg7[%c0_10, %c0_11], %12 {strides = array<i32>} : memref<8x1024xf32, #tpu.memory_space<vmem>>, vector<8x1024xf32>,
    } else {
    }
    %c0 = arith.constant 0 : index
    %c0_1 = arith.constant 0 : index
    %3 = vector.load %arg7[%c0, %c0_1] : memref<8x1024xf32, #tpu.memory_space<vmem>>, vector<8x1024xf32>
    %c0_2 = arith.constant 0 : index
    %c0_3 = arith.constant 0 : index
    %4 = vector.load %arg3[%c0_2, %c0_3] : memref<8x2048xbf16, #tpu.memory_space<vmem>>, vector<8x2048xbf16>
    %c0_4 = arith.constant 0 : index
    %c0_5 = arith.constant 0 : index
    %5 = vector.load %arg4[%c0_4, %c0_5] : memref<2048x1024xbf16, #tpu.memory_space<vmem>>, vector<2048x1024xbf16>
    %cst = arith.constant dense<0.000000e+00> : vector<8x1024xf32>
    %6 = tpu.matmul %4, %5, %cst {dimension_numbers = #tpu.dot_dimension_numbers<[1], [0], [0], [1], [0, 0, 1, 1], [], []>} : vector<8x2048xbf16>, vector<2048x1024xbf16>, vector<8x1024xf32> -> vector<8x1024xf32>
    %7 = arith.addf %3, %6 : vector<8x1024xf32>
    %c0_6 = arith.constant 0 : index
    %c0_7 = arith.constant 0 : index
    %8 = vector.load %arg7[%c0_6, %c0_7] : memref<8x1024xf32, #tpu.memory_space<vmem>>, vector<8x1024xf32>
    tpu.vector_store %arg7[%c0_6, %c0_7], %7 {strides = array<i32>} : memref<8x1024xf32, #tpu.memory_space<vmem>>, vector<8x1024xf32>,
    %c12_i32 = arith.constant 12 : i32
    %9 = arith.cmpi eq, %arg2, %c12_i32 : i32
    %10 = arith.extui %9 : i1 to i32
    %c0_i32_8 = arith.constant 0 : i32
    %11 = arith.cmpi ne, %10, %c0_i32_8 : i32
    scf.if %11 {
      %c0_9 = arith.constant 0 : index
      %c0_10 = arith.constant 0 : index
      %12 = vector.load %arg7[%c0_9, %c0_10] : memref<8x1024xf32, #tpu.memory_space<vmem>>, vector<8x1024xf32>
      %c0_11 = arith.constant 0 : index
      %c0_12 = arith.constant 0 : index
      %13 = vector.load %arg5[%c0_11, %c0_12] : memref<1x1024xf32, #tpu.memory_space<vmem>>, vector<1x1024xf32>
      %14 = vector.broadcast %13 : vector<1x1024xf32> to vector<8x1024xf32>
      %15 = arith.addf %12, %14 : vector<8x1024xf32>
      %cst_13 = arith.constant 0.000000e+00 : f32
      %16 = vector.broadcast %cst_13 : f32 to vector<8x1024xf32>
      %17 = arith.maximumf %15, %16 : vector<8x1024xf32>
      %c0_14 = arith.constant 0 : index
      %c0_15 = arith.constant 0 : index
      %18 = vector.load %arg6[%c0_14, %c0_15] : memref<8x1024xf32, #tpu.memory_space<vmem>>, vector<8x1024xf32>
      tpu.vector_store %arg6[%c0_14, %c0_15], %17 {strides = array<i32>} : memref<8x1024xf32, #tpu.memory_space<vmem>>, vector<8x1024xf32>,
    } else {
    }
    return
  }
  func.func @transform_0(%arg0: i32, %arg1: i32, %arg2: i32) -> (i32, i32) {
    %c0_i32 = arith.constant 0 : i32
    return %arg0, %arg2 : i32, i32
  }
  func.func @transform_1(%arg0: i32, %arg1: i32, %arg2: i32) -> (i32, i32) {
    %c0_i32 = arith.constant 0 : i32
    return %arg2, %arg1 : i32, i32
  }
  func.func @transform_2(%arg0: i32, %arg1: i32, %arg2: i32) -> (i32, i32) {
    %c0_i32 = arith.constant 0 : i32
    %c0_i32_0 = arith.constant 0 : i32
    return %c0_i32, %arg1 : i32, i32
  }
  func.func @transform_3(%arg0: i32, %arg1: i32, %arg2: i32) -> (i32, i32) {
    %c0_i32 = arith.constant 0 : i32
    return %arg0, %arg1 : i32, i32
  }
}

</mosaic_0001>

<llo_original>
// kernel: tpu_custom_call.1
$region0: #{tpu_custom_call.1}
  #allocation0 [shape = 'u32[]', space=smem, size = 0x4, offset = 0x4, fixed_abs, tag = 'smem constant byte address 0x4 - core index']
  #allocation1 [shape = 'u32[72,128]{1,0:T(1,128)}', space=vmem, size = 0x9000, scoped, tag = 'internal scratch']
  #allocation2 [shape = 'f32[8,1024]{1,0:T(8,128)}', space=vmem, size = 0x8000, scoped, tag = 'scratch operand']
  %s0 = inlined_call_operand.hbm [shape: bf16[8,26624], index: 0, kind: input, shape index: {}]
  %s1 = inlined_call_operand.hbm [shape: bf16[26624,4096], index: 1, kind: input, shape index: {}]
  %s2 = inlined_call_operand.hbm [shape: f32[1,4096], index: 2, kind: input, shape index: {}]
  %s3 = inlined_call_operand.hbm [shape: f32[8,4096], index: 3, kind: output, shape index: {}]
  %s4 = sld [smem:[#allocation0]]
  $region65: #{tpu_custom_call.1} parent=0
    _
  %s6 = ssub.s32 1, %s4
  %s7 = scalar_select 0, %s6, %s4
  $region1: #{tpu_custom_call.1} parent=0
    #allocation3 [shape = 'u8[65536]{0}', space=vmem, size = 0x10000, scoped, tag = 'input window, operand 0']
    #allocation4 [shape = 's32[2]{0}', space=sflag, size = 0x8, scoped, tag = 'scoped memory for tpu_custom_call.1']
    #allocation5 [shape = 's32[2]{0}', space=sflag, size = 0x8, scoped, tag = 'scoped memory for tpu_custom_call.1']
    #allocation6 [shape = 'u8[8388608]{0}', space=vmem, size = 0x800000, scoped, tag = 'input window, operand 1']
    #allocation7 [shape = 's32[2]{0}', space=sflag, size = 0x8, scoped, tag = 'scoped memory for tpu_custom_call.1']
    #allocation8 [shape = 'u8[8192]{0}', space=vmem, size = 0x2000, scoped, tag = 'input window, operand 2']
    #allocation9 [shape = 'u8[65536]{0}', space=vmem, size = 0x10000, scoped, tag = 'output window, operand 0']
    %8 = vsyncpa [#allocation4], 0
    %s9 = scalar_lea.sflag [#allocation4], 1
    %10 = vsyncpa %s9, 0
    %11 = vsyncpa [#allocation7], 0
    %s12 = scalar_lea.sflag [#allocation7], 1
    %13 = vsyncpa %s12, 0
    %14 = vsyncpa [#allocation5], 0
    %s15 = scalar_lea.sflag [#allocation5], 1
    %16 = vsyncpa %s15, 0
    loop: start=0, step=1, limit=54
    $region2: #{tpu_custom_call.1} parent=1 // loop_pre_header
      _
    $region3: #{tpu_custom_call.1} parent=1 // loop_header
      %s18 = sphi 0, %s22
      %p19 = scmp.ge.s32.totalorder %s18, 54
      %s25 = sphi 0, %s44
      %s26 = sphi 0, %s40
      %s27 = sphi 0, %s36
      %s28 = sphi 0, %s25
      %s29 = sphi 0, %s26
      %s30 = sphi 0, %s27
      %s31 = sphi 0, %s28
      %s32 = sphi 0, %s29
      %s33 = sphi 0, %s30
      %s49 = sphi 0, %s51
      %s52 = sphi 0, %s49
      %s53 = sphi 0, %s52
      %s69 = sphi 0, %s53
      %s77 = sphi 0, %s79
      %s80 = sphi 0, %s77
      %s81 = sphi 0, %s80
      %s97 = sphi 0, %s81
      %s103 = sphi 0, %s105
      %s106 = sphi 0, %s103
      %s107 = sphi 0, %s106
      %s123 = sphi 0, %s107
      %s131 = sphi 0, %s133
      %s134 = sphi 0, %s131
      %s135 = sphi 0, %s134
      %s151 = sphi 0, %s135
    $region4: #{tpu_custom_call.1} parent=1 // loop_header_branch
      %21 = sbr.rel (%p19) target = $region8
    $region5: #{tpu_custom_call.1} parent=1 // loop_body
      %s23 = ssub.s32 %s18, 1
      %s24 = ssub.s32 %s18, 2
      %s34 = sadd.s32 1, %s27
      %p35 = scmp.ge.s32.totalorder %s34, 13
      %s36 = scalar_select %p35, 0, %s34
      %s37 = sadd.s32 1, %s26
      %s38 = scalar_select %p35, %s37, %s26
      %p39 = scmp.ge.s32.totalorder %s38, 4
      %s40 = scalar_select %p39, 0, %s38
      %s41 = sadd.s32 1, %s25
      %s42 = scalar_select %p39, %s41, %s25
      %p43 = scmp.ge.s32.totalorder %s42, 1
      %s44 = scalar_select %p43, 0, %s42
      %s45 = ssub.s32 %s25, %s44
      %s46 = ssub.s32 %s27, %s36
      %s47 = sor.u32 %s45, %s46
      %p48 = scmp.eq.s32.totalorder %s47, 0
      %s50 = sadd.s32 %s49, 1
      %s51 = scalar_select %p48, %s49, %s50
      %p54 = pneg %p48
      %p55 = scmp.eq.s32.totalorder %s18, 51
      %p56 = por %p54, %p55
      %p57 = scmp.ne.s32.totalorder %s49, %s52
      %p58 = scmp.eq.s32.totalorder %s18, 0
      %p59 = por %p57, %p58
      %p60 = scmp.ne.s32.totalorder %s49, %s52
      %p61 = scmp.eq.s32.totalorder %s23, 51
      %p62 = por %p60, %p61
      %p63 = scmp.ne.s32.totalorder %s52, %s53
      %p64 = scmp.eq.s32.totalorder %s23, 0
      %p65 = por %p63, %p64
      %p66 = scmp.ne.s32.totalorder %s52, %s53
      %p67 = scmp.eq.s32.totalorder %s24, 51
      %p68 = por %p66, %p67
      %p70 = scmp.ne.s32.totalorder %s53, %s69
      %p71 = scmp.eq.s32.totalorder %s24, 0
      %p72 = por %p70, %p71
      %s73 = ssub.s32 %s27, %s36
      %s74 = ssub.s32 %s26, %s40
      %s75 = sor.u32 %s73, %s74
      %p76 = scmp.eq.s32.totalorder %s75, 0
      %s78 = sadd.s32 %s77, 1
      %s79 = scalar_select %p76, %s77, %s78
      %p82 = pneg %p76
      %p83 = scmp.eq.s32.totalorder %s18, 51
      %p84 = por %p82, %p83
      %p85 = scmp.ne.s32.totalorder %s77, %s80
      %p86 = scmp.eq.s32.totalorder %s18, 0
      %p87 = por %p85, %p86
      %p88 = scmp.ne.s32.totalorder %s77, %s80
      %p89 = scmp.eq.s32.totalorder %s23, 51
      %p90 = por %p88, %p89
      %p91 = scmp.ne.s32.totalorder %s80, %s81
      %p92 = scmp.eq.s32.totalorder %s23, 0
      %p93 = por %p91, %p92
      %p94 = scmp.ne.s32.totalorder %s80, %s81
      %p95 = scmp.eq.s32.totalorder %s24, 51
      %p96 = por %p94, %p95
      %p98 = scmp.ne.s32.totalorder %s81, %s97
      %p99 = scmp.eq.s32.totalorder %s24, 0
      %p100 = por %p98, %p99
      %s101 = ssub.s32 %s26, %s40
      %p102 = scmp.eq.s32.totalorder %s101, 0
      %s104 = sadd.s32 %s103, 1
      %s105 = scalar_select %p102, %s103, %s104
      %p108 = pneg %p102
      %p109 = scmp.eq.s32.totalorder %s18, 51
      %p110 = por %p108, %p109
      %p111 = scmp.ne.s32.totalorder %s103, %s106
      %p112 = scmp.eq.s32.totalorder %s18, 0
      %p113 = por %p111, %p112
      %p114 = scmp.ne.s32.totalorder %s103, %s106
      %p115 = scmp.eq.s32.totalorder %s23, 51
      %p116 = por %p114, %p115
      %p117 = scmp.ne.s32.totalorder %s106, %s107
      %p118 = scmp.eq.s32.totalorder %s23, 0
      %p119 = por %p117, %p118
      %p120 = scmp.ne.s32.totalorder %s106, %s107
      %p121 = scmp.eq.s32.totalorder %s24, 51
      %p122 = por %p120, %p121
      %p124 = scmp.ne.s32.totalorder %s107, %s123
      %p125 = scmp.eq.s32.totalorder %s24, 0
      %p126 = por %p124, %p125
      %s127 = ssub.s32 %s25, %s44
      %s128 = ssub.s32 %s26, %s40
      %s129 = sor.u32 %s127, %s128
      %p130 = scmp.eq.s32.totalorder %s129, 0
      %s132 = sadd.s32 %s131, 1
      %s133 = scalar_select %p130, %s131, %s132
      %p136 = pneg %p130
      %p137 = scmp.eq.s32.totalorder %s18, 51
      %p138 = por %p136, %p137
      %p139 = scmp.ne.s32.totalorder %s131, %s134
      %p140 = scmp.eq.s32.totalorder %s18, 0
      %p141 = por %p139, %p140
      %p142 = scmp.ne.s32.totalorder %s131, %s134
      %p143 = scmp.eq.s32.totalorder %s23, 51
      %p144 = por %p142, %p143
      %p145 = scmp.ne.s32.totalorder %s134, %s135
      %p146 = scmp.eq.s32.totalorder %s23, 0
      %p147 = por %p145, %p146
      %p148 = scmp.ne.s32.totalorder %s134, %s135
      %p149 = scmp.eq.s32.totalorder %s24, 51
      %p150 = por %p148, %p149
      %p152 = scmp.ne.s32.totalorder %s135, %s151
      %p153 = scmp.eq.s32.totalorder %s24, 0
      %p154 = por %p152, %p153
      %p155 = scmp.le.s32.totalorder 1, %s18
      %p156 = scmp.lt.s32.totalorder %s18, 53
      %p157 = pnand %p155, %p156
      %p158 = pneg %p157
      // Predicated region
      $region9: #{tpu_custom_call.1} parent=5 // pred_check
        _
      $region10: #{tpu_custom_call.1} parent=5 // pred_check_branch
        %160 = sbr.rel (%p157) target = $region12
      $region11: #{tpu_custom_call.1} parent=5 // pred_region
        %s161 = ssub.s32 %s18, 1
      $region12: #{tpu_custom_call.1} parent=5 // pred_fallthru
        _
      %p162 = scmp.lt.s32.totalorder %s18, 52
      // Predicated region
      $region13: #{tpu_custom_call.1} parent=5 // pred_check
        %p163 = pneg %p162
      $region14: #{tpu_custom_call.1} parent=5 // pred_check_branch
        %165 = sbr.rel (%p163) target = $region16
      $region15: #{tpu_custom_call.1} parent=5 // pred_region
        // Predicated region
        $region17: #{tpu_custom_call.1} parent=15 // pred_check
          %p166 = pneg %p59
        $region18: #{tpu_custom_call.1} parent=15 // pred_check_branch
          %168 = sbr.rel (%p166) target = $region20
        $region19: #{tpu_custom_call.1} parent=15 // pred_region
          %s169 = sand.u32 %s49, 1
          %s170 = scalar_lea.sflag [#allocation4], %s169
          %s171 = sand.u32 %s49, 1
          %s172 = smul.addr %s171, 64
          %s173 = scalar_lea.vmem [#allocation3], %s172
          %s174 = smul.u32 16, %s27
          %176 = vsyncadd %s170, 0
          %s177 = smul.addr %s25, 208
          %s178 = sadd.s32 %s174, %s177
          %s179 = smul.addr %s178, 4
          %s180 = scalar_lea.hbm %s0, %s179
          %s182 = sshll.u32 %s180, 4
          %s183 = int_to_ptr.hbm [resolvable:$true] %s182
          %s184 = sshll.u32 %s173, 4
          %s185 = int_to_ptr.vmem [resolvable:$true] %s184
          %187 = dma.hbm_to_vmem [thread:$0]  %s183, 1024, %s185, %s170
        $region20: #{tpu_custom_call.1} parent=15 // pred_fallthru
          _
        // Predicated region
        $region21: #{tpu_custom_call.1} parent=15 // pred_check
          %p188 = pneg %p87
        $region22: #{tpu_custom_call.1} parent=15 // pred_check_branch
          %190 = sbr.rel (%p188) target = $region24
        $region23: #{tpu_custom_call.1} parent=15 // pred_region
          %s191 = sand.u32 %s18, 1
          %s192 = scalar_lea.sflag [#allocation7], %s191
          %s193 = sand.u32 %s77, 1
          %s194 = smul.addr %s193, 8192
          %s195 = scalar_lea.vmem [#allocation6], %s194
          %s196 = smul.u32 256, %s27
          %s197 = smul.u32 8, %s26
          %199 = vsyncadd %s192, 0
          %s200 = smul.addr %s196, 32
          %s201 = sadd.s32 %s197, %s200
          %s202 = smul.addr %s201, 4
          %s203 = scalar_lea.hbm %s1, %s202
          %s204 = sshll.u32 %s203, 4
          %s205 = int_to_ptr.hbm [resolvable:$true] %s204
          %s206 = sshll.u32 %s195, 4
          %s207 = int_to_ptr.vmem [resolvable:$true] %s206
          %212 = dma.hbm_to_vmem [thread:$0]  %s205, 131072, %s207, %s192, 2048, 512, 32
        $region24: #{tpu_custom_call.1} parent=15 // pred_fallthru
          _
        // Predicated region
        $region25: #{tpu_custom_call.1} parent=15 // pred_check
          %p213 = pneg %p113
        $region26: #{tpu_custom_call.1} parent=15 // pred_check_branch
          %215 = sbr.rel (%p213) target = $region28
        $region27: #{tpu_custom_call.1} parent=15 // pred_region
          %s216 = sand.u32 %s18, 1
          %s217 = scalar_lea.sflag [#allocation7], %s216
          %s218 = sand.u32 %s103, 1
          %s219 = smul.addr %s218, 8
          %s220 = scalar_lea.vmem [#allocation8], %s219
          %s221 = smul.u32 8, %s26
          %223 = vsyncadd %s217, 0
          %s224 = scalar_lea.hbm %s2, %s221
          %s226 = sshll.u32 %s224, 4
          %s227 = int_to_ptr.hbm [resolvable:$true] %s226
          %s228 = sshll.u32 %s220, 4
          %s229 = int_to_ptr.vmem [resolvable:$true] %s228
          %231 = dma.hbm_to_vmem [thread:$0]  %s227, 128, %s229, %s217
        $region28: #{tpu_custom_call.1} parent=15 // pred_fallthru
          _
      $region16: #{tpu_custom_call.1} parent=5 // pred_fallthru
        _
      %p232 = scmp.le.s32.totalorder 1, %s18
      %p233 = scmp.lt.s32.totalorder %s18, 53
      %p234 = pnand %p232, %p233
      %p235 = pneg %p234
      // Predicated region
      $region29: #{tpu_custom_call.1} parent=5 // pred_check
        _
      $region30: #{tpu_custom_call.1} parent=5 // pred_check_branch
        %237 = sbr.rel (%p234) target = $region32
      $region31: #{tpu_custom_call.1} parent=5 // pred_region
        %s238 = ssub.s32 %s18, 1
        %s239 = sand.u32 %s52, 1
        %s240 = scalar_lea.sflag [#allocation4], %s239
        %s241 = sand.u32 %s52, 1
        %s242 = smul.addr %s241, 64
        %s243 = scalar_lea.vmem [#allocation3], %s242
        // Predicated region
        $region33: #{tpu_custom_call.1} parent=31 // pred_check
          %p244 = pneg %p65
        $region34: #{tpu_custom_call.1} parent=31 // pred_check_branch
          %246 = sbr.rel (%p244) target = $region36
        $region35: #{tpu_custom_call.1} parent=31 // pred_region
          %248 = dma.done %s240, 1024
        $region36: #{tpu_custom_call.1} parent=31 // pred_fallthru
          _
        %s249 = sand.u32 %s23, 1
        %s250 = scalar_lea.sflag [#allocation7], %s249
        %s251 = sand.u32 %s80, 1
        %s252 = smul.addr %s251, 8192
        %s253 = scalar_lea.vmem [#allocation6], %s252
        // Predicated region
        $region37: #{tpu_custom_call.1} parent=31 // pred_check
          %p254 = pneg %p93
        $region38: #{tpu_custom_call.1} parent=31 // pred_check_branch
          %256 = sbr.rel (%p254) target = $region40
        $region39: #{tpu_custom_call.1} parent=31 // pred_region
          %258 = dma.done %s250, 131072
        $region40: #{tpu_custom_call.1} parent=31 // pred_fallthru
          _
        %s259 = sand.u32 %s23, 1
        %s260 = scalar_lea.sflag [#allocation7], %s259
        %s261 = sand.u32 %s106, 1
        %s262 = smul.addr %s261, 8
        %s263 = scalar_lea.vmem [#allocation8], %s262
        // Predicated region
        $region41: #{tpu_custom_call.1} parent=31 // pred_check
          %p264 = pneg %p119
        $region42: #{tpu_custom_call.1} parent=31 // pred_check_branch
          %266 = sbr.rel (%p264) target = $region44
        $region43: #{tpu_custom_call.1} parent=31 // pred_region
          %268 = dma.done %s260, 128
        $region44: #{tpu_custom_call.1} parent=31 // pred_fallthru
          _
        %s269 = sand.u32 %s52, 1
        %s270 = scalar_lea.sflag [#allocation4], %s269
        %s271 = sand.u32 %s52, 1
        %s272 = smul.addr %s271, 64
        %s273 = scalar_lea.vmem [#allocation3], %s272
        %p274 = pneg %p65
        %p275 = pneg %p62
        %s276 = sand.u32 %s23, 1
        %s277 = scalar_lea.sflag [#allocation7], %s276
        %s278 = sand.u32 %s80, 1
        %s279 = smul.addr %s278, 8192
        %s280 = scalar_lea.vmem [#allocation6], %s279
        %p281 = pneg %p93
        %p282 = pneg %p90
        %s283 = sand.u32 %s23, 1
        %s284 = scalar_lea.sflag [#allocation7], %s283
        %s285 = sand.u32 %s106, 1
        %s286 = smul.addr %s285, 8
        %s287 = scalar_lea.vmem [#allocation8], %s286
        %p288 = pneg %p119
        %p289 = pneg %p116
        %p290 = pneg %p147
        %p291 = pneg %p144
        %s292 = sand.u32 %s134, 1
        %s293 = scalar_lea.sflag [#allocation5], %s292
        %s294 = sand.u32 %s134, 1
        %s295 = smul.addr %s294, 64
        %s296 = scalar_lea.vmem [#allocation9], %s295
        %s297 = smul.u32 16, %s30
        %s298 = smul.u32 256, %s30
        %s299 = smul.u32 8, %s29
        %s300 = smul.u32 8, %s29
        %s301 = smul.u32 8, %s29
        %p302 = scmp.eq.s32.totalorder %s30, 0
        // Predicated region
        $region45: #{tpu_custom_call.1} parent=31 // pred_check
          %p303 = pneg %p302
        $region46: #{tpu_custom_call.1} parent=31 // pred_check_branch
          %305 = sbr.rel (%p303) target = $region48
        $region47: #{tpu_custom_call.1} parent=31 // pred_region
          %306 = vst [vmem:[#allocation2] sm:$0xff] 0.0
          %307 = vst [vmem:[#allocation2 + $0x8] sm:$0xff] 0.0
          %308 = vst [vmem:[#allocation2 + $0x10] sm:$0xff] 0.0
          %309 = vst [vmem:[#allocation2 + $0x18] sm:$0xff] 0.0
          %310 = vst [vmem:[#allocation2 + $0x20] sm:$0xff] 0.0
          %311 = vst [vmem:[#allocation2 + $0x28] sm:$0xff] 0.0
          %312 = vst [vmem:[#allocation2 + $0x30] sm:$0xff] 0.0
          %313 = vst [vmem:[#allocation2 + $0x38] sm:$0xff] 0.0
        $region48: #{tpu_custom_call.1} parent=31 // pred_fallthru
          _
        %v314 = vld [vmem:[#allocation2] sm:$0xff]
        %v315 = vld [vmem:[#allocation2 + $0x8] sm:$0xff]
        %v316 = vld [vmem:[#allocation2 + $0x10] sm:$0xff]
        %v317 = vld [vmem:[#allocation2 + $0x18] sm:$0xff]
        %v318 = vld [vmem:[#allocation2 + $0x20] sm:$0xff]
        %v319 = vld [vmem:[#allocation2 + $0x28] sm:$0xff]
        %v320 = vld [vmem:[#allocation2 + $0x30] sm:$0xff]
        %v321 = vld [vmem:[#allocation2 + $0x38] sm:$0xff]
        %v322 = vld [vmem:[%s243] sm:$0xff]
        %v323 = vld [vmem:[%s243 + $0x8] sm:$0xff]
        %v324 = vld [vmem:[%s243 + $0x10] sm:$0xff]
        %v325 = vld [vmem:[%s243 + $0x18] sm:$0xff]
        %v326 = vld [vmem:[%s243 + $0x20] sm:$0xff]
        %v327 = vld [vmem:[%s243 + $0x28] sm:$0xff]
        %v328 = vld [vmem:[%s243 + $0x30] sm:$0xff]
        %v329 = vld [vmem:[%s243 + $0x38] sm:$0xff]
        %v330 = vld [vmem:[%s253] sm:$0xff]
        %v331 = vld [vmem:[%s253 + $0x8] sm:$0xff]
        %v332 = vld [vmem:[%s253 + $0x10] sm:$0xff]
        %v333 = vld [vmem:[%s253 + $0x18] sm:$0xff]
        %v334 = vld [vmem:[%s253 + $0x20] sm:$0xff]
        %v335 = vld [vmem:[%s253 + $0x28] sm:$0xff]
        %v336 = vld [vmem:[%s253 + $0x30] sm:$0xff]
        %v337 = vld [vmem:[%s253 + $0x38] sm:$0xff]
        %v338 = vld [vmem:[%s253 + $0x40] sm:$0xff]
        %v339 = vld [vmem:[%s253 + $0x48] sm:$0xff]
        %v340 = vld [vmem:[%s253 + $0x50] sm:$0xff]
        %v341 = vld [vmem:[%s253 + $0x58] sm:$0xff]
        %v342 = vld [vmem:[%s253 + $0x60] sm:$0xff]
        %v343 = vld [vmem:[%s253 + $0x68] sm:$0xff]
        %v344 = vld [vmem:[%s253 + $0x70] sm:$0xff]
        %v345 = vld [vmem:[%s253 + $0x78] sm:$0xff]
        %v346 = vld [vmem:[%s253 + $0x80] sm:$0xff]
        %v347 = vld [vmem:[%s253 + $0x88] sm:$0xff]
        %v348 = vld [vmem:[%s253 + $0x90] sm:$0xff]
        %v349 = vld [vmem:[%s253 + $0x98] sm:$0xff]
        %v350 = vld [vmem:[%s253 + $0xa0] sm:$0xff]
        %v351 = vld [vmem:[%s253 + $0xa8] sm:$0xff]
        %v352 = vld [vmem:[%s253 + $0xb0] sm:$0xff]
        %v353 = vld [vmem:[%s253 + $0xb8] sm:$0xff]
        %v354 = vld [vmem:[%s253 + $0xc0] sm:$0xff]
        %v355 = vld [vmem:[%s253 + $0xc8] sm:$0xff]
        %v356 = vld [vmem:[%s253 + $0xd0] sm:$0xff]
        %v357 = vld [vmem:[%s253 + $0xd8] sm:$0xff]
        %v358 = vld [vmem:[%s253 + $0xe0] sm:$0xff]
        %v359 = vld [vmem:[%s253 + $0xe8] sm:$0xff]
        %v360 = vld [vmem:[%s253 + $0xf0] sm:$0xff]
        %v361 = vld [vmem:[%s253 + $0xf8] sm:$0xff]
        %v362 = vld [vmem:[%s253 + $0x100] sm:$0xff]
        %v363 = vld [vmem:[%s253 + $0x108] sm:$0xff]
        %v364 = vld [vmem:[%s253 + $0x110] sm:$0xff]
        %v365 = vld [vmem:[%s253 + $0x118] sm:$0xff]
        %v366 = vld [vmem:[%s253 + $0x120] sm:$0xff]
        %v367 = vld [vmem:[%s253 + $0x128] sm:$0xff]
        %v368 = vld [vmem:[%s253 + $0x130] sm:$0xff]
        %v369 = vld [vmem:[%s253 + $0x138] sm:$0xff]
        %v370 = vld [vmem:[%s253 + $0x140] sm:$0xff]
        %v371 = vld [vmem:[%s253 + $0x148] sm:$0xff]
        %v372 = vld [vmem:[%s253 + $0x150] sm:$0xff]
        %v373 = vld [vmem:[%s253 + $0x158] sm:$0xff]
        %v374 = vld [vmem:[%s253 + $0x160] sm:$0xff]
        %v375 = vld [vmem:[%s253 + $0x168] sm:$0xff]
        %v376 = vld [vmem:[%s253 + $0x170] sm:$0xff]
        %v377 = vld [vmem:[%s253 + $0x178] sm:$0xff]
        %v378 = vld [vmem:[%s253 + $0x180] sm:$0xff]
        %v379 = vld [vmem:[%s253 + $0x188] sm:$0xff]
        %v380 = vld [vmem:[%s253 + $0x190] sm:$0xff]
        %v381 = vld [vmem:[%s253 + $0x198] sm:$0xff]
        %v382 = vld [vmem:[%s253 + $0x1a0] sm:$0xff]
        %v383 = vld [vmem:[%s253 + $0x1a8] sm:$0xff]
        %v384 = vld [vmem:[%s253 + $0x1b0] sm:$0xff]
        %v385 = vld [vmem:[%s253 + $0x1b8] sm:$0xff]
        %v386 = vld [vmem:[%s253 + $0x1c0] sm:$0xff]
        %v387 = vld [vmem:[%s253 + $0x1c8] sm:$0xff]
        %v388 = vld [vmem:[%s253 + $0x1d0] sm:$0xff]
        %v389 = vld [vmem:[%s253 + $0x1d8] sm:$0xff]
        %v390 = vld [vmem:[%s253 + $0x1e0] sm:$0xff]
        %v391 = vld [vmem:[%s253 + $0x1e8] sm:$0xff]
        %v392 = vld [vmem:[%s253 + $0x1f0] sm:$0xff]
        %v393 = vld [vmem:[%s253 + $0x1f8] sm:$0xff]
        %v394 = vld [vmem:[%s253 + $0x200] sm:$0xff]
        %v395 = vld [vmem:[%s253 + $0x208] sm:$0xff]
        %v396 = vld [vmem:[%s253 + $0x210] sm:$0xff]
        %v397 = vld [vmem:[%s253 + $0x218] sm:$0xff]
        %v398 = vld [vmem:[%s253 + $0x220] sm:$0xff]
        %v399 = vld [vmem:[%s253 + $0x228] sm:$0xff]
        %v400 = vld [vmem:[%s253 + $0x230] sm:$0xff]
        %v401 = vld [vmem:[%s253 + $0x238] sm:$0xff]
        %v402 = vld [vmem:[%s253 + $0x240] sm:$0xff]
        %v403 = vld [vmem:[%s253 + $0x248] sm:$0xff]
        %v404 = vld [vmem:[%s253 + $0x250] sm:$0xff]
        %v405 = vld [vmem:[%s253 + $0x258] sm:$0xff]
        %v406 = vld [vmem:[%s253 + $0x260] sm:$0xff]
        %v407 = vld [vmem:[%s253 + $0x268] sm:$0xff]
        %v408 = vld [vmem:[%s253 + $0x270] sm:$0xff]
        %v409 = vld [vmem:[%s253 + $0x278] sm:$0xff]
        %v410 = vld [vmem:[%s253 + $0x280] sm:$0xff]
        %v411 = vld [vmem:[%s253 + $0x288] sm:$0xff]
        %v412 = vld [vmem:[%s253 + $0x290] sm:$0xff]
        %v413 = vld [vmem:[%s253 + $0x298] sm:$0xff]
        %v414 = vld [vmem:[%s253 + $0x2a0] sm:$0xff]
        %v415 = vld [vmem:[%s253 + $0x2a8] sm:$0xff]
        %v416 = vld [vmem:[%s253 + $0x2b0] sm:$0xff]
        %v417 = vld [vmem:[%s253 + $0x2b8] sm:$0xff]
        %v418 = vld [vmem:[%s253 + $0x2c0] sm:$0xff]
        %v419 = vld [vmem:[%s253 + $0x2c8] sm:$0xff]
        %v420 = vld [vmem:[%s253 + $0x2d0] sm:$0xff]
        %v421 = vld [vmem:[%s253 + $0x2d8] sm:$0xff]
        %v422 = vld [vmem:[%s253 + $0x2e0] sm:$0xff]
        %v423 = vld [vmem:[%s253 + $0x2e8] sm:$0xff]
        %v424 = vld [vmem:[%s253 + $0x2f0] sm:$0xff]
        %v425 = vld [vmem:[%s253 + $0x2f8] sm:$0xff]
        %v426 = vld [vmem:[%s253 + $0x300] sm:$0xff]
        %v427 = vld [vmem:[%s253 + $0x308] sm:$0xff]
        %v428 = vld [vmem:[%s253 + $0x310] sm:$0xff]
        %v429 = vld [vmem:[%s253 + $0x318] sm:$0xff]
        %v430 = vld [vmem:[%s253 + $0x320] sm:$0xff]
        %v431 = vld [vmem:[%s253 + $0x328] sm:$0xff]
        %v432 = vld [vmem:[%s253 + $0x330] sm:$0xff]
        %v433 = vld [vmem:[%s253 + $0x338] sm:$0xff]
        %v434 = vld [vmem:[%s253 + $0x340] sm:$0xff]
        %v435 = vld [vmem:[%s253 + $0x348] sm:$0xff]
        %v436 = vld [vmem:[%s253 + $0x350] sm:$0xff]
        %v437 = vld [vmem:[%s253 + $0x358] sm:$0xff]
        %v438 = vld [vmem:[%s253 + $0x360] sm:$0xff]
        %v439 = vld [vmem:[%s253 + $0x368] sm:$0xff]
        %v440 = vld [vmem:[%s253 + $0x370] sm:$0xff]
        %v441 = vld [vmem:[%s253 + $0x378] sm:$0xff]
        %v442 = vld [vmem:[%s253 + $0x380] sm:$0xff]
        %v443 = vld [vmem:[%s253 + $0x388] sm:$0xff]
        %v444 = vld [vmem:[%s253 + $0x390] sm:$0xff]
        %v445 = vld [vmem:[%s253 + $0x398] sm:$0xff]
        %v446 = vld [vmem:[%s253 + $0x3a0] sm:$0xff]
        %v447 = vld [vmem:[%s253 + $0x3a8] sm:$0xff]
        %v448 = vld [vmem:[%s253 + $0x3b0] sm:$0xff]
        %v449 = vld [vmem:[%s253 + $0x3b8] sm:$0xff]
        %v450 = vld [vmem:[%s253 + $0x3c0] sm:$0xff]
        %v451 = vld [vmem:[%s253 + $0x3c8] sm:$0xff]
        %v452 = vld [vmem:[%s253 + $0x3d0] sm:$0xff]
        %v453 = vld [vmem:[%s253 + $0x3d8] sm:$0xff]
        %v454 = vld [vmem:[%s253 + $0x3e0] sm:$0xff]
        %v455 = vld [vmem:[%s253 + $0x3e8] sm:$0xff]
        %v456 = vld [vmem:[%s253 + $0x3f0] sm:$0xff]
        %v457 = vld [vmem:[%s253 + $0x3f8] sm:$0xff]
        %v458 = vld [vmem:[%s253 + $0x400] sm:$0xff]
        %v459 = vld [vmem:[%s253 + $0x408] sm:$0xff]
        %v460 = vld [vmem:[%s253 + $0x410] sm:$0xff]
        %v461 = vld [vmem:[%s253 + $0x418] sm:$0xff]
        %v462 = vld [vmem:[%s253 + $0x420] sm:$0xff]
        %v463 = vld [vmem:[%s253 + $0x428] sm:$0xff]
        %v464 = vld [vmem:[%s253 + $0x430] sm:$0xff]
        %v465 = vld [vmem:[%s253 + $0x438] sm:$0xff]
        %v466 = vld [vmem:[%s253 + $0x440] sm:$0xff]
        %v467 = vld [vmem:[%s253 + $0x448] sm:$0xff]
        %v468 = vld [vmem:[%s253 + $0x450] sm:$0xff]
        %v469 = vld [vmem:[%s253 + $0x458] sm:$0xff]
        %v470 = vld [vmem:[%s253 + $0x460] sm:$0xff]
        %v471 = vld [vmem:[%s253 + $0x468] sm:$0xff]
        %v472 = vld [vmem:[%s253 + $0x470] sm:$0xff]
        %v473 = vld [vmem:[%s253 + $0x478] sm:$0xff]
        %v474 = vld [vmem:[%s253 + $0x480] sm:$0xff]
        %v475 = vld [vmem:[%s253 + $0x488] sm:$0xff]
        %v476 = vld [vmem:[%s253 + $0x490] sm:$0xff]
        %v477 = vld [vmem:[%s253 + $0x498] sm:$0xff]
        %v478 = vld [vmem:[%s253 + $0x4a0] sm:$0xff]
        %v479 = vld [vmem:[%s253 + $0x4a8] sm:$0xff]
        %v480 = vld [vmem:[%s253 + $0x4b0] sm:$0xff]
        %v481 = vld [vmem:[%s253 + $0x4b8] sm:$0xff]
        %v482 = vld [vmem:[%s253 + $0x4c0] sm:$0xff]
        %v483 = vld [vmem:[%s253 + $0x4c8] sm:$0xff]
        %v484 = vld [vmem:[%s253 + $0x4d0] sm:$0xff]
        %v485 = vld [vmem:[%s253 + $0x4d8] sm:$0xff]
        %v486 = vld [vmem:[%s253 + $0x4e0] sm:$0xff]
        %v487 = vld [vmem:[%s253 + $0x4e8] sm:$0xff]
        %v488 = vld [vmem:[%s253 + $0x4f0] sm:$0xff]
        %v489 = vld [vmem:[%s253 + $0x4f8] sm:$0xff]
        %v490 = vld [vmem:[%s253 + $0x500] sm:$0xff]
        %v491 = vld [vmem:[%s253 + $0x508] sm:$0xff]
        %v492 = vld [vmem:[%s253 + $0x510] sm:$0xff]
        %v493 = vld [vmem:[%s253 + $0x518] sm:$0xff]
        %v494 = vld [vmem:[%s253 + $0x520] sm:$0xff]
        %v495 = vld [vmem:[%s253 + $0x528] sm:$0xff]
        %v496 = vld [vmem:[%s253 + $0x530] sm:$0xff]
        %v497 = vld [vmem:[%s253 + $0x538] sm:$0xff]
        %v498 = vld [vmem:[%s253 + $0x540] sm:$0xff]
        %v499 = vld [vmem:[%s253 + $0x548] sm:$0xff]
        %v500 = vld [vmem:[%s253 + $0x550] sm:$0xff]
        %v501 = vld [vmem:[%s253 + $0x558] sm:$0xff]
        %v502 = vld [vmem:[%s253 + $0x560] sm:$0xff]
        %v503 = vld [vmem:[%s253 + $0x568] sm:$0xff]
        %v504 = vld [vmem:[%s253 + $0x570] sm:$0xff]
        %v505 = vld [vmem:[%s253 + $0x578] sm:$0xff]
        %v506 = vld [vmem:[%s253 + $0x580] sm:$0xff]
        %v507 = vld [vmem:[%s253 + $0x588] sm:$0xff]
        %v508 = vld [vmem:[%s253 + $0x590] sm:$0xff]
        %v509 = vld [vmem:[%s253 + $0x598] sm:$0xff]
        %v510 = vld [vmem:[%s253 + $0x5a0] sm:$0xff]
        %v511 = vld [vmem:[%s253 + $0x5a8] sm:$0xff]
        %v512 = vld [vmem:[%s253 + $0x5b0] sm:$0xff]
        %v513 = vld [vmem:[%s253 + $0x5b8] sm:$0xff]
        %v514 = vld [vmem:[%s253 + $0x5c0] sm:$0xff]
        %v515 = vld [vmem:[%s253 + $0x5c8] sm:$0xff]
        %v516 = vld [vmem:[%s253 + $0x5d0] sm:$0xff]
        %v517 = vld [vmem:[%s253 + $0x5d8] sm:$0xff]
        %v518 = vld [vmem:[%s253 + $0x5e0] sm:$0xff]
        %v519 = vld [vmem:[%s253 + $0x5e8] sm:$0xff]
        %v520 = vld [vmem:[%s253 + $0x5f0] sm:$0xff]
        %v521 = vld [vmem:[%s253 + $0x5f8] sm:$0xff]
        %v522 = vld [vmem:[%s253 + $0x600] sm:$0xff]
        %v523 = vld [vmem:[%s253 + $0x608] sm:$0xff]
        %v524 = vld [vmem:[%s253 + $0x610] sm:$0xff]
        %v525 = vld [vmem:[%s253 + $0x618] sm:$0xff]
        %v526 = vld [vmem:[%s253 + $0x620] sm:$0xff]
        %v527 = vld [vmem:[%s253 + $0x628] sm:$0xff]
        %v528 = vld [vmem:[%s253 + $0x630] sm:$0xff]
        %v529 = vld [vmem:[%s253 + $0x638] sm:$0xff]
        %v530 = vld [vmem:[%s253 + $0x640] sm:$0xff]
        %v531 = vld [vmem:[%s253 + $0x648] sm:$0xff]
        %v532 = vld [vmem:[%s253 + $0x650] sm:$0xff]
        %v533 = vld [vmem:[%s253 + $0x658] sm:$0xff]
        %v534 = vld [vmem:[%s253 + $0x660] sm:$0xff]
        %v535 = vld [vmem:[%s253 + $0x668] sm:$0xff]
        %v536 = vld [vmem:[%s253 + $0x670] sm:$0xff]
        %v537 = vld [vmem:[%s253 + $0x678] sm:$0xff]
        %v538 = vld [vmem:[%s253 + $0x680] sm:$0xff]
        %v539 = vld [vmem:[%s253 + $0x688] sm:$0xff]
        %v540 = vld [vmem:[%s253 + $0x690] sm:$0xff]
        %v541 = vld [vmem:[%s253 + $0x698] sm:$0xff]
        %v542 = vld [vmem:[%s253 + $0x6a0] sm:$0xff]
        %v543 = vld [vmem:[%s253 + $0x6a8] sm:$0xff]
        %v544 = vld [vmem:[%s253 + $0x6b0] sm:$0xff]
        %v545 = vld [vmem:[%s253 + $0x6b8] sm:$0xff]
        %v546 = vld [vmem:[%s253 + $0x6c0] sm:$0xff]
        %v547 = vld [vmem:[%s253 + $0x6c8] sm:$0xff]
        %v548 = vld [vmem:[%s253 + $0x6d0] sm:$0xff]
        %v549 = vld [vmem:[%s253 + $0x6d8] sm:$0xff]
        %v550 = vld [vmem:[%s253 + $0x6e0] sm:$0xff]
        %v551 = vld [vmem:[%s253 + $0x6e8] sm:$0xff]
        %v552 = vld [vmem:[%s253 + $0x6f0] sm:$0xff]
        %v553 = vld [vmem:[%s253 + $0x6f8] sm:$0xff]
        %v554 = vld [vmem:[%s253 + $0x700] sm:$0xff]
        %v555 = vld [vmem:[%s253 + $0x708] sm:$0xff]
        %v556 = vld [vmem:[%s253 + $0x710] sm:$0xff]
        %v557 = vld [vmem:[%s253 + $0x718] sm:$0xff]
        %v558 = vld [vmem:[%s253 + $0x720] sm:$0xff]
        %v559 = vld [vmem:[%s253 + $0x728] sm:$0xff]
        %v560 = vld [vmem:[%s253 + $0x730] sm:$0xff]
        %v561 = vld [vmem:[%s253 + $0x738] sm:$0xff]
        %v562 = vld [vmem:[%s253 + $0x740] sm:$0xff]
        %v563 = vld [vmem:[%s253 + $0x748] sm:$0xff]
        %v564 = vld [vmem:[%s253 + $0x750] sm:$0xff]
        %v565 = vld [vmem:[%s253 + $0x758] sm:$0xff]
        %v566 = vld [vmem:[%s253 + $0x760] sm:$0xff]
        %v567 = vld [vmem:[%s253 + $0x768] sm:$0xff]
        %v568 = vld [vmem:[%s253 + $0x770] sm:$0xff]
        %v569 = vld [vmem:[%s253 + $0x778] sm:$0xff]
        %v570 = vld [vmem:[%s253 + $0x780] sm:$0xff]
        %v571 = vld [vmem:[%s253 + $0x788] sm:$0xff]
        %v572 = vld [vmem:[%s253 + $0x790] sm:$0xff]
        %v573 = vld [vmem:[%s253 + $0x798] sm:$0xff]
        %v574 = vld [vmem:[%s253 + $0x7a0] sm:$0xff]
        %v575 = vld [vmem:[%s253 + $0x7a8] sm:$0xff]
        %v576 = vld [vmem:[%s253 + $0x7b0] sm:$0xff]
        %v577 = vld [vmem:[%s253 + $0x7b8] sm:$0xff]
        %v578 = vld [vmem:[%s253 + $0x7c0] sm:$0xff]
        %v579 = vld [vmem:[%s253 + $0x7c8] sm:$0xff]
        %v580 = vld [vmem:[%s253 + $0x7d0] sm:$0xff]
        %v581 = vld [vmem:[%s253 + $0x7d8] sm:$0xff]
        %v582 = vld [vmem:[%s253 + $0x7e0] sm:$0xff]
        %v583 = vld [vmem:[%s253 + $0x7e8] sm:$0xff]
        %v584 = vld [vmem:[%s253 + $0x7f0] sm:$0xff]
        %v585 = vld [vmem:[%s253 + $0x7f8] sm:$0xff]
        %v586 = vld [vmem:[%s253 + $0x800] sm:$0xff]
        %v587 = vld [vmem:[%s253 + $0x808] sm:$0xff]
        %v588 = vld [vmem:[%s253 + $0x810] sm:$0xff]
        %v589 = vld [vmem:[%s253 + $0x818] sm:$0xff]
        %v590 = vld [vmem:[%s253 + $0x820] sm:$0xff]
        %v591 = vld [vmem:[%s253 + $0x828] sm:$0xff]
        %v592 = vld [vmem:[%s253 + $0x830] sm:$0xff]
        %v593 = vld [vmem:[%s253 + $0x838] sm:$0xff]
        %v594 = vld [vmem:[%s253 + $0x840] sm:$0xff]
        %v595 = vld [vmem:[%s253 + $0x848] sm:$0xff]
        %v596 = vld [vmem:[%s253 + $0x850] sm:$0xff]
        %v597 = vld [vmem:[%s253 + $0x858] sm:$0xff]
        %v598 = vld [vmem:[%s253 + $0x860] sm:$0xff]
        %v599 = vld [vmem:[%s253 + $0x868] sm:$0xff]
        %v600 = vld [vmem:[%s253 + $0x870] sm:$0xff]
        %v601 = vld [vmem:[%s253 + $0x878] sm:$0xff]
        %v602 = vld [vmem:[%s253 + $0x880] sm:$0xff]
        %v603 = vld [vmem:[%s253 + $0x888] sm:$0xff]
        %v604 = vld [vmem:[%s253 + $0x890] sm:$0xff]
        %v605 = vld [vmem:[%s253 + $0x898] sm:$0xff]
        %v606 = vld [vmem:[%s253 + $0x8a0] sm:$0xff]
        %v607 = vld [vmem:[%s253 + $0x8a8] sm:$0xff]
        %v608 = vld [vmem:[%s253 + $0x8b0] sm:$0xff]
        %v609 = vld [vmem:[%s253 + $0x8b8] sm:$0xff]
        %v610 = vld [vmem:[%s253 + $0x8c0] sm:$0xff]
        %v611 = vld [vmem:[%s253 + $0x8c8] sm:$0xff]
        %v612 = vld [vmem:[%s253 + $0x8d0] sm:$0xff]
        %v613 = vld [vmem:[%s253 + $0x8d8] sm:$0xff]
        %v614 = vld [vmem:[%s253 + $0x8e0] sm:$0xff]
        %v615 = vld [vmem:[%s253 + $0x8e8] sm:$0xff]
        %v616 = vld [vmem:[%s253 + $0x8f0] sm:$0xff]
        %v617 = vld [vmem:[%s253 + $0x8f8] sm:$0xff]
        %v618 = vld [vmem:[%s253 + $0x900] sm:$0xff]
        %v619 = vld [vmem:[%s253 + $0x908] sm:$0xff]
        %v620 = vld [vmem:[%s253 + $0x910] sm:$0xff]
        %v621 = vld [vmem:[%s253 + $0x918] sm:$0xff]
        %v622 = vld [vmem:[%s253 + $0x920] sm:$0xff]
        %v623 = vld [vmem:[%s253 + $0x928] sm:$0xff]
        %v624 = vld [vmem:[%s253 + $0x930] sm:$0xff]
        %v625 = vld [vmem:[%s253 + $0x938] sm:$0xff]
        %v626 = vld [vmem:[%s253 + $0x940] sm:$0xff]
        %v627 = vld [vmem:[%s253 + $0x948] sm:$0xff]
        %v628 = vld [vmem:[%s253 + $0x950] sm:$0xff]
        %v629 = vld [vmem:[%s253 + $0x958] sm:$0xff]
        %v630 = vld [vmem:[%s253 + $0x960] sm:$0xff]
        %v631 = vld [vmem:[%s253 + $0x968] sm:$0xff]
        %v632 = vld [vmem:[%s253 + $0x970] sm:$0xff]
        %v633 = vld [vmem:[%s253 + $0x978] sm:$0xff]
        %v634 = vld [vmem:[%s253 + $0x980] sm:$0xff]
        %v635 = vld [vmem:[%s253 + $0x988] sm:$0xff]
        %v636 = vld [vmem:[%s253 + $0x990] sm:$0xff]
        %v637 = vld [vmem:[%s253 + $0x998] sm:$0xff]
        %v638 = vld [vmem:[%s253 + $0x9a0] sm:$0xff]
        %v639 = vld [vmem:[%s253 + $0x9a8] sm:$0xff]
        %v640 = vld [vmem:[%s253 + $0x9b0] sm:$0xff]
        %v641 = vld [vmem:[%s253 + $0x9b8] sm:$0xff]
        %v642 = vld [vmem:[%s253 + $0x9c0] sm:$0xff]
        %v643 = vld [vmem:[%s253 + $0x9c8] sm:$0xff]
        %v644 = vld [vmem:[%s253 + $0x9d0] sm:$0xff]
        %v645 = vld [vmem:[%s253 + $0x9d8] sm:$0xff]
        %v646 = vld [vmem:[%s253 + $0x9e0] sm:$0xff]
        %v647 = vld [vmem:[%s253 + $0x9e8] sm:$0xff]
        %v648 = vld [vmem:[%s253 + $0x9f0] sm:$0xff]
        %v649 = vld [vmem:[%s253 + $0x9f8] sm:$0xff]
        %v650 = vld [vmem:[%s253 + $0xa00] sm:$0xff]
        %v651 = vld [vmem:[%s253 + $0xa08] sm:$0xff]
        %v652 = vld [vmem:[%s253 + $0xa10] sm:$0xff]
        %v653 = vld [vmem:[%s253 + $0xa18] sm:$0xff]
        %v654 = vld [vmem:[%s253 + $0xa20] sm:$0xff]
        %v655 = vld [vmem:[%s253 + $0xa28] sm:$0xff]
        %v656 = vld [vmem:[%s253 + $0xa30] sm:$0xff]
        %v657 = vld [vmem:[%s253 + $0xa38] sm:$0xff]
        %v658 = vld [vmem:[%s253 + $0xa40] sm:$0xff]
        %v659 = vld [vmem:[%s253 + $0xa48] sm:$0xff]
        %v660 = vld [vmem:[%s253 + $0xa50] sm:$0xff]
        %v661 = vld [vmem:[%s253 + $0xa58] sm:$0xff]
        %v662 = vld [vmem:[%s253 + $0xa60] sm:$0xff]
        %v663 = vld [vmem:[%s253 + $0xa68] sm:$0xff]
        %v664 = vld [vmem:[%s253 + $0xa70] sm:$0xff]
        %v665 = vld [vmem:[%s253 + $0xa78] sm:$0xff]
        %v666 = vld [vmem:[%s253 + $0xa80] sm:$0xff]
        %v667 = vld [vmem:[%s253 + $0xa88] sm:$0xff]
        %v668 = vld [vmem:[%s253 + $0xa90] sm:$0xff]
        %v669 = vld [vmem:[%s253 + $0xa98] sm:$0xff]
        %v670 = vld [vmem:[%s253 + $0xaa0] sm:$0xff]
        %v671 = vld [vmem:[%s253 + $0xaa8] sm:$0xff]
        %v672 = vld [vmem:[%s253 + $0xab0] sm:$0xff]
        %v673 = vld [vmem:[%s253 + $0xab8] sm:$0xff]
        %v674 = vld [vmem:[%s253 + $0xac0] sm:$0xff]
        %v675 = vld [vmem:[%s253 + $0xac8] sm:$0xff]
        %v676 = vld [vmem:[%s253 + $0xad0] sm:$0xff]
        %v677 = vld [vmem:[%s253 + $0xad8] sm:$0xff]
        %v678 = vld [vmem:[%s253 + $0xae0] sm:$0xff]
        %v679 = vld [vmem:[%s253 + $0xae8] sm:$0xff]
        %v680 = vld [vmem:[%s253 + $0xaf0] sm:$0xff]
        %v681 = vld [vmem:[%s253 + $0xaf8] sm:$0xff]
        %v682 = vld [vmem:[%s253 + $0xb00] sm:$0xff]
        %v683 = vld [vmem:[%s253 + $0xb08] sm:$0xff]
        %v684 = vld [vmem:[%s253 + $0xb10] sm:$0xff]
        %v685 = vld [vmem:[%s253 + $0xb18] sm:$0xff]
        %v686 = vld [vmem:[%s253 + $0xb20] sm:$0xff]
        %v687 = vld [vmem:[%s253 + $0xb28] sm:$0xff]
        %v688 = vld [vmem:[%s253 + $0xb30] sm:$0xff]
        %v689 = vld [vmem:[%s253 + $0xb38] sm:$0xff]
        %v690 = vld [vmem:[%s253 + $0xb40] sm:$0xff]
        %v691 = vld [vmem:[%s253 + $0xb48] sm:$0xff]
        %v692 = vld [vmem:[%s253 + $0xb50] sm:$0xff]
        %v693 = vld [vmem:[%s253 + $0xb58] sm:$0xff]
        %v694 = vld [vmem:[%s253 + $0xb60] sm:$0xff]
        %v695 = vld [vmem:[%s253 + $0xb68] sm:$0xff]
        %v696 = vld [vmem:[%s253 + $0xb70] sm:$0xff]
        %v697 = vld [vmem:[%s253 + $0xb78] sm:$0xff]
        %v698 = vld [vmem:[%s253 + $0xb80] sm:$0xff]
        %v699 = vld [vmem:[%s253 + $0xb88] sm:$0xff]
        %v700 = vld [vmem:[%s253 + $0xb90] sm:$0xff]
        %v701 = vld [vmem:[%s253 + $0xb98] sm:$0xff]
        %v702 = vld [vmem:[%s253 + $0xba0] sm:$0xff]
        %v703 = vld [vmem:[%s253 + $0xba8] sm:$0xff]
        %v704 = vld [vmem:[%s253 + $0xbb0] sm:$0xff]
        %v705 = vld [vmem:[%s253 + $0xbb8] sm:$0xff]
        %v706 = vld [vmem:[%s253 + $0xbc0] sm:$0xff]
        %v707 = vld [vmem:[%s253 + $0xbc8] sm:$0xff]
        %v708 = vld [vmem:[%s253 + $0xbd0] sm:$0xff]
        %v709 = vld [vmem:[%s253 + $0xbd8] sm:$0xff]
        %v710 = vld [vmem:[%s253 + $0xbe0] sm:$0xff]
        %v711 = vld [vmem:[%s253 + $0xbe8] sm:$0xff]
        %v712 = vld [vmem:[%s253 + $0xbf0] sm:$0xff]
        %v713 = vld [vmem:[%s253 + $0xbf8] sm:$0xff]
        %v714 = vld [vmem:[%s253 + $0xc00] sm:$0xff]
        %v715 = vld [vmem:[%s253 + $0xc08] sm:$0xff]
        %v716 = vld [vmem:[%s253 + $0xc10] sm:$0xff]
        %v717 = vld [vmem:[%s253 + $0xc18] sm:$0xff]
        %v718 = vld [vmem:[%s253 + $0xc20] sm:$0xff]
        %v719 = vld [vmem:[%s253 + $0xc28] sm:$0xff]
        %v720 = vld [vmem:[%s253 + $0xc30] sm:$0xff]
        %v721 = vld [vmem:[%s253 + $0xc38] sm:$0xff]
        %v722 = vld [vmem:[%s253 + $0xc40] sm:$0xff]
        %v723 = vld [vmem:[%s253 + $0xc48] sm:$0xff]
        %v724 = vld [vmem:[%s253 + $0xc50] sm:$0xff]
        %v725 = vld [vmem:[%s253 + $0xc58] sm:$0xff]
        %v726 = vld [vmem:[%s253 + $0xc60] sm:$0xff]
        %v727 = vld [vmem:[%s253 + $0xc68] sm:$0xff]
        %v728 = vld [vmem:[%s253 + $0xc70] sm:$0xff]
        %v729 = vld [vmem:[%s253 + $0xc78] sm:$0xff]
        %v730 = vld [vmem:[%s253 + $0xc80] sm:$0xff]
        %v731 = vld [vmem:[%s253 + $0xc88] sm:$0xff]
        %v732 = vld [vmem:[%s253 + $0xc90] sm:$0xff]
        %v733 = vld [vmem:[%s253 + $0xc98] sm:$0xff]
        %v734 = vld [vmem:[%s253 + $0xca0] sm:$0xff]
        %v735 = vld [vmem:[%s253 + $0xca8] sm:$0xff]
        %v736 = vld [vmem:[%s253 + $0xcb0] sm:$0xff]
        %v737 = vld [vmem:[%s253 + $0xcb8] sm:$0xff]
        %v738 = vld [vmem:[%s253 + $0xcc0] sm:$0xff]
        %v739 = vld [vmem:[%s253 + $0xcc8] sm:$0xff]
        %v740 = vld [vmem:[%s253 + $0xcd0] sm:$0xff]
        %v741 = vld [vmem:[%s253 + $0xcd8] sm:$0xff]
        %v742 = vld [vmem:[%s253 + $0xce0] sm:$0xff]
        %v743 = vld [vmem:[%s253 + $0xce8] sm:$0xff]
        %v744 = vld [vmem:[%s253 + $0xcf0] sm:$0xff]
        %v745 = vld [vmem:[%s253 + $0xcf8] sm:$0xff]
        %v746 = vld [vmem:[%s253 + $0xd00] sm:$0xff]
        %v747 = vld [vmem:[%s253 + $0xd08] sm:$0xff]
        %v748 = vld [vmem:[%s253 + $0xd10] sm:$0xff]
        %v749 = vld [vmem:[%s253 + $0xd18] sm:$0xff]
        %v750 = vld [vmem:[%s253 + $0xd20] sm:$0xff]
        %v751 = vld [vmem:[%s253 + $0xd28] sm:$0xff]
        %v752 = vld [vmem:[%s253 + $0xd30] sm:$0xff]
        %v753 = vld [vmem:[%s253 + $0xd38] sm:$0xff]
        %v754 = vld [vmem:[%s253 + $0xd40] sm:$0xff]
        %v755 = vld [vmem:[%s253 + $0xd48] sm:$0xff]
        %v756 = vld [vmem:[%s253 + $0xd50] sm:$0xff]
        %v757 = vld [vmem:[%s253 + $0xd58] sm:$0xff]
        %v758 = vld [vmem:[%s253 + $0xd60] sm:$0xff]
        %v759 = vld [vmem:[%s253 + $0xd68] sm:$0xff]
        %v760 = vld [vmem:[%s253 + $0xd70] sm:$0xff]
        %v761 = vld [vmem:[%s253 + $0xd78] sm:$0xff]
        %v762 = vld [vmem:[%s253 + $0xd80] sm:$0xff]
        %v763 = vld [vmem:[%s253 + $0xd88] sm:$0xff]
        %v764 = vld [vmem:[%s253 + $0xd90] sm:$0xff]
        %v765 = vld [vmem:[%s253 + $0xd98] sm:$0xff]
        %v766 = vld [vmem:[%s253 + $0xda0] sm:$0xff]
        %v767 = vld [vmem:[%s253 + $0xda8] sm:$0xff]
        %v768 = vld [vmem:[%s253 + $0xdb0] sm:$0xff]
        %v769 = vld [vmem:[%s253 + $0xdb8] sm:$0xff]
        %v770 = vld [vmem:[%s253 + $0xdc0] sm:$0xff]
        %v771 = vld [vmem:[%s253 + $0xdc8] sm:$0xff]
        %v772 = vld [vmem:[%s253 + $0xdd0] sm:$0xff]
        %v773 = vld [vmem:[%s253 + $0xdd8] sm:$0xff]
        %v774 = vld [vmem:[%s253 + $0xde0] sm:$0xff]
        %v775 = vld [vmem:[%s253 + $0xde8] sm:$0xff]
        %v776 = vld [vmem:[%s253 + $0xdf0] sm:$0xff]
        %v777 = vld [vmem:[%s253 + $0xdf8] sm:$0xff]
        %v778 = vld [vmem:[%s253 + $0xe00] sm:$0xff]
        %v779 = vld [vmem:[%s253 + $0xe08] sm:$0xff]
        %v780 = vld [vmem:[%s253 + $0xe10] sm:$0xff]
        %v781 = vld [vmem:[%s253 + $0xe18] sm:$0xff]
        %v782 = vld [vmem:[%s253 + $0xe20] sm:$0xff]
        %v783 = vld [vmem:[%s253 + $0xe28] sm:$0xff]
        %v784 = vld [vmem:[%s253 + $0xe30] sm:$0xff]
        %v785 = vld [vmem:[%s253 + $0xe38] sm:$0xff]
        %v786 = vld [vmem:[%s253 + $0xe40] sm:$0xff]
        %v787 = vld [vmem:[%s253 + $0xe48] sm:$0xff]
        %v788 = vld [vmem:[%s253 + $0xe50] sm:$0xff]
        %v789 = vld [vmem:[%s253 + $0xe58] sm:$0xff]
        %v790 = vld [vmem:[%s253 + $0xe60] sm:$0xff]
        %v791 = vld [vmem:[%s253 + $0xe68] sm:$0xff]
        %v792 = vld [vmem:[%s253 + $0xe70] sm:$0xff]
        %v793 = vld [vmem:[%s253 + $0xe78] sm:$0xff]
        %v794 = vld [vmem:[%s253 + $0xe80] sm:$0xff]
        %v795 = vld [vmem:[%s253 + $0xe88] sm:$0xff]
        %v796 = vld [vmem:[%s253 + $0xe90] sm:$0xff]
        %v797 = vld [vmem:[%s253 + $0xe98] sm:$0xff]
        %v798 = vld [vmem:[%s253 + $0xea0] sm:$0xff]
        %v799 = vld [vmem:[%s253 + $0xea8] sm:$0xff]
        %v800 = vld [vmem:[%s253 + $0xeb0] sm:$0xff]
        %v801 = vld [vmem:[%s253 + $0xeb8] sm:$0xff]
        %v802 = vld [vmem:[%s253 + $0xec0] sm:$0xff]
        %v803 = vld [vmem:[%s253 + $0xec8] sm:$0xff]
        %v804 = vld [vmem:[%s253 + $0xed0] sm:$0xff]
        %v805 = vld [vmem:[%s253 + $0xed8] sm:$0xff]
        %v806 = vld [vmem:[%s253 + $0xee0] sm:$0xff]
        %v807 = vld [vmem:[%s253 + $0xee8] sm:$0xff]
        %v808 = vld [vmem:[%s253 + $0xef0] sm:$0xff]
        %v809 = vld [vmem:[%s253 + $0xef8] sm:$0xff]
        %v810 = vld [vmem:[%s253 + $0xf00] sm:$0xff]
        %v811 = vld [vmem:[%s253 + $0xf08] sm:$0xff]
        %v812 = vld [vmem:[%s253 + $0xf10] sm:$0xff]
        %v813 = vld [vmem:[%s253 + $0xf18] sm:$0xff]
        %v814 = vld [vmem:[%s253 + $0xf20] sm:$0xff]
        %v815 = vld [vmem:[%s253 + $0xf28] sm:$0xff]
        %v816 = vld [vmem:[%s253 + $0xf30] sm:$0xff]
        %v817 = vld [vmem:[%s253 + $0xf38] sm:$0xff]
        %v818 = vld [vmem:[%s253 + $0xf40] sm:$0xff]
        %v819 = vld [vmem:[%s253 + $0xf48] sm:$0xff]
        %v820 = vld [vmem:[%s253 + $0xf50] sm:$0xff]
        %v821 = vld [vmem:[%s253 + $0xf58] sm:$0xff]
        %v822 = vld [vmem:[%s253 + $0xf60] sm:$0xff]
        %v823 = vld [vmem:[%s253 + $0xf68] sm:$0xff]
        %v824 = vld [vmem:[%s253 + $0xf70] sm:$0xff]
        %v825 = vld [vmem:[%s253 + $0xf78] sm:$0xff]
        %v826 = vld [vmem:[%s253 + $0xf80] sm:$0xff]
        %v827 = vld [vmem:[%s253 + $0xf88] sm:$0xff]
        %v828 = vld [vmem:[%s253 + $0xf90] sm:$0xff]
        %v829 = vld [vmem:[%s253 + $0xf98] sm:$0xff]
        %v830 = vld [vmem:[%s253 + $0xfa0] sm:$0xff]
        %v831 = vld [vmem:[%s253 + $0xfa8] sm:$0xff]
        %v832 = vld [vmem:[%s253 + $0xfb0] sm:$0xff]
        %v833 = vld [vmem:[%s253 + $0xfb8] sm:$0xff]
        %v834 = vld [vmem:[%s253 + $0xfc0] sm:$0xff]
        %v835 = vld [vmem:[%s253 + $0xfc8] sm:$0xff]
        %v836 = vld [vmem:[%s253 + $0xfd0] sm:$0xff]
        %v837 = vld [vmem:[%s253 + $0xfd8] sm:$0xff]
        %v838 = vld [vmem:[%s253 + $0xfe0] sm:$0xff]
        %v839 = vld [vmem:[%s253 + $0xfe8] sm:$0xff]
        %v840 = vld [vmem:[%s253 + $0xff0] sm:$0xff]
        %v841 = vld [vmem:[%s253 + $0xff8] sm:$0xff]
        %v842 = vld [vmem:[%s253 + $0x1000] sm:$0xff]
        %v843 = vld [vmem:[%s253 + $0x1008] sm:$0xff]
        %v844 = vld [vmem:[%s253 + $0x1010] sm:$0xff]
        %v845 = vld [vmem:[%s253 + $0x1018] sm:$0xff]
        %v846 = vld [vmem:[%s253 + $0x1020] sm:$0xff]
        %v847 = vld [vmem:[%s253 + $0x1028] sm:$0xff]
        %v848 = vld [vmem:[%s253 + $0x1030] sm:$0xff]
        %v849 = vld [vmem:[%s253 + $0x1038] sm:$0xff]
        %v850 = vld [vmem:[%s253 + $0x1040] sm:$0xff]
        %v851 = vld [vmem:[%s253 + $0x1048] sm:$0xff]
        %v852 = vld [vmem:[%s253 + $0x1050] sm:$0xff]
        %v853 = vld [vmem:[%s253 + $0x1058] sm:$0xff]
        %v854 = vld [vmem:[%s253 + $0x1060] sm:$0xff]
        %v855 = vld [vmem:[%s253 + $0x1068] sm:$0xff]
        %v856 = vld [vmem:[%s253 + $0x1070] sm:$0xff]
        %v857 = vld [vmem:[%s253 + $0x1078] sm:$0xff]
        %v858 = vld [vmem:[%s253 + $0x1080] sm:$0xff]
        %v859 = vld [vmem:[%s253 + $0x1088] sm:$0xff]
        %v860 = vld [vmem:[%s253 + $0x1090] sm:$0xff]
        %v861 = vld [vmem:[%s253 + $0x1098] sm:$0xff]
        %v862 = vld [vmem:[%s253 + $0x10a0] sm:$0xff]
        %v863 = vld [vmem:[%s253 + $0x10a8] sm:$0xff]
        %v864 = vld [vmem:[%s253 + $0x10b0] sm:$0xff]
        %v865 = vld [vmem:[%s253 + $0x10b8] sm:$0xff]
        %v866 = vld [vmem:[%s253 + $0x10c0] sm:$0xff]
        %v867 = vld [vmem:[%s253 + $0x10c8] sm:$0xff]
        %v868 = vld [vmem:[%s253 + $0x10d0] sm:$0xff]
        %v869 = vld [vmem:[%s253 + $0x10d8] sm:$0xff]
        %v870 = vld [vmem:[%s253 + $0x10e0] sm:$0xff]
        %v871 = vld [vmem:[%s253 + $0x10e8] sm:$0xff]
        %v872 = vld [vmem:[%s253 + $0x10f0] sm:$0xff]
        %v873 = vld [vmem:[%s253 + $0x10f8] sm:$0xff]
        %v874 = vld [vmem:[%s253 + $0x1100] sm:$0xff]
        %v875 = vld [vmem:[%s253 + $0x1108] sm:$0xff]
        %v876 = vld [vmem:[%s253 + $0x1110] sm:$0xff]
        %v877 = vld [vmem:[%s253 + $0x1118] sm:$0xff]
        %v878 = vld [vmem:[%s253 + $0x1120] sm:$0xff]
        %v879 = vld [vmem:[%s253 + $0x1128] sm:$0xff]
        %v880 = vld [vmem:[%s253 + $0x1130] sm:$0xff]
        %v881 = vld [vmem:[%s253 + $0x1138] sm:$0xff]
        %v882 = vld [vmem:[%s253 + $0x1140] sm:$0xff]
        %v883 = vld [vmem:[%s253 + $0x1148] sm:$0xff]
        %v884 = vld [vmem:[%s253 + $0x1150] sm:$0xff]
        %v885 = vld [vmem:[%s253 + $0x1158] sm:$0xff]
        %v886 = vld [vmem:[%s253 + $0x1160] sm:$0xff]
        %v887 = vld [vmem:[%s253 + $0x1168] sm:$0xff]
        %v888 = vld [vmem:[%s253 + $0x1170] sm:$0xff]
        %v889 = vld [vmem:[%s253 + $0x1178] sm:$0xff]
        %v890 = vld [vmem:[%s253 + $0x1180] sm:$0xff]
        %v891 = vld [vmem:[%s253 + $0x1188] sm:$0xff]
        %v892 = vld [vmem:[%s253 + $0x1190] sm:$0xff]
        %v893 = vld [vmem:[%s253 + $0x1198] sm:$0xff]
        %v894 = vld [vmem:[%s253 + $0x11a0] sm:$0xff]
        %v895 = vld [vmem:[%s253 + $0x11a8] sm:$0xff]
        %v896 = vld [vmem:[%s253 + $0x11b0] sm:$0xff]
        %v897 = vld [vmem:[%s253 + $0x11b8] sm:$0xff]
        %v898 = vld [vmem:[%s253 + $0x11c0] sm:$0xff]
        %v899 = vld [vmem:[%s253 + $0x11c8] sm:$0xff]
        %v900 = vld [vmem:[%s253 + $0x11d0] sm:$0xff]
        %v901 = vld [vmem:[%s253 + $0x11d8] sm:$0xff]
        %v902 = vld [vmem:[%s253 + $0x11e0] sm:$0xff]
        %v903 = vld [vmem:[%s253 + $0x11e8] sm:$0xff]
        %v904 = vld [vmem:[%s253 + $0x11f0] sm:$0xff]
        %v905 = vld [vmem:[%s253 + $0x11f8] sm:$0xff]
        %v906 = vld [vmem:[%s253 + $0x1200] sm:$0xff]
        %v907 = vld [vmem:[%s253 + $0x1208] sm:$0xff]
        %v908 = vld [vmem:[%s253 + $0x1210] sm:$0xff]
        %v909 = vld [vmem:[%s253 + $0x1218] sm:$0xff]
        %v910 = vld [vmem:[%s253 + $0x1220] sm:$0xff]
        %v911 = vld [vmem:[%s253 + $0x1228] sm:$0xff]
        %v912 = vld [vmem:[%s253 + $0x1230] sm:$0xff]
        %v913 = vld [vmem:[%s253 + $0x1238] sm:$0xff]
        %v914 = vld [vmem:[%s253 + $0x1240] sm:$0xff]
        %v915 = vld [vmem:[%s253 + $0x1248] sm:$0xff]
        %v916 = vld [vmem:[%s253 + $0x1250] sm:$0xff]
        %v917 = vld [vmem:[%s253 + $0x1258] sm:$0xff]
        %v918 = vld [vmem:[%s253 + $0x1260] sm:$0xff]
        %v919 = vld [vmem:[%s253 + $0x1268] sm:$0xff]
        %v920 = vld [vmem:[%s253 + $0x1270] sm:$0xff]
        %v921 = vld [vmem:[%s253 + $0x1278] sm:$0xff]
        %v922 = vld [vmem:[%s253 + $0x1280] sm:$0xff]
        %v923 = vld [vmem:[%s253 + $0x1288] sm:$0xff]
        %v924 = vld [vmem:[%s253 + $0x1290] sm:$0xff]
        %v925 = vld [vmem:[%s253 + $0x1298] sm:$0xff]
        %v926 = vld [vmem:[%s253 + $0x12a0] sm:$0xff]
        %v927 = vld [vmem:[%s253 + $0x12a8] sm:$0xff]
        %v928 = vld [vmem:[%s253 + $0x12b0] sm:$0xff]
        %v929 = vld [vmem:[%s253 + $0x12b8] sm:$0xff]
        %v930 = vld [vmem:[%s253 + $0x12c0] sm:$0xff]
        %v931 = vld [vmem:[%s253 + $0x12c8] sm:$0xff]
        %v932 = vld [vmem:[%s253 + $0x12d0] sm:$0xff]
        %v933 = vld [vmem:[%s253 + $0x12d8] sm:$0xff]
        %v934 = vld [vmem:[%s253 + $0x12e0] sm:$0xff]
        %v935 = vld [vmem:[%s253 + $0x12e8] sm:$0xff]
        %v936 = vld [vmem:[%s253 + $0x12f0] sm:$0xff]
        %v937 = vld [vmem:[%s253 + $0x12f8] sm:$0xff]
        %v938 = vld [vmem:[%s253 + $0x1300] sm:$0xff]
        %v939 = vld [vmem:[%s253 + $0x1308] sm:$0xff]
        %v940 = vld [vmem:[%s253 + $0x1310] sm:$0xff]
        %v941 = vld [vmem:[%s253 + $0x1318] sm:$0xff]
        %v942 = vld [vmem:[%s253 + $0x1320] sm:$0xff]
        %v943 = vld [vmem:[%s253 + $0x1328] sm:$0xff]
        %v944 = vld [vmem:[%s253 + $0x1330] sm:$0xff]
        %v945 = vld [vmem:[%s253 + $0x1338] sm:$0xff]
        %v946 = vld [vmem:[%s253 + $0x1340] sm:$0xff]
        %v947 = vld [vmem:[%s253 + $0x1348] sm:$0xff]
        %v948 = vld [vmem:[%s253 + $0x1350] sm:$0xff]
        %v949 = vld [vmem:[%s253 + $0x1358] sm:$0xff]
        %v950 = vld [vmem:[%s253 + $0x1360] sm:$0xff]
        %v951 = vld [vmem:[%s253 + $0x1368] sm:$0xff]
        %v952 = vld [vmem:[%s253 + $0x1370] sm:$0xff]
        %v953 = vld [vmem:[%s253 + $0x1378] sm:$0xff]
        %v954 = vld [vmem:[%s253 + $0x1380] sm:$0xff]
        %v955 = vld [vmem:[%s253 + $0x1388] sm:$0xff]
        %v956 = vld [vmem:[%s253 + $0x1390] sm:$0xff]
        %v957 = vld [vmem:[%s253 + $0x1398] sm:$0xff]
        %v958 = vld [vmem:[%s253 + $0x13a0] sm:$0xff]
        %v959 = vld [vmem:[%s253 + $0x13a8] sm:$0xff]
        %v960 = vld [vmem:[%s253 + $0x13b0] sm:$0xff]
        %v961 = vld [vmem:[%s253 + $0x13b8] sm:$0xff]
        %v962 = vld [vmem:[%s253 + $0x13c0] sm:$0xff]
        %v963 = vld [vmem:[%s253 + $0x13c8] sm:$0xff]
        %v964 = vld [vmem:[%s253 + $0x13d0] sm:$0xff]
        %v965 = vld [vmem:[%s253 + $0x13d8] sm:$0xff]
        %v966 = vld [vmem:[%s253 + $0x13e0] sm:$0xff]
        %v967 = vld [vmem:[%s253 + $0x13e8] sm:$0xff]
        %v968 = vld [vmem:[%s253 + $0x13f0] sm:$0xff]
        %v969 = vld [vmem:[%s253 + $0x13f8] sm:$0xff]
        %v970 = vld [vmem:[%s253 + $0x1400] sm:$0xff]
        %v971 = vld [vmem:[%s253 + $0x1408] sm:$0xff]
        %v972 = vld [vmem:[%s253 + $0x1410] sm:$0xff]
        %v973 = vld [vmem:[%s253 + $0x1418] sm:$0xff]
        %v974 = vld [vmem:[%s253 + $0x1420] sm:$0xff]
        %v975 = vld [vmem:[%s253 + $0x1428] sm:$0xff]
        %v976 = vld [vmem:[%s253 + $0x1430] sm:$0xff]
        %v977 = vld [vmem:[%s253 + $0x1438] sm:$0xff]
        %v978 = vld [vmem:[%s253 + $0x1440] sm:$0xff]
        %v979 = vld [vmem:[%s253 + $0x1448] sm:$0xff]
        %v980 = vld [vmem:[%s253 + $0x1450] sm:$0xff]
        %v981 = vld [vmem:[%s253 + $0x1458] sm:$0xff]
        %v982 = vld [vmem:[%s253 + $0x1460] sm:$0xff]
        %v983 = vld [vmem:[%s253 + $0x1468] sm:$0xff]
        %v984 = vld [vmem:[%s253 + $0x1470] sm:$0xff]
        %v985 = vld [vmem:[%s253 + $0x1478] sm:$0xff]
        %v986 = vld [vmem:[%s253 + $0x1480] sm:$0xff]
        %v987 = vld [vmem:[%s253 + $0x1488] sm:$0xff]
        %v988 = vld [vmem:[%s253 + $0x1490] sm:$0xff]
        %v989 = vld [vmem:[%s253 + $0x1498] sm:$0xff]
        %v990 = vld [vmem:[%s253 + $0x14a0] sm:$0xff]
        %v991 = vld [vmem:[%s253 + $0x14a8] sm:$0xff]
        %v992 = vld [vmem:[%s253 + $0x14b0] sm:$0xff]
        %v993 = vld [vmem:[%s253 + $0x14b8] sm:$0xff]
        %v994 = vld [vmem:[%s253 + $0x14c0] sm:$0xff]
        %v995 = vld [vmem:[%s253 + $0x14c8] sm:$0xff]
        %v996 = vld [vmem:[%s253 + $0x14d0] sm:$0xff]
        %v997 = vld [vmem:[%s253 + $0x14d8] sm:$0xff]
        %v998 = vld [vmem:[%s253 + $0x14e0] sm:$0xff]
        %v999 = vld [vmem:[%s253 + $0x14e8] sm:$0xff]
        %v1000 = vld [vmem:[%s253 + $0x14f0] sm:$0xff]
        %v1001 = vld [vmem:[%s253 + $0x14f8] sm:$0xff]
        %v1002 = vld [vmem:[%s253 + $0x1500] sm:$0xff]
        %v1003 = vld [vmem:[%s253 + $0x1508] sm:$0xff]
        %v1004 = vld [vmem:[%s253 + $0x1510] sm:$0xff]
        %v1005 = vld [vmem:[%s253 + $0x1518] sm:$0xff]
        %v1006 = vld [vmem:[%s253 + $0x1520] sm:$0xff]
        %v1007 = vld [vmem:[%s253 + $0x1528] sm:$0xff]
        %v1008 = vld [vmem:[%s253 + $0x1530] sm:$0xff]
        %v1009 = vld [vmem:[%s253 + $0x1538] sm:$0xff]
        %v1010 = vld [vmem:[%s253 + $0x1540] sm:$0xff]
        %v1011 = vld [vmem:[%s253 + $0x1548] sm:$0xff]
        %v1012 = vld [vmem:[%s253 + $0x1550] sm:$0xff]
        %v1013 = vld [vmem:[%s253 + $0x1558] sm:$0xff]
        %v1014 = vld [vmem:[%s253 + $0x1560] sm:$0xff]
        %v1015 = vld [vmem:[%s253 + $0x1568] sm:$0xff]
        %v1016 = vld [vmem:[%s253 + $0x1570] sm:$0xff]
        %v1017 = vld [vmem:[%s253 + $0x1578] sm:$0xff]
        %v1018 = vld [vmem:[%s253 + $0x1580] sm:$0xff]
        %v1019 = vld [vmem:[%s253 + $0x1588] sm:$0xff]
        %v1020 = vld [vmem:[%s253 + $0x1590] sm:$0xff]
        %v1021 = vld [vmem:[%s253 + $0x1598] sm:$0xff]
        %v1022 = vld [vmem:[%s253 + $0x15a0] sm:$0xff]
        %v1023 = vld [vmem:[%s253 + $0x15a8] sm:$0xff]
        %v1024 = vld [vmem:[%s253 + $0x15b0] sm:$0xff]
        %v1025 = vld [vmem:[%s253 + $0x15b8] sm:$0xff]
        %v1026 = vld [vmem:[%s253 + $0x15c0] sm:$0xff]
        %v1027 = vld [vmem:[%s253 + $0x15c8] sm:$0xff]
        %v1028 = vld [vmem:[%s253 + $0x15d0] sm:$0xff]
        %v1029 = vld [vmem:[%s253 + $0x15d8] sm:$0xff]
        %v1030 = vld [vmem:[%s253 + $0x15e0] sm:$0xff]
        %v1031 = vld [vmem:[%s253 + $0x15e8] sm:$0xff]
        %v1032 = vld [vmem:[%s253 + $0x15f0] sm:$0xff]
        %v1033 = vld [vmem:[%s253 + $0x15f8] sm:$0xff]
        %v1034 = vld [vmem:[%s253 + $0x1600] sm:$0xff]
        %v1035 = vld [vmem:[%s253 + $0x1608] sm:$0xff]
        %v1036 = vld [vmem:[%s253 + $0x1610] sm:$0xff]
        %v1037 = vld [vmem:[%s253 + $0x1618] sm:$0xff]
        %v1038 = vld [vmem:[%s253 + $0x1620] sm:$0xff]
        %v1039 = vld [vmem:[%s253 + $0x1628] sm:$0xff]
        %v1040 = vld [vmem:[%s253 + $0x1630] sm:$0xff]
        %v1041 = vld [vmem:[%s253 + $0x1638] sm:$0xff]
        %v1042 = vld [vmem:[%s253 + $0x1640] sm:$0xff]
        %v1043 = vld [vmem:[%s253 + $0x1648] sm:$0xff]
        %v1044 = vld [vmem:[%s253 + $0x1650] sm:$0xff]
        %v1045 = vld [vmem:[%s253 + $0x1658] sm:$0xff]
        %v1046 = vld [vmem:[%s253 + $0x1660] sm:$0xff]
        %v1047 = vld [vmem:[%s253 + $0x1668] sm:$0xff]
        %v1048 = vld [vmem:[%s253 + $0x1670] sm:$0xff]
        %v1049 = vld [vmem:[%s253 + $0x1678] sm:$0xff]
        %v1050 = vld [vmem:[%s253 + $0x1680] sm:$0xff]
        %v1051 = vld [vmem:[%s253 + $0x1688] sm:$0xff]
        %v1052 = vld [vmem:[%s253 + $0x1690] sm:$0xff]
        %v1053 = vld [vmem:[%s253 + $0x1698] sm:$0xff]
        %v1054 = vld [vmem:[%s253 + $0x16a0] sm:$0xff]
        %v1055 = vld [vmem:[%s253 + $0x16a8] sm:$0xff]
        %v1056 = vld [vmem:[%s253 + $0x16b0] sm:$0xff]
        %v1057 = vld [vmem:[%s253 + $0x16b8] sm:$0xff]
        %v1058 = vld [vmem:[%s253 + $0x16c0] sm:$0xff]
        %v1059 = vld [vmem:[%s253 + $0x16c8] sm:$0xff]
        %v1060 = vld [vmem:[%s253 + $0x16d0] sm:$0xff]
        %v1061 = vld [vmem:[%s253 + $0x16d8] sm:$0xff]
        %v1062 = vld [vmem:[%s253 + $0x16e0] sm:$0xff]
        %v1063 = vld [vmem:[%s253 + $0x16e8] sm:$0xff]
        %v1064 = vld [vmem:[%s253 + $0x16f0] sm:$0xff]
        %v1065 = vld [vmem:[%s253 + $0x16f8] sm:$0xff]
        %v1066 = vld [vmem:[%s253 + $0x1700] sm:$0xff]
        %v1067 = vld [vmem:[%s253 + $0x1708] sm:$0xff]
        %v1068 = vld [vmem:[%s253 + $0x1710] sm:$0xff]
        %v1069 = vld [vmem:[%s253 + $0x1718] sm:$0xff]
        %v1070 = vld [vmem:[%s253 + $0x1720] sm:$0xff]
        %v1071 = vld [vmem:[%s253 + $0x1728] sm:$0xff]
        %v1072 = vld [vmem:[%s253 + $0x1730] sm:$0xff]
        %v1073 = vld [vmem:[%s253 + $0x1738] sm:$0xff]
        %v1074 = vld [vmem:[%s253 + $0x1740] sm:$0xff]
        %v1075 = vld [vmem:[%s253 + $0x1748] sm:$0xff]
        %v1076 = vld [vmem:[%s253 + $0x1750] sm:$0xff]
        %v1077 = vld [vmem:[%s253 + $0x1758] sm:$0xff]
        %v1078 = vld [vmem:[%s253 + $0x1760] sm:$0xff]
        %v1079 = vld [vmem:[%s253 + $0x1768] sm:$0xff]
        %v1080 = vld [vmem:[%s253 + $0x1770] sm:$0xff]
        %v1081 = vld [vmem:[%s253 + $0x1778] sm:$0xff]
        %v1082 = vld [vmem:[%s253 + $0x1780] sm:$0xff]
        %v1083 = vld [vmem:[%s253 + $0x1788] sm:$0xff]
        %v1084 = vld [vmem:[%s253 + $0x1790] sm:$0xff]
        %v1085 = vld [vmem:[%s253 + $0x1798] sm:$0xff]
        %v1086 = vld [vmem:[%s253 + $0x17a0] sm:$0xff]
        %v1087 = vld [vmem:[%s253 + $0x17a8] sm:$0xff]
        %v1088 = vld [vmem:[%s253 + $0x17b0] sm:$0xff]
        %v1089 = vld [vmem:[%s253 + $0x17b8] sm:$0xff]
        %v1090 = vld [vmem:[%s253 + $0x17c0] sm:$0xff]
        %v1091 = vld [vmem:[%s253 + $0x17c8] sm:$0xff]
        %v1092 = vld [vmem:[%s253 + $0x17d0] sm:$0xff]
        %v1093 = vld [vmem:[%s253 + $0x17d8] sm:$0xff]
        %v1094 = vld [vmem:[%s253 + $0x17e0] sm:$0xff]
        %v1095 = vld [vmem:[%s253 + $0x17e8] sm:$0xff]
        %v1096 = vld [vmem:[%s253 + $0x17f0] sm:$0xff]
        %v1097 = vld [vmem:[%s253 + $0x17f8] sm:$0xff]
        %v1098 = vld [vmem:[%s253 + $0x1800] sm:$0xff]
        %v1099 = vld [vmem:[%s253 + $0x1808] sm:$0xff]
        %v1100 = vld [vmem:[%s253 + $0x1810] sm:$0xff]
        %v1101 = vld [vmem:[%s253 + $0x1818] sm:$0xff]
        %v1102 = vld [vmem:[%s253 + $0x1820] sm:$0xff]
        %v1103 = vld [vmem:[%s253 + $0x1828] sm:$0xff]
        %v1104 = vld [vmem:[%s253 + $0x1830] sm:$0xff]
        %v1105 = vld [vmem:[%s253 + $0x1838] sm:$0xff]
        %v1106 = vld [vmem:[%s253 + $0x1840] sm:$0xff]
        %v1107 = vld [vmem:[%s253 + $0x1848] sm:$0xff]
        %v1108 = vld [vmem:[%s253 + $0x1850] sm:$0xff]
        %v1109 = vld [vmem:[%s253 + $0x1858] sm:$0xff]
        %v1110 = vld [vmem:[%s253 + $0x1860] sm:$0xff]
        %v1111 = vld [vmem:[%s253 + $0x1868] sm:$0xff]
        %v1112 = vld [vmem:[%s253 + $0x1870] sm:$0xff]
        %v1113 = vld [vmem:[%s253 + $0x1878] sm:$0xff]
        %v1114 = vld [vmem:[%s253 + $0x1880] sm:$0xff]
        %v1115 = vld [vmem:[%s253 + $0x1888] sm:$0xff]
        %v1116 = vld [vmem:[%s253 + $0x1890] sm:$0xff]
        %v1117 = vld [vmem:[%s253 + $0x1898] sm:$0xff]
        %v1118 = vld [vmem:[%s253 + $0x18a0] sm:$0xff]
        %v1119 = vld [vmem:[%s253 + $0x18a8] sm:$0xff]
        %v1120 = vld [vmem:[%s253 + $0x18b0] sm:$0xff]
        %v1121 = vld [vmem:[%s253 + $0x18b8] sm:$0xff]
        %v1122 = vld [vmem:[%s253 + $0x18c0] sm:$0xff]
        %v1123 = vld [vmem:[%s253 + $0x18c8] sm:$0xff]
        %v1124 = vld [vmem:[%s253 + $0x18d0] sm:$0xff]
        %v1125 = vld [vmem:[%s253 + $0x18d8] sm:$0xff]
        %v1126 = vld [vmem:[%s253 + $0x18e0] sm:$0xff]
        %v1127 = vld [vmem:[%s253 + $0x18e8] sm:$0xff]
        %v1128 = vld [vmem:[%s253 + $0x18f0] sm:$0xff]
        %v1129 = vld [vmem:[%s253 + $0x18f8] sm:$0xff]
        %v1130 = vld [vmem:[%s253 + $0x1900] sm:$0xff]
        %v1131 = vld [vmem:[%s253 + $0x1908] sm:$0xff]
        %v1132 = vld [vmem:[%s253 + $0x1910] sm:$0xff]
        %v1133 = vld [vmem:[%s253 + $0x1918] sm:$0xff]
        %v1134 = vld [vmem:[%s253 + $0x1920] sm:$0xff]
        %v1135 = vld [vmem:[%s253 + $0x1928] sm:$0xff]
        %v1136 = vld [vmem:[%s253 + $0x1930] sm:$0xff]
        %v1137 = vld [vmem:[%s253 + $0x1938] sm:$0xff]
        %v1138 = vld [vmem:[%s253 + $0x1940] sm:$0xff]
        %v1139 = vld [vmem:[%s253 + $0x1948] sm:$0xff]
        %v1140 = vld [vmem:[%s253 + $0x1950] sm:$0xff]
        %v1141 = vld [vmem:[%s253 + $0x1958] sm:$0xff]
        %v1142 = vld [vmem:[%s253 + $0x1960] sm:$0xff]
        %v1143 = vld [vmem:[%s253 + $0x1968] sm:$0xff]
        %v1144 = vld [vmem:[%s253 + $0x1970] sm:$0xff]
        %v1145 = vld [vmem:[%s253 + $0x1978] sm:$0xff]
        %v1146 = vld [vmem:[%s253 + $0x1980] sm:$0xff]
        %v1147 = vld [vmem:[%s253 + $0x1988] sm:$0xff]
        %v1148 = vld [vmem:[%s253 + $0x1990] sm:$0xff]
        %v1149 = vld [vmem:[%s253 + $0x1998] sm:$0xff]
        %v1150 = vld [vmem:[%s253 + $0x19a0] sm:$0xff]
        %v1151 = vld [vmem:[%s253 + $0x19a8] sm:$0xff]
        %v1152 = vld [vmem:[%s253 + $0x19b0] sm:$0xff]
        %v1153 = vld [vmem:[%s253 + $0x19b8] sm:$0xff]
        %v1154 = vld [vmem:[%s253 + $0x19c0] sm:$0xff]
        %v1155 = vld [vmem:[%s253 + $0x19c8] sm:$0xff]
        %v1156 = vld [vmem:[%s253 + $0x19d0] sm:$0xff]
        %v1157 = vld [vmem:[%s253 + $0x19d8] sm:$0xff]
        %v1158 = vld [vmem:[%s253 + $0x19e0] sm:$0xff]
        %v1159 = vld [vmem:[%s253 + $0x19e8] sm:$0xff]
        %v1160 = vld [vmem:[%s253 + $0x19f0] sm:$0xff]
        %v1161 = vld [vmem:[%s253 + $0x19f8] sm:$0xff]
        %v1162 = vld [vmem:[%s253 + $0x1a00] sm:$0xff]
        %v1163 = vld [vmem:[%s253 + $0x1a08] sm:$0xff]
        %v1164 = vld [vmem:[%s253 + $0x1a10] sm:$0xff]
        %v1165 = vld [vmem:[%s253 + $0x1a18] sm:$0xff]
        %v1166 = vld [vmem:[%s253 + $0x1a20] sm:$0xff]
        %v1167 = vld [vmem:[%s253 + $0x1a28] sm:$0xff]
        %v1168 = vld [vmem:[%s253 + $0x1a30] sm:$0xff]
        %v1169 = vld [vmem:[%s253 + $0x1a38] sm:$0xff]
        %v1170 = vld [vmem:[%s253 + $0x1a40] sm:$0xff]
        %v1171 = vld [vmem:[%s253 + $0x1a48] sm:$0xff]
        %v1172 = vld [vmem:[%s253 + $0x1a50] sm:$0xff]
        %v1173 = vld [vmem:[%s253 + $0x1a58] sm:$0xff]
        %v1174 = vld [vmem:[%s253 + $0x1a60] sm:$0xff]
        %v1175 = vld [vmem:[%s253 + $0x1a68] sm:$0xff]
        %v1176 = vld [vmem:[%s253 + $0x1a70] sm:$0xff]
        %v1177 = vld [vmem:[%s253 + $0x1a78] sm:$0xff]
        %v1178 = vld [vmem:[%s253 + $0x1a80] sm:$0xff]
        %v1179 = vld [vmem:[%s253 + $0x1a88] sm:$0xff]
        %v1180 = vld [vmem:[%s253 + $0x1a90] sm:$0xff]
        %v1181 = vld [vmem:[%s253 + $0x1a98] sm:$0xff]
        %v1182 = vld [vmem:[%s253 + $0x1aa0] sm:$0xff]
        %v1183 = vld [vmem:[%s253 + $0x1aa8] sm:$0xff]
        %v1184 = vld [vmem:[%s253 + $0x1ab0] sm:$0xff]
        %v1185 = vld [vmem:[%s253 + $0x1ab8] sm:$0xff]
        %v1186 = vld [vmem:[%s253 + $0x1ac0] sm:$0xff]
        %v1187 = vld [vmem:[%s253 + $0x1ac8] sm:$0xff]
        %v1188 = vld [vmem:[%s253 + $0x1ad0] sm:$0xff]
        %v1189 = vld [vmem:[%s253 + $0x1ad8] sm:$0xff]
        %v1190 = vld [vmem:[%s253 + $0x1ae0] sm:$0xff]
        %v1191 = vld [vmem:[%s253 + $0x1ae8] sm:$0xff]
        %v1192 = vld [vmem:[%s253 + $0x1af0] sm:$0xff]
        %v1193 = vld [vmem:[%s253 + $0x1af8] sm:$0xff]
        %v1194 = vld [vmem:[%s253 + $0x1b00] sm:$0xff]
        %v1195 = vld [vmem:[%s253 + $0x1b08] sm:$0xff]
        %v1196 = vld [vmem:[%s253 + $0x1b10] sm:$0xff]
        %v1197 = vld [vmem:[%s253 + $0x1b18] sm:$0xff]
        %v1198 = vld [vmem:[%s253 + $0x1b20] sm:$0xff]
        %v1199 = vld [vmem:[%s253 + $0x1b28] sm:$0xff]
        %v1200 = vld [vmem:[%s253 + $0x1b30] sm:$0xff]
        %v1201 = vld [vmem:[%s253 + $0x1b38] sm:$0xff]
        %v1202 = vld [vmem:[%s253 + $0x1b40] sm:$0xff]
        %v1203 = vld [vmem:[%s253 + $0x1b48] sm:$0xff]
        %v1204 = vld [vmem:[%s253 + $0x1b50] sm:$0xff]
        %v1205 = vld [vmem:[%s253 + $0x1b58] sm:$0xff]
        %v1206 = vld [vmem:[%s253 + $0x1b60] sm:$0xff]
        %v1207 = vld [vmem:[%s253 + $0x1b68] sm:$0xff]
        %v1208 = vld [vmem:[%s253 + $0x1b70] sm:$0xff]
        %v1209 = vld [vmem:[%s253 + $0x1b78] sm:$0xff]
        %v1210 = vld [vmem:[%s253 + $0x1b80] sm:$0xff]
        %v1211 = vld [vmem:[%s253 + $0x1b88] sm:$0xff]
        %v1212 = vld [vmem:[%s253 + $0x1b90] sm:$0xff]
        %v1213 = vld [vmem:[%s253 + $0x1b98] sm:$0xff]
        %v1214 = vld [vmem:[%s253 + $0x1ba0] sm:$0xff]
        %v1215 = vld [vmem:[%s253 + $0x1ba8] sm:$0xff]
        %v1216 = vld [vmem:[%s253 + $0x1bb0] sm:$0xff]
        %v1217 = vld [vmem:[%s253 + $0x1bb8] sm:$0xff]
        %v1218 = vld [vmem:[%s253 + $0x1bc0] sm:$0xff]
        %v1219 = vld [vmem:[%s253 + $0x1bc8] sm:$0xff]
        %v1220 = vld [vmem:[%s253 + $0x1bd0] sm:$0xff]
        %v1221 = vld [vmem:[%s253 + $0x1bd8] sm:$0xff]
        %v1222 = vld [vmem:[%s253 + $0x1be0] sm:$0xff]
        %v1223 = vld [vmem:[%s253 + $0x1be8] sm:$0xff]
        %v1224 = vld [vmem:[%s253 + $0x1bf0] sm:$0xff]
        %v1225 = vld [vmem:[%s253 + $0x1bf8] sm:$0xff]
        %v1226 = vld [vmem:[%s253 + $0x1c00] sm:$0xff]
        %v1227 = vld [vmem:[%s253 + $0x1c08] sm:$0xff]
        %v1228 = vld [vmem:[%s253 + $0x1c10] sm:$0xff]
        %v1229 = vld [vmem:[%s253 + $0x1c18] sm:$0xff]
        %v1230 = vld [vmem:[%s253 + $0x1c20] sm:$0xff]
        %v1231 = vld [vmem:[%s253 + $0x1c28] sm:$0xff]
        %v1232 = vld [vmem:[%s253 + $0x1c30] sm:$0xff]
        %v1233 = vld [vmem:[%s253 + $0x1c38] sm:$0xff]
        %v1234 = vld [vmem:[%s253 + $0x1c40] sm:$0xff]
        %v1235 = vld [vmem:[%s253 + $0x1c48] sm:$0xff]
        %v1236 = vld [vmem:[%s253 + $0x1c50] sm:$0xff]
        %v1237 = vld [vmem:[%s253 + $0x1c58] sm:$0xff]
        %v1238 = vld [vmem:[%s253 + $0x1c60] sm:$0xff]
        %v1239 = vld [vmem:[%s253 + $0x1c68] sm:$0xff]
        %v1240 = vld [vmem:[%s253 + $0x1c70] sm:$0xff]
        %v1241 = vld [vmem:[%s253 + $0x1c78] sm:$0xff]
        %v1242 = vld [vmem:[%s253 + $0x1c80] sm:$0xff]
        %v1243 = vld [vmem:[%s253 + $0x1c88] sm:$0xff]
        %v1244 = vld [vmem:[%s253 + $0x1c90] sm:$0xff]
        %v1245 = vld [vmem:[%s253 + $0x1c98] sm:$0xff]
        %v1246 = vld [vmem:[%s253 + $0x1ca0] sm:$0xff]
        %v1247 = vld [vmem:[%s253 + $0x1ca8] sm:$0xff]
        %v1248 = vld [vmem:[%s253 + $0x1cb0] sm:$0xff]
        %v1249 = vld [vmem:[%s253 + $0x1cb8] sm:$0xff]
        %v1250 = vld [vmem:[%s253 + $0x1cc0] sm:$0xff]
        %v1251 = vld [vmem:[%s253 + $0x1cc8] sm:$0xff]
        %v1252 = vld [vmem:[%s253 + $0x1cd0] sm:$0xff]
        %v1253 = vld [vmem:[%s253 + $0x1cd8] sm:$0xff]
        %v1254 = vld [vmem:[%s253 + $0x1ce0] sm:$0xff]
        %v1255 = vld [vmem:[%s253 + $0x1ce8] sm:$0xff]
        %v1256 = vld [vmem:[%s253 + $0x1cf0] sm:$0xff]
        %v1257 = vld [vmem:[%s253 + $0x1cf8] sm:$0xff]
        %v1258 = vld [vmem:[%s253 + $0x1d00] sm:$0xff]
        %v1259 = vld [vmem:[%s253 + $0x1d08] sm:$0xff]
        %v1260 = vld [vmem:[%s253 + $0x1d10] sm:$0xff]
        %v1261 = vld [vmem:[%s253 + $0x1d18] sm:$0xff]
        %v1262 = vld [vmem:[%s253 + $0x1d20] sm:$0xff]
        %v1263 = vld [vmem:[%s253 + $0x1d28] sm:$0xff]
        %v1264 = vld [vmem:[%s253 + $0x1d30] sm:$0xff]
        %v1265 = vld [vmem:[%s253 + $0x1d38] sm:$0xff]
        %v1266 = vld [vmem:[%s253 + $0x1d40] sm:$0xff]
        %v1267 = vld [vmem:[%s253 + $0x1d48] sm:$0xff]
        %v1268 = vld [vmem:[%s253 + $0x1d50] sm:$0xff]
        %v1269 = vld [vmem:[%s253 + $0x1d58] sm:$0xff]
        %v1270 = vld [vmem:[%s253 + $0x1d60] sm:$0xff]
        %v1271 = vld [vmem:[%s253 + $0x1d68] sm:$0xff]
        %v1272 = vld [vmem:[%s253 + $0x1d70] sm:$0xff]
        %v1273 = vld [vmem:[%s253 + $0x1d78] sm:$0xff]
        %v1274 = vld [vmem:[%s253 + $0x1d80] sm:$0xff]
        %v1275 = vld [vmem:[%s253 + $0x1d88] sm:$0xff]
        %v1276 = vld [vmem:[%s253 + $0x1d90] sm:$0xff]
        %v1277 = vld [vmem:[%s253 + $0x1d98] sm:$0xff]
        %v1278 = vld [vmem:[%s253 + $0x1da0] sm:$0xff]
        %v1279 = vld [vmem:[%s253 + $0x1da8] sm:$0xff]
        %v1280 = vld [vmem:[%s253 + $0x1db0] sm:$0xff]
        %v1281 = vld [vmem:[%s253 + $0x1db8] sm:$0xff]
        %v1282 = vld [vmem:[%s253 + $0x1dc0] sm:$0xff]
        %v1283 = vld [vmem:[%s253 + $0x1dc8] sm:$0xff]
        %v1284 = vld [vmem:[%s253 + $0x1dd0] sm:$0xff]
        %v1285 = vld [vmem:[%s253 + $0x1dd8] sm:$0xff]
        %v1286 = vld [vmem:[%s253 + $0x1de0] sm:$0xff]
        %v1287 = vld [vmem:[%s253 + $0x1de8] sm:$0xff]
        %v1288 = vld [vmem:[%s253 + $0x1df0] sm:$0xff]
        %v1289 = vld [vmem:[%s253 + $0x1df8] sm:$0xff]
        %v1290 = vld [vmem:[%s253 + $0x1e00] sm:$0xff]
        %v1291 = vld [vmem:[%s253 + $0x1e08] sm:$0xff]
        %v1292 = vld [vmem:[%s253 + $0x1e10] sm:$0xff]
        %v1293 = vld [vmem:[%s253 + $0x1e18] sm:$0xff]
        %v1294 = vld [vmem:[%s253 + $0x1e20] sm:$0xff]
        %v1295 = vld [vmem:[%s253 + $0x1e28] sm:$0xff]
        %v1296 = vld [vmem:[%s253 + $0x1e30] sm:$0xff]
        %v1297 = vld [vmem:[%s253 + $0x1e38] sm:$0xff]
        %v1298 = vld [vmem:[%s253 + $0x1e40] sm:$0xff]
        %v1299 = vld [vmem:[%s253 + $0x1e48] sm:$0xff]
        %v1300 = vld [vmem:[%s253 + $0x1e50] sm:$0xff]
        %v1301 = vld [vmem:[%s253 + $0x1e58] sm:$0xff]
        %v1302 = vld [vmem:[%s253 + $0x1e60] sm:$0xff]
        %v1303 = vld [vmem:[%s253 + $0x1e68] sm:$0xff]
        %v1304 = vld [vmem:[%s253 + $0x1e70] sm:$0xff]
        %v1305 = vld [vmem:[%s253 + $0x1e78] sm:$0xff]
        %v1306 = vld [vmem:[%s253 + $0x1e80] sm:$0xff]
        %v1307 = vld [vmem:[%s253 + $0x1e88] sm:$0xff]
        %v1308 = vld [vmem:[%s253 + $0x1e90] sm:$0xff]
        %v1309 = vld [vmem:[%s253 + $0x1e98] sm:$0xff]
        %v1310 = vld [vmem:[%s253 + $0x1ea0] sm:$0xff]
        %v1311 = vld [vmem:[%s253 + $0x1ea8] sm:$0xff]
        %v1312 = vld [vmem:[%s253 + $0x1eb0] sm:$0xff]
        %v1313 = vld [vmem:[%s253 + $0x1eb8] sm:$0xff]
        %v1314 = vld [vmem:[%s253 + $0x1ec0] sm:$0xff]
        %v1315 = vld [vmem:[%s253 + $0x1ec8] sm:$0xff]
        %v1316 = vld [vmem:[%s253 + $0x1ed0] sm:$0xff]
        %v1317 = vld [vmem:[%s253 + $0x1ed8] sm:$0xff]
        %v1318 = vld [vmem:[%s253 + $0x1ee0] sm:$0xff]
        %v1319 = vld [vmem:[%s253 + $0x1ee8] sm:$0xff]
        %v1320 = vld [vmem:[%s253 + $0x1ef0] sm:$0xff]
        %v1321 = vld [vmem:[%s253 + $0x1ef8] sm:$0xff]
        %v1322 = vld [vmem:[%s253 + $0x1f00] sm:$0xff]
        %v1323 = vld [vmem:[%s253 + $0x1f08] sm:$0xff]
        %v1324 = vld [vmem:[%s253 + $0x1f10] sm:$0xff]
        %v1325 = vld [vmem:[%s253 + $0x1f18] sm:$0xff]
        %v1326 = vld [vmem:[%s253 + $0x1f20] sm:$0xff]
        %v1327 = vld [vmem:[%s253 + $0x1f28] sm:$0xff]
        %v1328 = vld [vmem:[%s253 + $0x1f30] sm:$0xff]
        %v1329 = vld [vmem:[%s253 + $0x1f38] sm:$0xff]
        %v1330 = vld [vmem:[%s253 + $0x1f40] sm:$0xff]
        %v1331 = vld [vmem:[%s253 + $0x1f48] sm:$0xff]
        %v1332 = vld [vmem:[%s253 + $0x1f50] sm:$0xff]
        %v1333 = vld [vmem:[%s253 + $0x1f58] sm:$0xff]
        %v1334 = vld [vmem:[%s253 + $0x1f60] sm:$0xff]
        %v1335 = vld [vmem:[%s253 + $0x1f68] sm:$0xff]
        %v1336 = vld [vmem:[%s253 + $0x1f70] sm:$0xff]
        %v1337 = vld [vmem:[%s253 + $0x1f78] sm:$0xff]
        %v1338 = vld [vmem:[%s253 + $0x1f80] sm:$0xff]
        %v1339 = vld [vmem:[%s253 + $0x1f88] sm:$0xff]
        %v1340 = vld [vmem:[%s253 + $0x1f90] sm:$0xff]
        %v1341 = vld [vmem:[%s253 + $0x1f98] sm:$0xff]
        %v1342 = vld [vmem:[%s253 + $0x1fa0] sm:$0xff]
        %v1343 = vld [vmem:[%s253 + $0x1fa8] sm:$0xff]
        %v1344 = vld [vmem:[%s253 + $0x1fb0] sm:$0xff]
        %v1345 = vld [vmem:[%s253 + $0x1fb8] sm:$0xff]
        %v1346 = vld [vmem:[%s253 + $0x1fc0] sm:$0xff]
        %v1347 = vld [vmem:[%s253 + $0x1fc8] sm:$0xff]
        %v1348 = vld [vmem:[%s253 + $0x1fd0] sm:$0xff]
        %v1349 = vld [vmem:[%s253 + $0x1fd8] sm:$0xff]
        %v1350 = vld [vmem:[%s253 + $0x1fe0] sm:$0xff]
        %v1351 = vld [vmem:[%s253 + $0x1fe8] sm:$0xff]
        %v1352 = vld [vmem:[%s253 + $0x1ff0] sm:$0xff]
        %v1353 = vld [vmem:[%s253 + $0x1ff8] sm:$0xff]
        %v1362 = vunpack.c.l.b16 %v322
        %v1363 = vunpack.c.h.b16 %v322
        %v1364 = vunpack.c.l.b16 %v323
        %v1365 = vunpack.c.h.b16 %v323
        %v1366 = vunpack.c.l.b16 %v324
        %v1367 = vunpack.c.h.b16 %v324
        %v1368 = vunpack.c.l.b16 %v325
        %v1369 = vunpack.c.h.b16 %v325
        %v1370 = vunpack.c.l.b16 %v326
        %v1371 = vunpack.c.h.b16 %v326
        %v1372 = vunpack.c.l.b16 %v327
        %v1373 = vunpack.c.h.b16 %v327
        %v1374 = vunpack.c.l.b16 %v328
        %v1375 = vunpack.c.h.b16 %v328
        %v1376 = vunpack.c.l.b16 %v329
        %v1377 = vunpack.c.h.b16 %v329
        %v1378 = vpack.c.b16 %v1362, %v1362
        %v1379 = vpack.c.b16 %v1363, %v1363
        %v1380 = vpack.c.b16 %v1364, %v1364
        %v1381 = vpack.c.b16 %v1365, %v1365
        %v1382 = vpack.c.b16 %v1366, %v1366
        %v1383 = vpack.c.b16 %v1367, %v1367
        %v1384 = vpack.c.b16 %v1368, %v1368
        %v1385 = vpack.c.b16 %v1369, %v1369
        %v1386 = vpack.c.b16 %v1370, %v1370
        %v1387 = vpack.c.b16 %v1371, %v1371
        %v1388 = vpack.c.b16 %v1372, %v1372
        %v1389 = vpack.c.b16 %v1373, %v1373
        %v1390 = vpack.c.b16 %v1374, %v1374
        %v1391 = vpack.c.b16 %v1375, %v1375
        %v1392 = vpack.c.b16 %v1376, %v1376
        %v1393 = vpack.c.b16 %v1377, %v1377
        %v2434 = vunpack.c.l.b16 %v330
        %v2435 = vunpack.c.h.b16 %v330
        %v2436 = vunpack.c.l.b16 %v331
        %v2437 = vunpack.c.h.b16 %v331
        %v2438 = vunpack.c.l.b16 %v332
        %v2439 = vunpack.c.h.b16 %v332
        %v2440 = vunpack.c.l.b16 %v333
        %v2441 = vunpack.c.h.b16 %v333
        %v2442 = vunpack.c.l.b16 %v334
        %v2443 = vunpack.c.h.b16 %v334
        %v2444 = vunpack.c.l.b16 %v335
        %v2445 = vunpack.c.h.b16 %v335
        %v2446 = vunpack.c.l.b16 %v336
        %v2447 = vunpack.c.h.b16 %v336
        %v2448 = vunpack.c.l.b16 %v337
        %v2449 = vunpack.c.h.b16 %v337
        %v2450 = vunpack.c.l.b16 %v338
        %v2451 = vunpack.c.h.b16 %v338
        %v2452 = vunpack.c.l.b16 %v339
        %v2453 = vunpack.c.h.b16 %v339
        %v2454 = vunpack.c.l.b16 %v340
        %v2455 = vunpack.c.h.b16 %v340
        %v2456 = vunpack.c.l.b16 %v341
        %v2457 = vunpack.c.h.b16 %v341
        %v2458 = vunpack.c.l.b16 %v342
        %v2459 = vunpack.c.h.b16 %v342
        %v2460 = vunpack.c.l.b16 %v343
        %v2461 = vunpack.c.h.b16 %v343
        %v2462 = vunpack.c.l.b16 %v344
        %v2463 = vunpack.c.h.b16 %v344
        %v2464 = vunpack.c.l.b16 %v345
        %v2465 = vunpack.c.h.b16 %v345
        %v2466 = vunpack.c.l.b16 %v346
        %v2467 = vunpack.c.h.b16 %v346
        %v2468 = vunpack.c.l.b16 %v347
        %v2469 = vunpack.c.h.b16 %v347
        %v2470 = vunpack.c.l.b16 %v348
        %v2471 = vunpack.c.h.b16 %v348
        %v2472 = vunpack.c.l.b16 %v349
        %v2473 = vunpack.c.h.b16 %v349
        %v2474 = vunpack.c.l.b16 %v350
        %v2475 = vunpack.c.h.b16 %v350
        %v2476 = vunpack.c.l.b16 %v351
        %v2477 = vunpack.c.h.b16 %v351
        %v2478 = vunpack.c.l.b16 %v352
        %v2479 = vunpack.c.h.b16 %v352
        %v2480 = vunpack.c.l.b16 %v353
        %v2481 = vunpack.c.h.b16 %v353
        %v2482 = vunpack.c.l.b16 %v354
        %v2483 = vunpack.c.h.b16 %v354
        %v2484 = vunpack.c.l.b16 %v355
        %v2485 = vunpack.c.h.b16 %v355
        %v2486 = vunpack.c.l.b16 %v356
        %v2487 = vunpack.c.h.b16 %v356
        %v2488 = vunpack.c.l.b16 %v357
        %v2489 = vunpack.c.h.b16 %v357
        %v2490 = vunpack.c.l.b16 %v358
        %v2491 = vunpack.c.h.b16 %v358
        %v2492 = vunpack.c.l.b16 %v359
        %v2493 = vunpack.c.h.b16 %v359
        %v2494 = vunpack.c.l.b16 %v360
        %v2495 = vunpack.c.h.b16 %v360
        %v2496 = vunpack.c.l.b16 %v361
        %v2497 = vunpack.c.h.b16 %v361
        %v2498 = vunpack.c.l.b16 %v362
        %v2499 = vunpack.c.h.b16 %v362
        %v2500 = vunpack.c.l.b16 %v363
        %v2501 = vunpack.c.h.b16 %v363
        %v2502 = vunpack.c.l.b16 %v364
        %v2503 = vunpack.c.h.b16 %v364
        %v2504 = vunpack.c.l.b16 %v365
        %v2505 = vunpack.c.h.b16 %v365
        %v2506 = vunpack.c.l.b16 %v366
        %v2507 = vunpack.c.h.b16 %v366
        %v2508 = vunpack.c.l.b16 %v367
        %v2509 = vunpack.c.h.b16 %v367
        %v2510 = vunpack.c.l.b16 %v368
        %v2511 = vunpack.c.h.b16 %v368
        %v2512 = vunpack.c.l.b16 %v369
        %v2513 = vunpack.c.h.b16 %v369
        %v2514 = vunpack.c.l.b16 %v370
        %v2515 = vunpack.c.h.b16 %v370
        %v2516 = vunpack.c.l.b16 %v371
        %v2517 = vunpack.c.h.b16 %v371
        %v2518 = vunpack.c.l.b16 %v372
        %v2519 = vunpack.c.h.b16 %v372
        %v2520 = vunpack.c.l.b16 %v373
        %v2521 = vunpack.c.h.b16 %v373
        %v2522 = vunpack.c.l.b16 %v374
        %v2523 = vunpack.c.h.b16 %v374
        %v2524 = vunpack.c.l.b16 %v375
        %v2525 = vunpack.c.h.b16 %v375
        %v2526 = vunpack.c.l.b16 %v376
        %v2527 = vunpack.c.h.b16 %v376
        %v2528 = vunpack.c.l.b16 %v377
        %v2529 = vunpack.c.h.b16 %v377
        %v2530 = vunpack.c.l.b16 %v378
        %v2531 = vunpack.c.h.b16 %v378
        %v2532 = vunpack.c.l.b16 %v379
        %v2533 = vunpack.c.h.b16 %v379
        %v2534 = vunpack.c.l.b16 %v380
        %v2535 = vunpack.c.h.b16 %v380
        %v2536 = vunpack.c.l.b16 %v381
        %v2537 = vunpack.c.h.b16 %v381
        %v2538 = vunpack.c.l.b16 %v382
        %v2539 = vunpack.c.h.b16 %v382
        %v2540 = vunpack.c.l.b16 %v383
        %v2541 = vunpack.c.h.b16 %v383
        %v2542 = vunpack.c.l.b16 %v384
        %v2543 = vunpack.c.h.b16 %v384
        %v2544 = vunpack.c.l.b16 %v385
        %v2545 = vunpack.c.h.b16 %v385
        %v2546 = vunpack.c.l.b16 %v386
        %v2547 = vunpack.c.h.b16 %v386
        %v2548 = vunpack.c.l.b16 %v387
        %v2549 = vunpack.c.h.b16 %v387
        %v2550 = vunpack.c.l.b16 %v388
        %v2551 = vunpack.c.h.b16 %v388
        %v2552 = vunpack.c.l.b16 %v389
        %v2553 = vunpack.c.h.b16 %v389
        %v2554 = vunpack.c.l.b16 %v390
        %v2555 = vunpack.c.h.b16 %v390
        %v2556 = vunpack.c.l.b16 %v391
        %v2557 = vunpack.c.h.b16 %v391
        %v2558 = vunpack.c.l.b16 %v392
        %v2559 = vunpack.c.h.b16 %v392
        %v2560 = vunpack.c.l.b16 %v393
        %v2561 = vunpack.c.h.b16 %v393
        %v2562 = vunpack.c.l.b16 %v394
        %v2563 = vunpack.c.h.b16 %v394
        %v2564 = vunpack.c.l.b16 %v395
        %v2565 = vunpack.c.h.b16 %v395
        %v2566 = vunpack.c.l.b16 %v396
        %v2567 = vunpack.c.h.b16 %v396
        %v2568 = vunpack.c.l.b16 %v397
        %v2569 = vunpack.c.h.b16 %v397
        %v2570 = vunpack.c.l.b16 %v398
        %v2571 = vunpack.c.h.b16 %v398
        %v2572 = vunpack.c.l.b16 %v399
        %v2573 = vunpack.c.h.b16 %v399
        %v2574 = vunpack.c.l.b16 %v400
        %v2575 = vunpack.c.h.b16 %v400
        %v2576 = vunpack.c.l.b16 %v401
        %v2577 = vunpack.c.h.b16 %v401
        %v2578 = vunpack.c.l.b16 %v402
        %v2579 = vunpack.c.h.b16 %v402
        %v2580 = vunpack.c.l.b16 %v403
        %v2581 = vunpack.c.h.b16 %v403
        %v2582 = vunpack.c.l.b16 %v404
        %v2583 = vunpack.c.h.b16 %v404
        %v2584 = vunpack.c.l.b16 %v405
        %v2585 = vunpack.c.h.b16 %v405
        %v2586 = vunpack.c.l.b16 %v406
        %v2587 = vunpack.c.h.b16 %v406
        %v2588 = vunpack.c.l.b16 %v407
        %v2589 = vunpack.c.h.b16 %v407
        %v2590 = vunpack.c.l.b16 %v408
        %v2591 = vunpack.c.h.b16 %v408
        %v2592 = vunpack.c.l.b16 %v409
        %v2593 = vunpack.c.h.b16 %v409
        %v2594 = vunpack.c.l.b16 %v410
        %v2595 = vunpack.c.h.b16 %v410
        %v2596 = vunpack.c.l.b16 %v411
        %v2597 = vunpack.c.h.b16 %v411
        %v2598 = vunpack.c.l.b16 %v412
        %v2599 = vunpack.c.h.b16 %v412
        %v2600 = vunpack.c.l.b16 %v413
        %v2601 = vunpack.c.h.b16 %v413
        %v2602 = vunpack.c.l.b16 %v414
        %v2603 = vunpack.c.h.b16 %v414
        %v2604 = vunpack.c.l.b16 %v415
        %v2605 = vunpack.c.h.b16 %v415
        %v2606 = vunpack.c.l.b16 %v416
        %v2607 = vunpack.c.h.b16 %v416
        %v2608 = vunpack.c.l.b16 %v417
        %v2609 = vunpack.c.h.b16 %v417
        %v2610 = vunpack.c.l.b16 %v418
        %v2611 = vunpack.c.h.b16 %v418
        %v2612 = vunpack.c.l.b16 %v419
        %v2613 = vunpack.c.h.b16 %v419
        %v2614 = vunpack.c.l.b16 %v420
        %v2615 = vunpack.c.h.b16 %v420
        %v2616 = vunpack.c.l.b16 %v421
        %v2617 = vunpack.c.h.b16 %v421
        %v2618 = vunpack.c.l.b16 %v422
        %v2619 = vunpack.c.h.b16 %v422
        %v2620 = vunpack.c.l.b16 %v423
        %v2621 = vunpack.c.h.b16 %v423
        %v2622 = vunpack.c.l.b16 %v424
        %v2623 = vunpack.c.h.b16 %v424
        %v2624 = vunpack.c.l.b16 %v425
        %v2625 = vunpack.c.h.b16 %v425
        %v2626 = vunpack.c.l.b16 %v426
        %v2627 = vunpack.c.h.b16 %v426
        %v2628 = vunpack.c.l.b16 %v427
        %v2629 = vunpack.c.h.b16 %v427
        %v2630 = vunpack.c.l.b16 %v428
        %v2631 = vunpack.c.h.b16 %v428
        %v2632 = vunpack.c.l.b16 %v429
        %v2633 = vunpack.c.h.b16 %v429
        %v2634 = vunpack.c.l.b16 %v430
        %v2635 = vunpack.c.h.b16 %v430
        %v2636 = vunpack.c.l.b16 %v431
        %v2637 = vunpack.c.h.b16 %v431
        %v2638 = vunpack.c.l.b16 %v432
        %v2639 = vunpack.c.h.b16 %v432
        %v2640 = vunpack.c.l.b16 %v433
        %v2641 = vunpack.c.h.b16 %v433
        %v2642 = vunpack.c.l.b16 %v434
        %v2643 = vunpack.c.h.b16 %v434
        %v2644 = vunpack.c.l.b16 %v435
        %v2645 = vunpack.c.h.b16 %v435
        %v2646 = vunpack.c.l.b16 %v436
        %v2647 = vunpack.c.h.b16 %v436
        %v2648 = vunpack.c.l.b16 %v437
        %v2649 = vunpack.c.h.b16 %v437
        %v2650 = vunpack.c.l.b16 %v438
        %v2651 = vunpack.c.h.b16 %v438
        %v2652 = vunpack.c.l.b16 %v439
        %v2653 = vunpack.c.h.b16 %v439
        %v2654 = vunpack.c.l.b16 %v440
        %v2655 = vunpack.c.h.b16 %v440
        %v2656 = vunpack.c.l.b16 %v441
        %v2657 = vunpack.c.h.b16 %v441
        %v2658 = vunpack.c.l.b16 %v442
        %v2659 = vunpack.c.h.b16 %v442
        %v2660 = vunpack.c.l.b16 %v443
        %v2661 = vunpack.c.h.b16 %v443
        %v2662 = vunpack.c.l.b16 %v444
        %v2663 = vunpack.c.h.b16 %v444
        %v2664 = vunpack.c.l.b16 %v445
        %v2665 = vunpack.c.h.b16 %v445
        %v2666 = vunpack.c.l.b16 %v446
        %v2667 = vunpack.c.h.b16 %v446
        %v2668 = vunpack.c.l.b16 %v447
        %v2669 = vunpack.c.h.b16 %v447
        %v2670 = vunpack.c.l.b16 %v448
        %v2671 = vunpack.c.h.b16 %v448
        %v2672 = vunpack.c.l.b16 %v449
        %v2673 = vunpack.c.h.b16 %v449
        %v2674 = vunpack.c.l.b16 %v450
        %v2675 = vunpack.c.h.b16 %v450
        %v2676 = vunpack.c.l.b16 %v451
        %v2677 = vunpack.c.h.b16 %v451
        %v2678 = vunpack.c.l.b16 %v452
        %v2679 = vunpack.c.h.b16 %v452
        %v2680 = vunpack.c.l.b16 %v453
        %v2681 = vunpack.c.h.b16 %v453
        %v2682 = vunpack.c.l.b16 %v454
        %v2683 = vunpack.c.h.b16 %v454
        %v2684 = vunpack.c.l.b16 %v455
        %v2685 = vunpack.c.h.b16 %v455
        %v2686 = vunpack.c.l.b16 %v456
        %v2687 = vunpack.c.h.b16 %v456
        %v2688 = vunpack.c.l.b16 %v457
        %v2689 = vunpack.c.h.b16 %v457
        %v2690 = vunpack.c.l.b16 %v458
        %v2691 = vunpack.c.h.b16 %v458
        %v2692 = vunpack.c.l.b16 %v459
        %v2693 = vunpack.c.h.b16 %v459
        %v2694 = vunpack.c.l.b16 %v460
        %v2695 = vunpack.c.h.b16 %v460
        %v2696 = vunpack.c.l.b16 %v461
        %v2697 = vunpack.c.h.b16 %v461
        %v2698 = vunpack.c.l.b16 %v462
        %v2699 = vunpack.c.h.b16 %v462
        %v2700 = vunpack.c.l.b16 %v463
        %v2701 = vunpack.c.h.b16 %v463
        %v2702 = vunpack.c.l.b16 %v464
        %v2703 = vunpack.c.h.b16 %v464
        %v2704 = vunpack.c.l.b16 %v465
        %v2705 = vunpack.c.h.b16 %v465
        %v2706 = vunpack.c.l.b16 %v466
        %v2707 = vunpack.c.h.b16 %v466
        %v2708 = vunpack.c.l.b16 %v467
        %v2709 = vunpack.c.h.b16 %v467
        %v2710 = vunpack.c.l.b16 %v468
        %v2711 = vunpack.c.h.b16 %v468
        %v2712 = vunpack.c.l.b16 %v469
        %v2713 = vunpack.c.h.b16 %v469
        %v2714 = vunpack.c.l.b16 %v470
        %v2715 = vunpack.c.h.b16 %v470
        %v2716 = vunpack.c.l.b16 %v471
        %v2717 = vunpack.c.h.b16 %v471
        %v2718 = vunpack.c.l.b16 %v472
        %v2719 = vunpack.c.h.b16 %v472
        %v2720 = vunpack.c.l.b16 %v473
        %v2721 = vunpack.c.h.b16 %v473
        %v2722 = vunpack.c.l.b16 %v474
        %v2723 = vunpack.c.h.b16 %v474
        %v2724 = vunpack.c.l.b16 %v475
        %v2725 = vunpack.c.h.b16 %v475
        %v2726 = vunpack.c.l.b16 %v476
        %v2727 = vunpack.c.h.b16 %v476
        %v2728 = vunpack.c.l.b16 %v477
        %v2729 = vunpack.c.h.b16 %v477
        %v2730 = vunpack.c.l.b16 %v478
        %v2731 = vunpack.c.h.b16 %v478
        %v2732 = vunpack.c.l.b16 %v479
        %v2733 = vunpack.c.h.b16 %v479
        %v2734 = vunpack.c.l.b16 %v480
        %v2735 = vunpack.c.h.b16 %v480
        %v2736 = vunpack.c.l.b16 %v481
        %v2737 = vunpack.c.h.b16 %v481
        %v2738 = vunpack.c.l.b16 %v482
        %v2739 = vunpack.c.h.b16 %v482
        %v2740 = vunpack.c.l.b16 %v483
        %v2741 = vunpack.c.h.b16 %v483
        %v2742 = vunpack.c.l.b16 %v484
        %v2743 = vunpack.c.h.b16 %v484
        %v2744 = vunpack.c.l.b16 %v485
        %v2745 = vunpack.c.h.b16 %v485
        %v2746 = vunpack.c.l.b16 %v486
        %v2747 = vunpack.c.h.b16 %v486
        %v2748 = vunpack.c.l.b16 %v487
        %v2749 = vunpack.c.h.b16 %v487
        %v2750 = vunpack.c.l.b16 %v488
        %v2751 = vunpack.c.h.b16 %v488
        %v2752 = vunpack.c.l.b16 %v489
        %v2753 = vunpack.c.h.b16 %v489
        %v2754 = vunpack.c.l.b16 %v490
        %v2755 = vunpack.c.h.b16 %v490
        %v2756 = vunpack.c.l.b16 %v491
        %v2757 = vunpack.c.h.b16 %v491
        %v2758 = vunpack.c.l.b16 %v492
        %v2759 = vunpack.c.h.b16 %v492
        %v2760 = vunpack.c.l.b16 %v493
        %v2761 = vunpack.c.h.b16 %v493
        %v2762 = vunpack.c.l.b16 %v494
        %v2763 = vunpack.c.h.b16 %v494
        %v2764 = vunpack.c.l.b16 %v495
        %v2765 = vunpack.c.h.b16 %v495
        %v2766 = vunpack.c.l.b16 %v496
        %v2767 = vunpack.c.h.b16 %v496
        %v2768 = vunpack.c.l.b16 %v497
        %v2769 = vunpack.c.h.b16 %v497
        %v2770 = vunpack.c.l.b16 %v498
        %v2771 = vunpack.c.h.b16 %v498
        %v2772 = vunpack.c.l.b16 %v499
        %v2773 = vunpack.c.h.b16 %v499
        %v2774 = vunpack.c.l.b16 %v500
        %v2775 = vunpack.c.h.b16 %v500
        %v2776 = vunpack.c.l.b16 %v501
        %v2777 = vunpack.c.h.b16 %v501
        %v2778 = vunpack.c.l.b16 %v502
        %v2779 = vunpack.c.h.b16 %v502
        %v2780 = vunpack.c.l.b16 %v503
        %v2781 = vunpack.c.h.b16 %v503
        %v2782 = vunpack.c.l.b16 %v504
        %v2783 = vunpack.c.h.b16 %v504
        %v2784 = vunpack.c.l.b16 %v505
        %v2785 = vunpack.c.h.b16 %v505
        %v2786 = vunpack.c.l.b16 %v506
        %v2787 = vunpack.c.h.b16 %v506
        %v2788 = vunpack.c.l.b16 %v507
        %v2789 = vunpack.c.h.b16 %v507
        %v2790 = vunpack.c.l.b16 %v508
        %v2791 = vunpack.c.h.b16 %v508
        %v2792 = vunpack.c.l.b16 %v509
        %v2793 = vunpack.c.h.b16 %v509
        %v2794 = vunpack.c.l.b16 %v510
        %v2795 = vunpack.c.h.b16 %v510
        %v2796 = vunpack.c.l.b16 %v511
        %v2797 = vunpack.c.h.b16 %v511
        %v2798 = vunpack.c.l.b16 %v512
        %v2799 = vunpack.c.h.b16 %v512
        %v2800 = vunpack.c.l.b16 %v513
        %v2801 = vunpack.c.h.b16 %v513
        %v2802 = vunpack.c.l.b16 %v514
        %v2803 = vunpack.c.h.b16 %v514
        %v2804 = vunpack.c.l.b16 %v515
        %v2805 = vunpack.c.h.b16 %v515
        %v2806 = vunpack.c.l.b16 %v516
        %v2807 = vunpack.c.h.b16 %v516
        %v2808 = vunpack.c.l.b16 %v517
        %v2809 = vunpack.c.h.b16 %v517
        %v2810 = vunpack.c.l.b16 %v518
        %v2811 = vunpack.c.h.b16 %v518
        %v2812 = vunpack.c.l.b16 %v519
        %v2813 = vunpack.c.h.b16 %v519
        %v2814 = vunpack.c.l.b16 %v520
        %v2815 = vunpack.c.h.b16 %v520
        %v2816 = vunpack.c.l.b16 %v521
        %v2817 = vunpack.c.h.b16 %v521
        %v2818 = vunpack.c.l.b16 %v522
        %v2819 = vunpack.c.h.b16 %v522
        %v2820 = vunpack.c.l.b16 %v523
        %v2821 = vunpack.c.h.b16 %v523
        %v2822 = vunpack.c.l.b16 %v524
        %v2823 = vunpack.c.h.b16 %v524
        %v2824 = vunpack.c.l.b16 %v525
        %v2825 = vunpack.c.h.b16 %v525
        %v2826 = vunpack.c.l.b16 %v526
        %v2827 = vunpack.c.h.b16 %v526
        %v2828 = vunpack.c.l.b16 %v527
        %v2829 = vunpack.c.h.b16 %v527
        %v2830 = vunpack.c.l.b16 %v528
        %v2831 = vunpack.c.h.b16 %v528
        %v2832 = vunpack.c.l.b16 %v529
        %v2833 = vunpack.c.h.b16 %v529
        %v2834 = vunpack.c.l.b16 %v530
        %v2835 = vunpack.c.h.b16 %v530
        %v2836 = vunpack.c.l.b16 %v531
        %v2837 = vunpack.c.h.b16 %v531
        %v2838 = vunpack.c.l.b16 %v532
        %v2839 = vunpack.c.h.b16 %v532
        %v2840 = vunpack.c.l.b16 %v533
        %v2841 = vunpack.c.h.b16 %v533
        %v2842 = vunpack.c.l.b16 %v534
        %v2843 = vunpack.c.h.b16 %v534
        %v2844 = vunpack.c.l.b16 %v535
        %v2845 = vunpack.c.h.b16 %v535
        %v2846 = vunpack.c.l.b16 %v536
        %v2847 = vunpack.c.h.b16 %v536
        %v2848 = vunpack.c.l.b16 %v537
        %v2849 = vunpack.c.h.b16 %v537
        %v2850 = vunpack.c.l.b16 %v538
        %v2851 = vunpack.c.h.b16 %v538
        %v2852 = vunpack.c.l.b16 %v539
        %v2853 = vunpack.c.h.b16 %v539
        %v2854 = vunpack.c.l.b16 %v540
        %v2855 = vunpack.c.h.b16 %v540
        %v2856 = vunpack.c.l.b16 %v541
        %v2857 = vunpack.c.h.b16 %v541
        %v2858 = vunpack.c.l.b16 %v542
        %v2859 = vunpack.c.h.b16 %v542
        %v2860 = vunpack.c.l.b16 %v543
        %v2861 = vunpack.c.h.b16 %v543
        %v2862 = vunpack.c.l.b16 %v544
        %v2863 = vunpack.c.h.b16 %v544
        %v2864 = vunpack.c.l.b16 %v545
        %v2865 = vunpack.c.h.b16 %v545
        %v2866 = vunpack.c.l.b16 %v546
        %v2867 = vunpack.c.h.b16 %v546
        %v2868 = vunpack.c.l.b16 %v547
        %v2869 = vunpack.c.h.b16 %v547
        %v2870 = vunpack.c.l.b16 %v548
        %v2871 = vunpack.c.h.b16 %v548
        %v2872 = vunpack.c.l.b16 %v549
        %v2873 = vunpack.c.h.b16 %v549
        %v2874 = vunpack.c.l.b16 %v550
        %v2875 = vunpack.c.h.b16 %v550
        %v2876 = vunpack.c.l.b16 %v551
        %v2877 = vunpack.c.h.b16 %v551
        %v2878 = vunpack.c.l.b16 %v552
        %v2879 = vunpack.c.h.b16 %v552
        %v2880 = vunpack.c.l.b16 %v553
        %v2881 = vunpack.c.h.b16 %v553
        %v2882 = vunpack.c.l.b16 %v554
        %v2883 = vunpack.c.h.b16 %v554
        %v2884 = vunpack.c.l.b16 %v555
        %v2885 = vunpack.c.h.b16 %v555
        %v2886 = vunpack.c.l.b16 %v556
        %v2887 = vunpack.c.h.b16 %v556
        %v2888 = vunpack.c.l.b16 %v557
        %v2889 = vunpack.c.h.b16 %v557
        %v2890 = vunpack.c.l.b16 %v558
        %v2891 = vunpack.c.h.b16 %v558
        %v2892 = vunpack.c.l.b16 %v559
        %v2893 = vunpack.c.h.b16 %v559
        %v2894 = vunpack.c.l.b16 %v560
        %v2895 = vunpack.c.h.b16 %v560
        %v2896 = vunpack.c.l.b16 %v561
        %v2897 = vunpack.c.h.b16 %v561
        %v2898 = vunpack.c.l.b16 %v562
        %v2899 = vunpack.c.h.b16 %v562
        %v2900 = vunpack.c.l.b16 %v563
        %v2901 = vunpack.c.h.b16 %v563
        %v2902 = vunpack.c.l.b16 %v564
        %v2903 = vunpack.c.h.b16 %v564
        %v2904 = vunpack.c.l.b16 %v565
        %v2905 = vunpack.c.h.b16 %v565
        %v2906 = vunpack.c.l.b16 %v566
        %v2907 = vunpack.c.h.b16 %v566
        %v2908 = vunpack.c.l.b16 %v567
        %v2909 = vunpack.c.h.b16 %v567
        %v2910 = vunpack.c.l.b16 %v568
        %v2911 = vunpack.c.h.b16 %v568
        %v2912 = vunpack.c.l.b16 %v569
        %v2913 = vunpack.c.h.b16 %v569
        %v2914 = vunpack.c.l.b16 %v570
        %v2915 = vunpack.c.h.b16 %v570
        %v2916 = vunpack.c.l.b16 %v571
        %v2917 = vunpack.c.h.b16 %v571
        %v2918 = vunpack.c.l.b16 %v572
        %v2919 = vunpack.c.h.b16 %v572
        %v2920 = vunpack.c.l.b16 %v573
        %v2921 = vunpack.c.h.b16 %v573
        %v2922 = vunpack.c.l.b16 %v574
        %v2923 = vunpack.c.h.b16 %v574
        %v2924 = vunpack.c.l.b16 %v575
        %v2925 = vunpack.c.h.b16 %v575
        %v2926 = vunpack.c.l.b16 %v576
        %v2927 = vunpack.c.h.b16 %v576
        %v2928 = vunpack.c.l.b16 %v577
        %v2929 = vunpack.c.h.b16 %v577
        %v2930 = vunpack.c.l.b16 %v578
        %v2931 = vunpack.c.h.b16 %v578
        %v2932 = vunpack.c.l.b16 %v579
        %v2933 = vunpack.c.h.b16 %v579
        %v2934 = vunpack.c.l.b16 %v580
        %v2935 = vunpack.c.h.b16 %v580
        %v2936 = vunpack.c.l.b16 %v581
        %v2937 = vunpack.c.h.b16 %v581
        %v2938 = vunpack.c.l.b16 %v582
        %v2939 = vunpack.c.h.b16 %v582
        %v2940 = vunpack.c.l.b16 %v583
        %v2941 = vunpack.c.h.b16 %v583
        %v2942 = vunpack.c.l.b16 %v584
        %v2943 = vunpack.c.h.b16 %v584
        %v2944 = vunpack.c.l.b16 %v585
        %v2945 = vunpack.c.h.b16 %v585
        %v2946 = vunpack.c.l.b16 %v586
        %v2947 = vunpack.c.h.b16 %v586
        %v2948 = vunpack.c.l.b16 %v587
        %v2949 = vunpack.c.h.b16 %v587
        %v2950 = vunpack.c.l.b16 %v588
        %v2951 = vunpack.c.h.b16 %v588
        %v2952 = vunpack.c.l.b16 %v589
        %v2953 = vunpack.c.h.b16 %v589
        %v2954 = vunpack.c.l.b16 %v590
        %v2955 = vunpack.c.h.b16 %v590
        %v2956 = vunpack.c.l.b16 %v591
        %v2957 = vunpack.c.h.b16 %v591
        %v2958 = vunpack.c.l.b16 %v592
        %v2959 = vunpack.c.h.b16 %v592
        %v2960 = vunpack.c.l.b16 %v593
        %v2961 = vunpack.c.h.b16 %v593
        %v2962 = vunpack.c.l.b16 %v594
        %v2963 = vunpack.c.h.b16 %v594
        %v2964 = vunpack.c.l.b16 %v595
        %v2965 = vunpack.c.h.b16 %v595
        %v2966 = vunpack.c.l.b16 %v596
        %v2967 = vunpack.c.h.b16 %v596
        %v2968 = vunpack.c.l.b16 %v597
        %v2969 = vunpack.c.h.b16 %v597
        %v2970 = vunpack.c.l.b16 %v598
        %v2971 = vunpack.c.h.b16 %v598
        %v2972 = vunpack.c.l.b16 %v599
        %v2973 = vunpack.c.h.b16 %v599
        %v2974 = vunpack.c.l.b16 %v600
        %v2975 = vunpack.c.h.b16 %v600
        %v2976 = vunpack.c.l.b16 %v601
        %v2977 = vunpack.c.h.b16 %v601
        %v2978 = vunpack.c.l.b16 %v602
        %v2979 = vunpack.c.h.b16 %v602
        %v2980 = vunpack.c.l.b16 %v603
        %v2981 = vunpack.c.h.b16 %v603
        %v2982 = vunpack.c.l.b16 %v604
        %v2983 = vunpack.c.h.b16 %v604
        %v2984 = vunpack.c.l.b16 %v605
        %v2985 = vunpack.c.h.b16 %v605
        %v2986 = vunpack.c.l.b16 %v606
        %v2987 = vunpack.c.h.b16 %v606
        %v2988 = vunpack.c.l.b16 %v607
        %v2989 = vunpack.c.h.b16 %v607
        %v2990 = vunpack.c.l.b16 %v608
        %v2991 = vunpack.c.h.b16 %v608
        %v2992 = vunpack.c.l.b16 %v609
        %v2993 = vunpack.c.h.b16 %v609
        %v2994 = vunpack.c.l.b16 %v610
        %v2995 = vunpack.c.h.b16 %v610
        %v2996 = vunpack.c.l.b16 %v611
        %v2997 = vunpack.c.h.b16 %v611
        %v2998 = vunpack.c.l.b16 %v612
        %v2999 = vunpack.c.h.b16 %v612
        %v3000 = vunpack.c.l.b16 %v613
        %v3001 = vunpack.c.h.b16 %v613
        %v3002 = vunpack.c.l.b16 %v614
        %v3003 = vunpack.c.h.b16 %v614
        %v3004 = vunpack.c.l.b16 %v615
        %v3005 = vunpack.c.h.b16 %v615
        %v3006 = vunpack.c.l.b16 %v616
        %v3007 = vunpack.c.h.b16 %v616
        %v3008 = vunpack.c.l.b16 %v617
        %v3009 = vunpack.c.h.b16 %v617
        %v3010 = vunpack.c.l.b16 %v618
        %v3011 = vunpack.c.h.b16 %v618
        %v3012 = vunpack.c.l.b16 %v619
        %v3013 = vunpack.c.h.b16 %v619
        %v3014 = vunpack.c.l.b16 %v620
        %v3015 = vunpack.c.h.b16 %v620
        %v3016 = vunpack.c.l.b16 %v621
        %v3017 = vunpack.c.h.b16 %v621
        %v3018 = vunpack.c.l.b16 %v622
        %v3019 = vunpack.c.h.b16 %v622
        %v3020 = vunpack.c.l.b16 %v623
        %v3021 = vunpack.c.h.b16 %v623
        %v3022 = vunpack.c.l.b16 %v624
        %v3023 = vunpack.c.h.b16 %v624
        %v3024 = vunpack.c.l.b16 %v625
        %v3025 = vunpack.c.h.b16 %v625
        %v3026 = vunpack.c.l.b16 %v626
        %v3027 = vunpack.c.h.b16 %v626
        %v3028 = vunpack.c.l.b16 %v627
        %v3029 = vunpack.c.h.b16 %v627
        %v3030 = vunpack.c.l.b16 %v628
        %v3031 = vunpack.c.h.b16 %v628
        %v3032 = vunpack.c.l.b16 %v629
        %v3033 = vunpack.c.h.b16 %v629
        %v3034 = vunpack.c.l.b16 %v630
        %v3035 = vunpack.c.h.b16 %v630
        %v3036 = vunpack.c.l.b16 %v631
        %v3037 = vunpack.c.h.b16 %v631
        %v3038 = vunpack.c.l.b16 %v632
        %v3039 = vunpack.c.h.b16 %v632
        %v3040 = vunpack.c.l.b16 %v633
        %v3041 = vunpack.c.h.b16 %v633
        %v3042 = vunpack.c.l.b16 %v634
        %v3043 = vunpack.c.h.b16 %v634
        %v3044 = vunpack.c.l.b16 %v635
        %v3045 = vunpack.c.h.b16 %v635
        %v3046 = vunpack.c.l.b16 %v636
        %v3047 = vunpack.c.h.b16 %v636
        %v3048 = vunpack.c.l.b16 %v637
        %v3049 = vunpack.c.h.b16 %v637
        %v3050 = vunpack.c.l.b16 %v638
        %v3051 = vunpack.c.h.b16 %v638
        %v3052 = vunpack.c.l.b16 %v639
        %v3053 = vunpack.c.h.b16 %v639
        %v3054 = vunpack.c.l.b16 %v640
        %v3055 = vunpack.c.h.b16 %v640
        %v3056 = vunpack.c.l.b16 %v641
        %v3057 = vunpack.c.h.b16 %v641
        %v3058 = vunpack.c.l.b16 %v642
        %v3059 = vunpack.c.h.b16 %v642
        %v3060 = vunpack.c.l.b16 %v643
        %v3061 = vunpack.c.h.b16 %v643
        %v3062 = vunpack.c.l.b16 %v644
        %v3063 = vunpack.c.h.b16 %v644
        %v3064 = vunpack.c.l.b16 %v645
        %v3065 = vunpack.c.h.b16 %v645
        %v3066 = vunpack.c.l.b16 %v646
        %v3067 = vunpack.c.h.b16 %v646
        %v3068 = vunpack.c.l.b16 %v647
        %v3069 = vunpack.c.h.b16 %v647
        %v3070 = vunpack.c.l.b16 %v648
        %v3071 = vunpack.c.h.b16 %v648
        %v3072 = vunpack.c.l.b16 %v649
        %v3073 = vunpack.c.h.b16 %v649
        %v3074 = vunpack.c.l.b16 %v650
        %v3075 = vunpack.c.h.b16 %v650
        %v3076 = vunpack.c.l.b16 %v651
        %v3077 = vunpack.c.h.b16 %v651
        %v3078 = vunpack.c.l.b16 %v652
        %v3079 = vunpack.c.h.b16 %v652
        %v3080 = vunpack.c.l.b16 %v653
        %v3081 = vunpack.c.h.b16 %v653
        %v3082 = vunpack.c.l.b16 %v654
        %v3083 = vunpack.c.h.b16 %v654
        %v3084 = vunpack.c.l.b16 %v655
        %v3085 = vunpack.c.h.b16 %v655
        %v3086 = vunpack.c.l.b16 %v656
        %v3087 = vunpack.c.h.b16 %v656
        %v3088 = vunpack.c.l.b16 %v657
        %v3089 = vunpack.c.h.b16 %v657
        %v3090 = vunpack.c.l.b16 %v658
        %v3091 = vunpack.c.h.b16 %v658
        %v3092 = vunpack.c.l.b16 %v659
        %v3093 = vunpack.c.h.b16 %v659
        %v3094 = vunpack.c.l.b16 %v660
        %v3095 = vunpack.c.h.b16 %v660
        %v3096 = vunpack.c.l.b16 %v661
        %v3097 = vunpack.c.h.b16 %v661
        %v3098 = vunpack.c.l.b16 %v662
        %v3099 = vunpack.c.h.b16 %v662
        %v3100 = vunpack.c.l.b16 %v663
        %v3101 = vunpack.c.h.b16 %v663
        %v3102 = vunpack.c.l.b16 %v664
        %v3103 = vunpack.c.h.b16 %v664
        %v3104 = vunpack.c.l.b16 %v665
        %v3105 = vunpack.c.h.b16 %v665
        %v3106 = vunpack.c.l.b16 %v666
        %v3107 = vunpack.c.h.b16 %v666
        %v3108 = vunpack.c.l.b16 %v667
        %v3109 = vunpack.c.h.b16 %v667
        %v3110 = vunpack.c.l.b16 %v668
        %v3111 = vunpack.c.h.b16 %v668
        %v3112 = vunpack.c.l.b16 %v669
        %v3113 = vunpack.c.h.b16 %v669
        %v3114 = vunpack.c.l.b16 %v670
        %v3115 = vunpack.c.h.b16 %v670
        %v3116 = vunpack.c.l.b16 %v671
        %v3117 = vunpack.c.h.b16 %v671
        %v3118 = vunpack.c.l.b16 %v672
        %v3119 = vunpack.c.h.b16 %v672
        %v3120 = vunpack.c.l.b16 %v673
        %v3121 = vunpack.c.h.b16 %v673
        %v3122 = vunpack.c.l.b16 %v674
        %v3123 = vunpack.c.h.b16 %v674
        %v3124 = vunpack.c.l.b16 %v675
        %v3125 = vunpack.c.h.b16 %v675
        %v3126 = vunpack.c.l.b16 %v676
        %v3127 = vunpack.c.h.b16 %v676
        %v3128 = vunpack.c.l.b16 %v677
        %v3129 = vunpack.c.h.b16 %v677
        %v3130 = vunpack.c.l.b16 %v678
        %v3131 = vunpack.c.h.b16 %v678
        %v3132 = vunpack.c.l.b16 %v679
        %v3133 = vunpack.c.h.b16 %v679
        %v3134 = vunpack.c.l.b16 %v680
        %v3135 = vunpack.c.h.b16 %v680
        %v3136 = vunpack.c.l.b16 %v681
        %v3137 = vunpack.c.h.b16 %v681
        %v3138 = vunpack.c.l.b16 %v682
        %v3139 = vunpack.c.h.b16 %v682
        %v3140 = vunpack.c.l.b16 %v683
        %v3141 = vunpack.c.h.b16 %v683
        %v3142 = vunpack.c.l.b16 %v684
        %v3143 = vunpack.c.h.b16 %v684
        %v3144 = vunpack.c.l.b16 %v685
        %v3145 = vunpack.c.h.b16 %v685
        %v3146 = vunpack.c.l.b16 %v686
        %v3147 = vunpack.c.h.b16 %v686
        %v3148 = vunpack.c.l.b16 %v687
        %v3149 = vunpack.c.h.b16 %v687
        %v3150 = vunpack.c.l.b16 %v688
        %v3151 = vunpack.c.h.b16 %v688
        %v3152 = vunpack.c.l.b16 %v689
        %v3153 = vunpack.c.h.b16 %v689
        %v3154 = vunpack.c.l.b16 %v690
        %v3155 = vunpack.c.h.b16 %v690
        %v3156 = vunpack.c.l.b16 %v691
        %v3157 = vunpack.c.h.b16 %v691
        %v3158 = vunpack.c.l.b16 %v692
        %v3159 = vunpack.c.h.b16 %v692
        %v3160 = vunpack.c.l.b16 %v693
        %v3161 = vunpack.c.h.b16 %v693
        %v3162 = vunpack.c.l.b16 %v694
        %v3163 = vunpack.c.h.b16 %v694
        %v3164 = vunpack.c.l.b16 %v695
        %v3165 = vunpack.c.h.b16 %v695
        %v3166 = vunpack.c.l.b16 %v696
        %v3167 = vunpack.c.h.b16 %v696
        %v3168 = vunpack.c.l.b16 %v697
        %v3169 = vunpack.c.h.b16 %v697
        %v3170 = vunpack.c.l.b16 %v698
        %v3171 = vunpack.c.h.b16 %v698
        %v3172 = vunpack.c.l.b16 %v699
        %v3173 = vunpack.c.h.b16 %v699
        %v3174 = vunpack.c.l.b16 %v700
        %v3175 = vunpack.c.h.b16 %v700
        %v3176 = vunpack.c.l.b16 %v701
        %v3177 = vunpack.c.h.b16 %v701
        %v3178 = vunpack.c.l.b16 %v702
        %v3179 = vunpack.c.h.b16 %v702
        %v3180 = vunpack.c.l.b16 %v703
        %v3181 = vunpack.c.h.b16 %v703
        %v3182 = vunpack.c.l.b16 %v704
        %v3183 = vunpack.c.h.b16 %v704
        %v3184 = vunpack.c.l.b16 %v705
        %v3185 = vunpack.c.h.b16 %v705
        %v3186 = vunpack.c.l.b16 %v706
        %v3187 = vunpack.c.h.b16 %v706
        %v3188 = vunpack.c.l.b16 %v707
        %v3189 = vunpack.c.h.b16 %v707
        %v3190 = vunpack.c.l.b16 %v708
        %v3191 = vunpack.c.h.b16 %v708
        %v3192 = vunpack.c.l.b16 %v709
        %v3193 = vunpack.c.h.b16 %v709
        %v3194 = vunpack.c.l.b16 %v710
        %v3195 = vunpack.c.h.b16 %v710
        %v3196 = vunpack.c.l.b16 %v711
        %v3197 = vunpack.c.h.b16 %v711
        %v3198 = vunpack.c.l.b16 %v712
        %v3199 = vunpack.c.h.b16 %v712
        %v3200 = vunpack.c.l.b16 %v713
        %v3201 = vunpack.c.h.b16 %v713
        %v3202 = vunpack.c.l.b16 %v714
        %v3203 = vunpack.c.h.b16 %v714
        %v3204 = vunpack.c.l.b16 %v715
        %v3205 = vunpack.c.h.b16 %v715
        %v3206 = vunpack.c.l.b16 %v716
        %v3207 = vunpack.c.h.b16 %v716
        %v3208 = vunpack.c.l.b16 %v717
        %v3209 = vunpack.c.h.b16 %v717
        %v3210 = vunpack.c.l.b16 %v718
        %v3211 = vunpack.c.h.b16 %v718
        %v3212 = vunpack.c.l.b16 %v719
        %v3213 = vunpack.c.h.b16 %v719
        %v3214 = vunpack.c.l.b16 %v720
        %v3215 = vunpack.c.h.b16 %v720
        %v3216 = vunpack.c.l.b16 %v721
        %v3217 = vunpack.c.h.b16 %v721
        %v3218 = vunpack.c.l.b16 %v722
        %v3219 = vunpack.c.h.b16 %v722
        %v3220 = vunpack.c.l.b16 %v723
        %v3221 = vunpack.c.h.b16 %v723
        %v3222 = vunpack.c.l.b16 %v724
        %v3223 = vunpack.c.h.b16 %v724
        %v3224 = vunpack.c.l.b16 %v725
        %v3225 = vunpack.c.h.b16 %v725
        %v3226 = vunpack.c.l.b16 %v726
        %v3227 = vunpack.c.h.b16 %v726
        %v3228 = vunpack.c.l.b16 %v727
        %v3229 = vunpack.c.h.b16 %v727
        %v3230 = vunpack.c.l.b16 %v728
        %v3231 = vunpack.c.h.b16 %v728
        %v3232 = vunpack.c.l.b16 %v729
        %v3233 = vunpack.c.h.b16 %v729
        %v3234 = vunpack.c.l.b16 %v730
        %v3235 = vunpack.c.h.b16 %v730
        %v3236 = vunpack.c.l.b16 %v731
        %v3237 = vunpack.c.h.b16 %v731
        %v3238 = vunpack.c.l.b16 %v732
        %v3239 = vunpack.c.h.b16 %v732
        %v3240 = vunpack.c.l.b16 %v733
        %v3241 = vunpack.c.h.b16 %v733
        %v3242 = vunpack.c.l.b16 %v734
        %v3243 = vunpack.c.h.b16 %v734
        %v3244 = vunpack.c.l.b16 %v735
        %v3245 = vunpack.c.h.b16 %v735
        %v3246 = vunpack.c.l.b16 %v736
        %v3247 = vunpack.c.h.b16 %v736
        %v3248 = vunpack.c.l.b16 %v737
        %v3249 = vunpack.c.h.b16 %v737
        %v3250 = vunpack.c.l.b16 %v738
        %v3251 = vunpack.c.h.b16 %v738
        %v3252 = vunpack.c.l.b16 %v739
        %v3253 = vunpack.c.h.b16 %v739
        %v3254 = vunpack.c.l.b16 %v740
        %v3255 = vunpack.c.h.b16 %v740
        %v3256 = vunpack.c.l.b16 %v741
        %v3257 = vunpack.c.h.b16 %v741
        %v3258 = vunpack.c.l.b16 %v742
        %v3259 = vunpack.c.h.b16 %v742
        %v3260 = vunpack.c.l.b16 %v743
        %v3261 = vunpack.c.h.b16 %v743
        %v3262 = vunpack.c.l.b16 %v744
        %v3263 = vunpack.c.h.b16 %v744
        %v3264 = vunpack.c.l.b16 %v745
        %v3265 = vunpack.c.h.b16 %v745
        %v3266 = vunpack.c.l.b16 %v746
        %v3267 = vunpack.c.h.b16 %v746
        %v3268 = vunpack.c.l.b16 %v747
        %v3269 = vunpack.c.h.b16 %v747
        %v3270 = vunpack.c.l.b16 %v748
        %v3271 = vunpack.c.h.b16 %v748
        %v3272 = vunpack.c.l.b16 %v749
        %v3273 = vunpack.c.h.b16 %v749
        %v3274 = vunpack.c.l.b16 %v750
        %v3275 = vunpack.c.h.b16 %v750
        %v3276 = vunpack.c.l.b16 %v751
        %v3277 = vunpack.c.h.b16 %v751
        %v3278 = vunpack.c.l.b16 %v752
        %v3279 = vunpack.c.h.b16 %v752
        %v3280 = vunpack.c.l.b16 %v753
        %v3281 = vunpack.c.h.b16 %v753
        %v3282 = vunpack.c.l.b16 %v754
        %v3283 = vunpack.c.h.b16 %v754
        %v3284 = vunpack.c.l.b16 %v755
        %v3285 = vunpack.c.h.b16 %v755
        %v3286 = vunpack.c.l.b16 %v756
        %v3287 = vunpack.c.h.b16 %v756
        %v3288 = vunpack.c.l.b16 %v757
        %v3289 = vunpack.c.h.b16 %v757
        %v3290 = vunpack.c.l.b16 %v758
        %v3291 = vunpack.c.h.b16 %v758
        %v3292 = vunpack.c.l.b16 %v759
        %v3293 = vunpack.c.h.b16 %v759
        %v3294 = vunpack.c.l.b16 %v760
        %v3295 = vunpack.c.h.b16 %v760
        %v3296 = vunpack.c.l.b16 %v761
        %v3297 = vunpack.c.h.b16 %v761
        %v3298 = vunpack.c.l.b16 %v762
        %v3299 = vunpack.c.h.b16 %v762
        %v3300 = vunpack.c.l.b16 %v763
        %v3301 = vunpack.c.h.b16 %v763
        %v3302 = vunpack.c.l.b16 %v764
        %v3303 = vunpack.c.h.b16 %v764
        %v3304 = vunpack.c.l.b16 %v765
        %v3305 = vunpack.c.h.b16 %v765
        %v3306 = vunpack.c.l.b16 %v766
        %v3307 = vunpack.c.h.b16 %v766
        %v3308 = vunpack.c.l.b16 %v767
        %v3309 = vunpack.c.h.b16 %v767
        %v3310 = vunpack.c.l.b16 %v768
        %v3311 = vunpack.c.h.b16 %v768
        %v3312 = vunpack.c.l.b16 %v769
        %v3313 = vunpack.c.h.b16 %v769
        %v3314 = vunpack.c.l.b16 %v770
        %v3315 = vunpack.c.h.b16 %v770
        %v3316 = vunpack.c.l.b16 %v771
        %v3317 = vunpack.c.h.b16 %v771
        %v3318 = vunpack.c.l.b16 %v772
        %v3319 = vunpack.c.h.b16 %v772
        %v3320 = vunpack.c.l.b16 %v773
        %v3321 = vunpack.c.h.b16 %v773
        %v3322 = vunpack.c.l.b16 %v774
        %v3323 = vunpack.c.h.b16 %v774
        %v3324 = vunpack.c.l.b16 %v775
        %v3325 = vunpack.c.h.b16 %v775
        %v3326 = vunpack.c.l.b16 %v776
        %v3327 = vunpack.c.h.b16 %v776
        %v3328 = vunpack.c.l.b16 %v777
        %v3329 = vunpack.c.h.b16 %v777
        %v3330 = vunpack.c.l.b16 %v778
        %v3331 = vunpack.c.h.b16 %v778
        %v3332 = vunpack.c.l.b16 %v779
        %v3333 = vunpack.c.h.b16 %v779
        %v3334 = vunpack.c.l.b16 %v780
        %v3335 = vunpack.c.h.b16 %v780
        %v3336 = vunpack.c.l.b16 %v781
        %v3337 = vunpack.c.h.b16 %v781
        %v3338 = vunpack.c.l.b16 %v782
        %v3339 = vunpack.c.h.b16 %v782
        %v3340 = vunpack.c.l.b16 %v783
        %v3341 = vunpack.c.h.b16 %v783
        %v3342 = vunpack.c.l.b16 %v784
        %v3343 = vunpack.c.h.b16 %v784
        %v3344 = vunpack.c.l.b16 %v785
        %v3345 = vunpack.c.h.b16 %v785
        %v3346 = vunpack.c.l.b16 %v786
        %v3347 = vunpack.c.h.b16 %v786
        %v3348 = vunpack.c.l.b16 %v787
        %v3349 = vunpack.c.h.b16 %v787
        %v3350 = vunpack.c.l.b16 %v788
        %v3351 = vunpack.c.h.b16 %v788
        %v3352 = vunpack.c.l.b16 %v789
        %v3353 = vunpack.c.h.b16 %v789
        %v3354 = vunpack.c.l.b16 %v790
        %v3355 = vunpack.c.h.b16 %v790
        %v3356 = vunpack.c.l.b16 %v791
        %v3357 = vunpack.c.h.b16 %v791
        %v3358 = vunpack.c.l.b16 %v792
        %v3359 = vunpack.c.h.b16 %v792
        %v3360 = vunpack.c.l.b16 %v793
        %v3361 = vunpack.c.h.b16 %v793
        %v3362 = vunpack.c.l.b16 %v794
        %v3363 = vunpack.c.h.b16 %v794
        %v3364 = vunpack.c.l.b16 %v795
        %v3365 = vunpack.c.h.b16 %v795
        %v3366 = vunpack.c.l.b16 %v796
        %v3367 = vunpack.c.h.b16 %v796
        %v3368 = vunpack.c.l.b16 %v797
        %v3369 = vunpack.c.h.b16 %v797
        %v3370 = vunpack.c.l.b16 %v798
        %v3371 = vunpack.c.h.b16 %v798
        %v3372 = vunpack.c.l.b16 %v799
        %v3373 = vunpack.c.h.b16 %v799
        %v3374 = vunpack.c.l.b16 %v800
        %v3375 = vunpack.c.h.b16 %v800
        %v3376 = vunpack.c.l.b16 %v801
        %v3377 = vunpack.c.h.b16 %v801
        %v3378 = vunpack.c.l.b16 %v802
        %v3379 = vunpack.c.h.b16 %v802
        %v3380 = vunpack.c.l.b16 %v803
        %v3381 = vunpack.c.h.b16 %v803
        %v3382 = vunpack.c.l.b16 %v804
        %v3383 = vunpack.c.h.b16 %v804
        %v3384 = vunpack.c.l.b16 %v805
        %v3385 = vunpack.c.h.b16 %v805
        %v3386 = vunpack.c.l.b16 %v806
        %v3387 = vunpack.c.h.b16 %v806
        %v3388 = vunpack.c.l.b16 %v807
        %v3389 = vunpack.c.h.b16 %v807
        %v3390 = vunpack.c.l.b16 %v808
        %v3391 = vunpack.c.h.b16 %v808
        %v3392 = vunpack.c.l.b16 %v809
        %v3393 = vunpack.c.h.b16 %v809
        %v3394 = vunpack.c.l.b16 %v810
        %v3395 = vunpack.c.h.b16 %v810
        %v3396 = vunpack.c.l.b16 %v811
        %v3397 = vunpack.c.h.b16 %v811
        %v3398 = vunpack.c.l.b16 %v812
        %v3399 = vunpack.c.h.b16 %v812
        %v3400 = vunpack.c.l.b16 %v813
        %v3401 = vunpack.c.h.b16 %v813
        %v3402 = vunpack.c.l.b16 %v814
        %v3403 = vunpack.c.h.b16 %v814
        %v3404 = vunpack.c.l.b16 %v815
        %v3405 = vunpack.c.h.b16 %v815
        %v3406 = vunpack.c.l.b16 %v816
        %v3407 = vunpack.c.h.b16 %v816
        %v3408 = vunpack.c.l.b16 %v817
        %v3409 = vunpack.c.h.b16 %v817
        %v3410 = vunpack.c.l.b16 %v818
        %v3411 = vunpack.c.h.b16 %v818
        %v3412 = vunpack.c.l.b16 %v819
        %v3413 = vunpack.c.h.b16 %v819
        %v3414 = vunpack.c.l.b16 %v820
        %v3415 = vunpack.c.h.b16 %v820
        %v3416 = vunpack.c.l.b16 %v821
        %v3417 = vunpack.c.h.b16 %v821
        %v3418 = vunpack.c.l.b16 %v822
        %v3419 = vunpack.c.h.b16 %v822
        %v3420 = vunpack.c.l.b16 %v823
        %v3421 = vunpack.c.h.b16 %v823
        %v3422 = vunpack.c.l.b16 %v824
        %v3423 = vunpack.c.h.b16 %v824
        %v3424 = vunpack.c.l.b16 %v825
        %v3425 = vunpack.c.h.b16 %v825
        %v3426 = vunpack.c.l.b16 %v826
        %v3427 = vunpack.c.h.b16 %v826
        %v3428 = vunpack.c.l.b16 %v827
        %v3429 = vunpack.c.h.b16 %v827
        %v3430 = vunpack.c.l.b16 %v828
        %v3431 = vunpack.c.h.b16 %v828
        %v3432 = vunpack.c.l.b16 %v829
        %v3433 = vunpack.c.h.b16 %v829
        %v3434 = vunpack.c.l.b16 %v830
        %v3435 = vunpack.c.h.b16 %v830
        %v3436 = vunpack.c.l.b16 %v831
        %v3437 = vunpack.c.h.b16 %v831
        %v3438 = vunpack.c.l.b16 %v832
        %v3439 = vunpack.c.h.b16 %v832
        %v3440 = vunpack.c.l.b16 %v833
        %v3441 = vunpack.c.h.b16 %v833
        %v3442 = vunpack.c.l.b16 %v834
        %v3443 = vunpack.c.h.b16 %v834
        %v3444 = vunpack.c.l.b16 %v835
        %v3445 = vunpack.c.h.b16 %v835
        %v3446 = vunpack.c.l.b16 %v836
        %v3447 = vunpack.c.h.b16 %v836
        %v3448 = vunpack.c.l.b16 %v837
        %v3449 = vunpack.c.h.b16 %v837
        %v3450 = vunpack.c.l.b16 %v838
        %v3451 = vunpack.c.h.b16 %v838
        %v3452 = vunpack.c.l.b16 %v839
        %v3453 = vunpack.c.h.b16 %v839
        %v3454 = vunpack.c.l.b16 %v840
        %v3455 = vunpack.c.h.b16 %v840
        %v3456 = vunpack.c.l.b16 %v841
        %v3457 = vunpack.c.h.b16 %v841
        %v3458 = vunpack.c.l.b16 %v842
        %v3459 = vunpack.c.h.b16 %v842
        %v3460 = vunpack.c.l.b16 %v843
        %v3461 = vunpack.c.h.b16 %v843
        %v3462 = vunpack.c.l.b16 %v844
        %v3463 = vunpack.c.h.b16 %v844
        %v3464 = vunpack.c.l.b16 %v845
        %v3465 = vunpack.c.h.b16 %v845
        %v3466 = vunpack.c.l.b16 %v846
        %v3467 = vunpack.c.h.b16 %v846
        %v3468 = vunpack.c.l.b16 %v847
        %v3469 = vunpack.c.h.b16 %v847
        %v3470 = vunpack.c.l.b16 %v848
        %v3471 = vunpack.c.h.b16 %v848
        %v3472 = vunpack.c.l.b16 %v849
        %v3473 = vunpack.c.h.b16 %v849
        %v3474 = vunpack.c.l.b16 %v850
        %v3475 = vunpack.c.h.b16 %v850
        %v3476 = vunpack.c.l.b16 %v851
        %v3477 = vunpack.c.h.b16 %v851
        %v3478 = vunpack.c.l.b16 %v852
        %v3479 = vunpack.c.h.b16 %v852
        %v3480 = vunpack.c.l.b16 %v853
        %v3481 = vunpack.c.h.b16 %v853
        %v3482 = vunpack.c.l.b16 %v854
        %v3483 = vunpack.c.h.b16 %v854
        %v3484 = vunpack.c.l.b16 %v855
        %v3485 = vunpack.c.h.b16 %v855
        %v3486 = vunpack.c.l.b16 %v856
        %v3487 = vunpack.c.h.b16 %v856
        %v3488 = vunpack.c.l.b16 %v857
        %v3489 = vunpack.c.h.b16 %v857
        %v3490 = vunpack.c.l.b16 %v858
        %v3491 = vunpack.c.h.b16 %v858
        %v3492 = vunpack.c.l.b16 %v859
        %v3493 = vunpack.c.h.b16 %v859
        %v3494 = vunpack.c.l.b16 %v860
        %v3495 = vunpack.c.h.b16 %v860
        %v3496 = vunpack.c.l.b16 %v861
        %v3497 = vunpack.c.h.b16 %v861
        %v3498 = vunpack.c.l.b16 %v862
        %v3499 = vunpack.c.h.b16 %v862
        %v3500 = vunpack.c.l.b16 %v863
        %v3501 = vunpack.c.h.b16 %v863
        %v3502 = vunpack.c.l.b16 %v864
        %v3503 = vunpack.c.h.b16 %v864
        %v3504 = vunpack.c.l.b16 %v865
        %v3505 = vunpack.c.h.b16 %v865
        %v3506 = vunpack.c.l.b16 %v866
        %v3507 = vunpack.c.h.b16 %v866
        %v3508 = vunpack.c.l.b16 %v867
        %v3509 = vunpack.c.h.b16 %v867
        %v3510 = vunpack.c.l.b16 %v868
        %v3511 = vunpack.c.h.b16 %v868
        %v3512 = vunpack.c.l.b16 %v869
        %v3513 = vunpack.c.h.b16 %v869
        %v3514 = vunpack.c.l.b16 %v870
        %v3515 = vunpack.c.h.b16 %v870
        %v3516 = vunpack.c.l.b16 %v871
        %v3517 = vunpack.c.h.b16 %v871
        %v3518 = vunpack.c.l.b16 %v872
        %v3519 = vunpack.c.h.b16 %v872
        %v3520 = vunpack.c.l.b16 %v873
        %v3521 = vunpack.c.h.b16 %v873
        %v3522 = vunpack.c.l.b16 %v874
        %v3523 = vunpack.c.h.b16 %v874
        %v3524 = vunpack.c.l.b16 %v875
        %v3525 = vunpack.c.h.b16 %v875
        %v3526 = vunpack.c.l.b16 %v876
        %v3527 = vunpack.c.h.b16 %v876
        %v3528 = vunpack.c.l.b16 %v877
        %v3529 = vunpack.c.h.b16 %v877
        %v3530 = vunpack.c.l.b16 %v878
        %v3531 = vunpack.c.h.b16 %v878
        %v3532 = vunpack.c.l.b16 %v879
        %v3533 = vunpack.c.h.b16 %v879
        %v3534 = vunpack.c.l.b16 %v880
        %v3535 = vunpack.c.h.b16 %v880
        %v3536 = vunpack.c.l.b16 %v881
        %v3537 = vunpack.c.h.b16 %v881
        %v3538 = vunpack.c.l.b16 %v882
        %v3539 = vunpack.c.h.b16 %v882
        %v3540 = vunpack.c.l.b16 %v883
        %v3541 = vunpack.c.h.b16 %v883
        %v3542 = vunpack.c.l.b16 %v884
        %v3543 = vunpack.c.h.b16 %v884
        %v3544 = vunpack.c.l.b16 %v885
        %v3545 = vunpack.c.h.b16 %v885
        %v3546 = vunpack.c.l.b16 %v886
        %v3547 = vunpack.c.h.b16 %v886
        %v3548 = vunpack.c.l.b16 %v887
        %v3549 = vunpack.c.h.b16 %v887
        %v3550 = vunpack.c.l.b16 %v888
        %v3551 = vunpack.c.h.b16 %v888
        %v3552 = vunpack.c.l.b16 %v889
        %v3553 = vunpack.c.h.b16 %v889
        %v3554 = vunpack.c.l.b16 %v890
        %v3555 = vunpack.c.h.b16 %v890
        %v3556 = vunpack.c.l.b16 %v891
        %v3557 = vunpack.c.h.b16 %v891
        %v3558 = vunpack.c.l.b16 %v892
        %v3559 = vunpack.c.h.b16 %v892
        %v3560 = vunpack.c.l.b16 %v893
        %v3561 = vunpack.c.h.b16 %v893
        %v3562 = vunpack.c.l.b16 %v894
        %v3563 = vunpack.c.h.b16 %v894
        %v3564 = vunpack.c.l.b16 %v895
        %v3565 = vunpack.c.h.b16 %v895
        %v3566 = vunpack.c.l.b16 %v896
        %v3567 = vunpack.c.h.b16 %v896
        %v3568 = vunpack.c.l.b16 %v897
        %v3569 = vunpack.c.h.b16 %v897
        %v3570 = vunpack.c.l.b16 %v898
        %v3571 = vunpack.c.h.b16 %v898
        %v3572 = vunpack.c.l.b16 %v899
        %v3573 = vunpack.c.h.b16 %v899
        %v3574 = vunpack.c.l.b16 %v900
        %v3575 = vunpack.c.h.b16 %v900
        %v3576 = vunpack.c.l.b16 %v901
        %v3577 = vunpack.c.h.b16 %v901
        %v3578 = vunpack.c.l.b16 %v902
        %v3579 = vunpack.c.h.b16 %v902
        %v3580 = vunpack.c.l.b16 %v903
        %v3581 = vunpack.c.h.b16 %v903
        %v3582 = vunpack.c.l.b16 %v904
        %v3583 = vunpack.c.h.b16 %v904
        %v3584 = vunpack.c.l.b16 %v905
        %v3585 = vunpack.c.h.b16 %v905
        %v3586 = vunpack.c.l.b16 %v906
        %v3587 = vunpack.c.h.b16 %v906
        %v3588 = vunpack.c.l.b16 %v907
        %v3589 = vunpack.c.h.b16 %v907
        %v3590 = vunpack.c.l.b16 %v908
        %v3591 = vunpack.c.h.b16 %v908
        %v3592 = vunpack.c.l.b16 %v909
        %v3593 = vunpack.c.h.b16 %v909
        %v3594 = vunpack.c.l.b16 %v910
        %v3595 = vunpack.c.h.b16 %v910
        %v3596 = vunpack.c.l.b16 %v911
        %v3597 = vunpack.c.h.b16 %v911
        %v3598 = vunpack.c.l.b16 %v912
        %v3599 = vunpack.c.h.b16 %v912
        %v3600 = vunpack.c.l.b16 %v913
        %v3601 = vunpack.c.h.b16 %v913
        %v3602 = vunpack.c.l.b16 %v914
        %v3603 = vunpack.c.h.b16 %v914
        %v3604 = vunpack.c.l.b16 %v915
        %v3605 = vunpack.c.h.b16 %v915
        %v3606 = vunpack.c.l.b16 %v916
        %v3607 = vunpack.c.h.b16 %v916
        %v3608 = vunpack.c.l.b16 %v917
        %v3609 = vunpack.c.h.b16 %v917
        %v3610 = vunpack.c.l.b16 %v918
        %v3611 = vunpack.c.h.b16 %v918
        %v3612 = vunpack.c.l.b16 %v919
        %v3613 = vunpack.c.h.b16 %v919
        %v3614 = vunpack.c.l.b16 %v920
        %v3615 = vunpack.c.h.b16 %v920
        %v3616 = vunpack.c.l.b16 %v921
        %v3617 = vunpack.c.h.b16 %v921
        %v3618 = vunpack.c.l.b16 %v922
        %v3619 = vunpack.c.h.b16 %v922
        %v3620 = vunpack.c.l.b16 %v923
        %v3621 = vunpack.c.h.b16 %v923
        %v3622 = vunpack.c.l.b16 %v924
        %v3623 = vunpack.c.h.b16 %v924
        %v3624 = vunpack.c.l.b16 %v925
        %v3625 = vunpack.c.h.b16 %v925
        %v3626 = vunpack.c.l.b16 %v926
        %v3627 = vunpack.c.h.b16 %v926
        %v3628 = vunpack.c.l.b16 %v927
        %v3629 = vunpack.c.h.b16 %v927
        %v3630 = vunpack.c.l.b16 %v928
        %v3631 = vunpack.c.h.b16 %v928
        %v3632 = vunpack.c.l.b16 %v929
        %v3633 = vunpack.c.h.b16 %v929
        %v3634 = vunpack.c.l.b16 %v930
        %v3635 = vunpack.c.h.b16 %v930
        %v3636 = vunpack.c.l.b16 %v931
        %v3637 = vunpack.c.h.b16 %v931
        %v3638 = vunpack.c.l.b16 %v932
        %v3639 = vunpack.c.h.b16 %v932
        %v3640 = vunpack.c.l.b16 %v933
        %v3641 = vunpack.c.h.b16 %v933
        %v3642 = vunpack.c.l.b16 %v934
        %v3643 = vunpack.c.h.b16 %v934
        %v3644 = vunpack.c.l.b16 %v935
        %v3645 = vunpack.c.h.b16 %v935
        %v3646 = vunpack.c.l.b16 %v936
        %v3647 = vunpack.c.h.b16 %v936
        %v3648 = vunpack.c.l.b16 %v937
        %v3649 = vunpack.c.h.b16 %v937
        %v3650 = vunpack.c.l.b16 %v938
        %v3651 = vunpack.c.h.b16 %v938
        %v3652 = vunpack.c.l.b16 %v939
        %v3653 = vunpack.c.h.b16 %v939
        %v3654 = vunpack.c.l.b16 %v940
        %v3655 = vunpack.c.h.b16 %v940
        %v3656 = vunpack.c.l.b16 %v941
        %v3657 = vunpack.c.h.b16 %v941
        %v3658 = vunpack.c.l.b16 %v942
        %v3659 = vunpack.c.h.b16 %v942
        %v3660 = vunpack.c.l.b16 %v943
        %v3661 = vunpack.c.h.b16 %v943
        %v3662 = vunpack.c.l.b16 %v944
        %v3663 = vunpack.c.h.b16 %v944
        %v3664 = vunpack.c.l.b16 %v945
        %v3665 = vunpack.c.h.b16 %v945
        %v3666 = vunpack.c.l.b16 %v946
        %v3667 = vunpack.c.h.b16 %v946
        %v3668 = vunpack.c.l.b16 %v947
        %v3669 = vunpack.c.h.b16 %v947
        %v3670 = vunpack.c.l.b16 %v948
        %v3671 = vunpack.c.h.b16 %v948
        %v3672 = vunpack.c.l.b16 %v949
        %v3673 = vunpack.c.h.b16 %v949
        %v3674 = vunpack.c.l.b16 %v950
        %v3675 = vunpack.c.h.b16 %v950
        %v3676 = vunpack.c.l.b16 %v951
        %v3677 = vunpack.c.h.b16 %v951
        %v3678 = vunpack.c.l.b16 %v952
        %v3679 = vunpack.c.h.b16 %v952
        %v3680 = vunpack.c.l.b16 %v953
        %v3681 = vunpack.c.h.b16 %v953
        %v3682 = vunpack.c.l.b16 %v954
        %v3683 = vunpack.c.h.b16 %v954
        %v3684 = vunpack.c.l.b16 %v955
        %v3685 = vunpack.c.h.b16 %v955
        %v3686 = vunpack.c.l.b16 %v956
        %v3687 = vunpack.c.h.b16 %v956
        %v3688 = vunpack.c.l.b16 %v957
        %v3689 = vunpack.c.h.b16 %v957
        %v3690 = vunpack.c.l.b16 %v958
        %v3691 = vunpack.c.h.b16 %v958
        %v3692 = vunpack.c.l.b16 %v959
        %v3693 = vunpack.c.h.b16 %v959
        %v3694 = vunpack.c.l.b16 %v960
        %v3695 = vunpack.c.h.b16 %v960
        %v3696 = vunpack.c.l.b16 %v961
        %v3697 = vunpack.c.h.b16 %v961
        %v3698 = vunpack.c.l.b16 %v962
        %v3699 = vunpack.c.h.b16 %v962
        %v3700 = vunpack.c.l.b16 %v963
        %v3701 = vunpack.c.h.b16 %v963
        %v3702 = vunpack.c.l.b16 %v964
        %v3703 = vunpack.c.h.b16 %v964
        %v3704 = vunpack.c.l.b16 %v965
        %v3705 = vunpack.c.h.b16 %v965
        %v3706 = vunpack.c.l.b16 %v966
        %v3707 = vunpack.c.h.b16 %v966
        %v3708 = vunpack.c.l.b16 %v967
        %v3709 = vunpack.c.h.b16 %v967
        %v3710 = vunpack.c.l.b16 %v968
        %v3711 = vunpack.c.h.b16 %v968
        %v3712 = vunpack.c.l.b16 %v969
        %v3713 = vunpack.c.h.b16 %v969
        %v3714 = vunpack.c.l.b16 %v970
        %v3715 = vunpack.c.h.b16 %v970
        %v3716 = vunpack.c.l.b16 %v971
        %v3717 = vunpack.c.h.b16 %v971
        %v3718 = vunpack.c.l.b16 %v972
        %v3719 = vunpack.c.h.b16 %v972
        %v3720 = vunpack.c.l.b16 %v973
        %v3721 = vunpack.c.h.b16 %v973
        %v3722 = vunpack.c.l.b16 %v974
        %v3723 = vunpack.c.h.b16 %v974
        %v3724 = vunpack.c.l.b16 %v975
        %v3725 = vunpack.c.h.b16 %v975
        %v3726 = vunpack.c.l.b16 %v976
        %v3727 = vunpack.c.h.b16 %v976
        %v3728 = vunpack.c.l.b16 %v977
        %v3729 = vunpack.c.h.b16 %v977
        %v3730 = vunpack.c.l.b16 %v978
        %v3731 = vunpack.c.h.b16 %v978
        %v3732 = vunpack.c.l.b16 %v979
        %v3733 = vunpack.c.h.b16 %v979
        %v3734 = vunpack.c.l.b16 %v980
        %v3735 = vunpack.c.h.b16 %v980
        %v3736 = vunpack.c.l.b16 %v981
        %v3737 = vunpack.c.h.b16 %v981
        %v3738 = vunpack.c.l.b16 %v982
        %v3739 = vunpack.c.h.b16 %v982
        %v3740 = vunpack.c.l.b16 %v983
        %v3741 = vunpack.c.h.b16 %v983
        %v3742 = vunpack.c.l.b16 %v984
        %v3743 = vunpack.c.h.b16 %v984
        %v3744 = vunpack.c.l.b16 %v985
        %v3745 = vunpack.c.h.b16 %v985
        %v3746 = vunpack.c.l.b16 %v986
        %v3747 = vunpack.c.h.b16 %v986
        %v3748 = vunpack.c.l.b16 %v987
        %v3749 = vunpack.c.h.b16 %v987
        %v3750 = vunpack.c.l.b16 %v988
        %v3751 = vunpack.c.h.b16 %v988
        %v3752 = vunpack.c.l.b16 %v989
        %v3753 = vunpack.c.h.b16 %v989
        %v3754 = vunpack.c.l.b16 %v990
        %v3755 = vunpack.c.h.b16 %v990
        %v3756 = vunpack.c.l.b16 %v991
        %v3757 = vunpack.c.h.b16 %v991
        %v3758 = vunpack.c.l.b16 %v992
        %v3759 = vunpack.c.h.b16 %v992
        %v3760 = vunpack.c.l.b16 %v993
        %v3761 = vunpack.c.h.b16 %v993
        %v3762 = vunpack.c.l.b16 %v994
        %v3763 = vunpack.c.h.b16 %v994
        %v3764 = vunpack.c.l.b16 %v995
        %v3765 = vunpack.c.h.b16 %v995
        %v3766 = vunpack.c.l.b16 %v996
        %v3767 = vunpack.c.h.b16 %v996
        %v3768 = vunpack.c.l.b16 %v997
        %v3769 = vunpack.c.h.b16 %v997
        %v3770 = vunpack.c.l.b16 %v998
        %v3771 = vunpack.c.h.b16 %v998
        %v3772 = vunpack.c.l.b16 %v999
        %v3773 = vunpack.c.h.b16 %v999
        %v3774 = vunpack.c.l.b16 %v1000
        %v3775 = vunpack.c.h.b16 %v1000
        %v3776 = vunpack.c.l.b16 %v1001
        %v3777 = vunpack.c.h.b16 %v1001
        %v3778 = vunpack.c.l.b16 %v1002
        %v3779 = vunpack.c.h.b16 %v1002
        %v3780 = vunpack.c.l.b16 %v1003
        %v3781 = vunpack.c.h.b16 %v1003
        %v3782 = vunpack.c.l.b16 %v1004
        %v3783 = vunpack.c.h.b16 %v1004
        %v3784 = vunpack.c.l.b16 %v1005
        %v3785 = vunpack.c.h.b16 %v1005
        %v3786 = vunpack.c.l.b16 %v1006
        %v3787 = vunpack.c.h.b16 %v1006
        %v3788 = vunpack.c.l.b16 %v1007
        %v3789 = vunpack.c.h.b16 %v1007
        %v3790 = vunpack.c.l.b16 %v1008
        %v3791 = vunpack.c.h.b16 %v1008
        %v3792 = vunpack.c.l.b16 %v1009
        %v3793 = vunpack.c.h.b16 %v1009
        %v3794 = vunpack.c.l.b16 %v1010
        %v3795 = vunpack.c.h.b16 %v1010
        %v3796 = vunpack.c.l.b16 %v1011
        %v3797 = vunpack.c.h.b16 %v1011
        %v3798 = vunpack.c.l.b16 %v1012
        %v3799 = vunpack.c.h.b16 %v1012
        %v3800 = vunpack.c.l.b16 %v1013
        %v3801 = vunpack.c.h.b16 %v1013
        %v3802 = vunpack.c.l.b16 %v1014
        %v3803 = vunpack.c.h.b16 %v1014
        %v3804 = vunpack.c.l.b16 %v1015
        %v3805 = vunpack.c.h.b16 %v1015
        %v3806 = vunpack.c.l.b16 %v1016
        %v3807 = vunpack.c.h.b16 %v1016
        %v3808 = vunpack.c.l.b16 %v1017
        %v3809 = vunpack.c.h.b16 %v1017
        %v3810 = vunpack.c.l.b16 %v1018
        %v3811 = vunpack.c.h.b16 %v1018
        %v3812 = vunpack.c.l.b16 %v1019
        %v3813 = vunpack.c.h.b16 %v1019
        %v3814 = vunpack.c.l.b16 %v1020
        %v3815 = vunpack.c.h.b16 %v1020
        %v3816 = vunpack.c.l.b16 %v1021
        %v3817 = vunpack.c.h.b16 %v1021
        %v3818 = vunpack.c.l.b16 %v1022
        %v3819 = vunpack.c.h.b16 %v1022
        %v3820 = vunpack.c.l.b16 %v1023
        %v3821 = vunpack.c.h.b16 %v1023
        %v3822 = vunpack.c.l.b16 %v1024
        %v3823 = vunpack.c.h.b16 %v1024
        %v3824 = vunpack.c.l.b16 %v1025
        %v3825 = vunpack.c.h.b16 %v1025
        %v3826 = vunpack.c.l.b16 %v1026
        %v3827 = vunpack.c.h.b16 %v1026
        %v3828 = vunpack.c.l.b16 %v1027
        %v3829 = vunpack.c.h.b16 %v1027
        %v3830 = vunpack.c.l.b16 %v1028
        %v3831 = vunpack.c.h.b16 %v1028
        %v3832 = vunpack.c.l.b16 %v1029
        %v3833 = vunpack.c.h.b16 %v1029
        %v3834 = vunpack.c.l.b16 %v1030
        %v3835 = vunpack.c.h.b16 %v1030
        %v3836 = vunpack.c.l.b16 %v1031
        %v3837 = vunpack.c.h.b16 %v1031
        %v3838 = vunpack.c.l.b16 %v1032
        %v3839 = vunpack.c.h.b16 %v1032
        %v3840 = vunpack.c.l.b16 %v1033
        %v3841 = vunpack.c.h.b16 %v1033
        %v3842 = vunpack.c.l.b16 %v1034
        %v3843 = vunpack.c.h.b16 %v1034
        %v3844 = vunpack.c.l.b16 %v1035
        %v3845 = vunpack.c.h.b16 %v1035
        %v3846 = vunpack.c.l.b16 %v1036
        %v3847 = vunpack.c.h.b16 %v1036
        %v3848 = vunpack.c.l.b16 %v1037
        %v3849 = vunpack.c.h.b16 %v1037
        %v3850 = vunpack.c.l.b16 %v1038
        %v3851 = vunpack.c.h.b16 %v1038
        %v3852 = vunpack.c.l.b16 %v1039
        %v3853 = vunpack.c.h.b16 %v1039
        %v3854 = vunpack.c.l.b16 %v1040
        %v3855 = vunpack.c.h.b16 %v1040
        %v3856 = vunpack.c.l.b16 %v1041
        %v3857 = vunpack.c.h.b16 %v1041
        %v3858 = vunpack.c.l.b16 %v1042
        %v3859 = vunpack.c.h.b16 %v1042
        %v3860 = vunpack.c.l.b16 %v1043
        %v3861 = vunpack.c.h.b16 %v1043
        %v3862 = vunpack.c.l.b16 %v1044
        %v3863 = vunpack.c.h.b16 %v1044
        %v3864 = vunpack.c.l.b16 %v1045
        %v3865 = vunpack.c.h.b16 %v1045
        %v3866 = vunpack.c.l.b16 %v1046
        %v3867 = vunpack.c.h.b16 %v1046
        %v3868 = vunpack.c.l.b16 %v1047
        %v3869 = vunpack.c.h.b16 %v1047
        %v3870 = vunpack.c.l.b16 %v1048
        %v3871 = vunpack.c.h.b16 %v1048
        %v3872 = vunpack.c.l.b16 %v1049
        %v3873 = vunpack.c.h.b16 %v1049
        %v3874 = vunpack.c.l.b16 %v1050
        %v3875 = vunpack.c.h.b16 %v1050
        %v3876 = vunpack.c.l.b16 %v1051
        %v3877 = vunpack.c.h.b16 %v1051
        %v3878 = vunpack.c.l.b16 %v1052
        %v3879 = vunpack.c.h.b16 %v1052
        %v3880 = vunpack.c.l.b16 %v1053
        %v3881 = vunpack.c.h.b16 %v1053
        %v3882 = vunpack.c.l.b16 %v1054
        %v3883 = vunpack.c.h.b16 %v1054
        %v3884 = vunpack.c.l.b16 %v1055
        %v3885 = vunpack.c.h.b16 %v1055
        %v3886 = vunpack.c.l.b16 %v1056
        %v3887 = vunpack.c.h.b16 %v1056
        %v3888 = vunpack.c.l.b16 %v1057
        %v3889 = vunpack.c.h.b16 %v1057
        %v3890 = vunpack.c.l.b16 %v1058
        %v3891 = vunpack.c.h.b16 %v1058
        %v3892 = vunpack.c.l.b16 %v1059
        %v3893 = vunpack.c.h.b16 %v1059
        %v3894 = vunpack.c.l.b16 %v1060
        %v3895 = vunpack.c.h.b16 %v1060
        %v3896 = vunpack.c.l.b16 %v1061
        %v3897 = vunpack.c.h.b16 %v1061
        %v3898 = vunpack.c.l.b16 %v1062
        %v3899 = vunpack.c.h.b16 %v1062
        %v3900 = vunpack.c.l.b16 %v1063
        %v3901 = vunpack.c.h.b16 %v1063
        %v3902 = vunpack.c.l.b16 %v1064
        %v3903 = vunpack.c.h.b16 %v1064
        %v3904 = vunpack.c.l.b16 %v1065
        %v3905 = vunpack.c.h.b16 %v1065
        %v3906 = vunpack.c.l.b16 %v1066
        %v3907 = vunpack.c.h.b16 %v1066
        %v3908 = vunpack.c.l.b16 %v1067
        %v3909 = vunpack.c.h.b16 %v1067
        %v3910 = vunpack.c.l.b16 %v1068
        %v3911 = vunpack.c.h.b16 %v1068
        %v3912 = vunpack.c.l.b16 %v1069
        %v3913 = vunpack.c.h.b16 %v1069
        %v3914 = vunpack.c.l.b16 %v1070
        %v3915 = vunpack.c.h.b16 %v1070
        %v3916 = vunpack.c.l.b16 %v1071
        %v3917 = vunpack.c.h.b16 %v1071
        %v3918 = vunpack.c.l.b16 %v1072
        %v3919 = vunpack.c.h.b16 %v1072
        %v3920 = vunpack.c.l.b16 %v1073
        %v3921 = vunpack.c.h.b16 %v1073
        %v3922 = vunpack.c.l.b16 %v1074
        %v3923 = vunpack.c.h.b16 %v1074
        %v3924 = vunpack.c.l.b16 %v1075
        %v3925 = vunpack.c.h.b16 %v1075
        %v3926 = vunpack.c.l.b16 %v1076
        %v3927 = vunpack.c.h.b16 %v1076
        %v3928 = vunpack.c.l.b16 %v1077
        %v3929 = vunpack.c.h.b16 %v1077
        %v3930 = vunpack.c.l.b16 %v1078
        %v3931 = vunpack.c.h.b16 %v1078
        %v3932 = vunpack.c.l.b16 %v1079
        %v3933 = vunpack.c.h.b16 %v1079
        %v3934 = vunpack.c.l.b16 %v1080
        %v3935 = vunpack.c.h.b16 %v1080
        %v3936 = vunpack.c.l.b16 %v1081
        %v3937 = vunpack.c.h.b16 %v1081
        %v3938 = vunpack.c.l.b16 %v1082
        %v3939 = vunpack.c.h.b16 %v1082
        %v3940 = vunpack.c.l.b16 %v1083
        %v3941 = vunpack.c.h.b16 %v1083
        %v3942 = vunpack.c.l.b16 %v1084
        %v3943 = vunpack.c.h.b16 %v1084
        %v3944 = vunpack.c.l.b16 %v1085
        %v3945 = vunpack.c.h.b16 %v1085
        %v3946 = vunpack.c.l.b16 %v1086
        %v3947 = vunpack.c.h.b16 %v1086
        %v3948 = vunpack.c.l.b16 %v1087
        %v3949 = vunpack.c.h.b16 %v1087
        %v3950 = vunpack.c.l.b16 %v1088
        %v3951 = vunpack.c.h.b16 %v1088
        %v3952 = vunpack.c.l.b16 %v1089
        %v3953 = vunpack.c.h.b16 %v1089
        %v3954 = vunpack.c.l.b16 %v1090
        %v3955 = vunpack.c.h.b16 %v1090
        %v3956 = vunpack.c.l.b16 %v1091
        %v3957 = vunpack.c.h.b16 %v1091
        %v3958 = vunpack.c.l.b16 %v1092
        %v3959 = vunpack.c.h.b16 %v1092
        %v3960 = vunpack.c.l.b16 %v1093
        %v3961 = vunpack.c.h.b16 %v1093
        %v3962 = vunpack.c.l.b16 %v1094
        %v3963 = vunpack.c.h.b16 %v1094
        %v3964 = vunpack.c.l.b16 %v1095
        %v3965 = vunpack.c.h.b16 %v1095
        %v3966 = vunpack.c.l.b16 %v1096
        %v3967 = vunpack.c.h.b16 %v1096
        %v3968 = vunpack.c.l.b16 %v1097
        %v3969 = vunpack.c.h.b16 %v1097
        %v3970 = vunpack.c.l.b16 %v1098
        %v3971 = vunpack.c.h.b16 %v1098
        %v3972 = vunpack.c.l.b16 %v1099
        %v3973 = vunpack.c.h.b16 %v1099
        %v3974 = vunpack.c.l.b16 %v1100
        %v3975 = vunpack.c.h.b16 %v1100
        %v3976 = vunpack.c.l.b16 %v1101
        %v3977 = vunpack.c.h.b16 %v1101
        %v3978 = vunpack.c.l.b16 %v1102
        %v3979 = vunpack.c.h.b16 %v1102
        %v3980 = vunpack.c.l.b16 %v1103
        %v3981 = vunpack.c.h.b16 %v1103
        %v3982 = vunpack.c.l.b16 %v1104
        %v3983 = vunpack.c.h.b16 %v1104
        %v3984 = vunpack.c.l.b16 %v1105
        %v3985 = vunpack.c.h.b16 %v1105
        %v3986 = vunpack.c.l.b16 %v1106
        %v3987 = vunpack.c.h.b16 %v1106
        %v3988 = vunpack.c.l.b16 %v1107
        %v3989 = vunpack.c.h.b16 %v1107
        %v3990 = vunpack.c.l.b16 %v1108
        %v3991 = vunpack.c.h.b16 %v1108
        %v3992 = vunpack.c.l.b16 %v1109
        %v3993 = vunpack.c.h.b16 %v1109
        %v3994 = vunpack.c.l.b16 %v1110
        %v3995 = vunpack.c.h.b16 %v1110
        %v3996 = vunpack.c.l.b16 %v1111
        %v3997 = vunpack.c.h.b16 %v1111
        %v3998 = vunpack.c.l.b16 %v1112
        %v3999 = vunpack.c.h.b16 %v1112
        %v4000 = vunpack.c.l.b16 %v1113
        %v4001 = vunpack.c.h.b16 %v1113
        %v4002 = vunpack.c.l.b16 %v1114
        %v4003 = vunpack.c.h.b16 %v1114
        %v4004 = vunpack.c.l.b16 %v1115
        %v4005 = vunpack.c.h.b16 %v1115
        %v4006 = vunpack.c.l.b16 %v1116
        %v4007 = vunpack.c.h.b16 %v1116
        %v4008 = vunpack.c.l.b16 %v1117
        %v4009 = vunpack.c.h.b16 %v1117
        %v4010 = vunpack.c.l.b16 %v1118
        %v4011 = vunpack.c.h.b16 %v1118
        %v4012 = vunpack.c.l.b16 %v1119
        %v4013 = vunpack.c.h.b16 %v1119
        %v4014 = vunpack.c.l.b16 %v1120
        %v4015 = vunpack.c.h.b16 %v1120
        %v4016 = vunpack.c.l.b16 %v1121
        %v4017 = vunpack.c.h.b16 %v1121
        %v4018 = vunpack.c.l.b16 %v1122
        %v4019 = vunpack.c.h.b16 %v1122
        %v4020 = vunpack.c.l.b16 %v1123
        %v4021 = vunpack.c.h.b16 %v1123
        %v4022 = vunpack.c.l.b16 %v1124
        %v4023 = vunpack.c.h.b16 %v1124
        %v4024 = vunpack.c.l.b16 %v1125
        %v4025 = vunpack.c.h.b16 %v1125
        %v4026 = vunpack.c.l.b16 %v1126
        %v4027 = vunpack.c.h.b16 %v1126
        %v4028 = vunpack.c.l.b16 %v1127
        %v4029 = vunpack.c.h.b16 %v1127
        %v4030 = vunpack.c.l.b16 %v1128
        %v4031 = vunpack.c.h.b16 %v1128
        %v4032 = vunpack.c.l.b16 %v1129
        %v4033 = vunpack.c.h.b16 %v1129
        %v4034 = vunpack.c.l.b16 %v1130
        %v4035 = vunpack.c.h.b16 %v1130
        %v4036 = vunpack.c.l.b16 %v1131
        %v4037 = vunpack.c.h.b16 %v1131
        %v4038 = vunpack.c.l.b16 %v1132
        %v4039 = vunpack.c.h.b16 %v1132
        %v4040 = vunpack.c.l.b16 %v1133
        %v4041 = vunpack.c.h.b16 %v1133
        %v4042 = vunpack.c.l.b16 %v1134
        %v4043 = vunpack.c.h.b16 %v1134
        %v4044 = vunpack.c.l.b16 %v1135
        %v4045 = vunpack.c.h.b16 %v1135
        %v4046 = vunpack.c.l.b16 %v1136
        %v4047 = vunpack.c.h.b16 %v1136
        %v4048 = vunpack.c.l.b16 %v1137
        %v4049 = vunpack.c.h.b16 %v1137
        %v4050 = vunpack.c.l.b16 %v1138
        %v4051 = vunpack.c.h.b16 %v1138
        %v4052 = vunpack.c.l.b16 %v1139
        %v4053 = vunpack.c.h.b16 %v1139
        %v4054 = vunpack.c.l.b16 %v1140
        %v4055 = vunpack.c.h.b16 %v1140
        %v4056 = vunpack.c.l.b16 %v1141
        %v4057 = vunpack.c.h.b16 %v1141
        %v4058 = vunpack.c.l.b16 %v1142
        %v4059 = vunpack.c.h.b16 %v1142
        %v4060 = vunpack.c.l.b16 %v1143
        %v4061 = vunpack.c.h.b16 %v1143
        %v4062 = vunpack.c.l.b16 %v1144
        %v4063 = vunpack.c.h.b16 %v1144
        %v4064 = vunpack.c.l.b16 %v1145
        %v4065 = vunpack.c.h.b16 %v1145
        %v4066 = vunpack.c.l.b16 %v1146
        %v4067 = vunpack.c.h.b16 %v1146
        %v4068 = vunpack.c.l.b16 %v1147
        %v4069 = vunpack.c.h.b16 %v1147
        %v4070 = vunpack.c.l.b16 %v1148
        %v4071 = vunpack.c.h.b16 %v1148
        %v4072 = vunpack.c.l.b16 %v1149
        %v4073 = vunpack.c.h.b16 %v1149
        %v4074 = vunpack.c.l.b16 %v1150
        %v4075 = vunpack.c.h.b16 %v1150
        %v4076 = vunpack.c.l.b16 %v1151
        %v4077 = vunpack.c.h.b16 %v1151
        %v4078 = vunpack.c.l.b16 %v1152
        %v4079 = vunpack.c.h.b16 %v1152
        %v4080 = vunpack.c.l.b16 %v1153
        %v4081 = vunpack.c.h.b16 %v1153
        %v4082 = vunpack.c.l.b16 %v1154
        %v4083 = vunpack.c.h.b16 %v1154
        %v4084 = vunpack.c.l.b16 %v1155
        %v4085 = vunpack.c.h.b16 %v1155
        %v4086 = vunpack.c.l.b16 %v1156
        %v4087 = vunpack.c.h.b16 %v1156
        %v4088 = vunpack.c.l.b16 %v1157
        %v4089 = vunpack.c.h.b16 %v1157
        %v4090 = vunpack.c.l.b16 %v1158
        %v4091 = vunpack.c.h.b16 %v1158
        %v4092 = vunpack.c.l.b16 %v1159
        %v4093 = vunpack.c.h.b16 %v1159
        %v4094 = vunpack.c.l.b16 %v1160
        %v4095 = vunpack.c.h.b16 %v1160
        %v4096 = vunpack.c.l.b16 %v1161
        %v4097 = vunpack.c.h.b16 %v1161
        %v4098 = vunpack.c.l.b16 %v1162
        %v4099 = vunpack.c.h.b16 %v1162
        %v4100 = vunpack.c.l.b16 %v1163
        %v4101 = vunpack.c.h.b16 %v1163
        %v4102 = vunpack.c.l.b16 %v1164
        %v4103 = vunpack.c.h.b16 %v1164
        %v4104 = vunpack.c.l.b16 %v1165
        %v4105 = vunpack.c.h.b16 %v1165
        %v4106 = vunpack.c.l.b16 %v1166
        %v4107 = vunpack.c.h.b16 %v1166
        %v4108 = vunpack.c.l.b16 %v1167
        %v4109 = vunpack.c.h.b16 %v1167
        %v4110 = vunpack.c.l.b16 %v1168
        %v4111 = vunpack.c.h.b16 %v1168
        %v4112 = vunpack.c.l.b16 %v1169
        %v4113 = vunpack.c.h.b16 %v1169
        %v4114 = vunpack.c.l.b16 %v1170
        %v4115 = vunpack.c.h.b16 %v1170
        %v4116 = vunpack.c.l.b16 %v1171
        %v4117 = vunpack.c.h.b16 %v1171
        %v4118 = vunpack.c.l.b16 %v1172
        %v4119 = vunpack.c.h.b16 %v1172
        %v4120 = vunpack.c.l.b16 %v1173
        %v4121 = vunpack.c.h.b16 %v1173
        %v4122 = vunpack.c.l.b16 %v1174
        %v4123 = vunpack.c.h.b16 %v1174
        %v4124 = vunpack.c.l.b16 %v1175
        %v4125 = vunpack.c.h.b16 %v1175
        %v4126 = vunpack.c.l.b16 %v1176
        %v4127 = vunpack.c.h.b16 %v1176
        %v4128 = vunpack.c.l.b16 %v1177
        %v4129 = vunpack.c.h.b16 %v1177
        %v4130 = vunpack.c.l.b16 %v1178
        %v4131 = vunpack.c.h.b16 %v1178
        %v4132 = vunpack.c.l.b16 %v1179
        %v4133 = vunpack.c.h.b16 %v1179
        %v4134 = vunpack.c.l.b16 %v1180
        %v4135 = vunpack.c.h.b16 %v1180
        %v4136 = vunpack.c.l.b16 %v1181
        %v4137 = vunpack.c.h.b16 %v1181
        %v4138 = vunpack.c.l.b16 %v1182
        %v4139 = vunpack.c.h.b16 %v1182
        %v4140 = vunpack.c.l.b16 %v1183
        %v4141 = vunpack.c.h.b16 %v1183
        %v4142 = vunpack.c.l.b16 %v1184
        %v4143 = vunpack.c.h.b16 %v1184
        %v4144 = vunpack.c.l.b16 %v1185
        %v4145 = vunpack.c.h.b16 %v1185
        %v4146 = vunpack.c.l.b16 %v1186
        %v4147 = vunpack.c.h.b16 %v1186
        %v4148 = vunpack.c.l.b16 %v1187
        %v4149 = vunpack.c.h.b16 %v1187
        %v4150 = vunpack.c.l.b16 %v1188
        %v4151 = vunpack.c.h.b16 %v1188
        %v4152 = vunpack.c.l.b16 %v1189
        %v4153 = vunpack.c.h.b16 %v1189
        %v4154 = vunpack.c.l.b16 %v1190
        %v4155 = vunpack.c.h.b16 %v1190
        %v4156 = vunpack.c.l.b16 %v1191
        %v4157 = vunpack.c.h.b16 %v1191
        %v4158 = vunpack.c.l.b16 %v1192
        %v4159 = vunpack.c.h.b16 %v1192
        %v4160 = vunpack.c.l.b16 %v1193
        %v4161 = vunpack.c.h.b16 %v1193
        %v4162 = vunpack.c.l.b16 %v1194
        %v4163 = vunpack.c.h.b16 %v1194
        %v4164 = vunpack.c.l.b16 %v1195
        %v4165 = vunpack.c.h.b16 %v1195
        %v4166 = vunpack.c.l.b16 %v1196
        %v4167 = vunpack.c.h.b16 %v1196
        %v4168 = vunpack.c.l.b16 %v1197
        %v4169 = vunpack.c.h.b16 %v1197
        %v4170 = vunpack.c.l.b16 %v1198
        %v4171 = vunpack.c.h.b16 %v1198
        %v4172 = vunpack.c.l.b16 %v1199
        %v4173 = vunpack.c.h.b16 %v1199
        %v4174 = vunpack.c.l.b16 %v1200
        %v4175 = vunpack.c.h.b16 %v1200
        %v4176 = vunpack.c.l.b16 %v1201
        %v4177 = vunpack.c.h.b16 %v1201
        %v4178 = vunpack.c.l.b16 %v1202
        %v4179 = vunpack.c.h.b16 %v1202
        %v4180 = vunpack.c.l.b16 %v1203
        %v4181 = vunpack.c.h.b16 %v1203
        %v4182 = vunpack.c.l.b16 %v1204
        %v4183 = vunpack.c.h.b16 %v1204
        %v4184 = vunpack.c.l.b16 %v1205
        %v4185 = vunpack.c.h.b16 %v1205
        %v4186 = vunpack.c.l.b16 %v1206
        %v4187 = vunpack.c.h.b16 %v1206
        %v4188 = vunpack.c.l.b16 %v1207
        %v4189 = vunpack.c.h.b16 %v1207
        %v4190 = vunpack.c.l.b16 %v1208
        %v4191 = vunpack.c.h.b16 %v1208
        %v4192 = vunpack.c.l.b16 %v1209
        %v4193 = vunpack.c.h.b16 %v1209
        %v4194 = vunpack.c.l.b16 %v1210
        %v4195 = vunpack.c.h.b16 %v1210
        %v4196 = vunpack.c.l.b16 %v1211
        %v4197 = vunpack.c.h.b16 %v1211
        %v4198 = vunpack.c.l.b16 %v1212
        %v4199 = vunpack.c.h.b16 %v1212
        %v4200 = vunpack.c.l.b16 %v1213
        %v4201 = vunpack.c.h.b16 %v1213
        %v4202 = vunpack.c.l.b16 %v1214
        %v4203 = vunpack.c.h.b16 %v1214
        %v4204 = vunpack.c.l.b16 %v1215
        %v4205 = vunpack.c.h.b16 %v1215
        %v4206 = vunpack.c.l.b16 %v1216
        %v4207 = vunpack.c.h.b16 %v1216
        %v4208 = vunpack.c.l.b16 %v1217
        %v4209 = vunpack.c.h.b16 %v1217
        %v4210 = vunpack.c.l.b16 %v1218
        %v4211 = vunpack.c.h.b16 %v1218
        %v4212 = vunpack.c.l.b16 %v1219
        %v4213 = vunpack.c.h.b16 %v1219
        %v4214 = vunpack.c.l.b16 %v1220
        %v4215 = vunpack.c.h.b16 %v1220
        %v4216 = vunpack.c.l.b16 %v1221
        %v4217 = vunpack.c.h.b16 %v1221
        %v4218 = vunpack.c.l.b16 %v1222
        %v4219 = vunpack.c.h.b16 %v1222
        %v4220 = vunpack.c.l.b16 %v1223
        %v4221 = vunpack.c.h.b16 %v1223
        %v4222 = vunpack.c.l.b16 %v1224
        %v4223 = vunpack.c.h.b16 %v1224
        %v4224 = vunpack.c.l.b16 %v1225
        %v4225 = vunpack.c.h.b16 %v1225
        %v4226 = vunpack.c.l.b16 %v1226
        %v4227 = vunpack.c.h.b16 %v1226
        %v4228 = vunpack.c.l.b16 %v1227
        %v4229 = vunpack.c.h.b16 %v1227
        %v4230 = vunpack.c.l.b16 %v1228
        %v4231 = vunpack.c.h.b16 %v1228
        %v4232 = vunpack.c.l.b16 %v1229
        %v4233 = vunpack.c.h.b16 %v1229
        %v4234 = vunpack.c.l.b16 %v1230
        %v4235 = vunpack.c.h.b16 %v1230
        %v4236 = vunpack.c.l.b16 %v1231
        %v4237 = vunpack.c.h.b16 %v1231
        %v4238 = vunpack.c.l.b16 %v1232
        %v4239 = vunpack.c.h.b16 %v1232
        %v4240 = vunpack.c.l.b16 %v1233
        %v4241 = vunpack.c.h.b16 %v1233
        %v4242 = vunpack.c.l.b16 %v1234
        %v4243 = vunpack.c.h.b16 %v1234
        %v4244 = vunpack.c.l.b16 %v1235
        %v4245 = vunpack.c.h.b16 %v1235
        %v4246 = vunpack.c.l.b16 %v1236
        %v4247 = vunpack.c.h.b16 %v1236
        %v4248 = vunpack.c.l.b16 %v1237
        %v4249 = vunpack.c.h.b16 %v1237
        %v4250 = vunpack.c.l.b16 %v1238
        %v4251 = vunpack.c.h.b16 %v1238
        %v4252 = vunpack.c.l.b16 %v1239
        %v4253 = vunpack.c.h.b16 %v1239
        %v4254 = vunpack.c.l.b16 %v1240
        %v4255 = vunpack.c.h.b16 %v1240
        %v4256 = vunpack.c.l.b16 %v1241
        %v4257 = vunpack.c.h.b16 %v1241
        %v4258 = vunpack.c.l.b16 %v1242
        %v4259 = vunpack.c.h.b16 %v1242
        %v4260 = vunpack.c.l.b16 %v1243
        %v4261 = vunpack.c.h.b16 %v1243
        %v4262 = vunpack.c.l.b16 %v1244
        %v4263 = vunpack.c.h.b16 %v1244
        %v4264 = vunpack.c.l.b16 %v1245
        %v4265 = vunpack.c.h.b16 %v1245
        %v4266 = vunpack.c.l.b16 %v1246
        %v4267 = vunpack.c.h.b16 %v1246
        %v4268 = vunpack.c.l.b16 %v1247
        %v4269 = vunpack.c.h.b16 %v1247
        %v4270 = vunpack.c.l.b16 %v1248
        %v4271 = vunpack.c.h.b16 %v1248
        %v4272 = vunpack.c.l.b16 %v1249
        %v4273 = vunpack.c.h.b16 %v1249
        %v4274 = vunpack.c.l.b16 %v1250
        %v4275 = vunpack.c.h.b16 %v1250
        %v4276 = vunpack.c.l.b16 %v1251
        %v4277 = vunpack.c.h.b16 %v1251
        %v4278 = vunpack.c.l.b16 %v1252
        %v4279 = vunpack.c.h.b16 %v1252
        %v4280 = vunpack.c.l.b16 %v1253
        %v4281 = vunpack.c.h.b16 %v1253
        %v4282 = vunpack.c.l.b16 %v1254
        %v4283 = vunpack.c.h.b16 %v1254
        %v4284 = vunpack.c.l.b16 %v1255
        %v4285 = vunpack.c.h.b16 %v1255
        %v4286 = vunpack.c.l.b16 %v1256
        %v4287 = vunpack.c.h.b16 %v1256
        %v4288 = vunpack.c.l.b16 %v1257
        %v4289 = vunpack.c.h.b16 %v1257
        %v4290 = vunpack.c.l.b16 %v1258
        %v4291 = vunpack.c.h.b16 %v1258
        %v4292 = vunpack.c.l.b16 %v1259
        %v4293 = vunpack.c.h.b16 %v1259
        %v4294 = vunpack.c.l.b16 %v1260
        %v4295 = vunpack.c.h.b16 %v1260
        %v4296 = vunpack.c.l.b16 %v1261
        %v4297 = vunpack.c.h.b16 %v1261
        %v4298 = vunpack.c.l.b16 %v1262
        %v4299 = vunpack.c.h.b16 %v1262
        %v4300 = vunpack.c.l.b16 %v1263
        %v4301 = vunpack.c.h.b16 %v1263
        %v4302 = vunpack.c.l.b16 %v1264
        %v4303 = vunpack.c.h.b16 %v1264
        %v4304 = vunpack.c.l.b16 %v1265
        %v4305 = vunpack.c.h.b16 %v1265
        %v4306 = vunpack.c.l.b16 %v1266
        %v4307 = vunpack.c.h.b16 %v1266
        %v4308 = vunpack.c.l.b16 %v1267
        %v4309 = vunpack.c.h.b16 %v1267
        %v4310 = vunpack.c.l.b16 %v1268
        %v4311 = vunpack.c.h.b16 %v1268
        %v4312 = vunpack.c.l.b16 %v1269
        %v4313 = vunpack.c.h.b16 %v1269
        %v4314 = vunpack.c.l.b16 %v1270
        %v4315 = vunpack.c.h.b16 %v1270
        %v4316 = vunpack.c.l.b16 %v1271
        %v4317 = vunpack.c.h.b16 %v1271
        %v4318 = vunpack.c.l.b16 %v1272
        %v4319 = vunpack.c.h.b16 %v1272
        %v4320 = vunpack.c.l.b16 %v1273
        %v4321 = vunpack.c.h.b16 %v1273
        %v4322 = vunpack.c.l.b16 %v1274
        %v4323 = vunpack.c.h.b16 %v1274
        %v4324 = vunpack.c.l.b16 %v1275
        %v4325 = vunpack.c.h.b16 %v1275
        %v4326 = vunpack.c.l.b16 %v1276
        %v4327 = vunpack.c.h.b16 %v1276
        %v4328 = vunpack.c.l.b16 %v1277
        %v4329 = vunpack.c.h.b16 %v1277
        %v4330 = vunpack.c.l.b16 %v1278
        %v4331 = vunpack.c.h.b16 %v1278
        %v4332 = vunpack.c.l.b16 %v1279
        %v4333 = vunpack.c.h.b16 %v1279
        %v4334 = vunpack.c.l.b16 %v1280
        %v4335 = vunpack.c.h.b16 %v1280
        %v4336 = vunpack.c.l.b16 %v1281
        %v4337 = vunpack.c.h.b16 %v1281
        %v4338 = vunpack.c.l.b16 %v1282
        %v4339 = vunpack.c.h.b16 %v1282
        %v4340 = vunpack.c.l.b16 %v1283
        %v4341 = vunpack.c.h.b16 %v1283
        %v4342 = vunpack.c.l.b16 %v1284
        %v4343 = vunpack.c.h.b16 %v1284
        %v4344 = vunpack.c.l.b16 %v1285
        %v4345 = vunpack.c.h.b16 %v1285
        %v4346 = vunpack.c.l.b16 %v1286
        %v4347 = vunpack.c.h.b16 %v1286
        %v4348 = vunpack.c.l.b16 %v1287
        %v4349 = vunpack.c.h.b16 %v1287
        %v4350 = vunpack.c.l.b16 %v1288
        %v4351 = vunpack.c.h.b16 %v1288
        %v4352 = vunpack.c.l.b16 %v1289
        %v4353 = vunpack.c.h.b16 %v1289
        %v4354 = vunpack.c.l.b16 %v1290
        %v4355 = vunpack.c.h.b16 %v1290
        %v4356 = vunpack.c.l.b16 %v1291
        %v4357 = vunpack.c.h.b16 %v1291
        %v4358 = vunpack.c.l.b16 %v1292
        %v4359 = vunpack.c.h.b16 %v1292
        %v4360 = vunpack.c.l.b16 %v1293
        %v4361 = vunpack.c.h.b16 %v1293
        %v4362 = vunpack.c.l.b16 %v1294
        %v4363 = vunpack.c.h.b16 %v1294
        %v4364 = vunpack.c.l.b16 %v1295
        %v4365 = vunpack.c.h.b16 %v1295
        %v4366 = vunpack.c.l.b16 %v1296
        %v4367 = vunpack.c.h.b16 %v1296
        %v4368 = vunpack.c.l.b16 %v1297
        %v4369 = vunpack.c.h.b16 %v1297
        %v4370 = vunpack.c.l.b16 %v1298
        %v4371 = vunpack.c.h.b16 %v1298
        %v4372 = vunpack.c.l.b16 %v1299
        %v4373 = vunpack.c.h.b16 %v1299
        %v4374 = vunpack.c.l.b16 %v1300
        %v4375 = vunpack.c.h.b16 %v1300
        %v4376 = vunpack.c.l.b16 %v1301
        %v4377 = vunpack.c.h.b16 %v1301
        %v4378 = vunpack.c.l.b16 %v1302
        %v4379 = vunpack.c.h.b16 %v1302
        %v4380 = vunpack.c.l.b16 %v1303
        %v4381 = vunpack.c.h.b16 %v1303
        %v4382 = vunpack.c.l.b16 %v1304
        %v4383 = vunpack.c.h.b16 %v1304
        %v4384 = vunpack.c.l.b16 %v1305
        %v4385 = vunpack.c.h.b16 %v1305
        %v4386 = vunpack.c.l.b16 %v1306
        %v4387 = vunpack.c.h.b16 %v1306
        %v4388 = vunpack.c.l.b16 %v1307
        %v4389 = vunpack.c.h.b16 %v1307
        %v4390 = vunpack.c.l.b16 %v1308
        %v4391 = vunpack.c.h.b16 %v1308
        %v4392 = vunpack.c.l.b16 %v1309
        %v4393 = vunpack.c.h.b16 %v1309
        %v4394 = vunpack.c.l.b16 %v1310
        %v4395 = vunpack.c.h.b16 %v1310
        %v4396 = vunpack.c.l.b16 %v1311
        %v4397 = vunpack.c.h.b16 %v1311
        %v4398 = vunpack.c.l.b16 %v1312
        %v4399 = vunpack.c.h.b16 %v1312
        %v4400 = vunpack.c.l.b16 %v1313
        %v4401 = vunpack.c.h.b16 %v1313
        %v4402 = vunpack.c.l.b16 %v1314
        %v4403 = vunpack.c.h.b16 %v1314
        %v4404 = vunpack.c.l.b16 %v1315
        %v4405 = vunpack.c.h.b16 %v1315
        %v4406 = vunpack.c.l.b16 %v1316
        %v4407 = vunpack.c.h.b16 %v1316
        %v4408 = vunpack.c.l.b16 %v1317
        %v4409 = vunpack.c.h.b16 %v1317
        %v4410 = vunpack.c.l.b16 %v1318
        %v4411 = vunpack.c.h.b16 %v1318
        %v4412 = vunpack.c.l.b16 %v1319
        %v4413 = vunpack.c.h.b16 %v1319
        %v4414 = vunpack.c.l.b16 %v1320
        %v4415 = vunpack.c.h.b16 %v1320
        %v4416 = vunpack.c.l.b16 %v1321
        %v4417 = vunpack.c.h.b16 %v1321
        %v4418 = vunpack.c.l.b16 %v1322
        %v4419 = vunpack.c.h.b16 %v1322
        %v4420 = vunpack.c.l.b16 %v1323
        %v4421 = vunpack.c.h.b16 %v1323
        %v4422 = vunpack.c.l.b16 %v1324
        %v4423 = vunpack.c.h.b16 %v1324
        %v4424 = vunpack.c.l.b16 %v1325
        %v4425 = vunpack.c.h.b16 %v1325
        %v4426 = vunpack.c.l.b16 %v1326
        %v4427 = vunpack.c.h.b16 %v1326
        %v4428 = vunpack.c.l.b16 %v1327
        %v4429 = vunpack.c.h.b16 %v1327
        %v4430 = vunpack.c.l.b16 %v1328
        %v4431 = vunpack.c.h.b16 %v1328
        %v4432 = vunpack.c.l.b16 %v1329
        %v4433 = vunpack.c.h.b16 %v1329
        %v4434 = vunpack.c.l.b16 %v1330
        %v4435 = vunpack.c.h.b16 %v1330
        %v4436 = vunpack.c.l.b16 %v1331
        %v4437 = vunpack.c.h.b16 %v1331
        %v4438 = vunpack.c.l.b16 %v1332
        %v4439 = vunpack.c.h.b16 %v1332
        %v4440 = vunpack.c.l.b16 %v1333
        %v4441 = vunpack.c.h.b16 %v1333
        %v4442 = vunpack.c.l.b16 %v1334
        %v4443 = vunpack.c.h.b16 %v1334
        %v4444 = vunpack.c.l.b16 %v1335
        %v4445 = vunpack.c.h.b16 %v1335
        %v4446 = vunpack.c.l.b16 %v1336
        %v4447 = vunpack.c.h.b16 %v1336
        %v4448 = vunpack.c.l.b16 %v1337
        %v4449 = vunpack.c.h.b16 %v1337
        %v4450 = vunpack.c.l.b16 %v1338
        %v4451 = vunpack.c.h.b16 %v1338
        %v4452 = vunpack.c.l.b16 %v1339
        %v4453 = vunpack.c.h.b16 %v1339
        %v4454 = vunpack.c.l.b16 %v1340
        %v4455 = vunpack.c.h.b16 %v1340
        %v4456 = vunpack.c.l.b16 %v1341
        %v4457 = vunpack.c.h.b16 %v1341
        %v4458 = vunpack.c.l.b16 %v1342
        %v4459 = vunpack.c.h.b16 %v1342
        %v4460 = vunpack.c.l.b16 %v1343
        %v4461 = vunpack.c.h.b16 %v1343
        %v4462 = vunpack.c.l.b16 %v1344
        %v4463 = vunpack.c.h.b16 %v1344
        %v4464 = vunpack.c.l.b16 %v1345
        %v4465 = vunpack.c.h.b16 %v1345
        %v4466 = vunpack.c.l.b16 %v1346
        %v4467 = vunpack.c.h.b16 %v1346
        %v4468 = vunpack.c.l.b16 %v1347
        %v4469 = vunpack.c.h.b16 %v1347
        %v4470 = vunpack.c.l.b16 %v1348
        %v4471 = vunpack.c.h.b16 %v1348
        %v4472 = vunpack.c.l.b16 %v1349
        %v4473 = vunpack.c.h.b16 %v1349
        %v4474 = vunpack.c.l.b16 %v1350
        %v4475 = vunpack.c.h.b16 %v1350
        %v4476 = vunpack.c.l.b16 %v1351
        %v4477 = vunpack.c.h.b16 %v1351
        %v4478 = vunpack.c.l.b16 %v1352
        %v4479 = vunpack.c.h.b16 %v1352
        %v4480 = vunpack.c.l.b16 %v1353
        %v4481 = vunpack.c.h.b16 %v1353
        %v4482 = vpack.c.b16 %v2442, %v2434
        %v4483 = vpack.c.b16 %v2443, %v2435
        %v4484 = vpack.c.b16 %v2444, %v2436
        %v4485 = vpack.c.b16 %v2445, %v2437
        %v4486 = vpack.c.b16 %v2446, %v2438
        %v4487 = vpack.c.b16 %v2447, %v2439
        %v4488 = vpack.c.b16 %v2448, %v2440
        %v4489 = vpack.c.b16 %v2449, %v2441
        %v4490 = vpack.c.b16 %v2458, %v2450
        %v4491 = vpack.c.b16 %v2459, %v2451
        %v4492 = vpack.c.b16 %v2460, %v2452
        %v4493 = vpack.c.b16 %v2461, %v2453
        %v4494 = vpack.c.b16 %v2462, %v2454
        %v4495 = vpack.c.b16 %v2463, %v2455
        %v4496 = vpack.c.b16 %v2464, %v2456
        %v4497 = vpack.c.b16 %v2465, %v2457
        %v4498 = vpack.c.b16 %v2474, %v2466
        %v4499 = vpack.c.b16 %v2475, %v2467
        %v4500 = vpack.c.b16 %v2476, %v2468
        %v4501 = vpack.c.b16 %v2477, %v2469
        %v4502 = vpack.c.b16 %v2478, %v2470
        %v4503 = vpack.c.b16 %v2479, %v2471
        %v4504 = vpack.c.b16 %v2480, %v2472
        %v4505 = vpack.c.b16 %v2481, %v2473
        %v4506 = vpack.c.b16 %v2490, %v2482
        %v4507 = vpack.c.b16 %v2491, %v2483
        %v4508 = vpack.c.b16 %v2492, %v2484
        %v4509 = vpack.c.b16 %v2493, %v2485
        %v4510 = vpack.c.b16 %v2494, %v2486
        %v4511 = vpack.c.b16 %v2495, %v2487
        %v4512 = vpack.c.b16 %v2496, %v2488
        %v4513 = vpack.c.b16 %v2497, %v2489
        %v4514 = vpack.c.b16 %v2506, %v2498
        %v4515 = vpack.c.b16 %v2507, %v2499
        %v4516 = vpack.c.b16 %v2508, %v2500
        %v4517 = vpack.c.b16 %v2509, %v2501
        %v4518 = vpack.c.b16 %v2510, %v2502
        %v4519 = vpack.c.b16 %v2511, %v2503
        %v4520 = vpack.c.b16 %v2512, %v2504
        %v4521 = vpack.c.b16 %v2513, %v2505
        %v4522 = vpack.c.b16 %v2522, %v2514
        %v4523 = vpack.c.b16 %v2523, %v2515
        %v4524 = vpack.c.b16 %v2524, %v2516
        %v4525 = vpack.c.b16 %v2525, %v2517
        %v4526 = vpack.c.b16 %v2526, %v2518
        %v4527 = vpack.c.b16 %v2527, %v2519
        %v4528 = vpack.c.b16 %v2528, %v2520
        %v4529 = vpack.c.b16 %v2529, %v2521
        %v4530 = vpack.c.b16 %v2538, %v2530
        %v4531 = vpack.c.b16 %v2539, %v2531
        %v4532 = vpack.c.b16 %v2540, %v2532
        %v4533 = vpack.c.b16 %v2541, %v2533
        %v4534 = vpack.c.b16 %v2542, %v2534
        %v4535 = vpack.c.b16 %v2543, %v2535
        %v4536 = vpack.c.b16 %v2544, %v2536
        %v4537 = vpack.c.b16 %v2545, %v2537
        %v4538 = vpack.c.b16 %v2554, %v2546
        %v4539 = vpack.c.b16 %v2555, %v2547
        %v4540 = vpack.c.b16 %v2556, %v2548
        %v4541 = vpack.c.b16 %v2557, %v2549
        %v4542 = vpack.c.b16 %v2558, %v2550
        %v4543 = vpack.c.b16 %v2559, %v2551
        %v4544 = vpack.c.b16 %v2560, %v2552
        %v4545 = vpack.c.b16 %v2561, %v2553
        %v4546 = vpack.c.b16 %v2570, %v2562
        %v4547 = vpack.c.b16 %v2571, %v2563
        %v4548 = vpack.c.b16 %v2572, %v2564
        %v4549 = vpack.c.b16 %v2573, %v2565
        %v4550 = vpack.c.b16 %v2574, %v2566
        %v4551 = vpack.c.b16 %v2575, %v2567
        %v4552 = vpack.c.b16 %v2576, %v2568
        %v4553 = vpack.c.b16 %v2577, %v2569
        %v4554 = vpack.c.b16 %v2586, %v2578
        %v4555 = vpack.c.b16 %v2587, %v2579
        %v4556 = vpack.c.b16 %v2588, %v2580
        %v4557 = vpack.c.b16 %v2589, %v2581
        %v4558 = vpack.c.b16 %v2590, %v2582
        %v4559 = vpack.c.b16 %v2591, %v2583
        %v4560 = vpack.c.b16 %v2592, %v2584
        %v4561 = vpack.c.b16 %v2593, %v2585
        %v4562 = vpack.c.b16 %v2602, %v2594
        %v4563 = vpack.c.b16 %v2603, %v2595
        %v4564 = vpack.c.b16 %v2604, %v2596
        %v4565 = vpack.c.b16 %v2605, %v2597
        %v4566 = vpack.c.b16 %v2606, %v2598
        %v4567 = vpack.c.b16 %v2607, %v2599
        %v4568 = vpack.c.b16 %v2608, %v2600
        %v4569 = vpack.c.b16 %v2609, %v2601
        %v4570 = vpack.c.b16 %v2618, %v2610
        %v4571 = vpack.c.b16 %v2619, %v2611
        %v4572 = vpack.c.b16 %v2620, %v2612
        %v4573 = vpack.c.b16 %v2621, %v2613
        %v4574 = vpack.c.b16 %v2622, %v2614
        %v4575 = vpack.c.b16 %v2623, %v2615
        %v4576 = vpack.c.b16 %v2624, %v2616
        %v4577 = vpack.c.b16 %v2625, %v2617
        %v4578 = vpack.c.b16 %v2634, %v2626
        %v4579 = vpack.c.b16 %v2635, %v2627
        %v4580 = vpack.c.b16 %v2636, %v2628
        %v4581 = vpack.c.b16 %v2637, %v2629
        %v4582 = vpack.c.b16 %v2638, %v2630
        %v4583 = vpack.c.b16 %v2639, %v2631
        %v4584 = vpack.c.b16 %v2640, %v2632
        %v4585 = vpack.c.b16 %v2641, %v2633
        %v4586 = vpack.c.b16 %v2650, %v2642
        %v4587 = vpack.c.b16 %v2651, %v2643
        %v4588 = vpack.c.b16 %v2652, %v2644
        %v4589 = vpack.c.b16 %v2653, %v2645
        %v4590 = vpack.c.b16 %v2654, %v2646
        %v4591 = vpack.c.b16 %v2655, %v2647
        %v4592 = vpack.c.b16 %v2656, %v2648
        %v4593 = vpack.c.b16 %v2657, %v2649
        %v4594 = vpack.c.b16 %v2666, %v2658
        %v4595 = vpack.c.b16 %v2667, %v2659
        %v4596 = vpack.c.b16 %v2668, %v2660
        %v4597 = vpack.c.b16 %v2669, %v2661
        %v4598 = vpack.c.b16 %v2670, %v2662
        %v4599 = vpack.c.b16 %v2671, %v2663
        %v4600 = vpack.c.b16 %v2672, %v2664
        %v4601 = vpack.c.b16 %v2673, %v2665
        %v4602 = vpack.c.b16 %v2682, %v2674
        %v4603 = vpack.c.b16 %v2683, %v2675
        %v4604 = vpack.c.b16 %v2684, %v2676
        %v4605 = vpack.c.b16 %v2685, %v2677
        %v4606 = vpack.c.b16 %v2686, %v2678
        %v4607 = vpack.c.b16 %v2687, %v2679
        %v4608 = vpack.c.b16 %v2688, %v2680
        %v4609 = vpack.c.b16 %v2689, %v2681
        %v4610 = vpack.c.b16 %v2698, %v2690
        %v4611 = vpack.c.b16 %v2699, %v2691
        %v4612 = vpack.c.b16 %v2700, %v2692
        %v4613 = vpack.c.b16 %v2701, %v2693
        %v4614 = vpack.c.b16 %v2702, %v2694
        %v4615 = vpack.c.b16 %v2703, %v2695
        %v4616 = vpack.c.b16 %v2704, %v2696
        %v4617 = vpack.c.b16 %v2705, %v2697
        %v4618 = vpack.c.b16 %v2714, %v2706
        %v4619 = vpack.c.b16 %v2715, %v2707
        %v4620 = vpack.c.b16 %v2716, %v2708
        %v4621 = vpack.c.b16 %v2717, %v2709
        %v4622 = vpack.c.b16 %v2718, %v2710
        %v4623 = vpack.c.b16 %v2719, %v2711
        %v4624 = vpack.c.b16 %v2720, %v2712
        %v4625 = vpack.c.b16 %v2721, %v2713
        %v4626 = vpack.c.b16 %v2730, %v2722
        %v4627 = vpack.c.b16 %v2731, %v2723
        %v4628 = vpack.c.b16 %v2732, %v2724
        %v4629 = vpack.c.b16 %v2733, %v2725
        %v4630 = vpack.c.b16 %v2734, %v2726
        %v4631 = vpack.c.b16 %v2735, %v2727
        %v4632 = vpack.c.b16 %v2736, %v2728
        %v4633 = vpack.c.b16 %v2737, %v2729
        %v4634 = vpack.c.b16 %v2746, %v2738
        %v4635 = vpack.c.b16 %v2747, %v2739
        %v4636 = vpack.c.b16 %v2748, %v2740
        %v4637 = vpack.c.b16 %v2749, %v2741
        %v4638 = vpack.c.b16 %v2750, %v2742
        %v4639 = vpack.c.b16 %v2751, %v2743
        %v4640 = vpack.c.b16 %v2752, %v2744
        %v4641 = vpack.c.b16 %v2753, %v2745
        %v4642 = vpack.c.b16 %v2762, %v2754
        %v4643 = vpack.c.b16 %v2763, %v2755
        %v4644 = vpack.c.b16 %v2764, %v2756
        %v4645 = vpack.c.b16 %v2765, %v2757
        %v4646 = vpack.c.b16 %v2766, %v2758
        %v4647 = vpack.c.b16 %v2767, %v2759
        %v4648 = vpack.c.b16 %v2768, %v2760
        %v4649 = vpack.c.b16 %v2769, %v2761
        %v4650 = vpack.c.b16 %v2778, %v2770
        %v4651 = vpack.c.b16 %v2779, %v2771
        %v4652 = vpack.c.b16 %v2780, %v2772
        %v4653 = vpack.c.b16 %v2781, %v2773
        %v4654 = vpack.c.b16 %v2782, %v2774
        %v4655 = vpack.c.b16 %v2783, %v2775
        %v4656 = vpack.c.b16 %v2784, %v2776
        %v4657 = vpack.c.b16 %v2785, %v2777
        %v4658 = vpack.c.b16 %v2794, %v2786
        %v4659 = vpack.c.b16 %v2795, %v2787
        %v4660 = vpack.c.b16 %v2796, %v2788
        %v4661 = vpack.c.b16 %v2797, %v2789
        %v4662 = vpack.c.b16 %v2798, %v2790
        %v4663 = vpack.c.b16 %v2799, %v2791
        %v4664 = vpack.c.b16 %v2800, %v2792
        %v4665 = vpack.c.b16 %v2801, %v2793
        %v4666 = vpack.c.b16 %v2810, %v2802
        %v4667 = vpack.c.b16 %v2811, %v2803
        %v4668 = vpack.c.b16 %v2812, %v2804
        %v4669 = vpack.c.b16 %v2813, %v2805
        %v4670 = vpack.c.b16 %v2814, %v2806
        %v4671 = vpack.c.b16 %v2815, %v2807
        %v4672 = vpack.c.b16 %v2816, %v2808
        %v4673 = vpack.c.b16 %v2817, %v2809
        %v4674 = vpack.c.b16 %v2826, %v2818
        %v4675 = vpack.c.b16 %v2827, %v2819
        %v4676 = vpack.c.b16 %v2828, %v2820
        %v4677 = vpack.c.b16 %v2829, %v2821
        %v4678 = vpack.c.b16 %v2830, %v2822
        %v4679 = vpack.c.b16 %v2831, %v2823
        %v4680 = vpack.c.b16 %v2832, %v2824
        %v4681 = vpack.c.b16 %v2833, %v2825
        %v4682 = vpack.c.b16 %v2842, %v2834
        %v4683 = vpack.c.b16 %v2843, %v2835
        %v4684 = vpack.c.b16 %v2844, %v2836
        %v4685 = vpack.c.b16 %v2845, %v2837
        %v4686 = vpack.c.b16 %v2846, %v2838
        %v4687 = vpack.c.b16 %v2847, %v2839
        %v4688 = vpack.c.b16 %v2848, %v2840
        %v4689 = vpack.c.b16 %v2849, %v2841
        %v4690 = vpack.c.b16 %v2858, %v2850
        %v4691 = vpack.c.b16 %v2859, %v2851
        %v4692 = vpack.c.b16 %v2860, %v2852
        %v4693 = vpack.c.b16 %v2861, %v2853
        %v4694 = vpack.c.b16 %v2862, %v2854
        %v4695 = vpack.c.b16 %v2863, %v2855
        %v4696 = vpack.c.b16 %v2864, %v2856
        %v4697 = vpack.c.b16 %v2865, %v2857
        %v4698 = vpack.c.b16 %v2874, %v2866
        %v4699 = vpack.c.b16 %v2875, %v2867
        %v4700 = vpack.c.b16 %v2876, %v2868
        %v4701 = vpack.c.b16 %v2877, %v2869
        %v4702 = vpack.c.b16 %v2878, %v2870
        %v4703 = vpack.c.b16 %v2879, %v2871
        %v4704 = vpack.c.b16 %v2880, %v2872
        %v4705 = vpack.c.b16 %v2881, %v2873
        %v4706 = vpack.c.b16 %v2890, %v2882
        %v4707 = vpack.c.b16 %v2891, %v2883
        %v4708 = vpack.c.b16 %v2892, %v2884
        %v4709 = vpack.c.b16 %v2893, %v2885
        %v4710 = vpack.c.b16 %v2894, %v2886
        %v4711 = vpack.c.b16 %v2895, %v2887
        %v4712 = vpack.c.b16 %v2896, %v2888
        %v4713 = vpack.c.b16 %v2897, %v2889
        %v4714 = vpack.c.b16 %v2906, %v2898
        %v4715 = vpack.c.b16 %v2907, %v2899
        %v4716 = vpack.c.b16 %v2908, %v2900
        %v4717 = vpack.c.b16 %v2909, %v2901
        %v4718 = vpack.c.b16 %v2910, %v2902
        %v4719 = vpack.c.b16 %v2911, %v2903
        %v4720 = vpack.c.b16 %v2912, %v2904
        %v4721 = vpack.c.b16 %v2913, %v2905
        %v4722 = vpack.c.b16 %v2922, %v2914
        %v4723 = vpack.c.b16 %v2923, %v2915
        %v4724 = vpack.c.b16 %v2924, %v2916
        %v4725 = vpack.c.b16 %v2925, %v2917
        %v4726 = vpack.c.b16 %v2926, %v2918
        %v4727 = vpack.c.b16 %v2927, %v2919
        %v4728 = vpack.c.b16 %v2928, %v2920
        %v4729 = vpack.c.b16 %v2929, %v2921
        %v4730 = vpack.c.b16 %v2938, %v2930
        %v4731 = vpack.c.b16 %v2939, %v2931
        %v4732 = vpack.c.b16 %v2940, %v2932
        %v4733 = vpack.c.b16 %v2941, %v2933
        %v4734 = vpack.c.b16 %v2942, %v2934
        %v4735 = vpack.c.b16 %v2943, %v2935
        %v4736 = vpack.c.b16 %v2944, %v2936
        %v4737 = vpack.c.b16 %v2945, %v2937
        %v4738 = vpack.c.b16 %v2954, %v2946
        %v4739 = vpack.c.b16 %v2955, %v2947
        %v4740 = vpack.c.b16 %v2956, %v2948
        %v4741 = vpack.c.b16 %v2957, %v2949
        %v4742 = vpack.c.b16 %v2958, %v2950
        %v4743 = vpack.c.b16 %v2959, %v2951
        %v4744 = vpack.c.b16 %v2960, %v2952
        %v4745 = vpack.c.b16 %v2961, %v2953
        %v4746 = vpack.c.b16 %v2970, %v2962
        %v4747 = vpack.c.b16 %v2971, %v2963
        %v4748 = vpack.c.b16 %v2972, %v2964
        %v4749 = vpack.c.b16 %v2973, %v2965
        %v4750 = vpack.c.b16 %v2974, %v2966
        %v4751 = vpack.c.b16 %v2975, %v2967
        %v4752 = vpack.c.b16 %v2976, %v2968
        %v4753 = vpack.c.b16 %v2977, %v2969
        %v4754 = vpack.c.b16 %v2986, %v2978
        %v4755 = vpack.c.b16 %v2987, %v2979
        %v4756 = vpack.c.b16 %v2988, %v2980
        %v4757 = vpack.c.b16 %v2989, %v2981
        %v4758 = vpack.c.b16 %v2990, %v2982
        %v4759 = vpack.c.b16 %v2991, %v2983
        %v4760 = vpack.c.b16 %v2992, %v2984
        %v4761 = vpack.c.b16 %v2993, %v2985
        %v4762 = vpack.c.b16 %v3002, %v2994
        %v4763 = vpack.c.b16 %v3003, %v2995
        %v4764 = vpack.c.b16 %v3004, %v2996
        %v4765 = vpack.c.b16 %v3005, %v2997
        %v4766 = vpack.c.b16 %v3006, %v2998
        %v4767 = vpack.c.b16 %v3007, %v2999
        %v4768 = vpack.c.b16 %v3008, %v3000
        %v4769 = vpack.c.b16 %v3009, %v3001
        %v4770 = vpack.c.b16 %v3018, %v3010
        %v4771 = vpack.c.b16 %v3019, %v3011
        %v4772 = vpack.c.b16 %v3020, %v3012
        %v4773 = vpack.c.b16 %v3021, %v3013
        %v4774 = vpack.c.b16 %v3022, %v3014
        %v4775 = vpack.c.b16 %v3023, %v3015
        %v4776 = vpack.c.b16 %v3024, %v3016
        %v4777 = vpack.c.b16 %v3025, %v3017
        %v4778 = vpack.c.b16 %v3034, %v3026
        %v4779 = vpack.c.b16 %v3035, %v3027
        %v4780 = vpack.c.b16 %v3036, %v3028
        %v4781 = vpack.c.b16 %v3037, %v3029
        %v4782 = vpack.c.b16 %v3038, %v3030
        %v4783 = vpack.c.b16 %v3039, %v3031
        %v4784 = vpack.c.b16 %v3040, %v3032
        %v4785 = vpack.c.b16 %v3041, %v3033
        %v4786 = vpack.c.b16 %v3050, %v3042
        %v4787 = vpack.c.b16 %v3051, %v3043
        %v4788 = vpack.c.b16 %v3052, %v3044
        %v4789 = vpack.c.b16 %v3053, %v3045
        %v4790 = vpack.c.b16 %v3054, %v3046
        %v4791 = vpack.c.b16 %v3055, %v3047
        %v4792 = vpack.c.b16 %v3056, %v3048
        %v4793 = vpack.c.b16 %v3057, %v3049
        %v4794 = vpack.c.b16 %v3066, %v3058
        %v4795 = vpack.c.b16 %v3067, %v3059
        %v4796 = vpack.c.b16 %v3068, %v3060
        %v4797 = vpack.c.b16 %v3069, %v3061
        %v4798 = vpack.c.b16 %v3070, %v3062
        %v4799 = vpack.c.b16 %v3071, %v3063
        %v4800 = vpack.c.b16 %v3072, %v3064
        %v4801 = vpack.c.b16 %v3073, %v3065
        %v4802 = vpack.c.b16 %v3082, %v3074
        %v4803 = vpack.c.b16 %v3083, %v3075
        %v4804 = vpack.c.b16 %v3084, %v3076
        %v4805 = vpack.c.b16 %v3085, %v3077
        %v4806 = vpack.c.b16 %v3086, %v3078
        %v4807 = vpack.c.b16 %v3087, %v3079
        %v4808 = vpack.c.b16 %v3088, %v3080
        %v4809 = vpack.c.b16 %v3089, %v3081
        %v4810 = vpack.c.b16 %v3098, %v3090
        %v4811 = vpack.c.b16 %v3099, %v3091
        %v4812 = vpack.c.b16 %v3100, %v3092
        %v4813 = vpack.c.b16 %v3101, %v3093
        %v4814 = vpack.c.b16 %v3102, %v3094
        %v4815 = vpack.c.b16 %v3103, %v3095
        %v4816 = vpack.c.b16 %v3104, %v3096
        %v4817 = vpack.c.b16 %v3105, %v3097
        %v4818 = vpack.c.b16 %v3114, %v3106
        %v4819 = vpack.c.b16 %v3115, %v3107
        %v4820 = vpack.c.b16 %v3116, %v3108
        %v4821 = vpack.c.b16 %v3117, %v3109
        %v4822 = vpack.c.b16 %v3118, %v3110
        %v4823 = vpack.c.b16 %v3119, %v3111
        %v4824 = vpack.c.b16 %v3120, %v3112
        %v4825 = vpack.c.b16 %v3121, %v3113
        %v4826 = vpack.c.b16 %v3130, %v3122
        %v4827 = vpack.c.b16 %v3131, %v3123
        %v4828 = vpack.c.b16 %v3132, %v3124
        %v4829 = vpack.c.b16 %v3133, %v3125
        %v4830 = vpack.c.b16 %v3134, %v3126
        %v4831 = vpack.c.b16 %v3135, %v3127
        %v4832 = vpack.c.b16 %v3136, %v3128
        %v4833 = vpack.c.b16 %v3137, %v3129
        %v4834 = vpack.c.b16 %v3146, %v3138
        %v4835 = vpack.c.b16 %v3147, %v3139
        %v4836 = vpack.c.b16 %v3148, %v3140
        %v4837 = vpack.c.b16 %v3149, %v3141
        %v4838 = vpack.c.b16 %v3150, %v3142
        %v4839 = vpack.c.b16 %v3151, %v3143
        %v4840 = vpack.c.b16 %v3152, %v3144
        %v4841 = vpack.c.b16 %v3153, %v3145
        %v4842 = vpack.c.b16 %v3162, %v3154
        %v4843 = vpack.c.b16 %v3163, %v3155
        %v4844 = vpack.c.b16 %v3164, %v3156
        %v4845 = vpack.c.b16 %v3165, %v3157
        %v4846 = vpack.c.b16 %v3166, %v3158
        %v4847 = vpack.c.b16 %v3167, %v3159
        %v4848 = vpack.c.b16 %v3168, %v3160
        %v4849 = vpack.c.b16 %v3169, %v3161
        %v4850 = vpack.c.b16 %v3178, %v3170
        %v4851 = vpack.c.b16 %v3179, %v3171
        %v4852 = vpack.c.b16 %v3180, %v3172
        %v4853 = vpack.c.b16 %v3181, %v3173
        %v4854 = vpack.c.b16 %v3182, %v3174
        %v4855 = vpack.c.b16 %v3183, %v3175
        %v4856 = vpack.c.b16 %v3184, %v3176
        %v4857 = vpack.c.b16 %v3185, %v3177
        %v4858 = vpack.c.b16 %v3194, %v3186
        %v4859 = vpack.c.b16 %v3195, %v3187
        %v4860 = vpack.c.b16 %v3196, %v3188
        %v4861 = vpack.c.b16 %v3197, %v3189
        %v4862 = vpack.c.b16 %v3198, %v3190
        %v4863 = vpack.c.b16 %v3199, %v3191
        %v4864 = vpack.c.b16 %v3200, %v3192
        %v4865 = vpack.c.b16 %v3201, %v3193
        %v4866 = vpack.c.b16 %v3210, %v3202
        %v4867 = vpack.c.b16 %v3211, %v3203
        %v4868 = vpack.c.b16 %v3212, %v3204
        %v4869 = vpack.c.b16 %v3213, %v3205
        %v4870 = vpack.c.b16 %v3214, %v3206
        %v4871 = vpack.c.b16 %v3215, %v3207
        %v4872 = vpack.c.b16 %v3216, %v3208
        %v4873 = vpack.c.b16 %v3217, %v3209
        %v4874 = vpack.c.b16 %v3226, %v3218
        %v4875 = vpack.c.b16 %v3227, %v3219
        %v4876 = vpack.c.b16 %v3228, %v3220
        %v4877 = vpack.c.b16 %v3229, %v3221
        %v4878 = vpack.c.b16 %v3230, %v3222
        %v4879 = vpack.c.b16 %v3231, %v3223
        %v4880 = vpack.c.b16 %v3232, %v3224
        %v4881 = vpack.c.b16 %v3233, %v3225
        %v4882 = vpack.c.b16 %v3242, %v3234
        %v4883 = vpack.c.b16 %v3243, %v3235
        %v4884 = vpack.c.b16 %v3244, %v3236
        %v4885 = vpack.c.b16 %v3245, %v3237
        %v4886 = vpack.c.b16 %v3246, %v3238
        %v4887 = vpack.c.b16 %v3247, %v3239
        %v4888 = vpack.c.b16 %v3248, %v3240
        %v4889 = vpack.c.b16 %v3249, %v3241
        %v4890 = vpack.c.b16 %v3258, %v3250
        %v4891 = vpack.c.b16 %v3259, %v3251
        %v4892 = vpack.c.b16 %v3260, %v3252
        %v4893 = vpack.c.b16 %v3261, %v3253
        %v4894 = vpack.c.b16 %v3262, %v3254
        %v4895 = vpack.c.b16 %v3263, %v3255
        %v4896 = vpack.c.b16 %v3264, %v3256
        %v4897 = vpack.c.b16 %v3265, %v3257
        %v4898 = vpack.c.b16 %v3274, %v3266
        %v4899 = vpack.c.b16 %v3275, %v3267
        %v4900 = vpack.c.b16 %v3276, %v3268
        %v4901 = vpack.c.b16 %v3277, %v3269
        %v4902 = vpack.c.b16 %v3278, %v3270
        %v4903 = vpack.c.b16 %v3279, %v3271
        %v4904 = vpack.c.b16 %v3280, %v3272
        %v4905 = vpack.c.b16 %v3281, %v3273
        %v4906 = vpack.c.b16 %v3290, %v3282
        %v4907 = vpack.c.b16 %v3291, %v3283
        %v4908 = vpack.c.b16 %v3292, %v3284
        %v4909 = vpack.c.b16 %v3293, %v3285
        %v4910 = vpack.c.b16 %v3294, %v3286
        %v4911 = vpack.c.b16 %v3295, %v3287
        %v4912 = vpack.c.b16 %v3296, %v3288
        %v4913 = vpack.c.b16 %v3297, %v3289
        %v4914 = vpack.c.b16 %v3306, %v3298
        %v4915 = vpack.c.b16 %v3307, %v3299
        %v4916 = vpack.c.b16 %v3308, %v3300
        %v4917 = vpack.c.b16 %v3309, %v3301
        %v4918 = vpack.c.b16 %v3310, %v3302
        %v4919 = vpack.c.b16 %v3311, %v3303
        %v4920 = vpack.c.b16 %v3312, %v3304
        %v4921 = vpack.c.b16 %v3313, %v3305
        %v4922 = vpack.c.b16 %v3322, %v3314
        %v4923 = vpack.c.b16 %v3323, %v3315
        %v4924 = vpack.c.b16 %v3324, %v3316
        %v4925 = vpack.c.b16 %v3325, %v3317
        %v4926 = vpack.c.b16 %v3326, %v3318
        %v4927 = vpack.c.b16 %v3327, %v3319
        %v4928 = vpack.c.b16 %v3328, %v3320
        %v4929 = vpack.c.b16 %v3329, %v3321
        %v4930 = vpack.c.b16 %v3338, %v3330
        %v4931 = vpack.c.b16 %v3339, %v3331
        %v4932 = vpack.c.b16 %v3340, %v3332
        %v4933 = vpack.c.b16 %v3341, %v3333
        %v4934 = vpack.c.b16 %v3342, %v3334
        %v4935 = vpack.c.b16 %v3343, %v3335
        %v4936 = vpack.c.b16 %v3344, %v3336
        %v4937 = vpack.c.b16 %v3345, %v3337
        %v4938 = vpack.c.b16 %v3354, %v3346
        %v4939 = vpack.c.b16 %v3355, %v3347
        %v4940 = vpack.c.b16 %v3356, %v3348
        %v4941 = vpack.c.b16 %v3357, %v3349
        %v4942 = vpack.c.b16 %v3358, %v3350
        %v4943 = vpack.c.b16 %v3359, %v3351
        %v4944 = vpack.c.b16 %v3360, %v3352
        %v4945 = vpack.c.b16 %v3361, %v3353
        %v4946 = vpack.c.b16 %v3370, %v3362
        %v4947 = vpack.c.b16 %v3371, %v3363
        %v4948 = vpack.c.b16 %v3372, %v3364
        %v4949 = vpack.c.b16 %v3373, %v3365
        %v4950 = vpack.c.b16 %v3374, %v3366
        %v4951 = vpack.c.b16 %v3375, %v3367
        %v4952 = vpack.c.b16 %v3376, %v3368
        %v4953 = vpack.c.b16 %v3377, %v3369
        %v4954 = vpack.c.b16 %v3386, %v3378
        %v4955 = vpack.c.b16 %v3387, %v3379
        %v4956 = vpack.c.b16 %v3388, %v3380
        %v4957 = vpack.c.b16 %v3389, %v3381
        %v4958 = vpack.c.b16 %v3390, %v3382
        %v4959 = vpack.c.b16 %v3391, %v3383
        %v4960 = vpack.c.b16 %v3392, %v3384
        %v4961 = vpack.c.b16 %v3393, %v3385
        %v4962 = vpack.c.b16 %v3402, %v3394
        %v4963 = vpack.c.b16 %v3403, %v3395
        %v4964 = vpack.c.b16 %v3404, %v3396
        %v4965 = vpack.c.b16 %v3405, %v3397
        %v4966 = vpack.c.b16 %v3406, %v3398
        %v4967 = vpack.c.b16 %v3407, %v3399
        %v4968 = vpack.c.b16 %v3408, %v3400
        %v4969 = vpack.c.b16 %v3409, %v3401
        %v4970 = vpack.c.b16 %v3418, %v3410
        %v4971 = vpack.c.b16 %v3419, %v3411
        %v4972 = vpack.c.b16 %v3420, %v3412
        %v4973 = vpack.c.b16 %v3421, %v3413
        %v4974 = vpack.c.b16 %v3422, %v3414
        %v4975 = vpack.c.b16 %v3423, %v3415
        %v4976 = vpack.c.b16 %v3424, %v3416
        %v4977 = vpack.c.b16 %v3425, %v3417
        %v4978 = vpack.c.b16 %v3434, %v3426
        %v4979 = vpack.c.b16 %v3435, %v3427
        %v4980 = vpack.c.b16 %v3436, %v3428
        %v4981 = vpack.c.b16 %v3437, %v3429
        %v4982 = vpack.c.b16 %v3438, %v3430
        %v4983 = vpack.c.b16 %v3439, %v3431
        %v4984 = vpack.c.b16 %v3440, %v3432
        %v4985 = vpack.c.b16 %v3441, %v3433
        %v4986 = vpack.c.b16 %v3450, %v3442
        %v4987 = vpack.c.b16 %v3451, %v3443
        %v4988 = vpack.c.b16 %v3452, %v3444
        %v4989 = vpack.c.b16 %v3453, %v3445
        %v4990 = vpack.c.b16 %v3454, %v3446
        %v4991 = vpack.c.b16 %v3455, %v3447
        %v4992 = vpack.c.b16 %v3456, %v3448
        %v4993 = vpack.c.b16 %v3457, %v3449
        %v4994 = vpack.c.b16 %v3466, %v3458
        %v4995 = vpack.c.b16 %v3467, %v3459
        %v4996 = vpack.c.b16 %v3468, %v3460
        %v4997 = vpack.c.b16 %v3469, %v3461
        %v4998 = vpack.c.b16 %v3470, %v3462
        %v4999 = vpack.c.b16 %v3471, %v3463
        %v5000 = vpack.c.b16 %v3472, %v3464
        %v5001 = vpack.c.b16 %v3473, %v3465
        %v5002 = vpack.c.b16 %v3482, %v3474
        %v5003 = vpack.c.b16 %v3483, %v3475
        %v5004 = vpack.c.b16 %v3484, %v3476
        %v5005 = vpack.c.b16 %v3485, %v3477
        %v5006 = vpack.c.b16 %v3486, %v3478
        %v5007 = vpack.c.b16 %v3487, %v3479
        %v5008 = vpack.c.b16 %v3488, %v3480
        %v5009 = vpack.c.b16 %v3489, %v3481
        %v5010 = vpack.c.b16 %v3498, %v3490
        %v5011 = vpack.c.b16 %v3499, %v3491
        %v5012 = vpack.c.b16 %v3500, %v3492
        %v5013 = vpack.c.b16 %v3501, %v3493
        %v5014 = vpack.c.b16 %v3502, %v3494
        %v5015 = vpack.c.b16 %v3503, %v3495
        %v5016 = vpack.c.b16 %v3504, %v3496
        %v5017 = vpack.c.b16 %v3505, %v3497
        %v5018 = vpack.c.b16 %v3514, %v3506
        %v5019 = vpack.c.b16 %v3515, %v3507
        %v5020 = vpack.c.b16 %v3516, %v3508
        %v5021 = vpack.c.b16 %v3517, %v3509
        %v5022 = vpack.c.b16 %v3518, %v3510
        %v5023 = vpack.c.b16 %v3519, %v3511
        %v5024 = vpack.c.b16 %v3520, %v3512
        %v5025 = vpack.c.b16 %v3521, %v3513
        %v5026 = vpack.c.b16 %v3530, %v3522
        %v5027 = vpack.c.b16 %v3531, %v3523
        %v5028 = vpack.c.b16 %v3532, %v3524
        %v5029 = vpack.c.b16 %v3533, %v3525
        %v5030 = vpack.c.b16 %v3534, %v3526
        %v5031 = vpack.c.b16 %v3535, %v3527
        %v5032 = vpack.c.b16 %v3536, %v3528
        %v5033 = vpack.c.b16 %v3537, %v3529
        %v5034 = vpack.c.b16 %v3546, %v3538
        %v5035 = vpack.c.b16 %v3547, %v3539
        %v5036 = vpack.c.b16 %v3548, %v3540
        %v5037 = vpack.c.b16 %v3549, %v3541
        %v5038 = vpack.c.b16 %v3550, %v3542
        %v5039 = vpack.c.b16 %v3551, %v3543
        %v5040 = vpack.c.b16 %v3552, %v3544
        %v5041 = vpack.c.b16 %v3553, %v3545
        %v5042 = vpack.c.b16 %v3562, %v3554
        %v5043 = vpack.c.b16 %v3563, %v3555
        %v5044 = vpack.c.b16 %v3564, %v3556
        %v5045 = vpack.c.b16 %v3565, %v3557
        %v5046 = vpack.c.b16 %v3566, %v3558
        %v5047 = vpack.c.b16 %v3567, %v3559
        %v5048 = vpack.c.b16 %v3568, %v3560
        %v5049 = vpack.c.b16 %v3569, %v3561
        %v5050 = vpack.c.b16 %v3578, %v3570
        %v5051 = vpack.c.b16 %v3579, %v3571
        %v5052 = vpack.c.b16 %v3580, %v3572
        %v5053 = vpack.c.b16 %v3581, %v3573
        %v5054 = vpack.c.b16 %v3582, %v3574
        %v5055 = vpack.c.b16 %v3583, %v3575
        %v5056 = vpack.c.b16 %v3584, %v3576
        %v5057 = vpack.c.b16 %v3585, %v3577
        %v5058 = vpack.c.b16 %v3594, %v3586
        %v5059 = vpack.c.b16 %v3595, %v3587
        %v5060 = vpack.c.b16 %v3596, %v3588
        %v5061 = vpack.c.b16 %v3597, %v3589
        %v5062 = vpack.c.b16 %v3598, %v3590
        %v5063 = vpack.c.b16 %v3599, %v3591
        %v5064 = vpack.c.b16 %v3600, %v3592
        %v5065 = vpack.c.b16 %v3601, %v3593
        %v5066 = vpack.c.b16 %v3610, %v3602
        %v5067 = vpack.c.b16 %v3611, %v3603
        %v5068 = vpack.c.b16 %v3612, %v3604
        %v5069 = vpack.c.b16 %v3613, %v3605
        %v5070 = vpack.c.b16 %v3614, %v3606
        %v5071 = vpack.c.b16 %v3615, %v3607
        %v5072 = vpack.c.b16 %v3616, %v3608
        %v5073 = vpack.c.b16 %v3617, %v3609
        %v5074 = vpack.c.b16 %v3626, %v3618
        %v5075 = vpack.c.b16 %v3627, %v3619
        %v5076 = vpack.c.b16 %v3628, %v3620
        %v5077 = vpack.c.b16 %v3629, %v3621
        %v5078 = vpack.c.b16 %v3630, %v3622
        %v5079 = vpack.c.b16 %v3631, %v3623
        %v5080 = vpack.c.b16 %v3632, %v3624
        %v5081 = vpack.c.b16 %v3633, %v3625
        %v5082 = vpack.c.b16 %v3642, %v3634
        %v5083 = vpack.c.b16 %v3643, %v3635
        %v5084 = vpack.c.b16 %v3644, %v3636
        %v5085 = vpack.c.b16 %v3645, %v3637
        %v5086 = vpack.c.b16 %v3646, %v3638
        %v5087 = vpack.c.b16 %v3647, %v3639
        %v5088 = vpack.c.b16 %v3648, %v3640
        %v5089 = vpack.c.b16 %v3649, %v3641
        %v5090 = vpack.c.b16 %v3658, %v3650
        %v5091 = vpack.c.b16 %v3659, %v3651
        %v5092 = vpack.c.b16 %v3660, %v3652
        %v5093 = vpack.c.b16 %v3661, %v3653
        %v5094 = vpack.c.b16 %v3662, %v3654
        %v5095 = vpack.c.b16 %v3663, %v3655
        %v5096 = vpack.c.b16 %v3664, %v3656
        %v5097 = vpack.c.b16 %v3665, %v3657
        %v5098 = vpack.c.b16 %v3674, %v3666
        %v5099 = vpack.c.b16 %v3675, %v3667
        %v5100 = vpack.c.b16 %v3676, %v3668
        %v5101 = vpack.c.b16 %v3677, %v3669
        %v5102 = vpack.c.b16 %v3678, %v3670
        %v5103 = vpack.c.b16 %v3679, %v3671
        %v5104 = vpack.c.b16 %v3680, %v3672
        %v5105 = vpack.c.b16 %v3681, %v3673
        %v5106 = vpack.c.b16 %v3690, %v3682
        %v5107 = vpack.c.b16 %v3691, %v3683
        %v5108 = vpack.c.b16 %v3692, %v3684
        %v5109 = vpack.c.b16 %v3693, %v3685
        %v5110 = vpack.c.b16 %v3694, %v3686
        %v5111 = vpack.c.b16 %v3695, %v3687
        %v5112 = vpack.c.b16 %v3696, %v3688
        %v5113 = vpack.c.b16 %v3697, %v3689
        %v5114 = vpack.c.b16 %v3706, %v3698
        %v5115 = vpack.c.b16 %v3707, %v3699
        %v5116 = vpack.c.b16 %v3708, %v3700
        %v5117 = vpack.c.b16 %v3709, %v3701
        %v5118 = vpack.c.b16 %v3710, %v3702
        %v5119 = vpack.c.b16 %v3711, %v3703
        %v5120 = vpack.c.b16 %v3712, %v3704
        %v5121 = vpack.c.b16 %v3713, %v3705
        %v5122 = vpack.c.b16 %v3722, %v3714
        %v5123 = vpack.c.b16 %v3723, %v3715
        %v5124 = vpack.c.b16 %v3724, %v3716
        %v5125 = vpack.c.b16 %v3725, %v3717
        %v5126 = vpack.c.b16 %v3726, %v3718
        %v5127 = vpack.c.b16 %v3727, %v3719
        %v5128 = vpack.c.b16 %v3728, %v3720
        %v5129 = vpack.c.b16 %v3729, %v3721
        %v5130 = vpack.c.b16 %v3738, %v3730
        %v5131 = vpack.c.b16 %v3739, %v3731
        %v5132 = vpack.c.b16 %v3740, %v3732
        %v5133 = vpack.c.b16 %v3741, %v3733
        %v5134 = vpack.c.b16 %v3742, %v3734
        %v5135 = vpack.c.b16 %v3743, %v3735
        %v5136 = vpack.c.b16 %v3744, %v3736
        %v5137 = vpack.c.b16 %v3745, %v3737
        %v5138 = vpack.c.b16 %v3754, %v3746
        %v5139 = vpack.c.b16 %v3755, %v3747
        %v5140 = vpack.c.b16 %v3756, %v3748
        %v5141 = vpack.c.b16 %v3757, %v3749
        %v5142 = vpack.c.b16 %v3758, %v3750
        %v5143 = vpack.c.b16 %v3759, %v3751
        %v5144 = vpack.c.b16 %v3760, %v3752
        %v5145 = vpack.c.b16 %v3761, %v3753
        %v5146 = vpack.c.b16 %v3770, %v3762
        %v5147 = vpack.c.b16 %v3771, %v3763
        %v5148 = vpack.c.b16 %v3772, %v3764
        %v5149 = vpack.c.b16 %v3773, %v3765
        %v5150 = vpack.c.b16 %v3774, %v3766
        %v5151 = vpack.c.b16 %v3775, %v3767
        %v5152 = vpack.c.b16 %v3776, %v3768
        %v5153 = vpack.c.b16 %v3777, %v3769
        %v5154 = vpack.c.b16 %v3786, %v3778
        %v5155 = vpack.c.b16 %v3787, %v3779
        %v5156 = vpack.c.b16 %v3788, %v3780
        %v5157 = vpack.c.b16 %v3789, %v3781
        %v5158 = vpack.c.b16 %v3790, %v3782
        %v5159 = vpack.c.b16 %v3791, %v3783
        %v5160 = vpack.c.b16 %v3792, %v3784
        %v5161 = vpack.c.b16 %v3793, %v3785
        %v5162 = vpack.c.b16 %v3802, %v3794
        %v5163 = vpack.c.b16 %v3803, %v3795
        %v5164 = vpack.c.b16 %v3804, %v3796
        %v5165 = vpack.c.b16 %v3805, %v3797
        %v5166 = vpack.c.b16 %v3806, %v3798
        %v5167 = vpack.c.b16 %v3807, %v3799
        %v5168 = vpack.c.b16 %v3808, %v3800
        %v5169 = vpack.c.b16 %v3809, %v3801
        %v5170 = vpack.c.b16 %v3818, %v3810
        %v5171 = vpack.c.b16 %v3819, %v3811
        %v5172 = vpack.c.b16 %v3820, %v3812
        %v5173 = vpack.c.b16 %v3821, %v3813
        %v5174 = vpack.c.b16 %v3822, %v3814
        %v5175 = vpack.c.b16 %v3823, %v3815
        %v5176 = vpack.c.b16 %v3824, %v3816
        %v5177 = vpack.c.b16 %v3825, %v3817
        %v5178 = vpack.c.b16 %v3834, %v3826
        %v5179 = vpack.c.b16 %v3835, %v3827
        %v5180 = vpack.c.b16 %v3836, %v3828
        %v5181 = vpack.c.b16 %v3837, %v3829
        %v5182 = vpack.c.b16 %v3838, %v3830
        %v5183 = vpack.c.b16 %v3839, %v3831
        %v5184 = vpack.c.b16 %v3840, %v3832
        %v5185 = vpack.c.b16 %v3841, %v3833
        %v5186 = vpack.c.b16 %v3850, %v3842
        %v5187 = vpack.c.b16 %v3851, %v3843
        %v5188 = vpack.c.b16 %v3852, %v3844
        %v5189 = vpack.c.b16 %v3853, %v3845
        %v5190 = vpack.c.b16 %v3854, %v3846
        %v5191 = vpack.c.b16 %v3855, %v3847
        %v5192 = vpack.c.b16 %v3856, %v3848
        %v5193 = vpack.c.b16 %v3857, %v3849
        %v5194 = vpack.c.b16 %v3866, %v3858
        %v5195 = vpack.c.b16 %v3867, %v3859
        %v5196 = vpack.c.b16 %v3868, %v3860
        %v5197 = vpack.c.b16 %v3869, %v3861
        %v5198 = vpack.c.b16 %v3870, %v3862
        %v5199 = vpack.c.b16 %v3871, %v3863
        %v5200 = vpack.c.b16 %v3872, %v3864
        %v5201 = vpack.c.b16 %v3873, %v3865
        %v5202 = vpack.c.b16 %v3882, %v3874
        %v5203 = vpack.c.b16 %v3883, %v3875
        %v5204 = vpack.c.b16 %v3884, %v3876
        %v5205 = vpack.c.b16 %v3885, %v3877
        %v5206 = vpack.c.b16 %v3886, %v3878
        %v5207 = vpack.c.b16 %v3887, %v3879
        %v5208 = vpack.c.b16 %v3888, %v3880
        %v5209 = vpack.c.b16 %v3889, %v3881
        %v5210 = vpack.c.b16 %v3898, %v3890
        %v5211 = vpack.c.b16 %v3899, %v3891
        %v5212 = vpack.c.b16 %v3900, %v3892
        %v5213 = vpack.c.b16 %v3901, %v3893
        %v5214 = vpack.c.b16 %v3902, %v3894
        %v5215 = vpack.c.b16 %v3903, %v3895
        %v5216 = vpack.c.b16 %v3904, %v3896
        %v5217 = vpack.c.b16 %v3905, %v3897
        %v5218 = vpack.c.b16 %v3914, %v3906
        %v5219 = vpack.c.b16 %v3915, %v3907
        %v5220 = vpack.c.b16 %v3916, %v3908
        %v5221 = vpack.c.b16 %v3917, %v3909
        %v5222 = vpack.c.b16 %v3918, %v3910
        %v5223 = vpack.c.b16 %v3919, %v3911
        %v5224 = vpack.c.b16 %v3920, %v3912
        %v5225 = vpack.c.b16 %v3921, %v3913
        %v5226 = vpack.c.b16 %v3930, %v3922
        %v5227 = vpack.c.b16 %v3931, %v3923
        %v5228 = vpack.c.b16 %v3932, %v3924
        %v5229 = vpack.c.b16 %v3933, %v3925
        %v5230 = vpack.c.b16 %v3934, %v3926
        %v5231 = vpack.c.b16 %v3935, %v3927
        %v5232 = vpack.c.b16 %v3936, %v3928
        %v5233 = vpack.c.b16 %v3937, %v3929
        %v5234 = vpack.c.b16 %v3946, %v3938
        %v5235 = vpack.c.b16 %v3947, %v3939
        %v5236 = vpack.c.b16 %v3948, %v3940
        %v5237 = vpack.c.b16 %v3949, %v3941
        %v5238 = vpack.c.b16 %v3950, %v3942
        %v5239 = vpack.c.b16 %v3951, %v3943
        %v5240 = vpack.c.b16 %v3952, %v3944
        %v5241 = vpack.c.b16 %v3953, %v3945
        %v5242 = vpack.c.b16 %v3962, %v3954
        %v5243 = vpack.c.b16 %v3963, %v3955
        %v5244 = vpack.c.b16 %v3964, %v3956
        %v5245 = vpack.c.b16 %v3965, %v3957
        %v5246 = vpack.c.b16 %v3966, %v3958
        %v5247 = vpack.c.b16 %v3967, %v3959
        %v5248 = vpack.c.b16 %v3968, %v3960
        %v5249 = vpack.c.b16 %v3969, %v3961
        %v5250 = vpack.c.b16 %v3978, %v3970
        %v5251 = vpack.c.b16 %v3979, %v3971
        %v5252 = vpack.c.b16 %v3980, %v3972
        %v5253 = vpack.c.b16 %v3981, %v3973
        %v5254 = vpack.c.b16 %v3982, %v3974
        %v5255 = vpack.c.b16 %v3983, %v3975
        %v5256 = vpack.c.b16 %v3984, %v3976
        %v5257 = vpack.c.b16 %v3985, %v3977
        %v5258 = vpack.c.b16 %v3994, %v3986
        %v5259 = vpack.c.b16 %v3995, %v3987
        %v5260 = vpack.c.b16 %v3996, %v3988
        %v5261 = vpack.c.b16 %v3997, %v3989
        %v5262 = vpack.c.b16 %v3998, %v3990
        %v5263 = vpack.c.b16 %v3999, %v3991
        %v5264 = vpack.c.b16 %v4000, %v3992
        %v5265 = vpack.c.b16 %v4001, %v3993
        %v5266 = vpack.c.b16 %v4010, %v4002
        %v5267 = vpack.c.b16 %v4011, %v4003
        %v5268 = vpack.c.b16 %v4012, %v4004
        %v5269 = vpack.c.b16 %v4013, %v4005
        %v5270 = vpack.c.b16 %v4014, %v4006
        %v5271 = vpack.c.b16 %v4015, %v4007
        %v5272 = vpack.c.b16 %v4016, %v4008
        %v5273 = vpack.c.b16 %v4017, %v4009
        %v5274 = vpack.c.b16 %v4026, %v4018
        %v5275 = vpack.c.b16 %v4027, %v4019
        %v5276 = vpack.c.b16 %v4028, %v4020
        %v5277 = vpack.c.b16 %v4029, %v4021
        %v5278 = vpack.c.b16 %v4030, %v4022
        %v5279 = vpack.c.b16 %v4031, %v4023
        %v5280 = vpack.c.b16 %v4032, %v4024
        %v5281 = vpack.c.b16 %v4033, %v4025
        %v5282 = vpack.c.b16 %v4042, %v4034
        %v5283 = vpack.c.b16 %v4043, %v4035
        %v5284 = vpack.c.b16 %v4044, %v4036
        %v5285 = vpack.c.b16 %v4045, %v4037
        %v5286 = vpack.c.b16 %v4046, %v4038
        %v5287 = vpack.c.b16 %v4047, %v4039
        %v5288 = vpack.c.b16 %v4048, %v4040
        %v5289 = vpack.c.b16 %v4049, %v4041
        %v5290 = vpack.c.b16 %v4058, %v4050
        %v5291 = vpack.c.b16 %v4059, %v4051
        %v5292 = vpack.c.b16 %v4060, %v4052
        %v5293 = vpack.c.b16 %v4061, %v4053
        %v5294 = vpack.c.b16 %v4062, %v4054
        %v5295 = vpack.c.b16 %v4063, %v4055
        %v5296 = vpack.c.b16 %v4064, %v4056
        %v5297 = vpack.c.b16 %v4065, %v4057
        %v5298 = vpack.c.b16 %v4074, %v4066
        %v5299 = vpack.c.b16 %v4075, %v4067
        %v5300 = vpack.c.b16 %v4076, %v4068
        %v5301 = vpack.c.b16 %v4077, %v4069
        %v5302 = vpack.c.b16 %v4078, %v4070
        %v5303 = vpack.c.b16 %v4079, %v4071
        %v5304 = vpack.c.b16 %v4080, %v4072
        %v5305 = vpack.c.b16 %v4081, %v4073
        %v5306 = vpack.c.b16 %v4090, %v4082
        %v5307 = vpack.c.b16 %v4091, %v4083
        %v5308 = vpack.c.b16 %v4092, %v4084
        %v5309 = vpack.c.b16 %v4093, %v4085
        %v5310 = vpack.c.b16 %v4094, %v4086
        %v5311 = vpack.c.b16 %v4095, %v4087
        %v5312 = vpack.c.b16 %v4096, %v4088
        %v5313 = vpack.c.b16 %v4097, %v4089
        %v5314 = vpack.c.b16 %v4106, %v4098
        %v5315 = vpack.c.b16 %v4107, %v4099
        %v5316 = vpack.c.b16 %v4108, %v4100
        %v5317 = vpack.c.b16 %v4109, %v4101
        %v5318 = vpack.c.b16 %v4110, %v4102
        %v5319 = vpack.c.b16 %v4111, %v4103
        %v5320 = vpack.c.b16 %v4112, %v4104
        %v5321 = vpack.c.b16 %v4113, %v4105
        %v5322 = vpack.c.b16 %v4122, %v4114
        %v5323 = vpack.c.b16 %v4123, %v4115
        %v5324 = vpack.c.b16 %v4124, %v4116
        %v5325 = vpack.c.b16 %v4125, %v4117
        %v5326 = vpack.c.b16 %v4126, %v4118
        %v5327 = vpack.c.b16 %v4127, %v4119
        %v5328 = vpack.c.b16 %v4128, %v4120
        %v5329 = vpack.c.b16 %v4129, %v4121
        %v5330 = vpack.c.b16 %v4138, %v4130
        %v5331 = vpack.c.b16 %v4139, %v4131
        %v5332 = vpack.c.b16 %v4140, %v4132
        %v5333 = vpack.c.b16 %v4141, %v4133
        %v5334 = vpack.c.b16 %v4142, %v4134
        %v5335 = vpack.c.b16 %v4143, %v4135
        %v5336 = vpack.c.b16 %v4144, %v4136
        %v5337 = vpack.c.b16 %v4145, %v4137
        %v5338 = vpack.c.b16 %v4154, %v4146
        %v5339 = vpack.c.b16 %v4155, %v4147
        %v5340 = vpack.c.b16 %v4156, %v4148
        %v5341 = vpack.c.b16 %v4157, %v4149
        %v5342 = vpack.c.b16 %v4158, %v4150
        %v5343 = vpack.c.b16 %v4159, %v4151
        %v5344 = vpack.c.b16 %v4160, %v4152
        %v5345 = vpack.c.b16 %v4161, %v4153
        %v5346 = vpack.c.b16 %v4170, %v4162
        %v5347 = vpack.c.b16 %v4171, %v4163
        %v5348 = vpack.c.b16 %v4172, %v4164
        %v5349 = vpack.c.b16 %v4173, %v4165
        %v5350 = vpack.c.b16 %v4174, %v4166
        %v5351 = vpack.c.b16 %v4175, %v4167
        %v5352 = vpack.c.b16 %v4176, %v4168
        %v5353 = vpack.c.b16 %v4177, %v4169
        %v5354 = vpack.c.b16 %v4186, %v4178
        %v5355 = vpack.c.b16 %v4187, %v4179
        %v5356 = vpack.c.b16 %v4188, %v4180
        %v5357 = vpack.c.b16 %v4189, %v4181
        %v5358 = vpack.c.b16 %v4190, %v4182
        %v5359 = vpack.c.b16 %v4191, %v4183
        %v5360 = vpack.c.b16 %v4192, %v4184
        %v5361 = vpack.c.b16 %v4193, %v4185
        %v5362 = vpack.c.b16 %v4202, %v4194
        %v5363 = vpack.c.b16 %v4203, %v4195
        %v5364 = vpack.c.b16 %v4204, %v4196
        %v5365 = vpack.c.b16 %v4205, %v4197
        %v5366 = vpack.c.b16 %v4206, %v4198
        %v5367 = vpack.c.b16 %v4207, %v4199
        %v5368 = vpack.c.b16 %v4208, %v4200
        %v5369 = vpack.c.b16 %v4209, %v4201
        %v5370 = vpack.c.b16 %v4218, %v4210
        %v5371 = vpack.c.b16 %v4219, %v4211
        %v5372 = vpack.c.b16 %v4220, %v4212
        %v5373 = vpack.c.b16 %v4221, %v4213
        %v5374 = vpack.c.b16 %v4222, %v4214
        %v5375 = vpack.c.b16 %v4223, %v4215
        %v5376 = vpack.c.b16 %v4224, %v4216
        %v5377 = vpack.c.b16 %v4225, %v4217
        %v5378 = vpack.c.b16 %v4234, %v4226
        %v5379 = vpack.c.b16 %v4235, %v4227
        %v5380 = vpack.c.b16 %v4236, %v4228
        %v5381 = vpack.c.b16 %v4237, %v4229
        %v5382 = vpack.c.b16 %v4238, %v4230
        %v5383 = vpack.c.b16 %v4239, %v4231
        %v5384 = vpack.c.b16 %v4240, %v4232
        %v5385 = vpack.c.b16 %v4241, %v4233
        %v5386 = vpack.c.b16 %v4250, %v4242
        %v5387 = vpack.c.b16 %v4251, %v4243
        %v5388 = vpack.c.b16 %v4252, %v4244
        %v5389 = vpack.c.b16 %v4253, %v4245
        %v5390 = vpack.c.b16 %v4254, %v4246
        %v5391 = vpack.c.b16 %v4255, %v4247
        %v5392 = vpack.c.b16 %v4256, %v4248
        %v5393 = vpack.c.b16 %v4257, %v4249
        %v5394 = vpack.c.b16 %v4266, %v4258
        %v5395 = vpack.c.b16 %v4267, %v4259
        %v5396 = vpack.c.b16 %v4268, %v4260
        %v5397 = vpack.c.b16 %v4269, %v4261
        %v5398 = vpack.c.b16 %v4270, %v4262
        %v5399 = vpack.c.b16 %v4271, %v4263
        %v5400 = vpack.c.b16 %v4272, %v4264
        %v5401 = vpack.c.b16 %v4273, %v4265
        %v5402 = vpack.c.b16 %v4282, %v4274
        %v5403 = vpack.c.b16 %v4283, %v4275
        %v5404 = vpack.c.b16 %v4284, %v4276
        %v5405 = vpack.c.b16 %v4285, %v4277
        %v5406 = vpack.c.b16 %v4286, %v4278
        %v5407 = vpack.c.b16 %v4287, %v4279
        %v5408 = vpack.c.b16 %v4288, %v4280
        %v5409 = vpack.c.b16 %v4289, %v4281
        %v5410 = vpack.c.b16 %v4298, %v4290
        %v5411 = vpack.c.b16 %v4299, %v4291
        %v5412 = vpack.c.b16 %v4300, %v4292
        %v5413 = vpack.c.b16 %v4301, %v4293
        %v5414 = vpack.c.b16 %v4302, %v4294
        %v5415 = vpack.c.b16 %v4303, %v4295
        %v5416 = vpack.c.b16 %v4304, %v4296
        %v5417 = vpack.c.b16 %v4305, %v4297
        %v5418 = vpack.c.b16 %v4314, %v4306
        %v5419 = vpack.c.b16 %v4315, %v4307
        %v5420 = vpack.c.b16 %v4316, %v4308
        %v5421 = vpack.c.b16 %v4317, %v4309
        %v5422 = vpack.c.b16 %v4318, %v4310
        %v5423 = vpack.c.b16 %v4319, %v4311
        %v5424 = vpack.c.b16 %v4320, %v4312
        %v5425 = vpack.c.b16 %v4321, %v4313
        %v5426 = vpack.c.b16 %v4330, %v4322
        %v5427 = vpack.c.b16 %v4331, %v4323
        %v5428 = vpack.c.b16 %v4332, %v4324
        %v5429 = vpack.c.b16 %v4333, %v4325
        %v5430 = vpack.c.b16 %v4334, %v4326
        %v5431 = vpack.c.b16 %v4335, %v4327
        %v5432 = vpack.c.b16 %v4336, %v4328
        %v5433 = vpack.c.b16 %v4337, %v4329
        %v5434 = vpack.c.b16 %v4346, %v4338
        %v5435 = vpack.c.b16 %v4347, %v4339
        %v5436 = vpack.c.b16 %v4348, %v4340
        %v5437 = vpack.c.b16 %v4349, %v4341
        %v5438 = vpack.c.b16 %v4350, %v4342
        %v5439 = vpack.c.b16 %v4351, %v4343
        %v5440 = vpack.c.b16 %v4352, %v4344
        %v5441 = vpack.c.b16 %v4353, %v4345
        %v5442 = vpack.c.b16 %v4362, %v4354
        %v5443 = vpack.c.b16 %v4363, %v4355
        %v5444 = vpack.c.b16 %v4364, %v4356
        %v5445 = vpack.c.b16 %v4365, %v4357
        %v5446 = vpack.c.b16 %v4366, %v4358
        %v5447 = vpack.c.b16 %v4367, %v4359
        %v5448 = vpack.c.b16 %v4368, %v4360
        %v5449 = vpack.c.b16 %v4369, %v4361
        %v5450 = vpack.c.b16 %v4378, %v4370
        %v5451 = vpack.c.b16 %v4379, %v4371
        %v5452 = vpack.c.b16 %v4380, %v4372
        %v5453 = vpack.c.b16 %v4381, %v4373
        %v5454 = vpack.c.b16 %v4382, %v4374
        %v5455 = vpack.c.b16 %v4383, %v4375
        %v5456 = vpack.c.b16 %v4384, %v4376
        %v5457 = vpack.c.b16 %v4385, %v4377
        %v5458 = vpack.c.b16 %v4394, %v4386
        %v5459 = vpack.c.b16 %v4395, %v4387
        %v5460 = vpack.c.b16 %v4396, %v4388
        %v5461 = vpack.c.b16 %v4397, %v4389
        %v5462 = vpack.c.b16 %v4398, %v4390
        %v5463 = vpack.c.b16 %v4399, %v4391
        %v5464 = vpack.c.b16 %v4400, %v4392
        %v5465 = vpack.c.b16 %v4401, %v4393
        %v5466 = vpack.c.b16 %v4410, %v4402
        %v5467 = vpack.c.b16 %v4411, %v4403
        %v5468 = vpack.c.b16 %v4412, %v4404
        %v5469 = vpack.c.b16 %v4413, %v4405
        %v5470 = vpack.c.b16 %v4414, %v4406
        %v5471 = vpack.c.b16 %v4415, %v4407
        %v5472 = vpack.c.b16 %v4416, %v4408
        %v5473 = vpack.c.b16 %v4417, %v4409
        %v5474 = vpack.c.b16 %v4426, %v4418
        %v5475 = vpack.c.b16 %v4427, %v4419
        %v5476 = vpack.c.b16 %v4428, %v4420
        %v5477 = vpack.c.b16 %v4429, %v4421
        %v5478 = vpack.c.b16 %v4430, %v4422
        %v5479 = vpack.c.b16 %v4431, %v4423
        %v5480 = vpack.c.b16 %v4432, %v4424
        %v5481 = vpack.c.b16 %v4433, %v4425
        %v5482 = vpack.c.b16 %v4442, %v4434
        %v5483 = vpack.c.b16 %v4443, %v4435
        %v5484 = vpack.c.b16 %v4444, %v4436
        %v5485 = vpack.c.b16 %v4445, %v4437
        %v5486 = vpack.c.b16 %v4446, %v4438
        %v5487 = vpack.c.b16 %v4447, %v4439
        %v5488 = vpack.c.b16 %v4448, %v4440
        %v5489 = vpack.c.b16 %v4449, %v4441
        %v5490 = vpack.c.b16 %v4458, %v4450
        %v5491 = vpack.c.b16 %v4459, %v4451
        %v5492 = vpack.c.b16 %v4460, %v4452
        %v5493 = vpack.c.b16 %v4461, %v4453
        %v5494 = vpack.c.b16 %v4462, %v4454
        %v5495 = vpack.c.b16 %v4463, %v4455
        %v5496 = vpack.c.b16 %v4464, %v4456
        %v5497 = vpack.c.b16 %v4465, %v4457
        %v5498 = vpack.c.b16 %v4474, %v4466
        %v5499 = vpack.c.b16 %v4475, %v4467
        %v5500 = vpack.c.b16 %v4476, %v4468
        %v5501 = vpack.c.b16 %v4477, %v4469
        %v5502 = vpack.c.b16 %v4478, %v4470
        %v5503 = vpack.c.b16 %v4479, %v4471
        %v5504 = vpack.c.b16 %v4480, %v4472
        %v5505 = vpack.c.b16 %v4481, %v4473
        %6530 = vmatpush.bf16.msra.mxu0 %v4538
        %6531 = vmatpush.bf16.msra.mxu0 %v4530
        %6532 = vmatpush.bf16.msra.mxu0 %v4522
        %6533 = vmatpush.bf16.msra.mxu0 %v4514
        %6534 = vmatpush.bf16.msra.mxu0 %v4506
        %6535 = vmatpush.bf16.msra.mxu0 %v4498
        %6536 = vmatpush.bf16.msra.mxu0 %v4490
        %6537 = vmatpush.bf16.msra.mxu0 %v4482
        %6538 = vmatmul.bf16.gmra.mxu0 %v1378
        %v6539 = vpop.f32.mrf.mxu0
        %v6540 = vadd.f32 0.0, %v6539
        %v6541 = vpop.f32.mrf.mxu0
        %6542 = vdwg.mxu0
        %6543 = vmatpush.bf16.msra.mxu0 %v4602
        %6544 = vmatpush.bf16.msra.mxu0 %v4594
        %6545 = vmatpush.bf16.msra.mxu0 %v4586
        %6546 = vmatpush.bf16.msra.mxu0 %v4578
        %6547 = vmatpush.bf16.msra.mxu0 %v4570
        %6548 = vmatpush.bf16.msra.mxu0 %v4562
        %6549 = vmatpush.bf16.msra.mxu0 %v4554
        %6550 = vmatpush.bf16.msra.mxu0 %v4546
        %6551 = vmatmul.bf16.gmra.mxu0 %v1379
        %v6552 = vpop.f32.mrf.mxu0
        %v6553 = vadd.f32 %v6540, %v6552
        %v6554 = vpop.f32.mrf.mxu0
        %6555 = vdwg.mxu0
        %6556 = vmatpush.bf16.msra.mxu0 %v4666
        %6557 = vmatpush.bf16.msra.mxu0 %v4658
        %6558 = vmatpush.bf16.msra.mxu0 %v4650
        %6559 = vmatpush.bf16.msra.mxu0 %v4642
        %6560 = vmatpush.bf16.msra.mxu0 %v4634
        %6561 = vmatpush.bf16.msra.mxu0 %v4626
        %6562 = vmatpush.bf16.msra.mxu0 %v4618
        %6563 = vmatpush.bf16.msra.mxu0 %v4610
        %6564 = vmatmul.bf16.gmra.mxu0 %v1380
        %v6565 = vpop.f32.mrf.mxu0
        %v6566 = vadd.f32 %v6553, %v6565
        %v6567 = vpop.f32.mrf.mxu0
        %6568 = vdwg.mxu0
        %6569 = vmatpush.bf16.msra.mxu0 %v4730
        %6570 = vmatpush.bf16.msra.mxu0 %v4722
        %6571 = vmatpush.bf16.msra.mxu0 %v4714
        %6572 = vmatpush.bf16.msra.mxu0 %v4706
        %6573 = vmatpush.bf16.msra.mxu0 %v4698
        %6574 = vmatpush.bf16.msra.mxu0 %v4690
        %6575 = vmatpush.bf16.msra.mxu0 %v4682
        %6576 = vmatpush.bf16.msra.mxu0 %v4674
        %6577 = vmatmul.bf16.gmra.mxu0 %v1381
        %v6578 = vpop.f32.mrf.mxu0
        %v6579 = vadd.f32 %v6566, %v6578
        %v6580 = vpop.f32.mrf.mxu0
        %6581 = vdwg.mxu0
        %6582 = vmatpush.bf16.msra.mxu0 %v4794
        %6583 = vmatpush.bf16.msra.mxu0 %v4786
        %6584 = vmatpush.bf16.msra.mxu0 %v4778
        %6585 = vmatpush.bf16.msra.mxu0 %v4770
        %6586 = vmatpush.bf16.msra.mxu0 %v4762
        %6587 = vmatpush.bf16.msra.mxu0 %v4754
        %6588 = vmatpush.bf16.msra.mxu0 %v4746
        %6589 = vmatpush.bf16.msra.mxu0 %v4738
        %6590 = vmatmul.bf16.gmra.mxu0 %v1382
        %v6591 = vpop.f32.mrf.mxu0
        %v6592 = vadd.f32 %v6579, %v6591
        %v6593 = vpop.f32.mrf.mxu0
        %6594 = vdwg.mxu0
        %6595 = vmatpush.bf16.msra.mxu0 %v4858
        %6596 = vmatpush.bf16.msra.mxu0 %v4850
        %6597 = vmatpush.bf16.msra.mxu0 %v4842
        %6598 = vmatpush.bf16.msra.mxu0 %v4834
        %6599 = vmatpush.bf16.msra.mxu0 %v4826
        %6600 = vmatpush.bf16.msra.mxu0 %v4818
        %6601 = vmatpush.bf16.msra.mxu0 %v4810
        %6602 = vmatpush.bf16.msra.mxu0 %v4802
        %6603 = vmatmul.bf16.gmra.mxu0 %v1383
        %v6604 = vpop.f32.mrf.mxu0
        %v6605 = vadd.f32 %v6592, %v6604
        %v6606 = vpop.f32.mrf.mxu0
        %6607 = vdwg.mxu0
        %6608 = vmatpush.bf16.msra.mxu0 %v4922
        %6609 = vmatpush.bf16.msra.mxu0 %v4914
        %6610 = vmatpush.bf16.msra.mxu0 %v4906
        %6611 = vmatpush.bf16.msra.mxu0 %v4898
        %6612 = vmatpush.bf16.msra.mxu0 %v4890
        %6613 = vmatpush.bf16.msra.mxu0 %v4882
        %6614 = vmatpush.bf16.msra.mxu0 %v4874
        %6615 = vmatpush.bf16.msra.mxu0 %v4866
        %6616 = vmatmul.bf16.gmra.mxu0 %v1384
        %v6617 = vpop.f32.mrf.mxu0
        %v6618 = vadd.f32 %v6605, %v6617
        %v6619 = vpop.f32.mrf.mxu0
        %6620 = vdwg.mxu0
        %6621 = vmatpush.bf16.msra.mxu0 %v4986
        %6622 = vmatpush.bf16.msra.mxu0 %v4978
        %6623 = vmatpush.bf16.msra.mxu0 %v4970
        %6624 = vmatpush.bf16.msra.mxu0 %v4962
        %6625 = vmatpush.bf16.msra.mxu0 %v4954
        %6626 = vmatpush.bf16.msra.mxu0 %v4946
        %6627 = vmatpush.bf16.msra.mxu0 %v4938
        %6628 = vmatpush.bf16.msra.mxu0 %v4930
        %6629 = vmatmul.bf16.gmra.mxu0 %v1385
        %v6630 = vpop.f32.mrf.mxu0
        %v6631 = vadd.f32 %v6618, %v6630
        %v6632 = vpop.f32.mrf.mxu0
        %6633 = vdwg.mxu0
        %6634 = vmatpush.bf16.msra.mxu0 %v5050
        %6635 = vmatpush.bf16.msra.mxu0 %v5042
        %6636 = vmatpush.bf16.msra.mxu0 %v5034
        %6637 = vmatpush.bf16.msra.mxu0 %v5026
        %6638 = vmatpush.bf16.msra.mxu0 %v5018
        %6639 = vmatpush.bf16.msra.mxu0 %v5010
        %6640 = vmatpush.bf16.msra.mxu0 %v5002
        %6641 = vmatpush.bf16.msra.mxu0 %v4994
        %6642 = vmatmul.bf16.gmra.mxu0 %v1386
        %v6643 = vpop.f32.mrf.mxu0
        %v6644 = vadd.f32 %v6631, %v6643
        %v6645 = vpop.f32.mrf.mxu0
        %6646 = vdwg.mxu0
        %6647 = vmatpush.bf16.msra.mxu0 %v5114
        %6648 = vmatpush.bf16.msra.mxu0 %v5106
        %6649 = vmatpush.bf16.msra.mxu0 %v5098
        %6650 = vmatpush.bf16.msra.mxu0 %v5090
        %6651 = vmatpush.bf16.msra.mxu0 %v5082
        %6652 = vmatpush.bf16.msra.mxu0 %v5074
        %6653 = vmatpush.bf16.msra.mxu0 %v5066
        %6654 = vmatpush.bf16.msra.mxu0 %v5058
        %6655 = vmatmul.bf16.gmra.mxu0 %v1387
        %v6656 = vpop.f32.mrf.mxu0
        %v6657 = vadd.f32 %v6644, %v6656
        %v6658 = vpop.f32.mrf.mxu0
        %6659 = vdwg.mxu0
        %6660 = vmatpush.bf16.msra.mxu0 %v5178
        %6661 = vmatpush.bf16.msra.mxu0 %v5170
        %6662 = vmatpush.bf16.msra.mxu0 %v5162
        %6663 = vmatpush.bf16.msra.mxu0 %v5154
        %6664 = vmatpush.bf16.msra.mxu0 %v5146
        %6665 = vmatpush.bf16.msra.mxu0 %v5138
        %6666 = vmatpush.bf16.msra.mxu0 %v5130
        %6667 = vmatpush.bf16.msra.mxu0 %v5122
        %6668 = vmatmul.bf16.gmra.mxu0 %v1388
        %v6669 = vpop.f32.mrf.mxu0
        %v6670 = vadd.f32 %v6657, %v6669
        %v6671 = vpop.f32.mrf.mxu0
        %6672 = vdwg.mxu0
        %6673 = vmatpush.bf16.msra.mxu0 %v5242
        %6674 = vmatpush.bf16.msra.mxu0 %v5234
        %6675 = vmatpush.bf16.msra.mxu0 %v5226
        %6676 = vmatpush.bf16.msra.mxu0 %v5218
        %6677 = vmatpush.bf16.msra.mxu0 %v5210
        %6678 = vmatpush.bf16.msra.mxu0 %v5202
        %6679 = vmatpush.bf16.msra.mxu0 %v5194
        %6680 = vmatpush.bf16.msra.mxu0 %v5186
        %6681 = vmatmul.bf16.gmra.mxu0 %v1389
        %v6682 = vpop.f32.mrf.mxu0
        %v6683 = vadd.f32 %v6670, %v6682
        %v6684 = vpop.f32.mrf.mxu0
        %6685 = vdwg.mxu0
        %6686 = vmatpush.bf16.msra.mxu0 %v5306
        %6687 = vmatpush.bf16.msra.mxu0 %v5298
        %6688 = vmatpush.bf16.msra.mxu0 %v5290
        %6689 = vmatpush.bf16.msra.mxu0 %v5282
        %6690 = vmatpush.bf16.msra.mxu0 %v5274
        %6691 = vmatpush.bf16.msra.mxu0 %v5266
        %6692 = vmatpush.bf16.msra.mxu0 %v5258
        %6693 = vmatpush.bf16.msra.mxu0 %v5250
        %6694 = vmatmul.bf16.gmra.mxu0 %v1390
        %v6695 = vpop.f32.mrf.mxu0
        %v6696 = vadd.f32 %v6683, %v6695
        %v6697 = vpop.f32.mrf.mxu0
        %6698 = vdwg.mxu0
        %6699 = vmatpush.bf16.msra.mxu0 %v5370
        %6700 = vmatpush.bf16.msra.mxu0 %v5362
        %6701 = vmatpush.bf16.msra.mxu0 %v5354
        %6702 = vmatpush.bf16.msra.mxu0 %v5346
        %6703 = vmatpush.bf16.msra.mxu0 %v5338
        %6704 = vmatpush.bf16.msra.mxu0 %v5330
        %6705 = vmatpush.bf16.msra.mxu0 %v5322
        %6706 = vmatpush.bf16.msra.mxu0 %v5314
        %6707 = vmatmul.bf16.gmra.mxu0 %v1391
        %v6708 = vpop.f32.mrf.mxu0
        %v6709 = vadd.f32 %v6696, %v6708
        %v6710 = vpop.f32.mrf.mxu0
        %6711 = vdwg.mxu0
        %6712 = vmatpush.bf16.msra.mxu0 %v5434
        %6713 = vmatpush.bf16.msra.mxu0 %v5426
        %6714 = vmatpush.bf16.msra.mxu0 %v5418
        %6715 = vmatpush.bf16.msra.mxu0 %v5410
        %6716 = vmatpush.bf16.msra.mxu0 %v5402
        %6717 = vmatpush.bf16.msra.mxu0 %v5394
        %6718 = vmatpush.bf16.msra.mxu0 %v5386
        %6719 = vmatpush.bf16.msra.mxu0 %v5378
        %6720 = vmatmul.bf16.gmra.mxu0 %v1392
        %v6721 = vpop.f32.mrf.mxu0
        %v6722 = vadd.f32 %v6709, %v6721
        %v6723 = vpop.f32.mrf.mxu0
        %6724 = vdwg.mxu0
        %6725 = vmatpush.bf16.msra.mxu0 %v5498
        %6726 = vmatpush.bf16.msra.mxu0 %v5490
        %6727 = vmatpush.bf16.msra.mxu0 %v5482
        %6728 = vmatpush.bf16.msra.mxu0 %v5474
        %6729 = vmatpush.bf16.msra.mxu0 %v5466
        %6730 = vmatpush.bf16.msra.mxu0 %v5458
        %6731 = vmatpush.bf16.msra.mxu0 %v5450
        %6732 = vmatpush.bf16.msra.mxu0 %v5442
        %6733 = vmatmul.bf16.gmra.mxu0 %v1393
        %v6734 = vpop.f32.mrf.mxu0
        %v6735 = vadd.f32 %v6722, %v6734
        %v6736 = vpop.f32.mrf.mxu0
        %6737 = vdwg.mxu0
        %6738 = vmatpush.bf16.msra.mxu0 %v4539
        %6739 = vmatpush.bf16.msra.mxu0 %v4531
        %6740 = vmatpush.bf16.msra.mxu0 %v4523
        %6741 = vmatpush.bf16.msra.mxu0 %v4515
        %6742 = vmatpush.bf16.msra.mxu0 %v4507
        %6743 = vmatpush.bf16.msra.mxu0 %v4499
        %6744 = vmatpush.bf16.msra.mxu0 %v4491
        %6745 = vmatpush.bf16.msra.mxu0 %v4483
        %6746 = vmatmul.bf16.gmra.mxu0 %v1378
        %v6747 = vpop.f32.mrf.mxu0
        %v6748 = vadd.f32 0.0, %v6747
        %v6749 = vpop.f32.mrf.mxu0
        %6750 = vdwg.mxu0
        %6751 = vmatpush.bf16.msra.mxu0 %v4603
        %6752 = vmatpush.bf16.msra.mxu0 %v4595
        %6753 = vmatpush.bf16.msra.mxu0 %v4587
        %6754 = vmatpush.bf16.msra.mxu0 %v4579
        %6755 = vmatpush.bf16.msra.mxu0 %v4571
        %6756 = vmatpush.bf16.msra.mxu0 %v4563
        %6757 = vmatpush.bf16.msra.mxu0 %v4555
        %6758 = vmatpush.bf16.msra.mxu0 %v4547
        %6759 = vmatmul.bf16.gmra.mxu0 %v1379
        %v6760 = vpop.f32.mrf.mxu0
        %v6761 = vadd.f32 %v6748, %v6760
        %v6762 = vpop.f32.mrf.mxu0
        %6763 = vdwg.mxu0
        %6764 = vmatpush.bf16.msra.mxu0 %v4667
        %6765 = vmatpush.bf16.msra.mxu0 %v4659
        %6766 = vmatpush.bf16.msra.mxu0 %v4651
        %6767 = vmatpush.bf16.msra.mxu0 %v4643
        %6768 = vmatpush.bf16.msra.mxu0 %v4635
        %6769 = vmatpush.bf16.msra.mxu0 %v4627
        %6770 = vmatpush.bf16.msra.mxu0 %v4619
        %6771 = vmatpush.bf16.msra.mxu0 %v4611
        %6772 = vmatmul.bf16.gmra.mxu0 %v1380
        %v6773 = vpop.f32.mrf.mxu0
        %v6774 = vadd.f32 %v6761, %v6773
        %v6775 = vpop.f32.mrf.mxu0
        %6776 = vdwg.mxu0
        %6777 = vmatpush.bf16.msra.mxu0 %v4731
        %6778 = vmatpush.bf16.msra.mxu0 %v4723
        %6779 = vmatpush.bf16.msra.mxu0 %v4715
        %6780 = vmatpush.bf16.msra.mxu0 %v4707
        %6781 = vmatpush.bf16.msra.mxu0 %v4699
        %6782 = vmatpush.bf16.msra.mxu0 %v4691
        %6783 = vmatpush.bf16.msra.mxu0 %v4683
        %6784 = vmatpush.bf16.msra.mxu0 %v4675
        %6785 = vmatmul.bf16.gmra.mxu0 %v1381
        %v6786 = vpop.f32.mrf.mxu0
        %v6787 = vadd.f32 %v6774, %v6786
        %v6788 = vpop.f32.mrf.mxu0
        %6789 = vdwg.mxu0
        %6790 = vmatpush.bf16.msra.mxu0 %v4795
        %6791 = vmatpush.bf16.msra.mxu0 %v4787
        %6792 = vmatpush.bf16.msra.mxu0 %v4779
        %6793 = vmatpush.bf16.msra.mxu0 %v4771
        %6794 = vmatpush.bf16.msra.mxu0 %v4763
        %6795 = vmatpush.bf16.msra.mxu0 %v4755
        %6796 = vmatpush.bf16.msra.mxu0 %v4747
        %6797 = vmatpush.bf16.msra.mxu0 %v4739
        %6798 = vmatmul.bf16.gmra.mxu0 %v1382
        %v6799 = vpop.f32.mrf.mxu0
        %v6800 = vadd.f32 %v6787, %v6799
        %v6801 = vpop.f32.mrf.mxu0
        %6802 = vdwg.mxu0
        %6803 = vmatpush.bf16.msra.mxu0 %v4859
        %6804 = vmatpush.bf16.msra.mxu0 %v4851
        %6805 = vmatpush.bf16.msra.mxu0 %v4843
        %6806 = vmatpush.bf16.msra.mxu0 %v4835
        %6807 = vmatpush.bf16.msra.mxu0 %v4827
        %6808 = vmatpush.bf16.msra.mxu0 %v4819
        %6809 = vmatpush.bf16.msra.mxu0 %v4811
        %6810 = vmatpush.bf16.msra.mxu0 %v4803
        %6811 = vmatmul.bf16.gmra.mxu0 %v1383
        %v6812 = vpop.f32.mrf.mxu0
        %v6813 = vadd.f32 %v6800, %v6812
        %v6814 = vpop.f32.mrf.mxu0
        %6815 = vdwg.mxu0
        %6816 = vmatpush.bf16.msra.mxu0 %v4923
        %6817 = vmatpush.bf16.msra.mxu0 %v4915
        %6818 = vmatpush.bf16.msra.mxu0 %v4907
        %6819 = vmatpush.bf16.msra.mxu0 %v4899
        %6820 = vmatpush.bf16.msra.mxu0 %v4891
        %6821 = vmatpush.bf16.msra.mxu0 %v4883
        %6822 = vmatpush.bf16.msra.mxu0 %v4875
        %6823 = vmatpush.bf16.msra.mxu0 %v4867
        %6824 = vmatmul.bf16.gmra.mxu0 %v1384
        %v6825 = vpop.f32.mrf.mxu0
        %v6826 = vadd.f32 %v6813, %v6825
        %v6827 = vpop.f32.mrf.mxu0
        %6828 = vdwg.mxu0
        %6829 = vmatpush.bf16.msra.mxu0 %v4987
        %6830 = vmatpush.bf16.msra.mxu0 %v4979
        %6831 = vmatpush.bf16.msra.mxu0 %v4971
        %6832 = vmatpush.bf16.msra.mxu0 %v4963
        %6833 = vmatpush.bf16.msra.mxu0 %v4955
        %6834 = vmatpush.bf16.msra.mxu0 %v4947
        %6835 = vmatpush.bf16.msra.mxu0 %v4939
        %6836 = vmatpush.bf16.msra.mxu0 %v4931
        %6837 = vmatmul.bf16.gmra.mxu0 %v1385
        %v6838 = vpop.f32.mrf.mxu0
        %v6839 = vadd.f32 %v6826, %v6838
        %v6840 = vpop.f32.mrf.mxu0
        %6841 = vdwg.mxu0
        %6842 = vmatpush.bf16.msra.mxu0 %v5051
        %6843 = vmatpush.bf16.msra.mxu0 %v5043
        %6844 = vmatpush.bf16.msra.mxu0 %v5035
        %6845 = vmatpush.bf16.msra.mxu0 %v5027
        %6846 = vmatpush.bf16.msra.mxu0 %v5019
        %6847 = vmatpush.bf16.msra.mxu0 %v5011
        %6848 = vmatpush.bf16.msra.mxu0 %v5003
        %6849 = vmatpush.bf16.msra.mxu0 %v4995
        %6850 = vmatmul.bf16.gmra.mxu0 %v1386
        %v6851 = vpop.f32.mrf.mxu0
        %v6852 = vadd.f32 %v6839, %v6851
        %v6853 = vpop.f32.mrf.mxu0
        %6854 = vdwg.mxu0
        %6855 = vmatpush.bf16.msra.mxu0 %v5115
        %6856 = vmatpush.bf16.msra.mxu0 %v5107
        %6857 = vmatpush.bf16.msra.mxu0 %v5099
        %6858 = vmatpush.bf16.msra.mxu0 %v5091
        %6859 = vmatpush.bf16.msra.mxu0 %v5083
        %6860 = vmatpush.bf16.msra.mxu0 %v5075
        %6861 = vmatpush.bf16.msra.mxu0 %v5067
        %6862 = vmatpush.bf16.msra.mxu0 %v5059
        %6863 = vmatmul.bf16.gmra.mxu0 %v1387
        %v6864 = vpop.f32.mrf.mxu0
        %v6865 = vadd.f32 %v6852, %v6864
        %v6866 = vpop.f32.mrf.mxu0
        %6867 = vdwg.mxu0
        %6868 = vmatpush.bf16.msra.mxu0 %v5179
        %6869 = vmatpush.bf16.msra.mxu0 %v5171
        %6870 = vmatpush.bf16.msra.mxu0 %v5163
        %6871 = vmatpush.bf16.msra.mxu0 %v5155
        %6872 = vmatpush.bf16.msra.mxu0 %v5147
        %6873 = vmatpush.bf16.msra.mxu0 %v5139
        %6874 = vmatpush.bf16.msra.mxu0 %v5131
        %6875 = vmatpush.bf16.msra.mxu0 %v5123
        %6876 = vmatmul.bf16.gmra.mxu0 %v1388
        %v6877 = vpop.f32.mrf.mxu0
        %v6878 = vadd.f32 %v6865, %v6877
        %v6879 = vpop.f32.mrf.mxu0
        %6880 = vdwg.mxu0
        %6881 = vmatpush.bf16.msra.mxu0 %v5243
        %6882 = vmatpush.bf16.msra.mxu0 %v5235
        %6883 = vmatpush.bf16.msra.mxu0 %v5227
        %6884 = vmatpush.bf16.msra.mxu0 %v5219
        %6885 = vmatpush.bf16.msra.mxu0 %v5211
        %6886 = vmatpush.bf16.msra.mxu0 %v5203
        %6887 = vmatpush.bf16.msra.mxu0 %v5195
        %6888 = vmatpush.bf16.msra.mxu0 %v5187
        %6889 = vmatmul.bf16.gmra.mxu0 %v1389
        %v6890 = vpop.f32.mrf.mxu0
        %v6891 = vadd.f32 %v6878, %v6890
        %v6892 = vpop.f32.mrf.mxu0
        %6893 = vdwg.mxu0
        %6894 = vmatpush.bf16.msra.mxu0 %v5307
        %6895 = vmatpush.bf16.msra.mxu0 %v5299
        %6896 = vmatpush.bf16.msra.mxu0 %v5291
        %6897 = vmatpush.bf16.msra.mxu0 %v5283
        %6898 = vmatpush.bf16.msra.mxu0 %v5275
        %6899 = vmatpush.bf16.msra.mxu0 %v5267
        %6900 = vmatpush.bf16.msra.mxu0 %v5259
        %6901 = vmatpush.bf16.msra.mxu0 %v5251
        %6902 = vmatmul.bf16.gmra.mxu0 %v1390
        %v6903 = vpop.f32.mrf.mxu0
        %v6904 = vadd.f32 %v6891, %v6903
        %v6905 = vpop.f32.mrf.mxu0
        %6906 = vdwg.mxu0
        %6907 = vmatpush.bf16.msra.mxu0 %v5371
        %6908 = vmatpush.bf16.msra.mxu0 %v5363
        %6909 = vmatpush.bf16.msra.mxu0 %v5355
        %6910 = vmatpush.bf16.msra.mxu0 %v5347
        %6911 = vmatpush.bf16.msra.mxu0 %v5339
        %6912 = vmatpush.bf16.msra.mxu0 %v5331
        %6913 = vmatpush.bf16.msra.mxu0 %v5323
        %6914 = vmatpush.bf16.msra.mxu0 %v5315
        %6915 = vmatmul.bf16.gmra.mxu0 %v1391
        %v6916 = vpop.f32.mrf.mxu0
        %v6917 = vadd.f32 %v6904, %v6916
        %v6918 = vpop.f32.mrf.mxu0
        %6919 = vdwg.mxu0
        %6920 = vmatpush.bf16.msra.mxu0 %v5435
        %6921 = vmatpush.bf16.msra.mxu0 %v5427
        %6922 = vmatpush.bf16.msra.mxu0 %v5419
        %6923 = vmatpush.bf16.msra.mxu0 %v5411
        %6924 = vmatpush.bf16.msra.mxu0 %v5403
        %6925 = vmatpush.bf16.msra.mxu0 %v5395
        %6926 = vmatpush.bf16.msra.mxu0 %v5387
        %6927 = vmatpush.bf16.msra.mxu0 %v5379
        %6928 = vmatmul.bf16.gmra.mxu0 %v1392
        %v6929 = vpop.f32.mrf.mxu0
        %v6930 = vadd.f32 %v6917, %v6929
        %v6931 = vpop.f32.mrf.mxu0
        %6932 = vdwg.mxu0
        %6933 = vmatpush.bf16.msra.mxu0 %v5499
        %6934 = vmatpush.bf16.msra.mxu0 %v5491
        %6935 = vmatpush.bf16.msra.mxu0 %v5483
        %6936 = vmatpush.bf16.msra.mxu0 %v5475
        %6937 = vmatpush.bf16.msra.mxu0 %v5467
        %6938 = vmatpush.bf16.msra.mxu0 %v5459
        %6939 = vmatpush.bf16.msra.mxu0 %v5451
        %6940 = vmatpush.bf16.msra.mxu0 %v5443
        %6941 = vmatmul.bf16.gmra.mxu0 %v1393
        %v6942 = vpop.f32.mrf.mxu0
        %v6943 = vadd.f32 %v6930, %v6942
        %v6944 = vpop.f32.mrf.mxu0
        %6945 = vdwg.mxu0
        %6946 = vmatpush.bf16.msra.mxu0 %v4540
        %6947 = vmatpush.bf16.msra.mxu0 %v4532
        %6948 = vmatpush.bf16.msra.mxu0 %v4524
        %6949 = vmatpush.bf16.msra.mxu0 %v4516
        %6950 = vmatpush.bf16.msra.mxu0 %v4508
        %6951 = vmatpush.bf16.msra.mxu0 %v4500
        %6952 = vmatpush.bf16.msra.mxu0 %v4492
        %6953 = vmatpush.bf16.msra.mxu0 %v4484
        %6954 = vmatmul.bf16.gmra.mxu0 %v1378
        %v6955 = vpop.f32.mrf.mxu0
        %v6956 = vadd.f32 0.0, %v6955
        %v6957 = vpop.f32.mrf.mxu0
        %6958 = vdwg.mxu0
        %6959 = vmatpush.bf16.msra.mxu0 %v4604
        %6960 = vmatpush.bf16.msra.mxu0 %v4596
        %6961 = vmatpush.bf16.msra.mxu0 %v4588
        %6962 = vmatpush.bf16.msra.mxu0 %v4580
        %6963 = vmatpush.bf16.msra.mxu0 %v4572
        %6964 = vmatpush.bf16.msra.mxu0 %v4564
        %6965 = vmatpush.bf16.msra.mxu0 %v4556
        %6966 = vmatpush.bf16.msra.mxu0 %v4548
        %6967 = vmatmul.bf16.gmra.mxu0 %v1379
        %v6968 = vpop.f32.mrf.mxu0
        %v6969 = vadd.f32 %v6956, %v6968
        %v6970 = vpop.f32.mrf.mxu0
        %6971 = vdwg.mxu0
        %6972 = vmatpush.bf16.msra.mxu0 %v4668
        %6973 = vmatpush.bf16.msra.mxu0 %v4660
        %6974 = vmatpush.bf16.msra.mxu0 %v4652
        %6975 = vmatpush.bf16.msra.mxu0 %v4644
        %6976 = vmatpush.bf16.msra.mxu0 %v4636
        %6977 = vmatpush.bf16.msra.mxu0 %v4628
        %6978 = vmatpush.bf16.msra.mxu0 %v4620
        %6979 = vmatpush.bf16.msra.mxu0 %v4612
        %6980 = vmatmul.bf16.gmra.mxu0 %v1380
        %v6981 = vpop.f32.mrf.mxu0
        %v6982 = vadd.f32 %v6969, %v6981
        %v6983 = vpop.f32.mrf.mxu0
        %6984 = vdwg.mxu0
        %6985 = vmatpush.bf16.msra.mxu0 %v4732
        %6986 = vmatpush.bf16.msra.mxu0 %v4724
        %6987 = vmatpush.bf16.msra.mxu0 %v4716
        %6988 = vmatpush.bf16.msra.mxu0 %v4708
        %6989 = vmatpush.bf16.msra.mxu0 %v4700
        %6990 = vmatpush.bf16.msra.mxu0 %v4692
        %6991 = vmatpush.bf16.msra.mxu0 %v4684
        %6992 = vmatpush.bf16.msra.mxu0 %v4676
        %6993 = vmatmul.bf16.gmra.mxu0 %v1381
        %v6994 = vpop.f32.mrf.mxu0
        %v6995 = vadd.f32 %v6982, %v6994
        %v6996 = vpop.f32.mrf.mxu0
        %6997 = vdwg.mxu0
        %6998 = vmatpush.bf16.msra.mxu0 %v4796
        %6999 = vmatpush.bf16.msra.mxu0 %v4788
        %7000 = vmatpush.bf16.msra.mxu0 %v4780
        %7001 = vmatpush.bf16.msra.mxu0 %v4772
        %7002 = vmatpush.bf16.msra.mxu0 %v4764
        %7003 = vmatpush.bf16.msra.mxu0 %v4756
        %7004 = vmatpush.bf16.msra.mxu0 %v4748
        %7005 = vmatpush.bf16.msra.mxu0 %v4740
        %7006 = vmatmul.bf16.gmra.mxu0 %v1382
        %v7007 = vpop.f32.mrf.mxu0
        %v7008 = vadd.f32 %v6995, %v7007
        %v7009 = vpop.f32.mrf.mxu0
        %7010 = vdwg.mxu0
        %7011 = vmatpush.bf16.msra.mxu0 %v4860
        %7012 = vmatpush.bf16.msra.mxu0 %v4852
        %7013 = vmatpush.bf16.msra.mxu0 %v4844
        %7014 = vmatpush.bf16.msra.mxu0 %v4836
        %7015 = vmatpush.bf16.msra.mxu0 %v4828
        %7016 = vmatpush.bf16.msra.mxu0 %v4820
        %7017 = vmatpush.bf16.msra.mxu0 %v4812
        %7018 = vmatpush.bf16.msra.mxu0 %v4804
        %7019 = vmatmul.bf16.gmra.mxu0 %v1383
        %v7020 = vpop.f32.mrf.mxu0
        %v7021 = vadd.f32 %v7008, %v7020
        %v7022 = vpop.f32.mrf.mxu0
        %7023 = vdwg.mxu0
        %7024 = vmatpush.bf16.msra.mxu0 %v4924
        %7025 = vmatpush.bf16.msra.mxu0 %v4916
        %7026 = vmatpush.bf16.msra.mxu0 %v4908
        %7027 = vmatpush.bf16.msra.mxu0 %v4900
        %7028 = vmatpush.bf16.msra.mxu0 %v4892
        %7029 = vmatpush.bf16.msra.mxu0 %v4884
        %7030 = vmatpush.bf16.msra.mxu0 %v4876
        %7031 = vmatpush.bf16.msra.mxu0 %v4868
        %7032 = vmatmul.bf16.gmra.mxu0 %v1384
        %v7033 = vpop.f32.mrf.mxu0
        %v7034 = vadd.f32 %v7021, %v7033
        %v7035 = vpop.f32.mrf.mxu0
        %7036 = vdwg.mxu0
        %7037 = vmatpush.bf16.msra.mxu0 %v4988
        %7038 = vmatpush.bf16.msra.mxu0 %v4980
        %7039 = vmatpush.bf16.msra.mxu0 %v4972
        %7040 = vmatpush.bf16.msra.mxu0 %v4964
        %7041 = vmatpush.bf16.msra.mxu0 %v4956
        %7042 = vmatpush.bf16.msra.mxu0 %v4948
        %7043 = vmatpush.bf16.msra.mxu0 %v4940
        %7044 = vmatpush.bf16.msra.mxu0 %v4932
        %7045 = vmatmul.bf16.gmra.mxu0 %v1385
        %v7046 = vpop.f32.mrf.mxu0
        %v7047 = vadd.f32 %v7034, %v7046
        %v7048 = vpop.f32.mrf.mxu0
        %7049 = vdwg.mxu0
        %7050 = vmatpush.bf16.msra.mxu0 %v5052
        %7051 = vmatpush.bf16.msra.mxu0 %v5044
        %7052 = vmatpush.bf16.msra.mxu0 %v5036
        %7053 = vmatpush.bf16.msra.mxu0 %v5028
        %7054 = vmatpush.bf16.msra.mxu0 %v5020
        %7055 = vmatpush.bf16.msra.mxu0 %v5012
        %7056 = vmatpush.bf16.msra.mxu0 %v5004
        %7057 = vmatpush.bf16.msra.mxu0 %v4996
        %7058 = vmatmul.bf16.gmra.mxu0 %v1386
        %v7059 = vpop.f32.mrf.mxu0
        %v7060 = vadd.f32 %v7047, %v7059
        %v7061 = vpop.f32.mrf.mxu0
        %7062 = vdwg.mxu0
        %7063 = vmatpush.bf16.msra.mxu0 %v5116
        %7064 = vmatpush.bf16.msra.mxu0 %v5108
        %7065 = vmatpush.bf16.msra.mxu0 %v5100
        %7066 = vmatpush.bf16.msra.mxu0 %v5092
        %7067 = vmatpush.bf16.msra.mxu0 %v5084
        %7068 = vmatpush.bf16.msra.mxu0 %v5076
        %7069 = vmatpush.bf16.msra.mxu0 %v5068
        %7070 = vmatpush.bf16.msra.mxu0 %v5060
        %7071 = vmatmul.bf16.gmra.mxu0 %v1387
        %v7072 = vpop.f32.mrf.mxu0
        %v7073 = vadd.f32 %v7060, %v7072
        %v7074 = vpop.f32.mrf.mxu0
        %7075 = vdwg.mxu0
        %7076 = vmatpush.bf16.msra.mxu0 %v5180
        %7077 = vmatpush.bf16.msra.mxu0 %v5172
        %7078 = vmatpush.bf16.msra.mxu0 %v5164
        %7079 = vmatpush.bf16.msra.mxu0 %v5156
        %7080 = vmatpush.bf16.msra.mxu0 %v5148
        %7081 = vmatpush.bf16.msra.mxu0 %v5140
        %7082 = vmatpush.bf16.msra.mxu0 %v5132
        %7083 = vmatpush.bf16.msra.mxu0 %v5124
        %7084 = vmatmul.bf16.gmra.mxu0 %v1388
        %v7085 = vpop.f32.mrf.mxu0
        %v7086 = vadd.f32 %v7073, %v7085
        %v7087 = vpop.f32.mrf.mxu0
        %7088 = vdwg.mxu0
        %7089 = vmatpush.bf16.msra.mxu0 %v5244
        %7090 = vmatpush.bf16.msra.mxu0 %v5236
        %7091 = vmatpush.bf16.msra.mxu0 %v5228
        %7092 = vmatpush.bf16.msra.mxu0 %v5220
        %7093 = vmatpush.bf16.msra.mxu0 %v5212
        %7094 = vmatpush.bf16.msra.mxu0 %v5204
        %7095 = vmatpush.bf16.msra.mxu0 %v5196
        %7096 = vmatpush.bf16.msra.mxu0 %v5188
        %7097 = vmatmul.bf16.gmra.mxu0 %v1389
        %v7098 = vpop.f32.mrf.mxu0
        %v7099 = vadd.f32 %v7086, %v7098
        %v7100 = vpop.f32.mrf.mxu0
        %7101 = vdwg.mxu0
        %7102 = vmatpush.bf16.msra.mxu0 %v5308
        %7103 = vmatpush.bf16.msra.mxu0 %v5300
        %7104 = vmatpush.bf16.msra.mxu0 %v5292
        %7105 = vmatpush.bf16.msra.mxu0 %v5284
        %7106 = vmatpush.bf16.msra.mxu0 %v5276
        %7107 = vmatpush.bf16.msra.mxu0 %v5268
        %7108 = vmatpush.bf16.msra.mxu0 %v5260
        %7109 = vmatpush.bf16.msra.mxu0 %v5252
        %7110 = vmatmul.bf16.gmra.mxu0 %v1390
        %v7111 = vpop.f32.mrf.mxu0
        %v7112 = vadd.f32 %v7099, %v7111
        %v7113 = vpop.f32.mrf.mxu0
        %7114 = vdwg.mxu0
        %7115 = vmatpush.bf16.msra.mxu0 %v5372
        %7116 = vmatpush.bf16.msra.mxu0 %v5364
        %7117 = vmatpush.bf16.msra.mxu0 %v5356
        %7118 = vmatpush.bf16.msra.mxu0 %v5348
        %7119 = vmatpush.bf16.msra.mxu0 %v5340
        %7120 = vmatpush.bf16.msra.mxu0 %v5332
        %7121 = vmatpush.bf16.msra.mxu0 %v5324
        %7122 = vmatpush.bf16.msra.mxu0 %v5316
        %7123 = vmatmul.bf16.gmra.mxu0 %v1391
        %v7124 = vpop.f32.mrf.mxu0
        %v7125 = vadd.f32 %v7112, %v7124
        %v7126 = vpop.f32.mrf.mxu0
        %7127 = vdwg.mxu0
        %7128 = vmatpush.bf16.msra.mxu0 %v5436
        %7129 = vmatpush.bf16.msra.mxu0 %v5428
        %7130 = vmatpush.bf16.msra.mxu0 %v5420
        %7131 = vmatpush.bf16.msra.mxu0 %v5412
        %7132 = vmatpush.bf16.msra.mxu0 %v5404
        %7133 = vmatpush.bf16.msra.mxu0 %v5396
        %7134 = vmatpush.bf16.msra.mxu0 %v5388
        %7135 = vmatpush.bf16.msra.mxu0 %v5380
        %7136 = vmatmul.bf16.gmra.mxu0 %v1392
        %v7137 = vpop.f32.mrf.mxu0
        %v7138 = vadd.f32 %v7125, %v7137
        %v7139 = vpop.f32.mrf.mxu0
        %7140 = vdwg.mxu0
        %7141 = vmatpush.bf16.msra.mxu0 %v5500
        %7142 = vmatpush.bf16.msra.mxu0 %v5492
        %7143 = vmatpush.bf16.msra.mxu0 %v5484
        %7144 = vmatpush.bf16.msra.mxu0 %v5476
        %7145 = vmatpush.bf16.msra.mxu0 %v5468
        %7146 = vmatpush.bf16.msra.mxu0 %v5460
        %7147 = vmatpush.bf16.msra.mxu0 %v5452
        %7148 = vmatpush.bf16.msra.mxu0 %v5444
        %7149 = vmatmul.bf16.gmra.mxu0 %v1393
        %v7150 = vpop.f32.mrf.mxu0
        %v7151 = vadd.f32 %v7138, %v7150
        %v7152 = vpop.f32.mrf.mxu0
        %7153 = vdwg.mxu0
        %7154 = vmatpush.bf16.msra.mxu0 %v4541
        %7155 = vmatpush.bf16.msra.mxu0 %v4533
        %7156 = vmatpush.bf16.msra.mxu0 %v4525
        %7157 = vmatpush.bf16.msra.mxu0 %v4517
        %7158 = vmatpush.bf16.msra.mxu0 %v4509
        %7159 = vmatpush.bf16.msra.mxu0 %v4501
        %7160 = vmatpush.bf16.msra.mxu0 %v4493
        %7161 = vmatpush.bf16.msra.mxu0 %v4485
        %7162 = vmatmul.bf16.gmra.mxu0 %v1378
        %v7163 = vpop.f32.mrf.mxu0
        %v7164 = vadd.f32 0.0, %v7163
        %v7165 = vpop.f32.mrf.mxu0
        %7166 = vdwg.mxu0
        %7167 = vmatpush.bf16.msra.mxu0 %v4605
        %7168 = vmatpush.bf16.msra.mxu0 %v4597
        %7169 = vmatpush.bf16.msra.mxu0 %v4589
        %7170 = vmatpush.bf16.msra.mxu0 %v4581
        %7171 = vmatpush.bf16.msra.mxu0 %v4573
        %7172 = vmatpush.bf16.msra.mxu0 %v4565
        %7173 = vmatpush.bf16.msra.mxu0 %v4557
        %7174 = vmatpush.bf16.msra.mxu0 %v4549
        %7175 = vmatmul.bf16.gmra.mxu0 %v1379
        %v7176 = vpop.f32.mrf.mxu0
        %v7177 = vadd.f32 %v7164, %v7176
        %v7178 = vpop.f32.mrf.mxu0
        %7179 = vdwg.mxu0
        %7180 = vmatpush.bf16.msra.mxu0 %v4669
        %7181 = vmatpush.bf16.msra.mxu0 %v4661
        %7182 = vmatpush.bf16.msra.mxu0 %v4653
        %7183 = vmatpush.bf16.msra.mxu0 %v4645
        %7184 = vmatpush.bf16.msra.mxu0 %v4637
        %7185 = vmatpush.bf16.msra.mxu0 %v4629
        %7186 = vmatpush.bf16.msra.mxu0 %v4621
        %7187 = vmatpush.bf16.msra.mxu0 %v4613
        %7188 = vmatmul.bf16.gmra.mxu0 %v1380
        %v7189 = vpop.f32.mrf.mxu0
        %v7190 = vadd.f32 %v7177, %v7189
        %v7191 = vpop.f32.mrf.mxu0
        %7192 = vdwg.mxu0
        %7193 = vmatpush.bf16.msra.mxu0 %v4733
        %7194 = vmatpush.bf16.msra.mxu0 %v4725
        %7195 = vmatpush.bf16.msra.mxu0 %v4717
        %7196 = vmatpush.bf16.msra.mxu0 %v4709
        %7197 = vmatpush.bf16.msra.mxu0 %v4701
        %7198 = vmatpush.bf16.msra.mxu0 %v4693
        %7199 = vmatpush.bf16.msra.mxu0 %v4685
        %7200 = vmatpush.bf16.msra.mxu0 %v4677
        %7201 = vmatmul.bf16.gmra.mxu0 %v1381
        %v7202 = vpop.f32.mrf.mxu0
        %v7203 = vadd.f32 %v7190, %v7202
        %v7204 = vpop.f32.mrf.mxu0
        %7205 = vdwg.mxu0
        %7206 = vmatpush.bf16.msra.mxu0 %v4797
        %7207 = vmatpush.bf16.msra.mxu0 %v4789
        %7208 = vmatpush.bf16.msra.mxu0 %v4781
        %7209 = vmatpush.bf16.msra.mxu0 %v4773
        %7210 = vmatpush.bf16.msra.mxu0 %v4765
        %7211 = vmatpush.bf16.msra.mxu0 %v4757
        %7212 = vmatpush.bf16.msra.mxu0 %v4749
        %7213 = vmatpush.bf16.msra.mxu0 %v4741
        %7214 = vmatmul.bf16.gmra.mxu0 %v1382
        %v7215 = vpop.f32.mrf.mxu0
        %v7216 = vadd.f32 %v7203, %v7215
        %v7217 = vpop.f32.mrf.mxu0
        %7218 = vdwg.mxu0
        %7219 = vmatpush.bf16.msra.mxu0 %v4861
        %7220 = vmatpush.bf16.msra.mxu0 %v4853
        %7221 = vmatpush.bf16.msra.mxu0 %v4845
        %7222 = vmatpush.bf16.msra.mxu0 %v4837
        %7223 = vmatpush.bf16.msra.mxu0 %v4829
        %7224 = vmatpush.bf16.msra.mxu0 %v4821
        %7225 = vmatpush.bf16.msra.mxu0 %v4813
        %7226 = vmatpush.bf16.msra.mxu0 %v4805
        %7227 = vmatmul.bf16.gmra.mxu0 %v1383
        %v7228 = vpop.f32.mrf.mxu0
        %v7229 = vadd.f32 %v7216, %v7228
        %v7230 = vpop.f32.mrf.mxu0
        %7231 = vdwg.mxu0
        %7232 = vmatpush.bf16.msra.mxu0 %v4925
        %7233 = vmatpush.bf16.msra.mxu0 %v4917
        %7234 = vmatpush.bf16.msra.mxu0 %v4909
        %7235 = vmatpush.bf16.msra.mxu0 %v4901
        %7236 = vmatpush.bf16.msra.mxu0 %v4893
        %7237 = vmatpush.bf16.msra.mxu0 %v4885
        %7238 = vmatpush.bf16.msra.mxu0 %v4877
        %7239 = vmatpush.bf16.msra.mxu0 %v4869
        %7240 = vmatmul.bf16.gmra.mxu0 %v1384
        %v7241 = vpop.f32.mrf.mxu0
        %v7242 = vadd.f32 %v7229, %v7241
        %v7243 = vpop.f32.mrf.mxu0
        %7244 = vdwg.mxu0
        %7245 = vmatpush.bf16.msra.mxu0 %v4989
        %7246 = vmatpush.bf16.msra.mxu0 %v4981
        %7247 = vmatpush.bf16.msra.mxu0 %v4973
        %7248 = vmatpush.bf16.msra.mxu0 %v4965
        %7249 = vmatpush.bf16.msra.mxu0 %v4957
        %7250 = vmatpush.bf16.msra.mxu0 %v4949
        %7251 = vmatpush.bf16.msra.mxu0 %v4941
        %7252 = vmatpush.bf16.msra.mxu0 %v4933
        %7253 = vmatmul.bf16.gmra.mxu0 %v1385
        %v7254 = vpop.f32.mrf.mxu0
        %v7255 = vadd.f32 %v7242, %v7254
        %v7256 = vpop.f32.mrf.mxu0
        %7257 = vdwg.mxu0
        %7258 = vmatpush.bf16.msra.mxu0 %v5053
        %7259 = vmatpush.bf16.msra.mxu0 %v5045
        %7260 = vmatpush.bf16.msra.mxu0 %v5037
        %7261 = vmatpush.bf16.msra.mxu0 %v5029
        %7262 = vmatpush.bf16.msra.mxu0 %v5021
        %7263 = vmatpush.bf16.msra.mxu0 %v5013
        %7264 = vmatpush.bf16.msra.mxu0 %v5005
        %7265 = vmatpush.bf16.msra.mxu0 %v4997
        %7266 = vmatmul.bf16.gmra.mxu0 %v1386
        %v7267 = vpop.f32.mrf.mxu0
        %v7268 = vadd.f32 %v7255, %v7267
        %v7269 = vpop.f32.mrf.mxu0
        %7270 = vdwg.mxu0
        %7271 = vmatpush.bf16.msra.mxu0 %v5117
        %7272 = vmatpush.bf16.msra.mxu0 %v5109
        %7273 = vmatpush.bf16.msra.mxu0 %v5101
        %7274 = vmatpush.bf16.msra.mxu0 %v5093
        %7275 = vmatpush.bf16.msra.mxu0 %v5085
        %7276 = vmatpush.bf16.msra.mxu0 %v5077
        %7277 = vmatpush.bf16.msra.mxu0 %v5069
        %7278 = vmatpush.bf16.msra.mxu0 %v5061
        %7279 = vmatmul.bf16.gmra.mxu0 %v1387
        %v7280 = vpop.f32.mrf.mxu0
        %v7281 = vadd.f32 %v7268, %v7280
        %v7282 = vpop.f32.mrf.mxu0
        %7283 = vdwg.mxu0
        %7284 = vmatpush.bf16.msra.mxu0 %v5181
        %7285 = vmatpush.bf16.msra.mxu0 %v5173
        %7286 = vmatpush.bf16.msra.mxu0 %v5165
        %7287 = vmatpush.bf16.msra.mxu0 %v5157
        %7288 = vmatpush.bf16.msra.mxu0 %v5149
        %7289 = vmatpush.bf16.msra.mxu0 %v5141
        %7290 = vmatpush.bf16.msra.mxu0 %v5133
        %7291 = vmatpush.bf16.msra.mxu0 %v5125
        %7292 = vmatmul.bf16.gmra.mxu0 %v1388
        %v7293 = vpop.f32.mrf.mxu0
        %v7294 = vadd.f32 %v7281, %v7293
        %v7295 = vpop.f32.mrf.mxu0
        %7296 = vdwg.mxu0
        %7297 = vmatpush.bf16.msra.mxu0 %v5245
        %7298 = vmatpush.bf16.msra.mxu0 %v5237
        %7299 = vmatpush.bf16.msra.mxu0 %v5229
        %7300 = vmatpush.bf16.msra.mxu0 %v5221
        %7301 = vmatpush.bf16.msra.mxu0 %v5213
        %7302 = vmatpush.bf16.msra.mxu0 %v5205
        %7303 = vmatpush.bf16.msra.mxu0 %v5197
        %7304 = vmatpush.bf16.msra.mxu0 %v5189
        %7305 = vmatmul.bf16.gmra.mxu0 %v1389
        %v7306 = vpop.f32.mrf.mxu0
        %v7307 = vadd.f32 %v7294, %v7306
        %v7308 = vpop.f32.mrf.mxu0
        %7309 = vdwg.mxu0
        %7310 = vmatpush.bf16.msra.mxu0 %v5309
        %7311 = vmatpush.bf16.msra.mxu0 %v5301
        %7312 = vmatpush.bf16.msra.mxu0 %v5293
        %7313 = vmatpush.bf16.msra.mxu0 %v5285
        %7314 = vmatpush.bf16.msra.mxu0 %v5277
        %7315 = vmatpush.bf16.msra.mxu0 %v5269
        %7316 = vmatpush.bf16.msra.mxu0 %v5261
        %7317 = vmatpush.bf16.msra.mxu0 %v5253
        %7318 = vmatmul.bf16.gmra.mxu0 %v1390
        %v7319 = vpop.f32.mrf.mxu0
        %v7320 = vadd.f32 %v7307, %v7319
        %v7321 = vpop.f32.mrf.mxu0
        %7322 = vdwg.mxu0
        %7323 = vmatpush.bf16.msra.mxu0 %v5373
        %7324 = vmatpush.bf16.msra.mxu0 %v5365
        %7325 = vmatpush.bf16.msra.mxu0 %v5357
        %7326 = vmatpush.bf16.msra.mxu0 %v5349
        %7327 = vmatpush.bf16.msra.mxu0 %v5341
        %7328 = vmatpush.bf16.msra.mxu0 %v5333
        %7329 = vmatpush.bf16.msra.mxu0 %v5325
        %7330 = vmatpush.bf16.msra.mxu0 %v5317
        %7331 = vmatmul.bf16.gmra.mxu0 %v1391
        %v7332 = vpop.f32.mrf.mxu0
        %v7333 = vadd.f32 %v7320, %v7332
        %v7334 = vpop.f32.mrf.mxu0
        %7335 = vdwg.mxu0
        %7336 = vmatpush.bf16.msra.mxu0 %v5437
        %7337 = vmatpush.bf16.msra.mxu0 %v5429
        %7338 = vmatpush.bf16.msra.mxu0 %v5421
        %7339 = vmatpush.bf16.msra.mxu0 %v5413
        %7340 = vmatpush.bf16.msra.mxu0 %v5405
        %7341 = vmatpush.bf16.msra.mxu0 %v5397
        %7342 = vmatpush.bf16.msra.mxu0 %v5389
        %7343 = vmatpush.bf16.msra.mxu0 %v5381
        %7344 = vmatmul.bf16.gmra.mxu0 %v1392
        %v7345 = vpop.f32.mrf.mxu0
        %v7346 = vadd.f32 %v7333, %v7345
        %v7347 = vpop.f32.mrf.mxu0
        %7348 = vdwg.mxu0
        %7349 = vmatpush.bf16.msra.mxu0 %v5501
        %7350 = vmatpush.bf16.msra.mxu0 %v5493
        %7351 = vmatpush.bf16.msra.mxu0 %v5485
        %7352 = vmatpush.bf16.msra.mxu0 %v5477
        %7353 = vmatpush.bf16.msra.mxu0 %v5469
        %7354 = vmatpush.bf16.msra.mxu0 %v5461
        %7355 = vmatpush.bf16.msra.mxu0 %v5453
        %7356 = vmatpush.bf16.msra.mxu0 %v5445
        %7357 = vmatmul.bf16.gmra.mxu0 %v1393
        %v7358 = vpop.f32.mrf.mxu0
        %v7359 = vadd.f32 %v7346, %v7358
        %v7360 = vpop.f32.mrf.mxu0
        %7361 = vdwg.mxu0
        %7362 = vmatpush.bf16.msra.mxu0 %v4542
        %7363 = vmatpush.bf16.msra.mxu0 %v4534
        %7364 = vmatpush.bf16.msra.mxu0 %v4526
        %7365 = vmatpush.bf16.msra.mxu0 %v4518
        %7366 = vmatpush.bf16.msra.mxu0 %v4510
        %7367 = vmatpush.bf16.msra.mxu0 %v4502
        %7368 = vmatpush.bf16.msra.mxu0 %v4494
        %7369 = vmatpush.bf16.msra.mxu0 %v4486
        %7370 = vmatmul.bf16.gmra.mxu0 %v1378
        %v7371 = vpop.f32.mrf.mxu0
        %v7372 = vadd.f32 0.0, %v7371
        %v7373 = vpop.f32.mrf.mxu0
        %7374 = vdwg.mxu0
        %7375 = vmatpush.bf16.msra.mxu0 %v4606
        %7376 = vmatpush.bf16.msra.mxu0 %v4598
        %7377 = vmatpush.bf16.msra.mxu0 %v4590
        %7378 = vmatpush.bf16.msra.mxu0 %v4582
        %7379 = vmatpush.bf16.msra.mxu0 %v4574
        %7380 = vmatpush.bf16.msra.mxu0 %v4566
        %7381 = vmatpush.bf16.msra.mxu0 %v4558
        %7382 = vmatpush.bf16.msra.mxu0 %v4550
        %7383 = vmatmul.bf16.gmra.mxu0 %v1379
        %v7384 = vpop.f32.mrf.mxu0
        %v7385 = vadd.f32 %v7372, %v7384
        %v7386 = vpop.f32.mrf.mxu0
        %7387 = vdwg.mxu0
        %7388 = vmatpush.bf16.msra.mxu0 %v4670
        %7389 = vmatpush.bf16.msra.mxu0 %v4662
        %7390 = vmatpush.bf16.msra.mxu0 %v4654
        %7391 = vmatpush.bf16.msra.mxu0 %v4646
        %7392 = vmatpush.bf16.msra.mxu0 %v4638
        %7393 = vmatpush.bf16.msra.mxu0 %v4630
        %7394 = vmatpush.bf16.msra.mxu0 %v4622
        %7395 = vmatpush.bf16.msra.mxu0 %v4614
        %7396 = vmatmul.bf16.gmra.mxu0 %v1380
        %v7397 = vpop.f32.mrf.mxu0
        %v7398 = vadd.f32 %v7385, %v7397
        %v7399 = vpop.f32.mrf.mxu0
        %7400 = vdwg.mxu0
        %7401 = vmatpush.bf16.msra.mxu0 %v4734
        %7402 = vmatpush.bf16.msra.mxu0 %v4726
        %7403 = vmatpush.bf16.msra.mxu0 %v4718
        %7404 = vmatpush.bf16.msra.mxu0 %v4710
        %7405 = vmatpush.bf16.msra.mxu0 %v4702
        %7406 = vmatpush.bf16.msra.mxu0 %v4694
        %7407 = vmatpush.bf16.msra.mxu0 %v4686
        %7408 = vmatpush.bf16.msra.mxu0 %v4678
        %7409 = vmatmul.bf16.gmra.mxu0 %v1381
        %v7410 = vpop.f32.mrf.mxu0
        %v7411 = vadd.f32 %v7398, %v7410
        %v7412 = vpop.f32.mrf.mxu0
        %7413 = vdwg.mxu0
        %7414 = vmatpush.bf16.msra.mxu0 %v4798
        %7415 = vmatpush.bf16.msra.mxu0 %v4790
        %7416 = vmatpush.bf16.msra.mxu0 %v4782
        %7417 = vmatpush.bf16.msra.mxu0 %v4774
        %7418 = vmatpush.bf16.msra.mxu0 %v4766
        %7419 = vmatpush.bf16.msra.mxu0 %v4758
        %7420 = vmatpush.bf16.msra.mxu0 %v4750
        %7421 = vmatpush.bf16.msra.mxu0 %v4742
        %7422 = vmatmul.bf16.gmra.mxu0 %v1382
        %v7423 = vpop.f32.mrf.mxu0
        %v7424 = vadd.f32 %v7411, %v7423
        %v7425 = vpop.f32.mrf.mxu0
        %7426 = vdwg.mxu0
        %7427 = vmatpush.bf16.msra.mxu0 %v4862
        %7428 = vmatpush.bf16.msra.mxu0 %v4854
        %7429 = vmatpush.bf16.msra.mxu0 %v4846
        %7430 = vmatpush.bf16.msra.mxu0 %v4838
        %7431 = vmatpush.bf16.msra.mxu0 %v4830
        %7432 = vmatpush.bf16.msra.mxu0 %v4822
        %7433 = vmatpush.bf16.msra.mxu0 %v4814
        %7434 = vmatpush.bf16.msra.mxu0 %v4806
        %7435 = vmatmul.bf16.gmra.mxu0 %v1383
        %v7436 = vpop.f32.mrf.mxu0
        %v7437 = vadd.f32 %v7424, %v7436
        %v7438 = vpop.f32.mrf.mxu0
        %7439 = vdwg.mxu0
        %7440 = vmatpush.bf16.msra.mxu0 %v4926
        %7441 = vmatpush.bf16.msra.mxu0 %v4918
        %7442 = vmatpush.bf16.msra.mxu0 %v4910
        %7443 = vmatpush.bf16.msra.mxu0 %v4902
        %7444 = vmatpush.bf16.msra.mxu0 %v4894
        %7445 = vmatpush.bf16.msra.mxu0 %v4886
        %7446 = vmatpush.bf16.msra.mxu0 %v4878
        %7447 = vmatpush.bf16.msra.mxu0 %v4870
        %7448 = vmatmul.bf16.gmra.mxu0 %v1384
        %v7449 = vpop.f32.mrf.mxu0
        %v7450 = vadd.f32 %v7437, %v7449
        %v7451 = vpop.f32.mrf.mxu0
        %7452 = vdwg.mxu0
        %7453 = vmatpush.bf16.msra.mxu0 %v4990
        %7454 = vmatpush.bf16.msra.mxu0 %v4982
        %7455 = vmatpush.bf16.msra.mxu0 %v4974
        %7456 = vmatpush.bf16.msra.mxu0 %v4966
        %7457 = vmatpush.bf16.msra.mxu0 %v4958
        %7458 = vmatpush.bf16.msra.mxu0 %v4950
        %7459 = vmatpush.bf16.msra.mxu0 %v4942
        %7460 = vmatpush.bf16.msra.mxu0 %v4934
        %7461 = vmatmul.bf16.gmra.mxu0 %v1385
        %v7462 = vpop.f32.mrf.mxu0
        %v7463 = vadd.f32 %v7450, %v7462
        %v7464 = vpop.f32.mrf.mxu0
        %7465 = vdwg.mxu0
        %7466 = vmatpush.bf16.msra.mxu0 %v5054
        %7467 = vmatpush.bf16.msra.mxu0 %v5046
        %7468 = vmatpush.bf16.msra.mxu0 %v5038
        %7469 = vmatpush.bf16.msra.mxu0 %v5030
        %7470 = vmatpush.bf16.msra.mxu0 %v5022
        %7471 = vmatpush.bf16.msra.mxu0 %v5014
        %7472 = vmatpush.bf16.msra.mxu0 %v5006
        %7473 = vmatpush.bf16.msra.mxu0 %v4998
        %7474 = vmatmul.bf16.gmra.mxu0 %v1386
        %v7475 = vpop.f32.mrf.mxu0
        %v7476 = vadd.f32 %v7463, %v7475
        %v7477 = vpop.f32.mrf.mxu0
        %7478 = vdwg.mxu0
        %7479 = vmatpush.bf16.msra.mxu0 %v5118
        %7480 = vmatpush.bf16.msra.mxu0 %v5110
        %7481 = vmatpush.bf16.msra.mxu0 %v5102
        %7482 = vmatpush.bf16.msra.mxu0 %v5094
        %7483 = vmatpush.bf16.msra.mxu0 %v5086
        %7484 = vmatpush.bf16.msra.mxu0 %v5078
        %7485 = vmatpush.bf16.msra.mxu0 %v5070
        %7486 = vmatpush.bf16.msra.mxu0 %v5062
        %7487 = vmatmul.bf16.gmra.mxu0 %v1387
        %v7488 = vpop.f32.mrf.mxu0
        %v7489 = vadd.f32 %v7476, %v7488
        %v7490 = vpop.f32.mrf.mxu0
        %7491 = vdwg.mxu0
        %7492 = vmatpush.bf16.msra.mxu0 %v5182
        %7493 = vmatpush.bf16.msra.mxu0 %v5174
        %7494 = vmatpush.bf16.msra.mxu0 %v5166
        %7495 = vmatpush.bf16.msra.mxu0 %v5158
        %7496 = vmatpush.bf16.msra.mxu0 %v5150
        %7497 = vmatpush.bf16.msra.mxu0 %v5142
        %7498 = vmatpush.bf16.msra.mxu0 %v5134
        %7499 = vmatpush.bf16.msra.mxu0 %v5126
        %7500 = vmatmul.bf16.gmra.mxu0 %v1388
        %v7501 = vpop.f32.mrf.mxu0
        %v7502 = vadd.f32 %v7489, %v7501
        %v7503 = vpop.f32.mrf.mxu0
        %7504 = vdwg.mxu0
        %7505 = vmatpush.bf16.msra.mxu0 %v5246
        %7506 = vmatpush.bf16.msra.mxu0 %v5238
        %7507 = vmatpush.bf16.msra.mxu0 %v5230
        %7508 = vmatpush.bf16.msra.mxu0 %v5222
        %7509 = vmatpush.bf16.msra.mxu0 %v5214
        %7510 = vmatpush.bf16.msra.mxu0 %v5206
        %7511 = vmatpush.bf16.msra.mxu0 %v5198
        %7512 = vmatpush.bf16.msra.mxu0 %v5190
        %7513 = vmatmul.bf16.gmra.mxu0 %v1389
        %v7514 = vpop.f32.mrf.mxu0
        %v7515 = vadd.f32 %v7502, %v7514
        %v7516 = vpop.f32.mrf.mxu0
        %7517 = vdwg.mxu0
        %7518 = vmatpush.bf16.msra.mxu0 %v5310
        %7519 = vmatpush.bf16.msra.mxu0 %v5302
        %7520 = vmatpush.bf16.msra.mxu0 %v5294
        %7521 = vmatpush.bf16.msra.mxu0 %v5286
        %7522 = vmatpush.bf16.msra.mxu0 %v5278
        %7523 = vmatpush.bf16.msra.mxu0 %v5270
        %7524 = vmatpush.bf16.msra.mxu0 %v5262
        %7525 = vmatpush.bf16.msra.mxu0 %v5254
        %7526 = vmatmul.bf16.gmra.mxu0 %v1390
        %v7527 = vpop.f32.mrf.mxu0
        %v7528 = vadd.f32 %v7515, %v7527
        %v7529 = vpop.f32.mrf.mxu0
        %7530 = vdwg.mxu0
        %7531 = vmatpush.bf16.msra.mxu0 %v5374
        %7532 = vmatpush.bf16.msra.mxu0 %v5366
        %7533 = vmatpush.bf16.msra.mxu0 %v5358
        %7534 = vmatpush.bf16.msra.mxu0 %v5350
        %7535 = vmatpush.bf16.msra.mxu0 %v5342
        %7536 = vmatpush.bf16.msra.mxu0 %v5334
        %7537 = vmatpush.bf16.msra.mxu0 %v5326
        %7538 = vmatpush.bf16.msra.mxu0 %v5318
        %7539 = vmatmul.bf16.gmra.mxu0 %v1391
        %v7540 = vpop.f32.mrf.mxu0
        %v7541 = vadd.f32 %v7528, %v7540
        %v7542 = vpop.f32.mrf.mxu0
        %7543 = vdwg.mxu0
        %7544 = vmatpush.bf16.msra.mxu0 %v5438
        %7545 = vmatpush.bf16.msra.mxu0 %v5430
        %7546 = vmatpush.bf16.msra.mxu0 %v5422
        %7547 = vmatpush.bf16.msra.mxu0 %v5414
        %7548 = vmatpush.bf16.msra.mxu0 %v5406
        %7549 = vmatpush.bf16.msra.mxu0 %v5398
        %7550 = vmatpush.bf16.msra.mxu0 %v5390
        %7551 = vmatpush.bf16.msra.mxu0 %v5382
        %7552 = vmatmul.bf16.gmra.mxu0 %v1392
        %v7553 = vpop.f32.mrf.mxu0
        %v7554 = vadd.f32 %v7541, %v7553
        %v7555 = vpop.f32.mrf.mxu0
        %7556 = vdwg.mxu0
        %7557 = vmatpush.bf16.msra.mxu0 %v5502
        %7558 = vmatpush.bf16.msra.mxu0 %v5494
        %7559 = vmatpush.bf16.msra.mxu0 %v5486
        %7560 = vmatpush.bf16.msra.mxu0 %v5478
        %7561 = vmatpush.bf16.msra.mxu0 %v5470
        %7562 = vmatpush.bf16.msra.mxu0 %v5462
        %7563 = vmatpush.bf16.msra.mxu0 %v5454
        %7564 = vmatpush.bf16.msra.mxu0 %v5446
        %7565 = vmatmul.bf16.gmra.mxu0 %v1393
        %v7566 = vpop.f32.mrf.mxu0
        %v7567 = vadd.f32 %v7554, %v7566
        %v7568 = vpop.f32.mrf.mxu0
        %7569 = vdwg.mxu0
        %7570 = vmatpush.bf16.msra.mxu0 %v4543
        %7571 = vmatpush.bf16.msra.mxu0 %v4535
        %7572 = vmatpush.bf16.msra.mxu0 %v4527
        %7573 = vmatpush.bf16.msra.mxu0 %v4519
        %7574 = vmatpush.bf16.msra.mxu0 %v4511
        %7575 = vmatpush.bf16.msra.mxu0 %v4503
        %7576 = vmatpush.bf16.msra.mxu0 %v4495
        %7577 = vmatpush.bf16.msra.mxu0 %v4487
        %7578 = vmatmul.bf16.gmra.mxu0 %v1378
        %v7579 = vpop.f32.mrf.mxu0
        %v7580 = vadd.f32 0.0, %v7579
        %v7581 = vpop.f32.mrf.mxu0
        %7582 = vdwg.mxu0
        %7583 = vmatpush.bf16.msra.mxu0 %v4607
        %7584 = vmatpush.bf16.msra.mxu0 %v4599
        %7585 = vmatpush.bf16.msra.mxu0 %v4591
        %7586 = vmatpush.bf16.msra.mxu0 %v4583
        %7587 = vmatpush.bf16.msra.mxu0 %v4575
        %7588 = vmatpush.bf16.msra.mxu0 %v4567
        %7589 = vmatpush.bf16.msra.mxu0 %v4559
        %7590 = vmatpush.bf16.msra.mxu0 %v4551
        %7591 = vmatmul.bf16.gmra.mxu0 %v1379
        %v7592 = vpop.f32.mrf.mxu0
        %v7593 = vadd.f32 %v7580, %v7592
        %v7594 = vpop.f32.mrf.mxu0
        %7595 = vdwg.mxu0
        %7596 = vmatpush.bf16.msra.mxu0 %v4671
        %7597 = vmatpush.bf16.msra.mxu0 %v4663
        %7598 = vmatpush.bf16.msra.mxu0 %v4655
        %7599 = vmatpush.bf16.msra.mxu0 %v4647
        %7600 = vmatpush.bf16.msra.mxu0 %v4639
        %7601 = vmatpush.bf16.msra.mxu0 %v4631
        %7602 = vmatpush.bf16.msra.mxu0 %v4623
        %7603 = vmatpush.bf16.msra.mxu0 %v4615
        %7604 = vmatmul.bf16.gmra.mxu0 %v1380
        %v7605 = vpop.f32.mrf.mxu0
        %v7606 = vadd.f32 %v7593, %v7605
        %v7607 = vpop.f32.mrf.mxu0
        %7608 = vdwg.mxu0
        %7609 = vmatpush.bf16.msra.mxu0 %v4735
        %7610 = vmatpush.bf16.msra.mxu0 %v4727
        %7611 = vmatpush.bf16.msra.mxu0 %v4719
        %7612 = vmatpush.bf16.msra.mxu0 %v4711
        %7613 = vmatpush.bf16.msra.mxu0 %v4703
        %7614 = vmatpush.bf16.msra.mxu0 %v4695
        %7615 = vmatpush.bf16.msra.mxu0 %v4687
        %7616 = vmatpush.bf16.msra.mxu0 %v4679
        %7617 = vmatmul.bf16.gmra.mxu0 %v1381
        %v7618 = vpop.f32.mrf.mxu0
        %v7619 = vadd.f32 %v7606, %v7618
        %v7620 = vpop.f32.mrf.mxu0
        %7621 = vdwg.mxu0
        %7622 = vmatpush.bf16.msra.mxu0 %v4799
        %7623 = vmatpush.bf16.msra.mxu0 %v4791
        %7624 = vmatpush.bf16.msra.mxu0 %v4783
        %7625 = vmatpush.bf16.msra.mxu0 %v4775
        %7626 = vmatpush.bf16.msra.mxu0 %v4767
        %7627 = vmatpush.bf16.msra.mxu0 %v4759
        %7628 = vmatpush.bf16.msra.mxu0 %v4751
        %7629 = vmatpush.bf16.msra.mxu0 %v4743
        %7630 = vmatmul.bf16.gmra.mxu0 %v1382
        %v7631 = vpop.f32.mrf.mxu0
        %v7632 = vadd.f32 %v7619, %v7631
        %v7633 = vpop.f32.mrf.mxu0
        %7634 = vdwg.mxu0
        %7635 = vmatpush.bf16.msra.mxu0 %v4863
        %7636 = vmatpush.bf16.msra.mxu0 %v4855
        %7637 = vmatpush.bf16.msra.mxu0 %v4847
        %7638 = vmatpush.bf16.msra.mxu0 %v4839
        %7639 = vmatpush.bf16.msra.mxu0 %v4831
        %7640 = vmatpush.bf16.msra.mxu0 %v4823
        %7641 = vmatpush.bf16.msra.mxu0 %v4815
        %7642 = vmatpush.bf16.msra.mxu0 %v4807
        %7643 = vmatmul.bf16.gmra.mxu0 %v1383
        %v7644 = vpop.f32.mrf.mxu0
        %v7645 = vadd.f32 %v7632, %v7644
        %v7646 = vpop.f32.mrf.mxu0
        %7647 = vdwg.mxu0
        %7648 = vmatpush.bf16.msra.mxu0 %v4927
        %7649 = vmatpush.bf16.msra.mxu0 %v4919
        %7650 = vmatpush.bf16.msra.mxu0 %v4911
        %7651 = vmatpush.bf16.msra.mxu0 %v4903
        %7652 = vmatpush.bf16.msra.mxu0 %v4895
        %7653 = vmatpush.bf16.msra.mxu0 %v4887
        %7654 = vmatpush.bf16.msra.mxu0 %v4879
        %7655 = vmatpush.bf16.msra.mxu0 %v4871
        %7656 = vmatmul.bf16.gmra.mxu0 %v1384
        %v7657 = vpop.f32.mrf.mxu0
        %v7658 = vadd.f32 %v7645, %v7657
        %v7659 = vpop.f32.mrf.mxu0
        %7660 = vdwg.mxu0
        %7661 = vmatpush.bf16.msra.mxu0 %v4991
        %7662 = vmatpush.bf16.msra.mxu0 %v4983
        %7663 = vmatpush.bf16.msra.mxu0 %v4975
        %7664 = vmatpush.bf16.msra.mxu0 %v4967
        %7665 = vmatpush.bf16.msra.mxu0 %v4959
        %7666 = vmatpush.bf16.msra.mxu0 %v4951
        %7667 = vmatpush.bf16.msra.mxu0 %v4943
        %7668 = vmatpush.bf16.msra.mxu0 %v4935
        %7669 = vmatmul.bf16.gmra.mxu0 %v1385
        %v7670 = vpop.f32.mrf.mxu0
        %v7671 = vadd.f32 %v7658, %v7670
        %v7672 = vpop.f32.mrf.mxu0
        %7673 = vdwg.mxu0
        %7674 = vmatpush.bf16.msra.mxu0 %v5055
        %7675 = vmatpush.bf16.msra.mxu0 %v5047
        %7676 = vmatpush.bf16.msra.mxu0 %v5039
        %7677 = vmatpush.bf16.msra.mxu0 %v5031
        %7678 = vmatpush.bf16.msra.mxu0 %v5023
        %7679 = vmatpush.bf16.msra.mxu0 %v5015
        %7680 = vmatpush.bf16.msra.mxu0 %v5007
        %7681 = vmatpush.bf16.msra.mxu0 %v4999
        %7682 = vmatmul.bf16.gmra.mxu0 %v1386
        %v7683 = vpop.f32.mrf.mxu0
        %v7684 = vadd.f32 %v7671, %v7683
        %v7685 = vpop.f32.mrf.mxu0
        %7686 = vdwg.mxu0
        %7687 = vmatpush.bf16.msra.mxu0 %v5119
        %7688 = vmatpush.bf16.msra.mxu0 %v5111
        %7689 = vmatpush.bf16.msra.mxu0 %v5103
        %7690 = vmatpush.bf16.msra.mxu0 %v5095
        %7691 = vmatpush.bf16.msra.mxu0 %v5087
        %7692 = vmatpush.bf16.msra.mxu0 %v5079
        %7693 = vmatpush.bf16.msra.mxu0 %v5071
        %7694 = vmatpush.bf16.msra.mxu0 %v5063
        %7695 = vmatmul.bf16.gmra.mxu0 %v1387
        %v7696 = vpop.f32.mrf.mxu0
        %v7697 = vadd.f32 %v7684, %v7696
        %v7698 = vpop.f32.mrf.mxu0
        %7699 = vdwg.mxu0
        %7700 = vmatpush.bf16.msra.mxu0 %v5183
        %7701 = vmatpush.bf16.msra.mxu0 %v5175
        %7702 = vmatpush.bf16.msra.mxu0 %v5167
        %7703 = vmatpush.bf16.msra.mxu0 %v5159
        %7704 = vmatpush.bf16.msra.mxu0 %v5151
        %7705 = vmatpush.bf16.msra.mxu0 %v5143
        %7706 = vmatpush.bf16.msra.mxu0 %v5135
        %7707 = vmatpush.bf16.msra.mxu0 %v5127
        %7708 = vmatmul.bf16.gmra.mxu0 %v1388
        %v7709 = vpop.f32.mrf.mxu0
        %v7710 = vadd.f32 %v7697, %v7709
        %v7711 = vpop.f32.mrf.mxu0
        %7712 = vdwg.mxu0
        %7713 = vmatpush.bf16.msra.mxu0 %v5247
        %7714 = vmatpush.bf16.msra.mxu0 %v5239
        %7715 = vmatpush.bf16.msra.mxu0 %v5231
        %7716 = vmatpush.bf16.msra.mxu0 %v5223
        %7717 = vmatpush.bf16.msra.mxu0 %v5215
        %7718 = vmatpush.bf16.msra.mxu0 %v5207
        %7719 = vmatpush.bf16.msra.mxu0 %v5199
        %7720 = vmatpush.bf16.msra.mxu0 %v5191
        %7721 = vmatmul.bf16.gmra.mxu0 %v1389
        %v7722 = vpop.f32.mrf.mxu0
        %v7723 = vadd.f32 %v7710, %v7722
        %v7724 = vpop.f32.mrf.mxu0
        %7725 = vdwg.mxu0
        %7726 = vmatpush.bf16.msra.mxu0 %v5311
        %7727 = vmatpush.bf16.msra.mxu0 %v5303
        %7728 = vmatpush.bf16.msra.mxu0 %v5295
        %7729 = vmatpush.bf16.msra.mxu0 %v5287
        %7730 = vmatpush.bf16.msra.mxu0 %v5279
        %7731 = vmatpush.bf16.msra.mxu0 %v5271
        %7732 = vmatpush.bf16.msra.mxu0 %v5263
        %7733 = vmatpush.bf16.msra.mxu0 %v5255
        %7734 = vmatmul.bf16.gmra.mxu0 %v1390
        %v7735 = vpop.f32.mrf.mxu0
        %v7736 = vadd.f32 %v7723, %v7735
        %v7737 = vpop.f32.mrf.mxu0
        %7738 = vdwg.mxu0
        %7739 = vmatpush.bf16.msra.mxu0 %v5375
        %7740 = vmatpush.bf16.msra.mxu0 %v5367
        %7741 = vmatpush.bf16.msra.mxu0 %v5359
        %7742 = vmatpush.bf16.msra.mxu0 %v5351
        %7743 = vmatpush.bf16.msra.mxu0 %v5343
        %7744 = vmatpush.bf16.msra.mxu0 %v5335
        %7745 = vmatpush.bf16.msra.mxu0 %v5327
        %7746 = vmatpush.bf16.msra.mxu0 %v5319
        %7747 = vmatmul.bf16.gmra.mxu0 %v1391
        %v7748 = vpop.f32.mrf.mxu0
        %v7749 = vadd.f32 %v7736, %v7748
        %v7750 = vpop.f32.mrf.mxu0
        %7751 = vdwg.mxu0
        %7752 = vmatpush.bf16.msra.mxu0 %v5439
        %7753 = vmatpush.bf16.msra.mxu0 %v5431
        %7754 = vmatpush.bf16.msra.mxu0 %v5423
        %7755 = vmatpush.bf16.msra.mxu0 %v5415
        %7756 = vmatpush.bf16.msra.mxu0 %v5407
        %7757 = vmatpush.bf16.msra.mxu0 %v5399
        %7758 = vmatpush.bf16.msra.mxu0 %v5391
        %7759 = vmatpush.bf16.msra.mxu0 %v5383
        %7760 = vmatmul.bf16.gmra.mxu0 %v1392
        %v7761 = vpop.f32.mrf.mxu0
        %v7762 = vadd.f32 %v7749, %v7761
        %v7763 = vpop.f32.mrf.mxu0
        %7764 = vdwg.mxu0
        %7765 = vmatpush.bf16.msra.mxu0 %v5503
        %7766 = vmatpush.bf16.msra.mxu0 %v5495
        %7767 = vmatpush.bf16.msra.mxu0 %v5487
        %7768 = vmatpush.bf16.msra.mxu0 %v5479
        %7769 = vmatpush.bf16.msra.mxu0 %v5471
        %7770 = vmatpush.bf16.msra.mxu0 %v5463
        %7771 = vmatpush.bf16.msra.mxu0 %v5455
        %7772 = vmatpush.bf16.msra.mxu0 %v5447
        %7773 = vmatmul.bf16.gmra.mxu0 %v1393
        %v7774 = vpop.f32.mrf.mxu0
        %v7775 = vadd.f32 %v7762, %v7774
        %v7776 = vpop.f32.mrf.mxu0
        %7777 = vdwg.mxu0
        %7778 = vmatpush.bf16.msra.mxu0 %v4544
        %7779 = vmatpush.bf16.msra.mxu0 %v4536
        %7780 = vmatpush.bf16.msra.mxu0 %v4528
        %7781 = vmatpush.bf16.msra.mxu0 %v4520
        %7782 = vmatpush.bf16.msra.mxu0 %v4512
        %7783 = vmatpush.bf16.msra.mxu0 %v4504
        %7784 = vmatpush.bf16.msra.mxu0 %v4496
        %7785 = vmatpush.bf16.msra.mxu0 %v4488
        %7786 = vmatmul.bf16.gmra.mxu0 %v1378
        %v7787 = vpop.f32.mrf.mxu0
        %v7788 = vadd.f32 0.0, %v7787
        %v7789 = vpop.f32.mrf.mxu0
        %7790 = vdwg.mxu0
        %7791 = vmatpush.bf16.msra.mxu0 %v4608
        %7792 = vmatpush.bf16.msra.mxu0 %v4600
        %7793 = vmatpush.bf16.msra.mxu0 %v4592
        %7794 = vmatpush.bf16.msra.mxu0 %v4584
        %7795 = vmatpush.bf16.msra.mxu0 %v4576
        %7796 = vmatpush.bf16.msra.mxu0 %v4568
        %7797 = vmatpush.bf16.msra.mxu0 %v4560
        %7798 = vmatpush.bf16.msra.mxu0 %v4552
        %7799 = vmatmul.bf16.gmra.mxu0 %v1379
        %v7800 = vpop.f32.mrf.mxu0
        %v7801 = vadd.f32 %v7788, %v7800
        %v7802 = vpop.f32.mrf.mxu0
        %7803 = vdwg.mxu0
        %7804 = vmatpush.bf16.msra.mxu0 %v4672
        %7805 = vmatpush.bf16.msra.mxu0 %v4664
        %7806 = vmatpush.bf16.msra.mxu0 %v4656
        %7807 = vmatpush.bf16.msra.mxu0 %v4648
        %7808 = vmatpush.bf16.msra.mxu0 %v4640
        %7809 = vmatpush.bf16.msra.mxu0 %v4632
        %7810 = vmatpush.bf16.msra.mxu0 %v4624
        %7811 = vmatpush.bf16.msra.mxu0 %v4616
        %7812 = vmatmul.bf16.gmra.mxu0 %v1380
        %v7813 = vpop.f32.mrf.mxu0
        %v7814 = vadd.f32 %v7801, %v7813
        %v7815 = vpop.f32.mrf.mxu0
        %7816 = vdwg.mxu0
        %7817 = vmatpush.bf16.msra.mxu0 %v4736
        %7818 = vmatpush.bf16.msra.mxu0 %v4728
        %7819 = vmatpush.bf16.msra.mxu0 %v4720
        %7820 = vmatpush.bf16.msra.mxu0 %v4712
        %7821 = vmatpush.bf16.msra.mxu0 %v4704
        %7822 = vmatpush.bf16.msra.mxu0 %v4696
        %7823 = vmatpush.bf16.msra.mxu0 %v4688
        %7824 = vmatpush.bf16.msra.mxu0 %v4680
        %7825 = vmatmul.bf16.gmra.mxu0 %v1381
        %v7826 = vpop.f32.mrf.mxu0
        %v7827 = vadd.f32 %v7814, %v7826
        %v7828 = vpop.f32.mrf.mxu0
        %7829 = vdwg.mxu0
        %7830 = vmatpush.bf16.msra.mxu0 %v4800
        %7831 = vmatpush.bf16.msra.mxu0 %v4792
        %7832 = vmatpush.bf16.msra.mxu0 %v4784
        %7833 = vmatpush.bf16.msra.mxu0 %v4776
        %7834 = vmatpush.bf16.msra.mxu0 %v4768
        %7835 = vmatpush.bf16.msra.mxu0 %v4760
        %7836 = vmatpush.bf16.msra.mxu0 %v4752
        %7837 = vmatpush.bf16.msra.mxu0 %v4744
        %7838 = vmatmul.bf16.gmra.mxu0 %v1382
        %v7839 = vpop.f32.mrf.mxu0
        %v7840 = vadd.f32 %v7827, %v7839
        %v7841 = vpop.f32.mrf.mxu0
        %7842 = vdwg.mxu0
        %7843 = vmatpush.bf16.msra.mxu0 %v4864
        %7844 = vmatpush.bf16.msra.mxu0 %v4856
        %7845 = vmatpush.bf16.msra.mxu0 %v4848
        %7846 = vmatpush.bf16.msra.mxu0 %v4840
        %7847 = vmatpush.bf16.msra.mxu0 %v4832
        %7848 = vmatpush.bf16.msra.mxu0 %v4824
        %7849 = vmatpush.bf16.msra.mxu0 %v4816
        %7850 = vmatpush.bf16.msra.mxu0 %v4808
        %7851 = vmatmul.bf16.gmra.mxu0 %v1383
        %v7852 = vpop.f32.mrf.mxu0
        %v7853 = vadd.f32 %v7840, %v7852
        %v7854 = vpop.f32.mrf.mxu0
        %7855 = vdwg.mxu0
        %7856 = vmatpush.bf16.msra.mxu0 %v4928
        %7857 = vmatpush.bf16.msra.mxu0 %v4920
        %7858 = vmatpush.bf16.msra.mxu0 %v4912
        %7859 = vmatpush.bf16.msra.mxu0 %v4904
        %7860 = vmatpush.bf16.msra.mxu0 %v4896
        %7861 = vmatpush.bf16.msra.mxu0 %v4888
        %7862 = vmatpush.bf16.msra.mxu0 %v4880
        %7863 = vmatpush.bf16.msra.mxu0 %v4872
        %7864 = vmatmul.bf16.gmra.mxu0 %v1384
        %v7865 = vpop.f32.mrf.mxu0
        %v7866 = vadd.f32 %v7853, %v7865
        %v7867 = vpop.f32.mrf.mxu0
        %7868 = vdwg.mxu0
        %7869 = vmatpush.bf16.msra.mxu0 %v4992
        %7870 = vmatpush.bf16.msra.mxu0 %v4984
        %7871 = vmatpush.bf16.msra.mxu0 %v4976
        %7872 = vmatpush.bf16.msra.mxu0 %v4968
        %7873 = vmatpush.bf16.msra.mxu0 %v4960
        %7874 = vmatpush.bf16.msra.mxu0 %v4952
        %7875 = vmatpush.bf16.msra.mxu0 %v4944
        %7876 = vmatpush.bf16.msra.mxu0 %v4936
        %7877 = vmatmul.bf16.gmra.mxu0 %v1385
        %v7878 = vpop.f32.mrf.mxu0
        %v7879 = vadd.f32 %v7866, %v7878
        %v7880 = vpop.f32.mrf.mxu0
        %7881 = vdwg.mxu0
        %7882 = vmatpush.bf16.msra.mxu0 %v5056
        %7883 = vmatpush.bf16.msra.mxu0 %v5048
        %7884 = vmatpush.bf16.msra.mxu0 %v5040
        %7885 = vmatpush.bf16.msra.mxu0 %v5032
        %7886 = vmatpush.bf16.msra.mxu0 %v5024
        %7887 = vmatpush.bf16.msra.mxu0 %v5016
        %7888 = vmatpush.bf16.msra.mxu0 %v5008
        %7889 = vmatpush.bf16.msra.mxu0 %v5000
        %7890 = vmatmul.bf16.gmra.mxu0 %v1386
        %v7891 = vpop.f32.mrf.mxu0
        %v7892 = vadd.f32 %v7879, %v7891
        %v7893 = vpop.f32.mrf.mxu0
        %7894 = vdwg.mxu0
        %7895 = vmatpush.bf16.msra.mxu0 %v5120
        %7896 = vmatpush.bf16.msra.mxu0 %v5112
        %7897 = vmatpush.bf16.msra.mxu0 %v5104
        %7898 = vmatpush.bf16.msra.mxu0 %v5096
        %7899 = vmatpush.bf16.msra.mxu0 %v5088
        %7900 = vmatpush.bf16.msra.mxu0 %v5080
        %7901 = vmatpush.bf16.msra.mxu0 %v5072
        %7902 = vmatpush.bf16.msra.mxu0 %v5064
        %7903 = vmatmul.bf16.gmra.mxu0 %v1387
        %v7904 = vpop.f32.mrf.mxu0
        %v7905 = vadd.f32 %v7892, %v7904
        %v7906 = vpop.f32.mrf.mxu0
        %7907 = vdwg.mxu0
        %7908 = vmatpush.bf16.msra.mxu0 %v5184
        %7909 = vmatpush.bf16.msra.mxu0 %v5176
        %7910 = vmatpush.bf16.msra.mxu0 %v5168
        %7911 = vmatpush.bf16.msra.mxu0 %v5160
        %7912 = vmatpush.bf16.msra.mxu0 %v5152
        %7913 = vmatpush.bf16.msra.mxu0 %v5144
        %7914 = vmatpush.bf16.msra.mxu0 %v5136
        %7915 = vmatpush.bf16.msra.mxu0 %v5128
        %7916 = vmatmul.bf16.gmra.mxu0 %v1388
        %v7917 = vpop.f32.mrf.mxu0
        %v7918 = vadd.f32 %v7905, %v7917
        %v7919 = vpop.f32.mrf.mxu0
        %7920 = vdwg.mxu0
        %7921 = vmatpush.bf16.msra.mxu0 %v5248
        %7922 = vmatpush.bf16.msra.mxu0 %v5240
        %7923 = vmatpush.bf16.msra.mxu0 %v5232
        %7924 = vmatpush.bf16.msra.mxu0 %v5224
        %7925 = vmatpush.bf16.msra.mxu0 %v5216
        %7926 = vmatpush.bf16.msra.mxu0 %v5208
        %7927 = vmatpush.bf16.msra.mxu0 %v5200
        %7928 = vmatpush.bf16.msra.mxu0 %v5192
        %7929 = vmatmul.bf16.gmra.mxu0 %v1389
        %v7930 = vpop.f32.mrf.mxu0
        %v7931 = vadd.f32 %v7918, %v7930
        %v7932 = vpop.f32.mrf.mxu0
        %7933 = vdwg.mxu0
        %7934 = vmatpush.bf16.msra.mxu0 %v5312
        %7935 = vmatpush.bf16.msra.mxu0 %v5304
        %7936 = vmatpush.bf16.msra.mxu0 %v5296
        %7937 = vmatpush.bf16.msra.mxu0 %v5288
        %7938 = vmatpush.bf16.msra.mxu0 %v5280
        %7939 = vmatpush.bf16.msra.mxu0 %v5272
        %7940 = vmatpush.bf16.msra.mxu0 %v5264
        %7941 = vmatpush.bf16.msra.mxu0 %v5256
        %7942 = vmatmul.bf16.gmra.mxu0 %v1390
        %v7943 = vpop.f32.mrf.mxu0
        %v7944 = vadd.f32 %v7931, %v7943
        %v7945 = vpop.f32.mrf.mxu0
        %7946 = vdwg.mxu0
        %7947 = vmatpush.bf16.msra.mxu0 %v5376
        %7948 = vmatpush.bf16.msra.mxu0 %v5368
        %7949 = vmatpush.bf16.msra.mxu0 %v5360
        %7950 = vmatpush.bf16.msra.mxu0 %v5352
        %7951 = vmatpush.bf16.msra.mxu0 %v5344
        %7952 = vmatpush.bf16.msra.mxu0 %v5336
        %7953 = vmatpush.bf16.msra.mxu0 %v5328
        %7954 = vmatpush.bf16.msra.mxu0 %v5320
        %7955 = vmatmul.bf16.gmra.mxu0 %v1391
        %v7956 = vpop.f32.mrf.mxu0
        %v7957 = vadd.f32 %v7944, %v7956
        %v7958 = vpop.f32.mrf.mxu0
        %7959 = vdwg.mxu0
        %7960 = vmatpush.bf16.msra.mxu0 %v5440
        %7961 = vmatpush.bf16.msra.mxu0 %v5432
        %7962 = vmatpush.bf16.msra.mxu0 %v5424
        %7963 = vmatpush.bf16.msra.mxu0 %v5416
        %7964 = vmatpush.bf16.msra.mxu0 %v5408
        %7965 = vmatpush.bf16.msra.mxu0 %v5400
        %7966 = vmatpush.bf16.msra.mxu0 %v5392
        %7967 = vmatpush.bf16.msra.mxu0 %v5384
        %7968 = vmatmul.bf16.gmra.mxu0 %v1392
        %v7969 = vpop.f32.mrf.mxu0
        %v7970 = vadd.f32 %v7957, %v7969
        %v7971 = vpop.f32.mrf.mxu0
        %7972 = vdwg.mxu0
        %7973 = vmatpush.bf16.msra.mxu0 %v5504
        %7974 = vmatpush.bf16.msra.mxu0 %v5496
        %7975 = vmatpush.bf16.msra.mxu0 %v5488
        %7976 = vmatpush.bf16.msra.mxu0 %v5480
        %7977 = vmatpush.bf16.msra.mxu0 %v5472
        %7978 = vmatpush.bf16.msra.mxu0 %v5464
        %7979 = vmatpush.bf16.msra.mxu0 %v5456
        %7980 = vmatpush.bf16.msra.mxu0 %v5448
        %7981 = vmatmul.bf16.gmra.mxu0 %v1393
        %v7982 = vpop.f32.mrf.mxu0
        %v7983 = vadd.f32 %v7970, %v7982
        %v7984 = vpop.f32.mrf.mxu0
        %7985 = vdwg.mxu0
        %7986 = vmatpush.bf16.msra.mxu0 %v4545
        %7987 = vmatpush.bf16.msra.mxu0 %v4537
        %7988 = vmatpush.bf16.msra.mxu0 %v4529
        %7989 = vmatpush.bf16.msra.mxu0 %v4521
        %7990 = vmatpush.bf16.msra.mxu0 %v4513
        %7991 = vmatpush.bf16.msra.mxu0 %v4505
        %7992 = vmatpush.bf16.msra.mxu0 %v4497
        %7993 = vmatpush.bf16.msra.mxu0 %v4489
        %7994 = vmatmul.bf16.gmra.mxu0 %v1378
        %v7995 = vpop.f32.mrf.mxu0
        %v7996 = vadd.f32 0.0, %v7995
        %v7997 = vpop.f32.mrf.mxu0
        %7998 = vdwg.mxu0
        %7999 = vmatpush.bf16.msra.mxu0 %v4609
        %8000 = vmatpush.bf16.msra.mxu0 %v4601
        %8001 = vmatpush.bf16.msra.mxu0 %v4593
        %8002 = vmatpush.bf16.msra.mxu0 %v4585
        %8003 = vmatpush.bf16.msra.mxu0 %v4577
        %8004 = vmatpush.bf16.msra.mxu0 %v4569
        %8005 = vmatpush.bf16.msra.mxu0 %v4561
        %8006 = vmatpush.bf16.msra.mxu0 %v4553
        %8007 = vmatmul.bf16.gmra.mxu0 %v1379
        %v8008 = vpop.f32.mrf.mxu0
        %v8009 = vadd.f32 %v7996, %v8008
        %v8010 = vpop.f32.mrf.mxu0
        %8011 = vdwg.mxu0
        %8012 = vmatpush.bf16.msra.mxu0 %v4673
        %8013 = vmatpush.bf16.msra.mxu0 %v4665
        %8014 = vmatpush.bf16.msra.mxu0 %v4657
        %8015 = vmatpush.bf16.msra.mxu0 %v4649
        %8016 = vmatpush.bf16.msra.mxu0 %v4641
        %8017 = vmatpush.bf16.msra.mxu0 %v4633
        %8018 = vmatpush.bf16.msra.mxu0 %v4625
        %8019 = vmatpush.bf16.msra.mxu0 %v4617
        %8020 = vmatmul.bf16.gmra.mxu0 %v1380
        %v8021 = vpop.f32.mrf.mxu0
        %v8022 = vadd.f32 %v8009, %v8021
        %v8023 = vpop.f32.mrf.mxu0
        %8024 = vdwg.mxu0
        %8025 = vmatpush.bf16.msra.mxu0 %v4737
        %8026 = vmatpush.bf16.msra.mxu0 %v4729
        %8027 = vmatpush.bf16.msra.mxu0 %v4721
        %8028 = vmatpush.bf16.msra.mxu0 %v4713
        %8029 = vmatpush.bf16.msra.mxu0 %v4705
        %8030 = vmatpush.bf16.msra.mxu0 %v4697
        %8031 = vmatpush.bf16.msra.mxu0 %v4689
        %8032 = vmatpush.bf16.msra.mxu0 %v4681
        %8033 = vmatmul.bf16.gmra.mxu0 %v1381
        %v8034 = vpop.f32.mrf.mxu0
        %v8035 = vadd.f32 %v8022, %v8034
        %v8036 = vpop.f32.mrf.mxu0
        %8037 = vdwg.mxu0
        %8038 = vmatpush.bf16.msra.mxu0 %v4801
        %8039 = vmatpush.bf16.msra.mxu0 %v4793
        %8040 = vmatpush.bf16.msra.mxu0 %v4785
        %8041 = vmatpush.bf16.msra.mxu0 %v4777
        %8042 = vmatpush.bf16.msra.mxu0 %v4769
        %8043 = vmatpush.bf16.msra.mxu0 %v4761
        %8044 = vmatpush.bf16.msra.mxu0 %v4753
        %8045 = vmatpush.bf16.msra.mxu0 %v4745
        %8046 = vmatmul.bf16.gmra.mxu0 %v1382
        %v8047 = vpop.f32.mrf.mxu0
        %v8048 = vadd.f32 %v8035, %v8047
        %v8049 = vpop.f32.mrf.mxu0
        %8050 = vdwg.mxu0
        %8051 = vmatpush.bf16.msra.mxu0 %v4865
        %8052 = vmatpush.bf16.msra.mxu0 %v4857
        %8053 = vmatpush.bf16.msra.mxu0 %v4849
        %8054 = vmatpush.bf16.msra.mxu0 %v4841
        %8055 = vmatpush.bf16.msra.mxu0 %v4833
        %8056 = vmatpush.bf16.msra.mxu0 %v4825
        %8057 = vmatpush.bf16.msra.mxu0 %v4817
        %8058 = vmatpush.bf16.msra.mxu0 %v4809
        %8059 = vmatmul.bf16.gmra.mxu0 %v1383
        %v8060 = vpop.f32.mrf.mxu0
        %v8061 = vadd.f32 %v8048, %v8060
        %v8062 = vpop.f32.mrf.mxu0
        %8063 = vdwg.mxu0
        %8064 = vmatpush.bf16.msra.mxu0 %v4929
        %8065 = vmatpush.bf16.msra.mxu0 %v4921
        %8066 = vmatpush.bf16.msra.mxu0 %v4913
        %8067 = vmatpush.bf16.msra.mxu0 %v4905
        %8068 = vmatpush.bf16.msra.mxu0 %v4897
        %8069 = vmatpush.bf16.msra.mxu0 %v4889
        %8070 = vmatpush.bf16.msra.mxu0 %v4881
        %8071 = vmatpush.bf16.msra.mxu0 %v4873
        %8072 = vmatmul.bf16.gmra.mxu0 %v1384
        %v8073 = vpop.f32.mrf.mxu0
        %v8074 = vadd.f32 %v8061, %v8073
        %v8075 = vpop.f32.mrf.mxu0
        %8076 = vdwg.mxu0
        %8077 = vmatpush.bf16.msra.mxu0 %v4993
        %8078 = vmatpush.bf16.msra.mxu0 %v4985
        %8079 = vmatpush.bf16.msra.mxu0 %v4977
        %8080 = vmatpush.bf16.msra.mxu0 %v4969
        %8081 = vmatpush.bf16.msra.mxu0 %v4961
        %8082 = vmatpush.bf16.msra.mxu0 %v4953
        %8083 = vmatpush.bf16.msra.mxu0 %v4945
        %8084 = vmatpush.bf16.msra.mxu0 %v4937
        %8085 = vmatmul.bf16.gmra.mxu0 %v1385
        %v8086 = vpop.f32.mrf.mxu0
        %v8087 = vadd.f32 %v8074, %v8086
        %v8088 = vpop.f32.mrf.mxu0
        %8089 = vdwg.mxu0
        %8090 = vmatpush.bf16.msra.mxu0 %v5057
        %8091 = vmatpush.bf16.msra.mxu0 %v5049
        %8092 = vmatpush.bf16.msra.mxu0 %v5041
        %8093 = vmatpush.bf16.msra.mxu0 %v5033
        %8094 = vmatpush.bf16.msra.mxu0 %v5025
        %8095 = vmatpush.bf16.msra.mxu0 %v5017
        %8096 = vmatpush.bf16.msra.mxu0 %v5009
        %8097 = vmatpush.bf16.msra.mxu0 %v5001
        %8098 = vmatmul.bf16.gmra.mxu0 %v1386
        %v8099 = vpop.f32.mrf.mxu0
        %v8100 = vadd.f32 %v8087, %v8099
        %v8101 = vpop.f32.mrf.mxu0
        %8102 = vdwg.mxu0
        %8103 = vmatpush.bf16.msra.mxu0 %v5121
        %8104 = vmatpush.bf16.msra.mxu0 %v5113
        %8105 = vmatpush.bf16.msra.mxu0 %v5105
        %8106 = vmatpush.bf16.msra.mxu0 %v5097
        %8107 = vmatpush.bf16.msra.mxu0 %v5089
        %8108 = vmatpush.bf16.msra.mxu0 %v5081
        %8109 = vmatpush.bf16.msra.mxu0 %v5073
        %8110 = vmatpush.bf16.msra.mxu0 %v5065
        %8111 = vmatmul.bf16.gmra.mxu0 %v1387
        %v8112 = vpop.f32.mrf.mxu0
        %v8113 = vadd.f32 %v8100, %v8112
        %v8114 = vpop.f32.mrf.mxu0
        %8115 = vdwg.mxu0
        %8116 = vmatpush.bf16.msra.mxu0 %v5185
        %8117 = vmatpush.bf16.msra.mxu0 %v5177
        %8118 = vmatpush.bf16.msra.mxu0 %v5169
        %8119 = vmatpush.bf16.msra.mxu0 %v5161
        %8120 = vmatpush.bf16.msra.mxu0 %v5153
        %8121 = vmatpush.bf16.msra.mxu0 %v5145
        %8122 = vmatpush.bf16.msra.mxu0 %v5137
        %8123 = vmatpush.bf16.msra.mxu0 %v5129
        %8124 = vmatmul.bf16.gmra.mxu0 %v1388
        %v8125 = vpop.f32.mrf.mxu0
        %v8126 = vadd.f32 %v8113, %v8125
        %v8127 = vpop.f32.mrf.mxu0
        %8128 = vdwg.mxu0
        %8129 = vmatpush.bf16.msra.mxu0 %v5249
        %8130 = vmatpush.bf16.msra.mxu0 %v5241
        %8131 = vmatpush.bf16.msra.mxu0 %v5233
        %8132 = vmatpush.bf16.msra.mxu0 %v5225
        %8133 = vmatpush.bf16.msra.mxu0 %v5217
        %8134 = vmatpush.bf16.msra.mxu0 %v5209
        %8135 = vmatpush.bf16.msra.mxu0 %v5201
        %8136 = vmatpush.bf16.msra.mxu0 %v5193
        %8137 = vmatmul.bf16.gmra.mxu0 %v1389
        %v8138 = vpop.f32.mrf.mxu0
        %v8139 = vadd.f32 %v8126, %v8138
        %v8140 = vpop.f32.mrf.mxu0
        %8141 = vdwg.mxu0
        %8142 = vmatpush.bf16.msra.mxu0 %v5313
        %8143 = vmatpush.bf16.msra.mxu0 %v5305
        %8144 = vmatpush.bf16.msra.mxu0 %v5297
        %8145 = vmatpush.bf16.msra.mxu0 %v5289
        %8146 = vmatpush.bf16.msra.mxu0 %v5281
        %8147 = vmatpush.bf16.msra.mxu0 %v5273
        %8148 = vmatpush.bf16.msra.mxu0 %v5265
        %8149 = vmatpush.bf16.msra.mxu0 %v5257
        %8150 = vmatmul.bf16.gmra.mxu0 %v1390
        %v8151 = vpop.f32.mrf.mxu0
        %v8152 = vadd.f32 %v8139, %v8151
        %v8153 = vpop.f32.mrf.mxu0
        %8154 = vdwg.mxu0
        %8155 = vmatpush.bf16.msra.mxu0 %v5377
        %8156 = vmatpush.bf16.msra.mxu0 %v5369
        %8157 = vmatpush.bf16.msra.mxu0 %v5361
        %8158 = vmatpush.bf16.msra.mxu0 %v5353
        %8159 = vmatpush.bf16.msra.mxu0 %v5345
        %8160 = vmatpush.bf16.msra.mxu0 %v5337
        %8161 = vmatpush.bf16.msra.mxu0 %v5329
        %8162 = vmatpush.bf16.msra.mxu0 %v5321
        %8163 = vmatmul.bf16.gmra.mxu0 %v1391
        %v8164 = vpop.f32.mrf.mxu0
        %v8165 = vadd.f32 %v8152, %v8164
        %v8166 = vpop.f32.mrf.mxu0
        %8167 = vdwg.mxu0
        %8168 = vmatpush.bf16.msra.mxu0 %v5441
        %8169 = vmatpush.bf16.msra.mxu0 %v5433
        %8170 = vmatpush.bf16.msra.mxu0 %v5425
        %8171 = vmatpush.bf16.msra.mxu0 %v5417
        %8172 = vmatpush.bf16.msra.mxu0 %v5409
        %8173 = vmatpush.bf16.msra.mxu0 %v5401
        %8174 = vmatpush.bf16.msra.mxu0 %v5393
        %8175 = vmatpush.bf16.msra.mxu0 %v5385
        %8176 = vmatmul.bf16.gmra.mxu0 %v1392
        %v8177 = vpop.f32.mrf.mxu0
        %v8178 = vadd.f32 %v8165, %v8177
        %v8179 = vpop.f32.mrf.mxu0
        %8180 = vdwg.mxu0
        %8181 = vmatpush.bf16.msra.mxu0 %v5505
        %8182 = vmatpush.bf16.msra.mxu0 %v5497
        %8183 = vmatpush.bf16.msra.mxu0 %v5489
        %8184 = vmatpush.bf16.msra.mxu0 %v5481
        %8185 = vmatpush.bf16.msra.mxu0 %v5473
        %8186 = vmatpush.bf16.msra.mxu0 %v5465
        %8187 = vmatpush.bf16.msra.mxu0 %v5457
        %8188 = vmatpush.bf16.msra.mxu0 %v5449
        %8189 = vmatmul.bf16.gmra.mxu0 %v1393
        %v8190 = vpop.f32.mrf.mxu0
        %v8191 = vadd.f32 %v8178, %v8190
        %v8192 = vpop.f32.mrf.mxu0
        %8193 = vdwg.mxu0
        %v8194 = vadd.f32 %v314, %v6735
        %v8195 = vadd.f32 %v315, %v6943
        %v8196 = vadd.f32 %v316, %v7151
        %v8197 = vadd.f32 %v317, %v7359
        %v8198 = vadd.f32 %v318, %v7567
        %v8199 = vadd.f32 %v319, %v7775
        %v8200 = vadd.f32 %v320, %v7983
        %v8201 = vadd.f32 %v321, %v8191
        %8202 = vst [vmem:[#allocation2] sm:$0xff] %v8194
        %8203 = vst [vmem:[#allocation2 + $0x8] sm:$0xff] %v8195
        %8204 = vst [vmem:[#allocation2 + $0x10] sm:$0xff] %v8196
        %8205 = vst [vmem:[#allocation2 + $0x18] sm:$0xff] %v8197
        %8206 = vst [vmem:[#allocation2 + $0x20] sm:$0xff] %v8198
        %8207 = vst [vmem:[#allocation2 + $0x28] sm:$0xff] %v8199
        %8208 = vst [vmem:[#allocation2 + $0x30] sm:$0xff] %v8200
        %8209 = vst [vmem:[#allocation2 + $0x38] sm:$0xff] %v8201
        %p8210 = scmp.eq.s32.totalorder %s30, 12
        // Predicated region
        $region49: #{tpu_custom_call.1} parent=31 // pred_check
          %p8211 = pneg %p8210
        $region50: #{tpu_custom_call.1} parent=31 // pred_check_branch
          %8213 = sbr.rel (%p8211) target = $region52
        $region51: #{tpu_custom_call.1} parent=31 // pred_region
          %v8214 = vld [vmem:[#allocation2] sm:$0xff]
          %v8215 = vld [vmem:[#allocation2 + $0x8] sm:$0xff]
          %v8216 = vld [vmem:[#allocation2 + $0x10] sm:$0xff]
          %v8217 = vld [vmem:[#allocation2 + $0x18] sm:$0xff]
          %v8218 = vld [vmem:[#allocation2 + $0x20] sm:$0xff]
          %v8219 = vld [vmem:[#allocation2 + $0x28] sm:$0xff]
          %v8220 = vld [vmem:[#allocation2 + $0x30] sm:$0xff]
          %v8221 = vld [vmem:[#allocation2 + $0x38] sm:$0xff]
          %v8222 = vld [vmem:[%s263] sm:$0xff]
          %v8224 = vperm.slane %v8222, 0
          %v8225 = vperm.slane %v8222, 1
          %v8226 = vperm.slane %v8222, 2
          %v8227 = vperm.slane %v8222, 3
          %v8228 = vperm.slane %v8222, 4
          %v8229 = vperm.slane %v8222, 5
          %v8230 = vperm.slane %v8222, 6
          %v8231 = vperm.slane %v8222, 7
          %v8240 = vadd.f32 %v8214, %v8224
          %v8241 = vadd.f32 %v8215, %v8225
          %v8242 = vadd.f32 %v8216, %v8226
          %v8243 = vadd.f32 %v8217, %v8227
          %v8244 = vadd.f32 %v8218, %v8228
          %v8245 = vadd.f32 %v8219, %v8229
          %v8246 = vadd.f32 %v8220, %v8230
          %v8247 = vadd.f32 %v8221, %v8231
          %v8248 = vmax.f32 %v8240, 0.0
          %v8249 = vmax.f32 %v8241, 0.0
          %v8250 = vmax.f32 %v8242, 0.0
          %v8251 = vmax.f32 %v8243, 0.0
          %v8252 = vmax.f32 %v8244, 0.0
          %v8253 = vmax.f32 %v8245, 0.0
          %v8254 = vmax.f32 %v8246, 0.0
          %v8255 = vmax.f32 %v8247, 0.0
          %8256 = vst [vmem:[%s296] sm:$0xff] %v8248
          %8257 = vst [vmem:[%s296 + $0x8] sm:$0xff] %v8249
          %8258 = vst [vmem:[%s296 + $0x10] sm:$0xff] %v8250
          %8259 = vst [vmem:[%s296 + $0x18] sm:$0xff] %v8251
          %8260 = vst [vmem:[%s296 + $0x20] sm:$0xff] %v8252
          %8261 = vst [vmem:[%s296 + $0x28] sm:$0xff] %v8253
          %8262 = vst [vmem:[%s296 + $0x30] sm:$0xff] %v8254
          %8263 = vst [vmem:[%s296 + $0x38] sm:$0xff] %v8255
        $region52: #{tpu_custom_call.1} parent=31 // pred_fallthru
          _
        %s8264 = sand.u32 %s134, 1
        %s8265 = scalar_lea.sflag [#allocation5], %s8264
        %s8266 = sand.u32 %s134, 1
        %s8267 = smul.addr %s8266, 64
        %s8268 = scalar_lea.vmem [#allocation9], %s8267
        // Predicated region
        $region53: #{tpu_custom_call.1} parent=31 // pred_check
          %p8269 = pneg %p144
        $region54: #{tpu_custom_call.1} parent=31 // pred_check_branch
          %8271 = sbr.rel (%p8269) target = $region56
        $region55: #{tpu_custom_call.1} parent=31 // pred_region
          %s8272 = smul.u32 8, %s29
          %8274 = vsyncadd %s8265, 0
          %s8275 = smul.addr %s28, 32
          %s8276 = sadd.s32 %s8272, %s8275
          %s8277 = smul.addr %s8276, 8
          %s8278 = scalar_lea.hbm %s3, %s8277
          %s8280 = sshll.u32 %s8268, 4
          %s8281 = int_to_ptr.vmem [resolvable:$true] %s8280
          %s8282 = sshll.u32 %s8278, 4
          %s8283 = int_to_ptr.hbm [resolvable:$true] %s8282
          %8285 = dma.vmem_to_hbm [thread:$0]  %s8281, 1024, %s8283, %s8265
        $region56: #{tpu_custom_call.1} parent=31 // pred_fallthru
          _
      $region32: #{tpu_custom_call.1} parent=5 // pred_fallthru
        _
      %p8286 = scmp.le.s32.totalorder 2, %s18
      // Predicated region
      $region57: #{tpu_custom_call.1} parent=5 // pred_check
        %p8287 = pneg %p8286
      $region58: #{tpu_custom_call.1} parent=5 // pred_check_branch
        %8289 = sbr.rel (%p8287) target = $region60
      $region59: #{tpu_custom_call.1} parent=5 // pred_region
        %s8290 = ssub.s32 %s18, 2
        // Predicated region
        $region61: #{tpu_custom_call.1} parent=59 // pred_check
          %p8291 = pneg %p150
        $region62: #{tpu_custom_call.1} parent=59 // pred_check_branch
          %8293 = sbr.rel (%p8291) target = $region64
        $region63: #{tpu_custom_call.1} parent=59 // pred_region
          %s8294 = sand.u32 %s135, 1
          %s8295 = scalar_lea.sflag [#allocation5], %s8294
          %s8296 = sand.u32 %s135, 1
          %s8297 = smul.addr %s8296, 64
          %s8298 = scalar_lea.vmem [#allocation9], %s8297
          %8300 = dma.done %s8295, 1024
        $region64: #{tpu_custom_call.1} parent=59 // pred_fallthru
          _
      $region60: #{tpu_custom_call.1} parent=5 // pred_fallthru
        _
    $region6: #{tpu_custom_call.1} parent=1 // loop_footer
      %s22 = sadd.s32 1, %s18
    $region7: #{tpu_custom_call.1} parent=1 // loop_footer_branch
      %17 = sbr.rel target = $region3
    $region8: #{tpu_custom_call.1} parent=1 // loop_exit
      _
    %8301 = vsyncpa [#allocation4], 1
    %s8302 = scalar_lea.sflag [#allocation4], 1
    %8303 = vsyncpa %s8302, 1
    %8304 = vsyncpa [#allocation7], 1
    %s8305 = scalar_lea.sflag [#allocation7], 1
    %8306 = vsyncpa %s8305, 1
    %8307 = vsyncpa [#allocation5], 1
    %s8308 = scalar_lea.sflag [#allocation5], 1
    %8309 = vsyncpa %s8308, 1

</llo_original>
